<compile_context>
chip_gen: v6e
topology: v6e:2x2x1
jax: 0.10.0
libtpu: 0.0.40
codegen_flags: <defaults>
</compile_context>

<pallas_src>
import numpy as np
import jax
import jax.numpy as jnp
from jax.experimental import pallas as pl
from jax.experimental.pallas import tpu as pltpu

COMPUTE_DTYPE = jnp.bfloat16   # MXU input dtype (accumulation stays float32)


# ---------------------------------------------------------------------------
# Bilinear (align_corners=True) interpolation helpers -- static, numpy.
# ---------------------------------------------------------------------------
def _h_taps(out_size: int, in_size: int):
    """Per-output-row 2-tap (index0, index1, weight0, weight1), align_corners."""
    if out_size == 1:
        src = np.zeros((1,), np.float64)
    else:
        src = np.arange(out_size, dtype=np.float64) * (in_size - 1) / (out_size - 1)
    i0 = np.clip(np.floor(src).astype(np.int64), 0, in_size - 1)
    i1 = np.minimum(i0 + 1, in_size - 1)
    w1 = (src - i0).astype(np.float64)
    w0 = 1.0 - w1
    return i0, i1, w0, w1


def _bilinear_matrix(out_size: int, in_size: int) -> np.ndarray:
    """A (out,in) with y = A @ x == nn.UpsamplingBilinear2d along one axis."""
    i0, i1, w0, w1 = _h_taps(out_size, in_size)
    A = np.zeros((out_size, in_size), np.float32)
    np.add.at(A, (np.arange(out_size), i0), w0.astype(np.float32))
    np.add.at(A, (np.arange(out_size), i1), w1.astype(np.float32))
    return A


# ---------------------------------------------------------------------------
# The single fused FPN kernel (all 4 levels, one grid step per batch sample)
# ---------------------------------------------------------------------------
def _make_fpn_kernel(cout, sizes, compute_dtype):
    (H2, W2), (H3, W3), (H4, W4), (H5, W5) = sizes

    def lateral(x_ref, w_ref):
        # 1x1 conv: (Cout, Cin) @ (Cin, H*W), f32 accumulation.
        x = x_ref[0].astype(compute_dtype)          # in-kernel f32 -> bf16 cast
        return jnp.dot(w_ref[...], x, preferred_element_type=jnp.float32)

    def conv3x3(f, w3_ref, H, W):
        # 3x3 "same" conv on the flat (Cout, H*W) map: nine shifted lane
        # slices of a zero-padded flat map -> nine accumulating MXU GEMMs.
        HW = H * W
        P = W + 1                                    # one row (+1) of zero pad
        fb = f.astype(compute_dtype)
        zpad = jnp.zeros((cout, P), compute_dtype)
        fpad = jnp.concatenate([zpad, fb, zpad], axis=1)       # (Cout, HW+2P)
        col = jax.lax.broadcasted_iota(jnp.int32, (1, HW), 1) % W
        left_ok = col >= 1                           # hoisted out of tap loop
        right_ok = col <= W - 2
        acc = jnp.zeros((cout, HW), jnp.float32)
        for ti in range(3):                          # kernel row    (dh = ti-1)
            for tj in range(3):                      # kernel column (dw = tj-1)
                t = fpad[:, ti * W + tj: ti * W + tj + HW]
                if tj == 0:                          # dw=-1: mask row wrap
                    t = jnp.where(left_ok, t, jnp.zeros_like(t))
                elif tj == 2:                        # dw=+1: mask row wrap
                    t = jnp.where(right_ok, t, jnp.zeros_like(t))
                acc = acc + jnp.dot(w3_ref[ti * 3 + tj], t,
                                    preferred_element_type=jnp.float32)
        return acc                                   # (Cout, HW) f32

    def up_add(lat, fprev, awT_ref, hi, wi, ho, wo):
        # Separable bilinear upsample (align_corners=True) fused with the
        # residual add:  W-axis = per-row GEMM against (wi, wo) matrix,
        # H-axis = static 2-tap lerp in f32.  Replaces the dense kron GEMM.
        awT = awT_ref[...]                           # (wi, wo) bf16, loaded once
        fb = fprev.astype(compute_dtype)             # (Cout, hi*wi)
        rows = [jnp.dot(fb[:, r * wi:(r + 1) * wi], awT,
                        preferred_element_type=jnp.float32)
                for r in range(hi)]                  # each (Cout, wo) f32
        i0, i1, w0, w1 = _h_taps(ho, hi)             # static python taps
        blocks = []
        for r in range(ho):
            if float(w1[r]) == 0.0:
                blocks.append(rows[int(i0[r])])
            else:
                blocks.append(rows[int(i0[r])] * float(w0[r])
                              + rows[int(i1[r])] * float(w1[r]))
        up = jnp.concatenate(blocks, axis=1)         # (Cout, ho*wo) f32
        return lat + up

    def kernel(x2_ref, x3_ref, x4_ref, x5_ref,
               w12_ref, w13_ref, w14_ref, w15_ref,
               w32_ref, w33_ref, w34_ref, w35_ref,
               a54_ref, a43_ref, a32_ref,
               p2_ref, p3_ref, p4_ref, p5_ref):
        # ---- level 5 (coarsest): latent_5 and p5 = conv3x3(latent_5) -------
        lat5 = lateral(x5_ref, w15_ref)
        p5_ref[0] = conv3x3(lat5, w35_ref, H5, W5).astype(p5_ref.dtype)

        # ---- level 4: f4 = conv1x1(c4) + up(latent_5); p4 = conv3x3(f4) ----
        lat4 = lateral(x4_ref, w14_ref)
        f4 = up_add(lat4, lat5, a54_ref, H5, W5, H4, W4)
        p4_ref[0] = conv3x3(f4, w34_ref, H4, W4).astype(p4_ref.dtype)

        # ---- level 3 -------------------------------------------------------
        lat3 = lateral(x3_ref, w13_ref)
        f3 = up_add(lat3, f4, a43_ref, H4, W4, H3, W3)
        p3_ref[0] = conv3x3(f3, w33_ref, H3, W3).astype(p3_ref.dtype)

        # ---- level 2 (f2 is never written to HBM -- only p2 is needed) -----
        lat2 = lateral(x2_ref, w12_ref)
        f2 = up_add(lat2, f3, a32_ref, H3, W3, H2, W2)
        p2_ref[0] = conv3x3(f2, w32_ref, H2, W2).astype(p2_ref.dtype)

    return kernel


# ---------------------------------------------------------------------------
# Parameters (PyTorch OIHW layout) + kernel-ready conversion + forward
# ---------------------------------------------------------------------------
def init_fpn_params(key, c2, c3, c4, c5, inner=256):
    """Random weights in PyTorch Conv2d (OIHW) layout, bias=False."""
    names_shapes = [
        ("c2_to_f2", (inner, c2, 1, 1)), ("c3_to_f3", (inner, c3, 1, 1)),
        ("c4_to_f4", (inner, c4, 1, 1)), ("c5_to_f5", (inner, c5, 1, 1)),
        ("p2_out", (inner, inner, 3, 3)), ("p3_out", (inner, inner, 3, 3)),
        ("p4_out", (inner, inner, 3, 3)), ("p5_out", (inner, inner, 3, 3)),
    ]
    keys = jax.random.split(key, len(names_shapes))
    return {name: 0.05 * jax.random.normal(k, shape, jnp.float32)
            for (name, shape), k in zip(names_shapes, keys)}


def prepare_params(params):
    """Convert PyTorch OIHW weights to kernel-ready bf16 matrices (done once)."""
    def w1(w):                              # (Cout, Cin, 1, 1) -> (Cout, Cin)
        return w.reshape(w.shape[0], w.shape[1]).astype(COMPUTE_DTYPE)

    def w3(w):                              # (Cout, Cin, 3, 3) -> (9, Cout, Cin)
        co, ci = w.shape[0], w.shape[1]     # tap index k = kh*3 + kw
        return jnp.transpose(w, (2, 3, 0, 1)).reshape(9, co, ci).astype(COMPUTE_DTYPE)

    return {
        "c2_to_f2": w1(params["c2_to_f2"]), "c3_to_f3": w1(params["c3_to_f3"]),
        "c4_to_f4": w1(params["c4_to_f4"]), "c5_to_f5": w1(params["c5_to_f5"]),
        "p2_out": w3(params["p2_out"]), "p3_out": w3(params["p3_out"]),
        "p4_out": w3(params["p4_out"]), "p5_out": w3(params["p5_out"]),
    }


@jax.jit
def fpn_forward(kparams, c2, c3, c4, c5):
    """FPN forward pass.  Inputs/outputs are NCHW, matching the PyTorch module."""
    N = c2.shape[0]
    sizes = [tuple(x.shape[2:]) for x in (c2, c3, c4, c5)]
    (H2, W2), (H3, W3), (H4, W4), (H5, W5) = sizes
    cout = kparams["c2_to_f2"].shape[0]

    # Free reshape to (N, C, H*W); the f32 -> bf16 cast happens IN the kernel.
    xs = [c.reshape(N, c.shape[1], c.shape[2] * c.shape[3]) for c in (c2, c3, c4, c5)]
    w1s = [kparams[k] for k in ("c2_to_f2", "c3_to_f3", "c4_to_f4", "c5_to_f5")]
    w3s = [kparams[k] for k in ("p2_out", "p3_out", "p4_out", "p5_out")]
    # Tiny per-skip W-axis interpolation matrices Aw^T (Wi, Wo), bf16.
    a54 = jnp.asarray(_bilinear_matrix(W4, W5).T, COMPUTE_DTYPE)
    a43 = jnp.asarray(_bilinear_matrix(W3, W4).T, COMPUTE_DTYPE)
    a32 = jnp.asarray(_bilinear_matrix(W2, W3).T, COMPUTE_DTYPE)

    def xmap(n):
        return (n, 0, 0)

    def cmap2(n):
        return (0, 0)

    def cmap3(n):
        return (0, 0, 0)

    in_specs = (
        [pl.BlockSpec((1, x.shape[1], x.shape[2]), xmap) for x in xs] +
        [pl.BlockSpec(tuple(w.shape), cmap2) for w in w1s] +
        [pl.BlockSpec(tuple(w.shape), cmap3) for w in w3s] +
        [pl.BlockSpec(tuple(a.shape), cmap2) for a in (a54, a43, a32)]
    )
    out_shape = tuple(jax.ShapeDtypeStruct((N, cout, H * W), jnp.float32)
                      for (H, W) in sizes)
    out_specs = tuple(pl.BlockSpec((1, cout, H * W), xmap) for (H, W) in sizes)

    kern = _make_fpn_kernel(cout, sizes, COMPUTE_DTYPE)
    p2, p3, p4, p5 = pl.pallas_call(
        kern,
        out_shape=out_shape,
        grid=(N,),
        in_specs=in_specs,
        out_specs=out_specs,
        compiler_params=pltpu.CompilerParams(
            dimension_semantics=("parallel",),     # batch across TCs (v7x megacore)
            vmem_limit_bytes=32 * 1024 * 1024,
        ),
    )(*xs, *w1s, *w3s, a54, a43, a32)

    return [p2.reshape(N, cout, H2, W2), p3.reshape(N, cout, H3, W3),
            p4.reshape(N, cout, H4, W4), p5.reshape(N, cout, H5, W5)]


# ---------------------------------------------------------------------------
# Pure-JAX f32 reference (for a loose numerical self-check)
# ---------------------------------------------------------------------------
def fpn_reference(params, c2, c3, c4, c5):
    dn = ("NCHW", "OIHW", "NCHW")

    def conv(x, w, pad):
        return jax.lax.conv_general_dilated(x, w, (1, 1), pad, dimension_numbers=dn)

    def up(x, size):
        ho, wo = size
        hi, wi = x.shape[2:]
        Ah = jnp.asarray(_bilinear_matrix(ho, hi))
        Aw = jnp.asarray(_bilinear_matrix(wo, wi))
        return jnp.einsum("oh,nchw,pw->ncop", Ah, x, Aw)

    l2 = conv(c2, params["c2_to_f2"], "VALID")
    l3 = conv(c3, params["c3_to_f3"], "VALID")
    l4 = conv(c4, params["c4_to_f4"], "VALID")
    l5 = conv(c5, params["c5_to_f5"], "VALID")
    f4 = l4 + up(l5, l4.shape[2:])
    f3 = l3 + up(f4, l3.shape[2:])
    f2 = l2 + up(f3, l2.shape[2:])
    pad = ((1, 1), (1, 1))
    return [conv(f2, params["p2_out"], pad), conv(f3, params["p3_out"], pad),
            conv(f4, params["p4_out"], pad), conv(l5, params["p5_out"], pad)]


# ---------------------------------------------------------------------------
if __name__ == "__main__":
    key = jax.random.PRNGKey(0)
    kp, k2, k3, k4, k5 = jax.random.split(key, 5)

    # Small FPN-consistent shapes (strides 4/8/16/32 of a 128-px image).
    N = 2
    C2, C3, C4, C5 = 8, 16, 32, 64
    INNER = 32
    c2 = jax.random.normal(k2, (N, C2, 32, 32), jnp.float32)
    c3 = jax.random.normal(k3, (N, C3, 16, 16), jnp.float32)
    c4 = jax.random.normal(k4, (N, C4, 8, 8), jnp.float32)
    c5 = jax.random.normal(k5, (N, C5, 4, 4), jnp.float32)

    params = init_fpn_params(kp, C2, C3, C4, C5, inner=INNER)
    kparams = prepare_params(params)

    outs = jax.block_until_ready(fpn_forward(kparams, c2, c3, c4, c5))

    expected = [(N, INNER, 32, 32), (N, INNER, 16, 16),
                (N, INNER, 8, 8), (N, INNER, 4, 4)]
    assert [tuple(o.shape) for o in outs] == expected, [tuple(o.shape) for o in outs]
    assert all(bool(jnp.all(jnp.isfinite(o))) for o in outs)

    # Loose numerical check vs. f32 reference (bf16 MXU inputs -> ~1% expected).
    refs = jax.block_until_ready(fpn_reference(params, c2, c3, c4, c5))
    for o, r in zip(outs, refs):
        err = float(jnp.max(jnp.abs(o - r)))
        scale = float(jnp.max(jnp.abs(r))) + 1e-6
        assert err <= 0.05 * scale + 1e-3, (err, scale)

    print("KERNEL_OK")
</pallas_src>

<mosaic_0001>
module attributes {stable_mosaic.version = 11 : i64} {
  func.func @kernel(%arg0: i32, %arg1: memref<1x8x1024xf32, #tpu.memory_space<vmem>>, %arg2: memref<1x16x256xf32, #tpu.memory_space<vmem>>, %arg3: memref<1x32x64xf32, #tpu.memory_space<vmem>>, %arg4: memref<1x64x16xf32, #tpu.memory_space<vmem>>, %arg5: memref<32x8xbf16, #tpu.memory_space<vmem>>, %arg6: memref<32x16xbf16, #tpu.memory_space<vmem>>, %arg7: memref<32x32xbf16, #tpu.memory_space<vmem>>, %arg8: memref<32x64xbf16, #tpu.memory_space<vmem>>, %arg9: memref<9x32x32xbf16, #tpu.memory_space<vmem>>, %arg10: memref<9x32x32xbf16, #tpu.memory_space<vmem>>, %arg11: memref<9x32x32xbf16, #tpu.memory_space<vmem>>, %arg12: memref<9x32x32xbf16, #tpu.memory_space<vmem>>, %arg13: memref<4x8xbf16, #tpu.memory_space<vmem>>, %arg14: memref<8x16xbf16, #tpu.memory_space<vmem>>, %arg15: memref<16x32xbf16, #tpu.memory_space<vmem>>, %arg16: memref<1x32x1024xf32, #tpu.memory_space<vmem>>, %arg17: memref<1x32x256xf32, #tpu.memory_space<vmem>>, %arg18: memref<1x32x64xf32, #tpu.memory_space<vmem>>, %arg19: memref<1x32x16xf32, #tpu.memory_space<vmem>>) attributes {dimension_semantics = [#tpu.dimension_semantics<parallel>], iteration_bounds = array<i64: 2>, scalar_prefetch = 0 : i64, scratch_operands = 0 : i64, tpu.core_type = #tpu.core_type<tc>, window_params = [{transform_indices = @transform_0, window_bounds = array<i64: 1, 8, 1024>}, {transform_indices = @transform_1, window_bounds = array<i64: 1, 16, 256>}, {transform_indices = @transform_2, window_bounds = array<i64: 1, 32, 64>}, {transform_indices = @transform_3, window_bounds = array<i64: 1, 64, 16>}, {pipeline_mode = #tpu.pipeline_mode<synchronous>, transform_indices = @transform_4, window_bounds = array<i64: 32, 8>}, {pipeline_mode = #tpu.pipeline_mode<synchronous>, transform_indices = @transform_5, window_bounds = array<i64: 32, 16>}, {pipeline_mode = #tpu.pipeline_mode<synchronous>, transform_indices = @transform_6, window_bounds = array<i64: 32, 32>}, {pipeline_mode = #tpu.pipeline_mode<synchronous>, transform_indices = @transform_7, window_bounds = array<i64: 32, 64>}, {pipeline_mode = #tpu.pipeline_mode<synchronous>, transform_indices = @transform_8, window_bounds = array<i64: 9, 32, 32>}, {pipeline_mode = #tpu.pipeline_mode<synchronous>, transform_indices = @transform_9, window_bounds = array<i64: 9, 32, 32>}, {pipeline_mode = #tpu.pipeline_mode<synchronous>, transform_indices = @transform_10, window_bounds = array<i64: 9, 32, 32>}, {pipeline_mode = #tpu.pipeline_mode<synchronous>, transform_indices = @transform_11, window_bounds = array<i64: 9, 32, 32>}, {pipeline_mode = #tpu.pipeline_mode<synchronous>, transform_indices = @transform_12, window_bounds = array<i64: 4, 8>}, {pipeline_mode = #tpu.pipeline_mode<synchronous>, transform_indices = @transform_13, window_bounds = array<i64: 8, 16>}, {pipeline_mode = #tpu.pipeline_mode<synchronous>, transform_indices = @transform_14, window_bounds = array<i64: 16, 32>}, {transform_indices = @transform_15, window_bounds = array<i64: 1, 32, 1024>}, {transform_indices = @transform_16, window_bounds = array<i64: 1, 32, 256>}, {transform_indices = @transform_17, window_bounds = array<i64: 1, 32, 64>}, {transform_indices = @transform_18, window_bounds = array<i64: 1, 32, 16>}]} {
    %c0 = arith.constant 0 : index
    %c0_0 = arith.constant 0 : index
    %c0_1 = arith.constant 0 : index
    %0 = vector.load %arg4[%c0, %c0_0, %c0_1] : memref<1x64x16xf32, #tpu.memory_space<vmem>>, vector<1x64x16xf32>
    %1 = vector.shape_cast %0 : vector<1x64x16xf32> to vector<64x16xf32>
    %2 = arith.truncf %1 : vector<64x16xf32> to vector<64x16xbf16>
    %c0_2 = arith.constant 0 : index
    %c0_3 = arith.constant 0 : index
    %3 = vector.load %arg8[%c0_2, %c0_3] : memref<32x64xbf16, #tpu.memory_space<vmem>>, vector<32x64xbf16>
    %cst = arith.constant dense<0.000000e+00> : vector<32x16xf32>
    %4 = tpu.matmul %3, %2, %cst {dimension_numbers = #tpu.dot_dimension_numbers<[1], [0], [0], [1], [0, 0, 1, 1], [], []>} : vector<32x64xbf16>, vector<64x16xbf16>, vector<32x16xf32> -> vector<32x16xf32>
    %5 = arith.truncf %4 : vector<32x16xf32> to vector<32x16xbf16>
    %cst_4 = arith.constant 0.000000e+00 : bf16
    %6 = vector.broadcast %cst_4 : bf16 to vector<32x5xbf16>
    %7 = tpu.concatenate %6, %5, %6 in 1 : vector<32x5xbf16>, vector<32x16xbf16>, vector<32x5xbf16> -> vector<32x26xbf16>
    %8 = tpu.iota {dimensions = array<i32: 1>} : vector<1x16xi32>
    %c4_i32 = arith.constant 4 : i32
    %c0_i32 = arith.constant 0 : i32
    %9 = arith.cmpi eq, %c4_i32, %c0_i32 : i32
    %c1_i32 = arith.constant 1 : i32
    %10 = arith.select %9, %c1_i32, %c4_i32 : i32
    %11 = vector.broadcast %10 : i32 to vector<1x16xi32>
    %12 = arith.remsi %8, %11 : vector<1x16xi32>
    %c0_i32_5 = arith.constant 0 : i32
    %13 = vector.broadcast %c0_i32_5 : i32 to vector<1x16xi32>
    %14 = arith.cmpi ne, %12, %13 : vector<1x16xi32>
    %c0_i32_6 = arith.constant 0 : i32
    %15 = vector.broadcast %c0_i32_6 : i32 to vector<1x16xi32>
    %16 = arith.cmpi slt, %12, %15 : vector<1x16xi32>
    %c0_i32_7 = arith.constant 0 : i32
    %17 = arith.cmpi slt, %10, %c0_i32_7 : i32
    %18 = vector.broadcast %17 : i1 to vector<1x16xi1>
    %19 = vector.broadcast %18 : vector<1x16xi1> to vector<1x16xi1>
    %20 = arith.xori %16, %19 : vector<1x16xi1>
    %21 = arith.andi %20, %14 : vector<1x16xi1>
    %22 = vector.broadcast %10 : i32 to vector<1x16xi32>
    %23 = arith.addi %12, %22 : vector<1x16xi32>
    %24 = arith.select %21, %23, %12 : vector<1x16xi1>, vector<1x16xi32>
    %c1_i32_8 = arith.constant 1 : i32
    %25 = vector.broadcast %c1_i32_8 : i32 to vector<1x16xi32>
    %26 = arith.cmpi sge, %24, %25 : vector<1x16xi32>
    %c2_i32 = arith.constant 2 : i32
    %27 = vector.broadcast %c2_i32 : i32 to vector<1x16xi32>
    %28 = arith.cmpi sle, %24, %27 : vector<1x16xi32>
    %cst_9 = arith.constant 0.000000e+00 : f32
    %29 = vector.broadcast %cst_9 : f32 to vector<32x16xf32>
    %30 = vector.extract_strided_slice %7 {offsets = [0, 0], sizes = [32, 16], strides = [1, 1]} : vector<32x26xbf16> to vector<32x16xbf16>
    %cst_10 = arith.constant 0.000000e+00 : bf16
    %31 = vector.broadcast %cst_10 : bf16 to vector<32x16xbf16>
    %32 = vector.shape_cast %26 : vector<1x16xi1> to vector<1x16xi1>
    %33 = vector.broadcast %32 : vector<1x16xi1> to vector<32x16xi1>
    %34 = arith.select %33, %30, %31 : vector<32x16xi1>, vector<32x16xbf16>
    %c0_11 = arith.constant 0 : index
    %c0_12 = arith.constant 0 : index
    %c0_13 = arith.constant 0 : index
    %35 = vector.load %arg12[%c0_11, %c0_12, %c0_13] : memref<9x32x32xbf16, #tpu.memory_space<vmem>>, vector<1x32x32xbf16>
    %36 = vector.shape_cast %35 : vector<1x32x32xbf16> to vector<32x32xbf16>
    %cst_14 = arith.constant dense<0.000000e+00> : vector<32x16xf32>
    %37 = tpu.matmul %36, %34, %cst_14 {dimension_numbers = #tpu.dot_dimension_numbers<[1], [0], [0], [1], [0, 0, 1, 1], [], []>} : vector<32x32xbf16>, vector<32x16xbf16>, vector<32x16xf32> -> vector<32x16xf32>
    %38 = arith.addf %29, %37 : vector<32x16xf32>
    %39 = vector.extract_strided_slice %7 {offsets = [0, 1], sizes = [32, 16], strides = [1, 1]} : vector<32x26xbf16> to vector<32x16xbf16>
    %c1 = arith.constant 1 : index
    %c0_15 = arith.constant 0 : index
    %c0_16 = arith.constant 0 : index
    %40 = vector.load %arg12[%c1, %c0_15, %c0_16] : memref<9x32x32xbf16, #tpu.memory_space<vmem>>, vector<1x32x32xbf16>
    %41 = vector.shape_cast %40 : vector<1x32x32xbf16> to vector<32x32xbf16>
    %cst_17 = arith.constant dense<0.000000e+00> : vector<32x16xf32>
    %42 = tpu.matmul %41, %39, %cst_17 {dimension_numbers = #tpu.dot_dimension_numbers<[1], [0], [0], [1], [0, 0, 1, 1], [], []>} : vector<32x32xbf16>, vector<32x16xbf16>, vector<32x16xf32> -> vector<32x16xf32>
    %43 = arith.addf %38, %42 : vector<32x16xf32>
    %44 = vector.extract_strided_slice %7 {offsets = [0, 2], sizes = [32, 16], strides = [1, 1]} : vector<32x26xbf16> to vector<32x16xbf16>
    %cst_18 = arith.constant 0.000000e+00 : bf16
    %45 = vector.broadcast %cst_18 : bf16 to vector<32x16xbf16>
    %46 = vector.shape_cast %28 : vector<1x16xi1> to vector<1x16xi1>
    %47 = vector.broadcast %46 : vector<1x16xi1> to vector<32x16xi1>
    %48 = arith.select %47, %44, %45 : vector<32x16xi1>, vector<32x16xbf16>
    %c2 = arith.constant 2 : index
    %c0_19 = arith.constant 0 : index
    %c0_20 = arith.constant 0 : index
    %49 = vector.load %arg12[%c2, %c0_19, %c0_20] : memref<9x32x32xbf16, #tpu.memory_space<vmem>>, vector<1x32x32xbf16>
    %50 = vector.shape_cast %49 : vector<1x32x32xbf16> to vector<32x32xbf16>
    %cst_21 = arith.constant dense<0.000000e+00> : vector<32x16xf32>
    %51 = tpu.matmul %50, %48, %cst_21 {dimension_numbers = #tpu.dot_dimension_numbers<[1], [0], [0], [1], [0, 0, 1, 1], [], []>} : vector<32x32xbf16>, vector<32x16xbf16>, vector<32x16xf32> -> vector<32x16xf32>
    %52 = arith.addf %43, %51 : vector<32x16xf32>
    %53 = vector.extract_strided_slice %7 {offsets = [0, 4], sizes = [32, 16], strides = [1, 1]} : vector<32x26xbf16> to vector<32x16xbf16>
    %cst_22 = arith.constant 0.000000e+00 : bf16
    %54 = vector.broadcast %cst_22 : bf16 to vector<32x16xbf16>
    %55 = vector.shape_cast %26 : vector<1x16xi1> to vector<1x16xi1>
    %56 = vector.broadcast %55 : vector<1x16xi1> to vector<32x16xi1>
    %57 = arith.select %56, %53, %54 : vector<32x16xi1>, vector<32x16xbf16>
    %c3 = arith.constant 3 : index
    %c0_23 = arith.constant 0 : index
    %c0_24 = arith.constant 0 : index
    %58 = vector.load %arg12[%c3, %c0_23, %c0_24] : memref<9x32x32xbf16, #tpu.memory_space<vmem>>, vector<1x32x32xbf16>
    %59 = vector.shape_cast %58 : vector<1x32x32xbf16> to vector<32x32xbf16>
    %cst_25 = arith.constant dense<0.000000e+00> : vector<32x16xf32>
    %60 = tpu.matmul %59, %57, %cst_25 {dimension_numbers = #tpu.dot_dimension_numbers<[1], [0], [0], [1], [0, 0, 1, 1], [], []>} : vector<32x32xbf16>, vector<32x16xbf16>, vector<32x16xf32> -> vector<32x16xf32>
    %61 = arith.addf %52, %60 : vector<32x16xf32>
    %62 = vector.extract_strided_slice %7 {offsets = [0, 5], sizes = [32, 16], strides = [1, 1]} : vector<32x26xbf16> to vector<32x16xbf16>
    %c4 = arith.constant 4 : index
    %c0_26 = arith.constant 0 : index
    %c0_27 = arith.constant 0 : index
    %63 = vector.load %arg12[%c4, %c0_26, %c0_27] : memref<9x32x32xbf16, #tpu.memory_space<vmem>>, vector<1x32x32xbf16>
    %64 = vector.shape_cast %63 : vector<1x32x32xbf16> to vector<32x32xbf16>
    %cst_28 = arith.constant dense<0.000000e+00> : vector<32x16xf32>
    %65 = tpu.matmul %64, %62, %cst_28 {dimension_numbers = #tpu.dot_dimension_numbers<[1], [0], [0], [1], [0, 0, 1, 1], [], []>} : vector<32x32xbf16>, vector<32x16xbf16>, vector<32x16xf32> -> vector<32x16xf32>
    %66 = arith.addf %61, %65 : vector<32x16xf32>
    %67 = vector.extract_strided_slice %7 {offsets = [0, 6], sizes = [32, 16], strides = [1, 1]} : vector<32x26xbf16> to vector<32x16xbf16>
    %cst_29 = arith.constant 0.000000e+00 : bf16
    %68 = vector.broadcast %cst_29 : bf16 to vector<32x16xbf16>
    %69 = vector.shape_cast %28 : vector<1x16xi1> to vector<1x16xi1>
    %70 = vector.broadcast %69 : vector<1x16xi1> to vector<32x16xi1>
    %71 = arith.select %70, %67, %68 : vector<32x16xi1>, vector<32x16xbf16>
    %c5 = arith.constant 5 : index
    %c0_30 = arith.constant 0 : index
    %c0_31 = arith.constant 0 : index
    %72 = vector.load %arg12[%c5, %c0_30, %c0_31] : memref<9x32x32xbf16, #tpu.memory_space<vmem>>, vector<1x32x32xbf16>
    %73 = vector.shape_cast %72 : vector<1x32x32xbf16> to vector<32x32xbf16>
    %cst_32 = arith.constant dense<0.000000e+00> : vector<32x16xf32>
    %74 = tpu.matmul %73, %71, %cst_32 {dimension_numbers = #tpu.dot_dimension_numbers<[1], [0], [0], [1], [0, 0, 1, 1], [], []>} : vector<32x32xbf16>, vector<32x16xbf16>, vector<32x16xf32> -> vector<32x16xf32>
    %75 = arith.addf %66, %74 : vector<32x16xf32>
    %76 = vector.extract_strided_slice %7 {offsets = [0, 8], sizes = [32, 16], strides = [1, 1]} : vector<32x26xbf16> to vector<32x16xbf16>
    %cst_33 = arith.constant 0.000000e+00 : bf16
    %77 = vector.broadcast %cst_33 : bf16 to vector<32x16xbf16>
    %78 = vector.shape_cast %26 : vector<1x16xi1> to vector<1x16xi1>
    %79 = vector.broadcast %78 : vector<1x16xi1> to vector<32x16xi1>
    %80 = arith.select %79, %76, %77 : vector<32x16xi1>, vector<32x16xbf16>
    %c6 = arith.constant 6 : index
    %c0_34 = arith.constant 0 : index
    %c0_35 = arith.constant 0 : index
    %81 = vector.load %arg12[%c6, %c0_34, %c0_35] : memref<9x32x32xbf16, #tpu.memory_space<vmem>>, vector<1x32x32xbf16>
    %82 = vector.shape_cast %81 : vector<1x32x32xbf16> to vector<32x32xbf16>
    %cst_36 = arith.constant dense<0.000000e+00> : vector<32x16xf32>
    %83 = tpu.matmul %82, %80, %cst_36 {dimension_numbers = #tpu.dot_dimension_numbers<[1], [0], [0], [1], [0, 0, 1, 1], [], []>} : vector<32x32xbf16>, vector<32x16xbf16>, vector<32x16xf32> -> vector<32x16xf32>
    %84 = arith.addf %75, %83 : vector<32x16xf32>
    %85 = vector.extract_strided_slice %7 {offsets = [0, 9], sizes = [32, 16], strides = [1, 1]} : vector<32x26xbf16> to vector<32x16xbf16>
    %c7 = arith.constant 7 : index
    %c0_37 = arith.constant 0 : index
    %c0_38 = arith.constant 0 : index
    %86 = vector.load %arg12[%c7, %c0_37, %c0_38] : memref<9x32x32xbf16, #tpu.memory_space<vmem>>, vector<1x32x32xbf16>
    %87 = vector.shape_cast %86 : vector<1x32x32xbf16> to vector<32x32xbf16>
    %cst_39 = arith.constant dense<0.000000e+00> : vector<32x16xf32>
    %88 = tpu.matmul %87, %85, %cst_39 {dimension_numbers = #tpu.dot_dimension_numbers<[1], [0], [0], [1], [0, 0, 1, 1], [], []>} : vector<32x32xbf16>, vector<32x16xbf16>, vector<32x16xf32> -> vector<32x16xf32>
    %89 = arith.addf %84, %88 : vector<32x16xf32>
    %90 = vector.extract_strided_slice %7 {offsets = [0, 10], sizes = [32, 16], strides = [1, 1]} : vector<32x26xbf16> to vector<32x16xbf16>
    %cst_40 = arith.constant 0.000000e+00 : bf16
    %91 = vector.broadcast %cst_40 : bf16 to vector<32x16xbf16>
    %92 = vector.shape_cast %28 : vector<1x16xi1> to vector<1x16xi1>
    %93 = vector.broadcast %92 : vector<1x16xi1> to vector<32x16xi1>
    %94 = arith.select %93, %90, %91 : vector<32x16xi1>, vector<32x16xbf16>
    %c8 = arith.constant 8 : index
    %c0_41 = arith.constant 0 : index
    %c0_42 = arith.constant 0 : index
    %95 = vector.load %arg12[%c8, %c0_41, %c0_42] : memref<9x32x32xbf16, #tpu.memory_space<vmem>>, vector<1x32x32xbf16>
    %96 = vector.shape_cast %95 : vector<1x32x32xbf16> to vector<32x32xbf16>
    %cst_43 = arith.constant dense<0.000000e+00> : vector<32x16xf32>
    %97 = tpu.matmul %96, %94, %cst_43 {dimension_numbers = #tpu.dot_dimension_numbers<[1], [0], [0], [1], [0, 0, 1, 1], [], []>} : vector<32x32xbf16>, vector<32x16xbf16>, vector<32x16xf32> -> vector<32x16xf32>
    %98 = arith.addf %89, %97 : vector<32x16xf32>
    %c0_44 = arith.constant 0 : index
    %c0_45 = arith.constant 0 : index
    %c0_46 = arith.constant 0 : index
    %99 = vector.load %arg19[%c0_44, %c0_45, %c0_46] : memref<1x32x16xf32, #tpu.memory_space<vmem>>, vector<1x32x16xf32>
    %100 = vector.shape_cast %99 : vector<1x32x16xf32> to vector<32x16xf32>
    %101 = vector.shape_cast %98 : vector<32x16xf32> to vector<1x32x16xf32>
    tpu.vector_store %arg19[%c0_44, %c0_45, %c0_46], %101 {strides = array<i32>} : memref<1x32x16xf32, #tpu.memory_space<vmem>>, vector<1x32x16xf32>,
    %c0_47 = arith.constant 0 : index
    %c0_48 = arith.constant 0 : index
    %c0_49 = arith.constant 0 : index
    %102 = vector.load %arg3[%c0_47, %c0_48, %c0_49] : memref<1x32x64xf32, #tpu.memory_space<vmem>>, vector<1x32x64xf32>
    %103 = vector.shape_cast %102 : vector<1x32x64xf32> to vector<32x64xf32>
    %104 = arith.truncf %103 : vector<32x64xf32> to vector<32x64xbf16>
    %c0_50 = arith.constant 0 : index
    %c0_51 = arith.constant 0 : index
    %105 = vector.load %arg7[%c0_50, %c0_51] : memref<32x32xbf16, #tpu.memory_space<vmem>>, vector<32x32xbf16>
    %cst_52 = arith.constant dense<0.000000e+00> : vector<32x64xf32>
    %106 = tpu.matmul %105, %104, %cst_52 {dimension_numbers = #tpu.dot_dimension_numbers<[1], [0], [0], [1], [0, 0, 1, 1], [], []>} : vector<32x32xbf16>, vector<32x64xbf16>, vector<32x64xf32> -> vector<32x64xf32>
    %c0_53 = arith.constant 0 : index
    %c0_54 = arith.constant 0 : index
    %107 = vector.load %arg13[%c0_53, %c0_54] : memref<4x8xbf16, #tpu.memory_space<vmem>>, vector<4x8xbf16>
    %108 = arith.truncf %4 : vector<32x16xf32> to vector<32x16xbf16>
    %109 = vector.extract_strided_slice %108 {offsets = [0, 0], sizes = [32, 4], strides = [1, 1]} : vector<32x16xbf16> to vector<32x4xbf16>
    %cst_55 = arith.constant dense<0.000000e+00> : vector<32x8xf32>
    %110 = tpu.matmul %109, %107, %cst_55 {dimension_numbers = #tpu.dot_dimension_numbers<[1], [0], [0], [1], [0, 0, 1, 1], [], []>} : vector<32x4xbf16>, vector<4x8xbf16>, vector<32x8xf32> -> vector<32x8xf32>
    %111 = vector.extract_strided_slice %108 {offsets = [0, 4], sizes = [32, 4], strides = [1, 1]} : vector<32x16xbf16> to vector<32x4xbf16>
    %cst_56 = arith.constant dense<0.000000e+00> : vector<32x8xf32>
    %112 = tpu.matmul %111, %107, %cst_56 {dimension_numbers = #tpu.dot_dimension_numbers<[1], [0], [0], [1], [0, 0, 1, 1], [], []>} : vector<32x4xbf16>, vector<4x8xbf16>, vector<32x8xf32> -> vector<32x8xf32>
    %113 = vector.extract_strided_slice %108 {offsets = [0, 8], sizes = [32, 4], strides = [1, 1]} : vector<32x16xbf16> to vector<32x4xbf16>
    %cst_57 = arith.constant dense<0.000000e+00> : vector<32x8xf32>
    %114 = tpu.matmul %113, %107, %cst_57 {dimension_numbers = #tpu.dot_dimension_numbers<[1], [0], [0], [1], [0, 0, 1, 1], [], []>} : vector<32x4xbf16>, vector<4x8xbf16>, vector<32x8xf32> -> vector<32x8xf32>
    %115 = vector.extract_strided_slice %108 {offsets = [0, 12], sizes = [32, 4], strides = [1, 1]} : vector<32x16xbf16> to vector<32x4xbf16>
    %cst_58 = arith.constant dense<0.000000e+00> : vector<32x8xf32>
    %116 = tpu.matmul %115, %107, %cst_58 {dimension_numbers = #tpu.dot_dimension_numbers<[1], [0], [0], [1], [0, 0, 1, 1], [], []>} : vector<32x4xbf16>, vector<4x8xbf16>, vector<32x8xf32> -> vector<32x8xf32>
    %cst_59 = arith.constant 0.571428597 : f32
    %117 = vector.broadcast %cst_59 : f32 to vector<32x8xf32>
    %118 = arith.mulf %110, %117 : vector<32x8xf32>
    %cst_60 = arith.constant 0.428571433 : f32
    %119 = vector.broadcast %cst_60 : f32 to vector<32x8xf32>
    %120 = arith.mulf %112, %119 : vector<32x8xf32>
    %121 = arith.addf %118, %120 : vector<32x8xf32>
    %cst_61 = arith.constant 0.142857149 : f32
    %122 = vector.broadcast %cst_61 : f32 to vector<32x8xf32>
    %123 = arith.mulf %110, %122 : vector<32x8xf32>
    %cst_62 = arith.constant 0.857142865 : f32
    %124 = vector.broadcast %cst_62 : f32 to vector<32x8xf32>
    %125 = arith.mulf %112, %124 : vector<32x8xf32>
    %126 = arith.addf %123, %125 : vector<32x8xf32>
    %cst_63 = arith.constant 0.714285731 : f32
    %127 = vector.broadcast %cst_63 : f32 to vector<32x8xf32>
    %128 = arith.mulf %112, %127 : vector<32x8xf32>
    %cst_64 = arith.constant 0.285714298 : f32
    %129 = vector.broadcast %cst_64 : f32 to vector<32x8xf32>
    %130 = arith.mulf %114, %129 : vector<32x8xf32>
    %131 = arith.addf %128, %130 : vector<32x8xf32>
    %cst_65 = arith.constant 0.285714298 : f32
    %132 = vector.broadcast %cst_65 : f32 to vector<32x8xf32>
    %133 = arith.mulf %112, %132 : vector<32x8xf32>
    %cst_66 = arith.constant 0.714285731 : f32
    %134 = vector.broadcast %cst_66 : f32 to vector<32x8xf32>
    %135 = arith.mulf %114, %134 : vector<32x8xf32>
    %136 = arith.addf %133, %135 : vector<32x8xf32>
    %cst_67 = arith.constant 0.857142865 : f32
    %137 = vector.broadcast %cst_67 : f32 to vector<32x8xf32>
    %138 = arith.mulf %114, %137 : vector<32x8xf32>
    %cst_68 = arith.constant 0.142857149 : f32
    %139 = vector.broadcast %cst_68 : f32 to vector<32x8xf32>
    %140 = arith.mulf %116, %139 : vector<32x8xf32>
    %141 = arith.addf %138, %140 : vector<32x8xf32>
    %cst_69 = arith.constant 0.428571433 : f32
    %142 = vector.broadcast %cst_69 : f32 to vector<32x8xf32>
    %143 = arith.mulf %114, %142 : vector<32x8xf32>
    %cst_70 = arith.constant 0.571428597 : f32
    %144 = vector.broadcast %cst_70 : f32 to vector<32x8xf32>
    %145 = arith.mulf %116, %144 : vector<32x8xf32>
    %146 = arith.addf %143, %145 : vector<32x8xf32>
    %147 = tpu.concatenate %110, %121, %126, %131, %136, %141, %146, %116 in 1 : vector<32x8xf32>, vector<32x8xf32>, vector<32x8xf32>, vector<32x8xf32>, vector<32x8xf32>, vector<32x8xf32>, vector<32x8xf32>, vector<32x8xf32> -> vector<32x64xf32>
    %148 = arith.addf %106, %147 : vector<32x64xf32>
    %149 = arith.truncf %148 : vector<32x64xf32> to vector<32x64xbf16>
    %cst_71 = arith.constant 0.000000e+00 : bf16
    %150 = vector.broadcast %cst_71 : bf16 to vector<32x9xbf16>
    %151 = tpu.concatenate %150, %149, %150 in 1 : vector<32x9xbf16>, vector<32x64xbf16>, vector<32x9xbf16> -> vector<32x82xbf16>
    %152 = tpu.iota {dimensions = array<i32: 1>} : vector<1x64xi32>
    %c8_i32 = arith.constant 8 : i32
    %c0_i32_72 = arith.constant 0 : i32
    %153 = arith.cmpi eq, %c8_i32, %c0_i32_72 : i32
    %c1_i32_73 = arith.constant 1 : i32
    %154 = arith.select %153, %c1_i32_73, %c8_i32 : i32
    %155 = vector.broadcast %154 : i32 to vector<1x64xi32>
    %156 = arith.remsi %152, %155 : vector<1x64xi32>
    %c0_i32_74 = arith.constant 0 : i32
    %157 = vector.broadcast %c0_i32_74 : i32 to vector<1x64xi32>
    %158 = arith.cmpi ne, %156, %157 : vector<1x64xi32>
    %c0_i32_75 = arith.constant 0 : i32
    %159 = vector.broadcast %c0_i32_75 : i32 to vector<1x64xi32>
    %160 = arith.cmpi slt, %156, %159 : vector<1x64xi32>
    %c0_i32_76 = arith.constant 0 : i32
    %161 = arith.cmpi slt, %154, %c0_i32_76 : i32
    %162 = vector.broadcast %161 : i1 to vector<1x64xi1>
    %163 = vector.broadcast %162 : vector<1x64xi1> to vector<1x64xi1>
    %164 = arith.xori %160, %163 : vector<1x64xi1>
    %165 = arith.andi %164, %158 : vector<1x64xi1>
    %166 = vector.broadcast %154 : i32 to vector<1x64xi32>
    %167 = arith.addi %156, %166 : vector<1x64xi32>
    %168 = arith.select %165, %167, %156 : vector<1x64xi1>, vector<1x64xi32>
    %c1_i32_77 = arith.constant 1 : i32
    %169 = vector.broadcast %c1_i32_77 : i32 to vector<1x64xi32>
    %170 = arith.cmpi sge, %168, %169 : vector<1x64xi32>
    %c6_i32 = arith.constant 6 : i32
    %171 = vector.broadcast %c6_i32 : i32 to vector<1x64xi32>
    %172 = arith.cmpi sle, %168, %171 : vector<1x64xi32>
    %cst_78 = arith.constant 0.000000e+00 : f32
    %173 = vector.broadcast %cst_78 : f32 to vector<32x64xf32>
    %174 = vector.extract_strided_slice %151 {offsets = [0, 0], sizes = [32, 64], strides = [1, 1]} : vector<32x82xbf16> to vector<32x64xbf16>
    %cst_79 = arith.constant 0.000000e+00 : bf16
    %175 = vector.broadcast %cst_79 : bf16 to vector<32x64xbf16>
    %176 = vector.shape_cast %170 : vector<1x64xi1> to vector<1x64xi1>
    %177 = vector.broadcast %176 : vector<1x64xi1> to vector<32x64xi1>
    %178 = arith.select %177, %174, %175 : vector<32x64xi1>, vector<32x64xbf16>
    %c0_80 = arith.constant 0 : index
    %c0_81 = arith.constant 0 : index
    %c0_82 = arith.constant 0 : index
    %179 = vector.load %arg11[%c0_80, %c0_81, %c0_82] : memref<9x32x32xbf16, #tpu.memory_space<vmem>>, vector<1x32x32xbf16>
    %180 = vector.shape_cast %179 : vector<1x32x32xbf16> to vector<32x32xbf16>
    %cst_83 = arith.constant dense<0.000000e+00> : vector<32x64xf32>
    %181 = tpu.matmul %180, %178, %cst_83 {dimension_numbers = #tpu.dot_dimension_numbers<[1], [0], [0], [1], [0, 0, 1, 1], [], []>} : vector<32x32xbf16>, vector<32x64xbf16>, vector<32x64xf32> -> vector<32x64xf32>
    %182 = arith.addf %173, %181 : vector<32x64xf32>
    %183 = vector.extract_strided_slice %151 {offsets = [0, 1], sizes = [32, 64], strides = [1, 1]} : vector<32x82xbf16> to vector<32x64xbf16>
    %c1_84 = arith.constant 1 : index
    %c0_85 = arith.constant 0 : index
    %c0_86 = arith.constant 0 : index
    %184 = vector.load %arg11[%c1_84, %c0_85, %c0_86] : memref<9x32x32xbf16, #tpu.memory_space<vmem>>, vector<1x32x32xbf16>
    %185 = vector.shape_cast %184 : vector<1x32x32xbf16> to vector<32x32xbf16>
    %cst_87 = arith.constant dense<0.000000e+00> : vector<32x64xf32>
    %186 = tpu.matmul %185, %183, %cst_87 {dimension_numbers = #tpu.dot_dimension_numbers<[1], [0], [0], [1], [0, 0, 1, 1], [], []>} : vector<32x32xbf16>, vector<32x64xbf16>, vector<32x64xf32> -> vector<32x64xf32>
    %187 = arith.addf %182, %186 : vector<32x64xf32>
    %188 = vector.extract_strided_slice %151 {offsets = [0, 2], sizes = [32, 64], strides = [1, 1]} : vector<32x82xbf16> to vector<32x64xbf16>
    %cst_88 = arith.constant 0.000000e+00 : bf16
    %189 = vector.broadcast %cst_88 : bf16 to vector<32x64xbf16>
    %190 = vector.shape_cast %172 : vector<1x64xi1> to vector<1x64xi1>
    %191 = vector.broadcast %190 : vector<1x64xi1> to vector<32x64xi1>
    %192 = arith.select %191, %188, %189 : vector<32x64xi1>, vector<32x64xbf16>
    %c2_89 = arith.constant 2 : index
    %c0_90 = arith.constant 0 : index
    %c0_91 = arith.constant 0 : index
    %193 = vector.load %arg11[%c2_89, %c0_90, %c0_91] : memref<9x32x32xbf16, #tpu.memory_space<vmem>>, vector<1x32x32xbf16>
    %194 = vector.shape_cast %193 : vector<1x32x32xbf16> to vector<32x32xbf16>
    %cst_92 = arith.constant dense<0.000000e+00> : vector<32x64xf32>
    %195 = tpu.matmul %194, %192, %cst_92 {dimension_numbers = #tpu.dot_dimension_numbers<[1], [0], [0], [1], [0, 0, 1, 1], [], []>} : vector<32x32xbf16>, vector<32x64xbf16>, vector<32x64xf32> -> vector<32x64xf32>
    %196 = arith.addf %187, %195 : vector<32x64xf32>
    %197 = vector.extract_strided_slice %151 {offsets = [0, 8], sizes = [32, 64], strides = [1, 1]} : vector<32x82xbf16> to vector<32x64xbf16>
    %cst_93 = arith.constant 0.000000e+00 : bf16
    %198 = vector.broadcast %cst_93 : bf16 to vector<32x64xbf16>
    %199 = vector.shape_cast %170 : vector<1x64xi1> to vector<1x64xi1>
    %200 = vector.broadcast %199 : vector<1x64xi1> to vector<32x64xi1>
    %201 = arith.select %200, %197, %198 : vector<32x64xi1>, vector<32x64xbf16>
    %c3_94 = arith.constant 3 : index
    %c0_95 = arith.constant 0 : index
    %c0_96 = arith.constant 0 : index
    %202 = vector.load %arg11[%c3_94, %c0_95, %c0_96] : memref<9x32x32xbf16, #tpu.memory_space<vmem>>, vector<1x32x32xbf16>
    %203 = vector.shape_cast %202 : vector<1x32x32xbf16> to vector<32x32xbf16>
    %cst_97 = arith.constant dense<0.000000e+00> : vector<32x64xf32>
    %204 = tpu.matmul %203, %201, %cst_97 {dimension_numbers = #tpu.dot_dimension_numbers<[1], [0], [0], [1], [0, 0, 1, 1], [], []>} : vector<32x32xbf16>, vector<32x64xbf16>, vector<32x64xf32> -> vector<32x64xf32>
    %205 = arith.addf %196, %204 : vector<32x64xf32>
    %206 = vector.extract_strided_slice %151 {offsets = [0, 9], sizes = [32, 64], strides = [1, 1]} : vector<32x82xbf16> to vector<32x64xbf16>
    %c4_98 = arith.constant 4 : index
    %c0_99 = arith.constant 0 : index
    %c0_100 = arith.constant 0 : index
    %207 = vector.load %arg11[%c4_98, %c0_99, %c0_100] : memref<9x32x32xbf16, #tpu.memory_space<vmem>>, vector<1x32x32xbf16>
    %208 = vector.shape_cast %207 : vector<1x32x32xbf16> to vector<32x32xbf16>
    %cst_101 = arith.constant dense<0.000000e+00> : vector<32x64xf32>
    %209 = tpu.matmul %208, %206, %cst_101 {dimension_numbers = #tpu.dot_dimension_numbers<[1], [0], [0], [1], [0, 0, 1, 1], [], []>} : vector<32x32xbf16>, vector<32x64xbf16>, vector<32x64xf32> -> vector<32x64xf32>
    %210 = arith.addf %205, %209 : vector<32x64xf32>
    %211 = vector.extract_strided_slice %151 {offsets = [0, 10], sizes = [32, 64], strides = [1, 1]} : vector<32x82xbf16> to vector<32x64xbf16>
    %cst_102 = arith.constant 0.000000e+00 : bf16
    %212 = vector.broadcast %cst_102 : bf16 to vector<32x64xbf16>
    %213 = vector.shape_cast %172 : vector<1x64xi1> to vector<1x64xi1>
    %214 = vector.broadcast %213 : vector<1x64xi1> to vector<32x64xi1>
    %215 = arith.select %214, %211, %212 : vector<32x64xi1>, vector<32x64xbf16>
    %c5_103 = arith.constant 5 : index
    %c0_104 = arith.constant 0 : index
    %c0_105 = arith.constant 0 : index
    %216 = vector.load %arg11[%c5_103, %c0_104, %c0_105] : memref<9x32x32xbf16, #tpu.memory_space<vmem>>, vector<1x32x32xbf16>
    %217 = vector.shape_cast %216 : vector<1x32x32xbf16> to vector<32x32xbf16>
    %cst_106 = arith.constant dense<0.000000e+00> : vector<32x64xf32>
    %218 = tpu.matmul %217, %215, %cst_106 {dimension_numbers = #tpu.dot_dimension_numbers<[1], [0], [0], [1], [0, 0, 1, 1], [], []>} : vector<32x32xbf16>, vector<32x64xbf16>, vector<32x64xf32> -> vector<32x64xf32>
    %219 = arith.addf %210, %218 : vector<32x64xf32>
    %220 = vector.extract_strided_slice %151 {offsets = [0, 16], sizes = [32, 64], strides = [1, 1]} : vector<32x82xbf16> to vector<32x64xbf16>
    %cst_107 = arith.constant 0.000000e+00 : bf16
    %221 = vector.broadcast %cst_107 : bf16 to vector<32x64xbf16>
    %222 = vector.shape_cast %170 : vector<1x64xi1> to vector<1x64xi1>
    %223 = vector.broadcast %222 : vector<1x64xi1> to vector<32x64xi1>
    %224 = arith.select %223, %220, %221 : vector<32x64xi1>, vector<32x64xbf16>
    %c6_108 = arith.constant 6 : index
    %c0_109 = arith.constant 0 : index
    %c0_110 = arith.constant 0 : index
    %225 = vector.load %arg11[%c6_108, %c0_109, %c0_110] : memref<9x32x32xbf16, #tpu.memory_space<vmem>>, vector<1x32x32xbf16>
    %226 = vector.shape_cast %225 : vector<1x32x32xbf16> to vector<32x32xbf16>
    %cst_111 = arith.constant dense<0.000000e+00> : vector<32x64xf32>
    %227 = tpu.matmul %226, %224, %cst_111 {dimension_numbers = #tpu.dot_dimension_numbers<[1], [0], [0], [1], [0, 0, 1, 1], [], []>} : vector<32x32xbf16>, vector<32x64xbf16>, vector<32x64xf32> -> vector<32x64xf32>
    %228 = arith.addf %219, %227 : vector<32x64xf32>
    %229 = vector.extract_strided_slice %151 {offsets = [0, 17], sizes = [32, 64], strides = [1, 1]} : vector<32x82xbf16> to vector<32x64xbf16>
    %c7_112 = arith.constant 7 : index
    %c0_113 = arith.constant 0 : index
    %c0_114 = arith.constant 0 : index
    %230 = vector.load %arg11[%c7_112, %c0_113, %c0_114] : memref<9x32x32xbf16, #tpu.memory_space<vmem>>, vector<1x32x32xbf16>
    %231 = vector.shape_cast %230 : vector<1x32x32xbf16> to vector<32x32xbf16>
    %cst_115 = arith.constant dense<0.000000e+00> : vector<32x64xf32>
    %232 = tpu.matmul %231, %229, %cst_115 {dimension_numbers = #tpu.dot_dimension_numbers<[1], [0], [0], [1], [0, 0, 1, 1], [], []>} : vector<32x32xbf16>, vector<32x64xbf16>, vector<32x64xf32> -> vector<32x64xf32>
    %233 = arith.addf %228, %232 : vector<32x64xf32>
    %234 = vector.extract_strided_slice %151 {offsets = [0, 18], sizes = [32, 64], strides = [1, 1]} : vector<32x82xbf16> to vector<32x64xbf16>
    %cst_116 = arith.constant 0.000000e+00 : bf16
    %235 = vector.broadcast %cst_116 : bf16 to vector<32x64xbf16>
    %236 = vector.shape_cast %172 : vector<1x64xi1> to vector<1x64xi1>
    %237 = vector.broadcast %236 : vector<1x64xi1> to vector<32x64xi1>
    %238 = arith.select %237, %234, %235 : vector<32x64xi1>, vector<32x64xbf16>
    %c8_117 = arith.constant 8 : index
    %c0_118 = arith.constant 0 : index
    %c0_119 = arith.constant 0 : index
    %239 = vector.load %arg11[%c8_117, %c0_118, %c0_119] : memref<9x32x32xbf16, #tpu.memory_space<vmem>>, vector<1x32x32xbf16>
    %240 = vector.shape_cast %239 : vector<1x32x32xbf16> to vector<32x32xbf16>
    %cst_120 = arith.constant dense<0.000000e+00> : vector<32x64xf32>
    %241 = tpu.matmul %240, %238, %cst_120 {dimension_numbers = #tpu.dot_dimension_numbers<[1], [0], [0], [1], [0, 0, 1, 1], [], []>} : vector<32x32xbf16>, vector<32x64xbf16>, vector<32x64xf32> -> vector<32x64xf32>
    %242 = arith.addf %233, %241 : vector<32x64xf32>
    %c0_121 = arith.constant 0 : index
    %c0_122 = arith.constant 0 : index
    %c0_123 = arith.constant 0 : index
    %243 = vector.load %arg18[%c0_121, %c0_122, %c0_123] : memref<1x32x64xf32, #tpu.memory_space<vmem>>, vector<1x32x64xf32>
    %244 = vector.shape_cast %243 : vector<1x32x64xf32> to vector<32x64xf32>
    %245 = vector.shape_cast %242 : vector<32x64xf32> to vector<1x32x64xf32>
    tpu.vector_store %arg18[%c0_121, %c0_122, %c0_123], %245 {strides = array<i32>} : memref<1x32x64xf32, #tpu.memory_space<vmem>>, vector<1x32x64xf32>,
    %c0_124 = arith.constant 0 : index
    %c0_125 = arith.constant 0 : index
    %c0_126 = arith.constant 0 : index
    %246 = vector.load %arg2[%c0_124, %c0_125, %c0_126] : memref<1x16x256xf32, #tpu.memory_space<vmem>>, vector<1x16x256xf32>
    %247 = vector.shape_cast %246 : vector<1x16x256xf32> to vector<16x256xf32>
    %248 = arith.truncf %247 : vector<16x256xf32> to vector<16x256xbf16>
    %c0_127 = arith.constant 0 : index
    %c0_128 = arith.constant 0 : index
    %249 = vector.load %arg6[%c0_127, %c0_128] : memref<32x16xbf16, #tpu.memory_space<vmem>>, vector<32x16xbf16>
    %cst_129 = arith.constant dense<0.000000e+00> : vector<32x256xf32>
    %250 = tpu.matmul %249, %248, %cst_129 {dimension_numbers = #tpu.dot_dimension_numbers<[1], [0], [0], [1], [0, 0, 1, 1], [], []>} : vector<32x16xbf16>, vector<16x256xbf16>, vector<32x256xf32> -> vector<32x256xf32>
    %c0_130 = arith.constant 0 : index
    %c0_131 = arith.constant 0 : index
    %251 = vector.load %arg14[%c0_130, %c0_131] : memref<8x16xbf16, #tpu.memory_space<vmem>>, vector<8x16xbf16>
    %252 = arith.truncf %148 : vector<32x64xf32> to vector<32x64xbf16>
    %253 = vector.extract_strided_slice %252 {offsets = [0, 0], sizes = [32, 8], strides = [1, 1]} : vector<32x64xbf16> to vector<32x8xbf16>
    %cst_132 = arith.constant dense<0.000000e+00> : vector<32x16xf32>
    %254 = tpu.matmul %253, %251, %cst_132 {dimension_numbers = #tpu.dot_dimension_numbers<[1], [0], [0], [1], [0, 0, 1, 1], [], []>} : vector<32x8xbf16>, vector<8x16xbf16>, vector<32x16xf32> -> vector<32x16xf32>
    %255 = vector.extract_strided_slice %252 {offsets = [0, 8], sizes = [32, 8], strides = [1, 1]} : vector<32x64xbf16> to vector<32x8xbf16>
    %cst_133 = arith.constant dense<0.000000e+00> : vector<32x16xf32>
    %256 = tpu.matmul %255, %251, %cst_133 {dimension_numbers = #tpu.dot_dimension_numbers<[1], [0], [0], [1], [0, 0, 1, 1], [], []>} : vector<32x8xbf16>, vector<8x16xbf16>, vector<32x16xf32> -> vector<32x16xf32>
    %257 = vector.extract_strided_slice %252 {offsets = [0, 16], sizes = [32, 8], strides = [1, 1]} : vector<32x64xbf16> to vector<32x8xbf16>
    %cst_134 = arith.constant dense<0.000000e+00> : vector<32x16xf32>
    %258 = tpu.matmul %257, %251, %cst_134 {dimension_numbers = #tpu.dot_dimension_numbers<[1], [0], [0], [1], [0, 0, 1, 1], [], []>} : vector<32x8xbf16>, vector<8x16xbf16>, vector<32x16xf32> -> vector<32x16xf32>
    %259 = vector.extract_strided_slice %252 {offsets = [0, 24], sizes = [32, 8], strides = [1, 1]} : vector<32x64xbf16> to vector<32x8xbf16>
    %cst_135 = arith.constant dense<0.000000e+00> : vector<32x16xf32>
    %260 = tpu.matmul %259, %251, %cst_135 {dimension_numbers = #tpu.dot_dimension_numbers<[1], [0], [0], [1], [0, 0, 1, 1], [], []>} : vector<32x8xbf16>, vector<8x16xbf16>, vector<32x16xf32> -> vector<32x16xf32>
    %261 = vector.extract_strided_slice %252 {offsets = [0, 32], sizes = [32, 8], strides = [1, 1]} : vector<32x64xbf16> to vector<32x8xbf16>
    %cst_136 = arith.constant dense<0.000000e+00> : vector<32x16xf32>
    %262 = tpu.matmul %261, %251, %cst_136 {dimension_numbers = #tpu.dot_dimension_numbers<[1], [0], [0], [1], [0, 0, 1, 1], [], []>} : vector<32x8xbf16>, vector<8x16xbf16>, vector<32x16xf32> -> vector<32x16xf32>
    %263 = vector.extract_strided_slice %252 {offsets = [0, 40], sizes = [32, 8], strides = [1, 1]} : vector<32x64xbf16> to vector<32x8xbf16>
    %cst_137 = arith.constant dense<0.000000e+00> : vector<32x16xf32>
    %264 = tpu.matmul %263, %251, %cst_137 {dimension_numbers = #tpu.dot_dimension_numbers<[1], [0], [0], [1], [0, 0, 1, 1], [], []>} : vector<32x8xbf16>, vector<8x16xbf16>, vector<32x16xf32> -> vector<32x16xf32>
    %265 = vector.extract_strided_slice %252 {offsets = [0, 48], sizes = [32, 8], strides = [1, 1]} : vector<32x64xbf16> to vector<32x8xbf16>
    %cst_138 = arith.constant dense<0.000000e+00> : vector<32x16xf32>
    %266 = tpu.matmul %265, %251, %cst_138 {dimension_numbers = #tpu.dot_dimension_numbers<[1], [0], [0], [1], [0, 0, 1, 1], [], []>} : vector<32x8xbf16>, vector<8x16xbf16>, vector<32x16xf32> -> vector<32x16xf32>
    %267 = vector.extract_strided_slice %252 {offsets = [0, 56], sizes = [32, 8], strides = [1, 1]} : vector<32x64xbf16> to vector<32x8xbf16>
    %cst_139 = arith.constant dense<0.000000e+00> : vector<32x16xf32>
    %268 = tpu.matmul %267, %251, %cst_139 {dimension_numbers = #tpu.dot_dimension_numbers<[1], [0], [0], [1], [0, 0, 1, 1], [], []>} : vector<32x8xbf16>, vector<8x16xbf16>, vector<32x16xf32> -> vector<32x16xf32>
    %cst_140 = arith.constant 0.533333361 : f32
    %269 = vector.broadcast %cst_140 : f32 to vector<32x16xf32>
    %270 = arith.mulf %254, %269 : vector<32x16xf32>
    %cst_141 = arith.constant 0.466666669 : f32
    %271 = vector.broadcast %cst_141 : f32 to vector<32x16xf32>
    %272 = arith.mulf %256, %271 : vector<32x16xf32>
    %273 = arith.addf %270, %272 : vector<32x16xf32>
    %cst_142 = arith.constant 0.0666666701 : f32
    %274 = vector.broadcast %cst_142 : f32 to vector<32x16xf32>
    %275 = arith.mulf %254, %274 : vector<32x16xf32>
    %cst_143 = arith.constant 0.933333337 : f32
    %276 = vector.broadcast %cst_143 : f32 to vector<32x16xf32>
    %277 = arith.mulf %256, %276 : vector<32x16xf32>
    %278 = arith.addf %275, %277 : vector<32x16xf32>
    %cst_144 = arith.constant 6.000000e-01 : f32
    %279 = vector.broadcast %cst_144 : f32 to vector<32x16xf32>
    %280 = arith.mulf %256, %279 : vector<32x16xf32>
    %cst_145 = arith.constant 4.000000e-01 : f32
    %281 = vector.broadcast %cst_145 : f32 to vector<32x16xf32>
    %282 = arith.mulf %258, %281 : vector<32x16xf32>
    %283 = arith.addf %280, %282 : vector<32x16xf32>
    %cst_146 = arith.constant 0.13333334 : f32
    %284 = vector.broadcast %cst_146 : f32 to vector<32x16xf32>
    %285 = arith.mulf %256, %284 : vector<32x16xf32>
    %cst_147 = arith.constant 0.866666674 : f32
    %286 = vector.broadcast %cst_147 : f32 to vector<32x16xf32>
    %287 = arith.mulf %258, %286 : vector<32x16xf32>
    %288 = arith.addf %285, %287 : vector<32x16xf32>
    %cst_148 = arith.constant 0.666666686 : f32
    %289 = vector.broadcast %cst_148 : f32 to vector<32x16xf32>
    %290 = arith.mulf %258, %289 : vector<32x16xf32>
    %cst_149 = arith.constant 0.333333343 : f32
    %291 = vector.broadcast %cst_149 : f32 to vector<32x16xf32>
    %292 = arith.mulf %260, %291 : vector<32x16xf32>
    %293 = arith.addf %290, %292 : vector<32x16xf32>
    %cst_150 = arith.constant 2.000000e-01 : f32
    %294 = vector.broadcast %cst_150 : f32 to vector<32x16xf32>
    %295 = arith.mulf %258, %294 : vector<32x16xf32>
    %cst_151 = arith.constant 8.000000e-01 : f32
    %296 = vector.broadcast %cst_151 : f32 to vector<32x16xf32>
    %297 = arith.mulf %260, %296 : vector<32x16xf32>
    %298 = arith.addf %295, %297 : vector<32x16xf32>
    %cst_152 = arith.constant 0.733333349 : f32
    %299 = vector.broadcast %cst_152 : f32 to vector<32x16xf32>
    %300 = arith.mulf %260, %299 : vector<32x16xf32>
    %cst_153 = arith.constant 0.266666681 : f32
    %301 = vector.broadcast %cst_153 : f32 to vector<32x16xf32>
    %302 = arith.mulf %262, %301 : vector<32x16xf32>
    %303 = arith.addf %300, %302 : vector<32x16xf32>
    %cst_154 = arith.constant 0.266666681 : f32
    %304 = vector.broadcast %cst_154 : f32 to vector<32x16xf32>
    %305 = arith.mulf %260, %304 : vector<32x16xf32>
    %cst_155 = arith.constant 0.733333349 : f32
    %306 = vector.broadcast %cst_155 : f32 to vector<32x16xf32>
    %307 = arith.mulf %262, %306 : vector<32x16xf32>
    %308 = arith.addf %305, %307 : vector<32x16xf32>
    %cst_156 = arith.constant 8.000000e-01 : f32
    %309 = vector.broadcast %cst_156 : f32 to vector<32x16xf32>
    %310 = arith.mulf %262, %309 : vector<32x16xf32>
    %cst_157 = arith.constant 2.000000e-01 : f32
    %311 = vector.broadcast %cst_157 : f32 to vector<32x16xf32>
    %312 = arith.mulf %264, %311 : vector<32x16xf32>
    %313 = arith.addf %310, %312 : vector<32x16xf32>
    %cst_158 = arith.constant 0.333333343 : f32
    %314 = vector.broadcast %cst_158 : f32 to vector<32x16xf32>
    %315 = arith.mulf %262, %314 : vector<32x16xf32>
    %cst_159 = arith.constant 0.666666686 : f32
    %316 = vector.broadcast %cst_159 : f32 to vector<32x16xf32>
    %317 = arith.mulf %264, %316 : vector<32x16xf32>
    %318 = arith.addf %315, %317 : vector<32x16xf32>
    %cst_160 = arith.constant 0.866666674 : f32
    %319 = vector.broadcast %cst_160 : f32 to vector<32x16xf32>
    %320 = arith.mulf %264, %319 : vector<32x16xf32>
    %cst_161 = arith.constant 0.13333334 : f32
    %321 = vector.broadcast %cst_161 : f32 to vector<32x16xf32>
    %322 = arith.mulf %266, %321 : vector<32x16xf32>
    %323 = arith.addf %320, %322 : vector<32x16xf32>
    %cst_162 = arith.constant 4.000000e-01 : f32
    %324 = vector.broadcast %cst_162 : f32 to vector<32x16xf32>
    %325 = arith.mulf %264, %324 : vector<32x16xf32>
    %cst_163 = arith.constant 6.000000e-01 : f32
    %326 = vector.broadcast %cst_163 : f32 to vector<32x16xf32>
    %327 = arith.mulf %266, %326 : vector<32x16xf32>
    %328 = arith.addf %325, %327 : vector<32x16xf32>
    %cst_164 = arith.constant 0.933333337 : f32
    %329 = vector.broadcast %cst_164 : f32 to vector<32x16xf32>
    %330 = arith.mulf %266, %329 : vector<32x16xf32>
    %cst_165 = arith.constant 0.0666666701 : f32
    %331 = vector.broadcast %cst_165 : f32 to vector<32x16xf32>
    %332 = arith.mulf %268, %331 : vector<32x16xf32>
    %333 = arith.addf %330, %332 : vector<32x16xf32>
    %cst_166 = arith.constant 0.466666669 : f32
    %334 = vector.broadcast %cst_166 : f32 to vector<32x16xf32>
    %335 = arith.mulf %266, %334 : vector<32x16xf32>
    %cst_167 = arith.constant 0.533333361 : f32
    %336 = vector.broadcast %cst_167 : f32 to vector<32x16xf32>
    %337 = arith.mulf %268, %336 : vector<32x16xf32>
    %338 = arith.addf %335, %337 : vector<32x16xf32>
    %339 = tpu.concatenate %254, %273, %278, %283, %288, %293, %298, %303, %308, %313, %318, %323, %328, %333, %338, %268 in 1 : vector<32x16xf32>, vector<32x16xf32>, vector<32x16xf32>, vector<32x16xf32>, vector<32x16xf32>, vector<32x16xf32>, vector<32x16xf32>, vector<32x16xf32>, vector<32x16xf32>, vector<32x16xf32>, vector<32x16xf32>, vector<32x16xf32>, vector<32x16xf32>, vector<32x16xf32>, vector<32x16xf32>, vector<32x16xf32> -> vector<32x256xf32>
    %340 = arith.addf %250, %339 : vector<32x256xf32>
    %341 = arith.truncf %340 : vector<32x256xf32> to vector<32x256xbf16>
    %cst_168 = arith.constant 0.000000e+00 : bf16
    %342 = vector.broadcast %cst_168 : bf16 to vector<32x17xbf16>
    %343 = tpu.concatenate %342, %341, %342 in 1 : vector<32x17xbf16>, vector<32x256xbf16>, vector<32x17xbf16> -> vector<32x290xbf16>
    %344 = tpu.iota {dimensions = array<i32: 1>} : vector<1x256xi32>
    %c16_i32 = arith.constant 16 : i32
    %c0_i32_169 = arith.constant 0 : i32
    %345 = arith.cmpi eq, %c16_i32, %c0_i32_169 : i32
    %c1_i32_170 = arith.constant 1 : i32
    %346 = arith.select %345, %c1_i32_170, %c16_i32 : i32
    %347 = vector.broadcast %346 : i32 to vector<1x256xi32>
    %348 = arith.remsi %344, %347 : vector<1x256xi32>
    %c0_i32_171 = arith.constant 0 : i32
    %349 = vector.broadcast %c0_i32_171 : i32 to vector<1x256xi32>
    %350 = arith.cmpi ne, %348, %349 : vector<1x256xi32>
    %c0_i32_172 = arith.constant 0 : i32
    %351 = vector.broadcast %c0_i32_172 : i32 to vector<1x256xi32>
    %352 = arith.cmpi slt, %348, %351 : vector<1x256xi32>
    %c0_i32_173 = arith.constant 0 : i32
    %353 = arith.cmpi slt, %346, %c0_i32_173 : i32
    %354 = vector.broadcast %353 : i1 to vector<1x256xi1>
    %355 = vector.broadcast %354 : vector<1x256xi1> to vector<1x256xi1>
    %356 = arith.xori %352, %355 : vector<1x256xi1>
    %357 = arith.andi %356, %350 : vector<1x256xi1>
    %358 = vector.broadcast %346 : i32 to vector<1x256xi32>
    %359 = arith.addi %348, %358 : vector<1x256xi32>
    %360 = arith.select %357, %359, %348 : vector<1x256xi1>, vector<1x256xi32>
    %c1_i32_174 = arith.constant 1 : i32
    %361 = vector.broadcast %c1_i32_174 : i32 to vector<1x256xi32>
    %362 = arith.cmpi sge, %360, %361 : vector<1x256xi32>
    %c14_i32 = arith.constant 14 : i32
    %363 = vector.broadcast %c14_i32 : i32 to vector<1x256xi32>
    %364 = arith.cmpi sle, %360, %363 : vector<1x256xi32>
    %cst_175 = arith.constant 0.000000e+00 : f32
    %365 = vector.broadcast %cst_175 : f32 to vector<32x256xf32>
    %366 = vector.extract_strided_slice %343 {offsets = [0, 0], sizes = [32, 256], strides = [1, 1]} : vector<32x290xbf16> to vector<32x256xbf16>
    %cst_176 = arith.constant 0.000000e+00 : bf16
    %367 = vector.broadcast %cst_176 : bf16 to vector<32x256xbf16>
    %368 = vector.shape_cast %362 : vector<1x256xi1> to vector<1x256xi1>
    %369 = vector.broadcast %368 : vector<1x256xi1> to vector<32x256xi1>
    %370 = arith.select %369, %366, %367 : vector<32x256xi1>, vector<32x256xbf16>
    %c0_177 = arith.constant 0 : index
    %c0_178 = arith.constant 0 : index
    %c0_179 = arith.constant 0 : index
    %371 = vector.load %arg10[%c0_177, %c0_178, %c0_179] : memref<9x32x32xbf16, #tpu.memory_space<vmem>>, vector<1x32x32xbf16>
    %372 = vector.shape_cast %371 : vector<1x32x32xbf16> to vector<32x32xbf16>
    %cst_180 = arith.constant dense<0.000000e+00> : vector<32x256xf32>
    %373 = tpu.matmul %372, %370, %cst_180 {dimension_numbers = #tpu.dot_dimension_numbers<[1], [0], [0], [1], [0, 0, 1, 1], [], []>} : vector<32x32xbf16>, vector<32x256xbf16>, vector<32x256xf32> -> vector<32x256xf32>
    %374 = arith.addf %365, %373 : vector<32x256xf32>
    %375 = vector.extract_strided_slice %343 {offsets = [0, 1], sizes = [32, 256], strides = [1, 1]} : vector<32x290xbf16> to vector<32x256xbf16>
    %c1_181 = arith.constant 1 : index
    %c0_182 = arith.constant 0 : index
    %c0_183 = arith.constant 0 : index
    %376 = vector.load %arg10[%c1_181, %c0_182, %c0_183] : memref<9x32x32xbf16, #tpu.memory_space<vmem>>, vector<1x32x32xbf16>
    %377 = vector.shape_cast %376 : vector<1x32x32xbf16> to vector<32x32xbf16>
    %cst_184 = arith.constant dense<0.000000e+00> : vector<32x256xf32>
    %378 = tpu.matmul %377, %375, %cst_184 {dimension_numbers = #tpu.dot_dimension_numbers<[1], [0], [0], [1], [0, 0, 1, 1], [], []>} : vector<32x32xbf16>, vector<32x256xbf16>, vector<32x256xf32> -> vector<32x256xf32>
    %379 = arith.addf %374, %378 : vector<32x256xf32>
    %380 = vector.extract_strided_slice %343 {offsets = [0, 2], sizes = [32, 256], strides = [1, 1]} : vector<32x290xbf16> to vector<32x256xbf16>
    %cst_185 = arith.constant 0.000000e+00 : bf16
    %381 = vector.broadcast %cst_185 : bf16 to vector<32x256xbf16>
    %382 = vector.shape_cast %364 : vector<1x256xi1> to vector<1x256xi1>
    %383 = vector.broadcast %382 : vector<1x256xi1> to vector<32x256xi1>
    %384 = arith.select %383, %380, %381 : vector<32x256xi1>, vector<32x256xbf16>
    %c2_186 = arith.constant 2 : index
    %c0_187 = arith.constant 0 : index
    %c0_188 = arith.constant 0 : index
    %385 = vector.load %arg10[%c2_186, %c0_187, %c0_188] : memref<9x32x32xbf16, #tpu.memory_space<vmem>>, vector<1x32x32xbf16>
    %386 = vector.shape_cast %385 : vector<1x32x32xbf16> to vector<32x32xbf16>
    %cst_189 = arith.constant dense<0.000000e+00> : vector<32x256xf32>
    %387 = tpu.matmul %386, %384, %cst_189 {dimension_numbers = #tpu.dot_dimension_numbers<[1], [0], [0], [1], [0, 0, 1, 1], [], []>} : vector<32x32xbf16>, vector<32x256xbf16>, vector<32x256xf32> -> vector<32x256xf32>
    %388 = arith.addf %379, %387 : vector<32x256xf32>
    %389 = vector.extract_strided_slice %343 {offsets = [0, 16], sizes = [32, 256], strides = [1, 1]} : vector<32x290xbf16> to vector<32x256xbf16>
    %cst_190 = arith.constant 0.000000e+00 : bf16
    %390 = vector.broadcast %cst_190 : bf16 to vector<32x256xbf16>
    %391 = vector.shape_cast %362 : vector<1x256xi1> to vector<1x256xi1>
    %392 = vector.broadcast %391 : vector<1x256xi1> to vector<32x256xi1>
    %393 = arith.select %392, %389, %390 : vector<32x256xi1>, vector<32x256xbf16>
    %c3_191 = arith.constant 3 : index
    %c0_192 = arith.constant 0 : index
    %c0_193 = arith.constant 0 : index
    %394 = vector.load %arg10[%c3_191, %c0_192, %c0_193] : memref<9x32x32xbf16, #tpu.memory_space<vmem>>, vector<1x32x32xbf16>
    %395 = vector.shape_cast %394 : vector<1x32x32xbf16> to vector<32x32xbf16>
    %cst_194 = arith.constant dense<0.000000e+00> : vector<32x256xf32>
    %396 = tpu.matmul %395, %393, %cst_194 {dimension_numbers = #tpu.dot_dimension_numbers<[1], [0], [0], [1], [0, 0, 1, 1], [], []>} : vector<32x32xbf16>, vector<32x256xbf16>, vector<32x256xf32> -> vector<32x256xf32>
    %397 = arith.addf %388, %396 : vector<32x256xf32>
    %398 = vector.extract_strided_slice %343 {offsets = [0, 17], sizes = [32, 256], strides = [1, 1]} : vector<32x290xbf16> to vector<32x256xbf16>
    %c4_195 = arith.constant 4 : index
    %c0_196 = arith.constant 0 : index
    %c0_197 = arith.constant 0 : index
    %399 = vector.load %arg10[%c4_195, %c0_196, %c0_197] : memref<9x32x32xbf16, #tpu.memory_space<vmem>>, vector<1x32x32xbf16>
    %400 = vector.shape_cast %399 : vector<1x32x32xbf16> to vector<32x32xbf16>
    %cst_198 = arith.constant dense<0.000000e+00> : vector<32x256xf32>
    %401 = tpu.matmul %400, %398, %cst_198 {dimension_numbers = #tpu.dot_dimension_numbers<[1], [0], [0], [1], [0, 0, 1, 1], [], []>} : vector<32x32xbf16>, vector<32x256xbf16>, vector<32x256xf32> -> vector<32x256xf32>
    %402 = arith.addf %397, %401 : vector<32x256xf32>
    %403 = vector.extract_strided_slice %343 {offsets = [0, 18], sizes = [32, 256], strides = [1, 1]} : vector<32x290xbf16> to vector<32x256xbf16>
    %cst_199 = arith.constant 0.000000e+00 : bf16
    %404 = vector.broadcast %cst_199 : bf16 to vector<32x256xbf16>
    %405 = vector.shape_cast %364 : vector<1x256xi1> to vector<1x256xi1>
    %406 = vector.broadcast %405 : vector<1x256xi1> to vector<32x256xi1>
    %407 = arith.select %406, %403, %404 : vector<32x256xi1>, vector<32x256xbf16>
    %c5_200 = arith.constant 5 : index
    %c0_201 = arith.constant 0 : index
    %c0_202 = arith.constant 0 : index
    %408 = vector.load %arg10[%c5_200, %c0_201, %c0_202] : memref<9x32x32xbf16, #tpu.memory_space<vmem>>, vector<1x32x32xbf16>
    %409 = vector.shape_cast %408 : vector<1x32x32xbf16> to vector<32x32xbf16>
    %cst_203 = arith.constant dense<0.000000e+00> : vector<32x256xf32>
    %410 = tpu.matmul %409, %407, %cst_203 {dimension_numbers = #tpu.dot_dimension_numbers<[1], [0], [0], [1], [0, 0, 1, 1], [], []>} : vector<32x32xbf16>, vector<32x256xbf16>, vector<32x256xf32> -> vector<32x256xf32>
    %411 = arith.addf %402, %410 : vector<32x256xf32>
    %412 = vector.extract_strided_slice %343 {offsets = [0, 32], sizes = [32, 256], strides = [1, 1]} : vector<32x290xbf16> to vector<32x256xbf16>
    %cst_204 = arith.constant 0.000000e+00 : bf16
    %413 = vector.broadcast %cst_204 : bf16 to vector<32x256xbf16>
    %414 = vector.shape_cast %362 : vector<1x256xi1> to vector<1x256xi1>
    %415 = vector.broadcast %414 : vector<1x256xi1> to vector<32x256xi1>
    %416 = arith.select %415, %412, %413 : vector<32x256xi1>, vector<32x256xbf16>
    %c6_205 = arith.constant 6 : index
    %c0_206 = arith.constant 0 : index
    %c0_207 = arith.constant 0 : index
    %417 = vector.load %arg10[%c6_205, %c0_206, %c0_207] : memref<9x32x32xbf16, #tpu.memory_space<vmem>>, vector<1x32x32xbf16>
    %418 = vector.shape_cast %417 : vector<1x32x32xbf16> to vector<32x32xbf16>
    %cst_208 = arith.constant dense<0.000000e+00> : vector<32x256xf32>
    %419 = tpu.matmul %418, %416, %cst_208 {dimension_numbers = #tpu.dot_dimension_numbers<[1], [0], [0], [1], [0, 0, 1, 1], [], []>} : vector<32x32xbf16>, vector<32x256xbf16>, vector<32x256xf32> -> vector<32x256xf32>
    %420 = arith.addf %411, %419 : vector<32x256xf32>
    %421 = vector.extract_strided_slice %343 {offsets = [0, 33], sizes = [32, 256], strides = [1, 1]} : vector<32x290xbf16> to vector<32x256xbf16>
    %c7_209 = arith.constant 7 : index
    %c0_210 = arith.constant 0 : index
    %c0_211 = arith.constant 0 : index
    %422 = vector.load %arg10[%c7_209, %c0_210, %c0_211] : memref<9x32x32xbf16, #tpu.memory_space<vmem>>, vector<1x32x32xbf16>
    %423 = vector.shape_cast %422 : vector<1x32x32xbf16> to vector<32x32xbf16>
    %cst_212 = arith.constant dense<0.000000e+00> : vector<32x256xf32>
    %424 = tpu.matmul %423, %421, %cst_212 {dimension_numbers = #tpu.dot_dimension_numbers<[1], [0], [0], [1], [0, 0, 1, 1], [], []>} : vector<32x32xbf16>, vector<32x256xbf16>, vector<32x256xf32> -> vector<32x256xf32>
    %425 = arith.addf %420, %424 : vector<32x256xf32>
    %426 = vector.extract_strided_slice %343 {offsets = [0, 34], sizes = [32, 256], strides = [1, 1]} : vector<32x290xbf16> to vector<32x256xbf16>
    %cst_213 = arith.constant 0.000000e+00 : bf16
    %427 = vector.broadcast %cst_213 : bf16 to vector<32x256xbf16>
    %428 = vector.shape_cast %364 : vector<1x256xi1> to vector<1x256xi1>
    %429 = vector.broadcast %428 : vector<1x256xi1> to vector<32x256xi1>
    %430 = arith.select %429, %426, %427 : vector<32x256xi1>, vector<32x256xbf16>
    %c8_214 = arith.constant 8 : index
    %c0_215 = arith.constant 0 : index
    %c0_216 = arith.constant 0 : index
    %431 = vector.load %arg10[%c8_214, %c0_215, %c0_216] : memref<9x32x32xbf16, #tpu.memory_space<vmem>>, vector<1x32x32xbf16>
    %432 = vector.shape_cast %431 : vector<1x32x32xbf16> to vector<32x32xbf16>
    %cst_217 = arith.constant dense<0.000000e+00> : vector<32x256xf32>
    %433 = tpu.matmul %432, %430, %cst_217 {dimension_numbers = #tpu.dot_dimension_numbers<[1], [0], [0], [1], [0, 0, 1, 1], [], []>} : vector<32x32xbf16>, vector<32x256xbf16>, vector<32x256xf32> -> vector<32x256xf32>
    %434 = arith.addf %425, %433 : vector<32x256xf32>
    %c0_218 = arith.constant 0 : index
    %c0_219 = arith.constant 0 : index
    %c0_220 = arith.constant 0 : index
    %435 = vector.load %arg17[%c0_218, %c0_219, %c0_220] : memref<1x32x256xf32, #tpu.memory_space<vmem>>, vector<1x32x256xf32>
    %436 = vector.shape_cast %435 : vector<1x32x256xf32> to vector<32x256xf32>
    %437 = vector.shape_cast %434 : vector<32x256xf32> to vector<1x32x256xf32>
    tpu.vector_store %arg17[%c0_218, %c0_219, %c0_220], %437 {strides = array<i32>} : memref<1x32x256xf32, #tpu.memory_space<vmem>>, vector<1x32x256xf32>,
    %c0_221 = arith.constant 0 : index
    %c0_222 = arith.constant 0 : index
    %c0_223 = arith.constant 0 : index
    %438 = vector.load %arg1[%c0_221, %c0_222, %c0_223] : memref<1x8x1024xf32, #tpu.memory_space<vmem>>, vector<1x8x1024xf32>
    %439 = vector.shape_cast %438 : vector<1x8x1024xf32> to vector<8x1024xf32>
    %440 = arith.truncf %439 : vector<8x1024xf32> to vector<8x1024xbf16>
    %c0_224 = arith.constant 0 : index
    %c0_225 = arith.constant 0 : index
    %441 = vector.load %arg5[%c0_224, %c0_225] : memref<32x8xbf16, #tpu.memory_space<vmem>>, vector<32x8xbf16>
    %cst_226 = arith.constant dense<0.000000e+00> : vector<32x1024xf32>
    %442 = tpu.matmul %441, %440, %cst_226 {dimension_numbers = #tpu.dot_dimension_numbers<[1], [0], [0], [1], [0, 0, 1, 1], [], []>} : vector<32x8xbf16>, vector<8x1024xbf16>, vector<32x1024xf32> -> vector<32x1024xf32>
    %c0_227 = arith.constant 0 : index
    %c0_228 = arith.constant 0 : index
    %443 = vector.load %arg15[%c0_227, %c0_228] : memref<16x32xbf16, #tpu.memory_space<vmem>>, vector<16x32xbf16>
    %444 = arith.truncf %340 : vector<32x256xf32> to vector<32x256xbf16>
    %445 = vector.extract_strided_slice %444 {offsets = [0, 0], sizes = [32, 16], strides = [1, 1]} : vector<32x256xbf16> to vector<32x16xbf16>
    %cst_229 = arith.constant dense<0.000000e+00> : vector<32x32xf32>
    %446 = tpu.matmul %445, %443, %cst_229 {dimension_numbers = #tpu.dot_dimension_numbers<[1], [0], [0], [1], [0, 0, 1, 1], [], []>} : vector<32x16xbf16>, vector<16x32xbf16>, vector<32x32xf32> -> vector<32x32xf32>
    %447 = vector.extract_strided_slice %444 {offsets = [0, 16], sizes = [32, 16], strides = [1, 1]} : vector<32x256xbf16> to vector<32x16xbf16>
    %cst_230 = arith.constant dense<0.000000e+00> : vector<32x32xf32>
    %448 = tpu.matmul %447, %443, %cst_230 {dimension_numbers = #tpu.dot_dimension_numbers<[1], [0], [0], [1], [0, 0, 1, 1], [], []>} : vector<32x16xbf16>, vector<16x32xbf16>, vector<32x32xf32> -> vector<32x32xf32>
    %449 = vector.extract_strided_slice %444 {offsets = [0, 32], sizes = [32, 16], strides = [1, 1]} : vector<32x256xbf16> to vector<32x16xbf16>
    %cst_231 = arith.constant dense<0.000000e+00> : vector<32x32xf32>
    %450 = tpu.matmul %449, %443, %cst_231 {dimension_numbers = #tpu.dot_dimension_numbers<[1], [0], [0], [1], [0, 0, 1, 1], [], []>} : vector<32x16xbf16>, vector<16x32xbf16>, vector<32x32xf32> -> vector<32x32xf32>
    %451 = vector.extract_strided_slice %444 {offsets = [0, 48], sizes = [32, 16], strides = [1, 1]} : vector<32x256xbf16> to vector<32x16xbf16>
    %cst_232 = arith.constant dense<0.000000e+00> : vector<32x32xf32>
    %452 = tpu.matmul %451, %443, %cst_232 {dimension_numbers = #tpu.dot_dimension_numbers<[1], [0], [0], [1], [0, 0, 1, 1], [], []>} : vector<32x16xbf16>, vector<16x32xbf16>, vector<32x32xf32> -> vector<32x32xf32>
    %453 = vector.extract_strided_slice %444 {offsets = [0, 64], sizes = [32, 16], strides = [1, 1]} : vector<32x256xbf16> to vector<32x16xbf16>
    %cst_233 = arith.constant dense<0.000000e+00> : vector<32x32xf32>
    %454 = tpu.matmul %453, %443, %cst_233 {dimension_numbers = #tpu.dot_dimension_numbers<[1], [0], [0], [1], [0, 0, 1, 1], [], []>} : vector<32x16xbf16>, vector<16x32xbf16>, vector<32x32xf32> -> vector<32x32xf32>
    %455 = vector.extract_strided_slice %444 {offsets = [0, 80], sizes = [32, 16], strides = [1, 1]} : vector<32x256xbf16> to vector<32x16xbf16>
    %cst_234 = arith.constant dense<0.000000e+00> : vector<32x32xf32>
    %456 = tpu.matmul %455, %443, %cst_234 {dimension_numbers = #tpu.dot_dimension_numbers<[1], [0], [0], [1], [0, 0, 1, 1], [], []>} : vector<32x16xbf16>, vector<16x32xbf16>, vector<32x32xf32> -> vector<32x32xf32>
    %457 = vector.extract_strided_slice %444 {offsets = [0, 96], sizes = [32, 16], strides = [1, 1]} : vector<32x256xbf16> to vector<32x16xbf16>
    %cst_235 = arith.constant dense<0.000000e+00> : vector<32x32xf32>
    %458 = tpu.matmul %457, %443, %cst_235 {dimension_numbers = #tpu.dot_dimension_numbers<[1], [0], [0], [1], [0, 0, 1, 1], [], []>} : vector<32x16xbf16>, vector<16x32xbf16>, vector<32x32xf32> -> vector<32x32xf32>
    %459 = vector.extract_strided_slice %444 {offsets = [0, 112], sizes = [32, 16], strides = [1, 1]} : vector<32x256xbf16> to vector<32x16xbf16>
    %cst_236 = arith.constant dense<0.000000e+00> : vector<32x32xf32>
    %460 = tpu.matmul %459, %443, %cst_236 {dimension_numbers = #tpu.dot_dimension_numbers<[1], [0], [0], [1], [0, 0, 1, 1], [], []>} : vector<32x16xbf16>, vector<16x32xbf16>, vector<32x32xf32> -> vector<32x32xf32>
    %461 = vector.extract_strided_slice %444 {offsets = [0, 128], sizes = [32, 16], strides = [1, 1]} : vector<32x256xbf16> to vector<32x16xbf16>
    %cst_237 = arith.constant dense<0.000000e+00> : vector<32x32xf32>
    %462 = tpu.matmul %461, %443, %cst_237 {dimension_numbers = #tpu.dot_dimension_numbers<[1], [0], [0], [1], [0, 0, 1, 1], [], []>} : vector<32x16xbf16>, vector<16x32xbf16>, vector<32x32xf32> -> vector<32x32xf32>
    %463 = vector.extract_strided_slice %444 {offsets = [0, 144], sizes = [32, 16], strides = [1, 1]} : vector<32x256xbf16> to vector<32x16xbf16>
    %cst_238 = arith.constant dense<0.000000e+00> : vector<32x32xf32>
    %464 = tpu.matmul %463, %443, %cst_238 {dimension_numbers = #tpu.dot_dimension_numbers<[1], [0], [0], [1], [0, 0, 1, 1], [], []>} : vector<32x16xbf16>, vector<16x32xbf16>, vector<32x32xf32> -> vector<32x32xf32>
    %465 = vector.extract_strided_slice %444 {offsets = [0, 160], sizes = [32, 16], strides = [1, 1]} : vector<32x256xbf16> to vector<32x16xbf16>
    %cst_239 = arith.constant dense<0.000000e+00> : vector<32x32xf32>
    %466 = tpu.matmul %465, %443, %cst_239 {dimension_numbers = #tpu.dot_dimension_numbers<[1], [0], [0], [1], [0, 0, 1, 1], [], []>} : vector<32x16xbf16>, vector<16x32xbf16>, vector<32x32xf32> -> vector<32x32xf32>
    %467 = vector.extract_strided_slice %444 {offsets = [0, 176], sizes = [32, 16], strides = [1, 1]} : vector<32x256xbf16> to vector<32x16xbf16>
    %cst_240 = arith.constant dense<0.000000e+00> : vector<32x32xf32>
    %468 = tpu.matmul %467, %443, %cst_240 {dimension_numbers = #tpu.dot_dimension_numbers<[1], [0], [0], [1], [0, 0, 1, 1], [], []>} : vector<32x16xbf16>, vector<16x32xbf16>, vector<32x32xf32> -> vector<32x32xf32>
    %469 = vector.extract_strided_slice %444 {offsets = [0, 192], sizes = [32, 16], strides = [1, 1]} : vector<32x256xbf16> to vector<32x16xbf16>
    %cst_241 = arith.constant dense<0.000000e+00> : vector<32x32xf32>
    %470 = tpu.matmul %469, %443, %cst_241 {dimension_numbers = #tpu.dot_dimension_numbers<[1], [0], [0], [1], [0, 0, 1, 1], [], []>} : vector<32x16xbf16>, vector<16x32xbf16>, vector<32x32xf32> -> vector<32x32xf32>
    %471 = vector.extract_strided_slice %444 {offsets = [0, 208], sizes = [32, 16], strides = [1, 1]} : vector<32x256xbf16> to vector<32x16xbf16>
    %cst_242 = arith.constant dense<0.000000e+00> : vector<32x32xf32>
    %472 = tpu.matmul %471, %443, %cst_242 {dimension_numbers = #tpu.dot_dimension_numbers<[1], [0], [0], [1], [0, 0, 1, 1], [], []>} : vector<32x16xbf16>, vector<16x32xbf16>, vector<32x32xf32> -> vector<32x32xf32>
    %473 = vector.extract_strided_slice %444 {offsets = [0, 224], sizes = [32, 16], strides = [1, 1]} : vector<32x256xbf16> to vector<32x16xbf16>
    %cst_243 = arith.constant dense<0.000000e+00> : vector<32x32xf32>
    %474 = tpu.matmul %473, %443, %cst_243 {dimension_numbers = #tpu.dot_dimension_numbers<[1], [0], [0], [1], [0, 0, 1, 1], [], []>} : vector<32x16xbf16>, vector<16x32xbf16>, vector<32x32xf32> -> vector<32x32xf32>
    %475 = vector.extract_strided_slice %444 {offsets = [0, 240], sizes = [32, 16], strides = [1, 1]} : vector<32x256xbf16> to vector<32x16xbf16>
    %cst_244 = arith.constant dense<0.000000e+00> : vector<32x32xf32>
    %476 = tpu.matmul %475, %443, %cst_244 {dimension_numbers = #tpu.dot_dimension_numbers<[1], [0], [0], [1], [0, 0, 1, 1], [], []>} : vector<32x16xbf16>, vector<16x32xbf16>, vector<32x32xf32> -> vector<32x32xf32>
    %cst_245 = arith.constant 5.161290e-01 : f32
    %477 = vector.broadcast %cst_245 : f32 to vector<32x32xf32>
    %478 = arith.mulf %446, %477 : vector<32x32xf32>
    %cst_246 = arith.constant 0.483870953 : f32
    %479 = vector.broadcast %cst_246 : f32 to vector<32x32xf32>
    %480 = arith.mulf %448, %479 : vector<32x32xf32>
    %481 = arith.addf %478, %480 : vector<32x32xf32>
    %cst_247 = arith.constant 0.0322580636 : f32
    %482 = vector.broadcast %cst_247 : f32 to vector<32x32xf32>
    %483 = arith.mulf %446, %482 : vector<32x32xf32>
    %cst_248 = arith.constant 0.967741906 : f32
    %484 = vector.broadcast %cst_248 : f32 to vector<32x32xf32>
    %485 = arith.mulf %448, %484 : vector<32x32xf32>
    %486 = arith.addf %483, %485 : vector<32x32xf32>
    %cst_249 = arith.constant 0.54838711 : f32
    %487 = vector.broadcast %cst_249 : f32 to vector<32x32xf32>
    %488 = arith.mulf %448, %487 : vector<32x32xf32>
    %cst_250 = arith.constant 0.45161289 : f32
    %489 = vector.broadcast %cst_250 : f32 to vector<32x32xf32>
    %490 = arith.mulf %450, %489 : vector<32x32xf32>
    %491 = arith.addf %488, %490 : vector<32x32xf32>
    %cst_251 = arith.constant 0.0645161271 : f32
    %492 = vector.broadcast %cst_251 : f32 to vector<32x32xf32>
    %493 = arith.mulf %448, %492 : vector<32x32xf32>
    %cst_252 = arith.constant 0.935483872 : f32
    %494 = vector.broadcast %cst_252 : f32 to vector<32x32xf32>
    %495 = arith.mulf %450, %494 : vector<32x32xf32>
    %496 = arith.addf %493, %495 : vector<32x32xf32>
    %cst_253 = arith.constant 0.580645144 : f32
    %497 = vector.broadcast %cst_253 : f32 to vector<32x32xf32>
    %498 = arith.mulf %450, %497 : vector<32x32xf32>
    %cst_254 = arith.constant 0.419354826 : f32
    %499 = vector.broadcast %cst_254 : f32 to vector<32x32xf32>
    %500 = arith.mulf %452, %499 : vector<32x32xf32>
    %501 = arith.addf %498, %500 : vector<32x32xf32>
    %cst_255 = arith.constant 0.0967741906 : f32
    %502 = vector.broadcast %cst_255 : f32 to vector<32x32xf32>
    %503 = arith.mulf %450, %502 : vector<32x32xf32>
    %cst_256 = arith.constant 0.903225779 : f32
    %504 = vector.broadcast %cst_256 : f32 to vector<32x32xf32>
    %505 = arith.mulf %452, %504 : vector<32x32xf32>
    %506 = arith.addf %503, %505 : vector<32x32xf32>
    %cst_257 = arith.constant 0.612903237 : f32
    %507 = vector.broadcast %cst_257 : f32 to vector<32x32xf32>
    %508 = arith.mulf %452, %507 : vector<32x32xf32>
    %cst_258 = arith.constant 0.387096763 : f32
    %509 = vector.broadcast %cst_258 : f32 to vector<32x32xf32>
    %510 = arith.mulf %454, %509 : vector<32x32xf32>
    %511 = arith.addf %508, %510 : vector<32x32xf32>
    %cst_259 = arith.constant 0.129032254 : f32
    %512 = vector.broadcast %cst_259 : f32 to vector<32x32xf32>
    %513 = arith.mulf %452, %512 : vector<32x32xf32>
    %cst_260 = arith.constant 0.870967745 : f32
    %514 = vector.broadcast %cst_260 : f32 to vector<32x32xf32>
    %515 = arith.mulf %454, %514 : vector<32x32xf32>
    %516 = arith.addf %513, %515 : vector<32x32xf32>
    %cst_261 = arith.constant 0.645161271 : f32
    %517 = vector.broadcast %cst_261 : f32 to vector<32x32xf32>
    %518 = arith.mulf %454, %517 : vector<32x32xf32>
    %cst_262 = arith.constant 0.354838699 : f32
    %519 = vector.broadcast %cst_262 : f32 to vector<32x32xf32>
    %520 = arith.mulf %456, %519 : vector<32x32xf32>
    %521 = arith.addf %518, %520 : vector<32x32xf32>
    %cst_263 = arith.constant 0.161290318 : f32
    %522 = vector.broadcast %cst_263 : f32 to vector<32x32xf32>
    %523 = arith.mulf %454, %522 : vector<32x32xf32>
    %cst_264 = arith.constant 0.838709652 : f32
    %524 = vector.broadcast %cst_264 : f32 to vector<32x32xf32>
    %525 = arith.mulf %456, %524 : vector<32x32xf32>
    %526 = arith.addf %523, %525 : vector<32x32xf32>
    %cst_265 = arith.constant 0.677419364 : f32
    %527 = vector.broadcast %cst_265 : f32 to vector<32x32xf32>
    %528 = arith.mulf %456, %527 : vector<32x32xf32>
    %cst_266 = arith.constant 0.322580636 : f32
    %529 = vector.broadcast %cst_266 : f32 to vector<32x32xf32>
    %530 = arith.mulf %458, %529 : vector<32x32xf32>
    %531 = arith.addf %528, %530 : vector<32x32xf32>
    %cst_267 = arith.constant 0.193548381 : f32
    %532 = vector.broadcast %cst_267 : f32 to vector<32x32xf32>
    %533 = arith.mulf %456, %532 : vector<32x32xf32>
    %cst_268 = arith.constant 0.806451618 : f32
    %534 = vector.broadcast %cst_268 : f32 to vector<32x32xf32>
    %535 = arith.mulf %458, %534 : vector<32x32xf32>
    %536 = arith.addf %533, %535 : vector<32x32xf32>
    %cst_269 = arith.constant 0.709677398 : f32
    %537 = vector.broadcast %cst_269 : f32 to vector<32x32xf32>
    %538 = arith.mulf %458, %537 : vector<32x32xf32>
    %cst_270 = arith.constant 0.290322572 : f32
    %539 = vector.broadcast %cst_270 : f32 to vector<32x32xf32>
    %540 = arith.mulf %460, %539 : vector<32x32xf32>
    %541 = arith.addf %538, %540 : vector<32x32xf32>
    %cst_271 = arith.constant 0.225806445 : f32
    %542 = vector.broadcast %cst_271 : f32 to vector<32x32xf32>
    %543 = arith.mulf %458, %542 : vector<32x32xf32>
    %cst_272 = arith.constant 0.774193525 : f32
    %544 = vector.broadcast %cst_272 : f32 to vector<32x32xf32>
    %545 = arith.mulf %460, %544 : vector<32x32xf32>
    %546 = arith.addf %543, %545 : vector<32x32xf32>
    %cst_273 = arith.constant 0.741935492 : f32
    %547 = vector.broadcast %cst_273 : f32 to vector<32x32xf32>
    %548 = arith.mulf %460, %547 : vector<32x32xf32>
    %cst_274 = arith.constant 0.258064508 : f32
    %549 = vector.broadcast %cst_274 : f32 to vector<32x32xf32>
    %550 = arith.mulf %462, %549 : vector<32x32xf32>
    %551 = arith.addf %548, %550 : vector<32x32xf32>
    %cst_275 = arith.constant 0.258064508 : f32
    %552 = vector.broadcast %cst_275 : f32 to vector<32x32xf32>
    %553 = arith.mulf %460, %552 : vector<32x32xf32>
    %cst_276 = arith.constant 0.741935492 : f32
    %554 = vector.broadcast %cst_276 : f32 to vector<32x32xf32>
    %555 = arith.mulf %462, %554 : vector<32x32xf32>
    %556 = arith.addf %553, %555 : vector<32x32xf32>
    %cst_277 = arith.constant 0.774193525 : f32
    %557 = vector.broadcast %cst_277 : f32 to vector<32x32xf32>
    %558 = arith.mulf %462, %557 : vector<32x32xf32>
    %cst_278 = arith.constant 0.225806445 : f32
    %559 = vector.broadcast %cst_278 : f32 to vector<32x32xf32>
    %560 = arith.mulf %464, %559 : vector<32x32xf32>
    %561 = arith.addf %558, %560 : vector<32x32xf32>
    %cst_279 = arith.constant 0.290322572 : f32
    %562 = vector.broadcast %cst_279 : f32 to vector<32x32xf32>
    %563 = arith.mulf %462, %562 : vector<32x32xf32>
    %cst_280 = arith.constant 0.709677398 : f32
    %564 = vector.broadcast %cst_280 : f32 to vector<32x32xf32>
    %565 = arith.mulf %464, %564 : vector<32x32xf32>
    %566 = arith.addf %563, %565 : vector<32x32xf32>
    %cst_281 = arith.constant 0.806451618 : f32
    %567 = vector.broadcast %cst_281 : f32 to vector<32x32xf32>
    %568 = arith.mulf %464, %567 : vector<32x32xf32>
    %cst_282 = arith.constant 0.193548381 : f32
    %569 = vector.broadcast %cst_282 : f32 to vector<32x32xf32>
    %570 = arith.mulf %466, %569 : vector<32x32xf32>
    %571 = arith.addf %568, %570 : vector<32x32xf32>
    %cst_283 = arith.constant 0.322580636 : f32
    %572 = vector.broadcast %cst_283 : f32 to vector<32x32xf32>
    %573 = arith.mulf %464, %572 : vector<32x32xf32>
    %cst_284 = arith.constant 0.677419364 : f32
    %574 = vector.broadcast %cst_284 : f32 to vector<32x32xf32>
    %575 = arith.mulf %466, %574 : vector<32x32xf32>
    %576 = arith.addf %573, %575 : vector<32x32xf32>
    %cst_285 = arith.constant 0.838709652 : f32
    %577 = vector.broadcast %cst_285 : f32 to vector<32x32xf32>
    %578 = arith.mulf %466, %577 : vector<32x32xf32>
    %cst_286 = arith.constant 0.161290318 : f32
    %579 = vector.broadcast %cst_286 : f32 to vector<32x32xf32>
    %580 = arith.mulf %468, %579 : vector<32x32xf32>
    %581 = arith.addf %578, %580 : vector<32x32xf32>
    %cst_287 = arith.constant 0.354838699 : f32
    %582 = vector.broadcast %cst_287 : f32 to vector<32x32xf32>
    %583 = arith.mulf %466, %582 : vector<32x32xf32>
    %cst_288 = arith.constant 0.645161271 : f32
    %584 = vector.broadcast %cst_288 : f32 to vector<32x32xf32>
    %585 = arith.mulf %468, %584 : vector<32x32xf32>
    %586 = arith.addf %583, %585 : vector<32x32xf32>
    %cst_289 = arith.constant 0.870967745 : f32
    %587 = vector.broadcast %cst_289 : f32 to vector<32x32xf32>
    %588 = arith.mulf %468, %587 : vector<32x32xf32>
    %cst_290 = arith.constant 0.129032254 : f32
    %589 = vector.broadcast %cst_290 : f32 to vector<32x32xf32>
    %590 = arith.mulf %470, %589 : vector<32x32xf32>
    %591 = arith.addf %588, %590 : vector<32x32xf32>
    %cst_291 = arith.constant 0.387096763 : f32
    %592 = vector.broadcast %cst_291 : f32 to vector<32x32xf32>
    %593 = arith.mulf %468, %592 : vector<32x32xf32>
    %cst_292 = arith.constant 0.612903237 : f32
    %594 = vector.broadcast %cst_292 : f32 to vector<32x32xf32>
    %595 = arith.mulf %470, %594 : vector<32x32xf32>
    %596 = arith.addf %593, %595 : vector<32x32xf32>
    %cst_293 = arith.constant 0.903225779 : f32
    %597 = vector.broadcast %cst_293 : f32 to vector<32x32xf32>
    %598 = arith.mulf %470, %597 : vector<32x32xf32>
    %cst_294 = arith.constant 0.0967741906 : f32
    %599 = vector.broadcast %cst_294 : f32 to vector<32x32xf32>
    %600 = arith.mulf %472, %599 : vector<32x32xf32>
    %601 = arith.addf %598, %600 : vector<32x32xf32>
    %cst_295 = arith.constant 0.419354826 : f32
    %602 = vector.broadcast %cst_295 : f32 to vector<32x32xf32>
    %603 = arith.mulf %470, %602 : vector<32x32xf32>
    %cst_296 = arith.constant 0.580645144 : f32
    %604 = vector.broadcast %cst_296 : f32 to vector<32x32xf32>
    %605 = arith.mulf %472, %604 : vector<32x32xf32>
    %606 = arith.addf %603, %605 : vector<32x32xf32>
    %cst_297 = arith.constant 0.935483872 : f32
    %607 = vector.broadcast %cst_297 : f32 to vector<32x32xf32>
    %608 = arith.mulf %472, %607 : vector<32x32xf32>
    %cst_298 = arith.constant 0.0645161271 : f32
    %609 = vector.broadcast %cst_298 : f32 to vector<32x32xf32>
    %610 = arith.mulf %474, %609 : vector<32x32xf32>
    %611 = arith.addf %608, %610 : vector<32x32xf32>
    %cst_299 = arith.constant 0.45161289 : f32
    %612 = vector.broadcast %cst_299 : f32 to vector<32x32xf32>
    %613 = arith.mulf %472, %612 : vector<32x32xf32>
    %cst_300 = arith.constant 0.54838711 : f32
    %614 = vector.broadcast %cst_300 : f32 to vector<32x32xf32>
    %615 = arith.mulf %474, %614 : vector<32x32xf32>
    %616 = arith.addf %613, %615 : vector<32x32xf32>
    %cst_301 = arith.constant 0.967741906 : f32
    %617 = vector.broadcast %cst_301 : f32 to vector<32x32xf32>
    %618 = arith.mulf %474, %617 : vector<32x32xf32>
    %cst_302 = arith.constant 0.0322580636 : f32
    %619 = vector.broadcast %cst_302 : f32 to vector<32x32xf32>
    %620 = arith.mulf %476, %619 : vector<32x32xf32>
    %621 = arith.addf %618, %620 : vector<32x32xf32>
    %cst_303 = arith.constant 0.483870953 : f32
    %622 = vector.broadcast %cst_303 : f32 to vector<32x32xf32>
    %623 = arith.mulf %474, %622 : vector<32x32xf32>
    %cst_304 = arith.constant 5.161290e-01 : f32
    %624 = vector.broadcast %cst_304 : f32 to vector<32x32xf32>
    %625 = arith.mulf %476, %624 : vector<32x32xf32>
    %626 = arith.addf %623, %625 : vector<32x32xf32>
    %627 = tpu.concatenate %446, %481, %486, %491, %496, %501, %506, %511, %516, %521, %526, %531, %536, %541, %546, %551 in 1 : vector<32x32xf32>, vector<32x32xf32>, vector<32x32xf32>, vector<32x32xf32>, vector<32x32xf32>, vector<32x32xf32>, vector<32x32xf32>, vector<32x32xf32>, vector<32x32xf32>, vector<32x32xf32>, vector<32x32xf32>, vector<32x32xf32>, vector<32x32xf32>, vector<32x32xf32>, vector<32x32xf32>, vector<32x32xf32> -> vector<32x512xf32>
    %628 = tpu.concatenate %556, %561, %566, %571, %576, %581, %586, %591, %596, %601, %606, %611, %616, %621, %626, %476 in 1 : vector<32x32xf32>, vector<32x32xf32>, vector<32x32xf32>, vector<32x32xf32>, vector<32x32xf32>, vector<32x32xf32>, vector<32x32xf32>, vector<32x32xf32>, vector<32x32xf32>, vector<32x32xf32>, vector<32x32xf32>, vector<32x32xf32>, vector<32x32xf32>, vector<32x32xf32>, vector<32x32xf32>, vector<32x32xf32> -> vector<32x512xf32>
    %629 = tpu.concatenate %627, %628 in 1 : vector<32x512xf32>, vector<32x512xf32> -> vector<32x1024xf32>
    %630 = arith.addf %442, %629 : vector<32x1024xf32>
    %631 = arith.truncf %630 : vector<32x1024xf32> to vector<32x1024xbf16>
    %cst_305 = arith.constant 0.000000e+00 : bf16
    %632 = vector.broadcast %cst_305 : bf16 to vector<32x33xbf16>
    %633 = tpu.concatenate %632, %631, %632 in 1 : vector<32x33xbf16>, vector<32x1024xbf16>, vector<32x33xbf16> -> vector<32x1090xbf16>
    %634 = tpu.iota {dimensions = array<i32: 1>} : vector<1x1024xi32>
    %c32_i32 = arith.constant 32 : i32
    %c0_i32_306 = arith.constant 0 : i32
    %635 = arith.cmpi eq, %c32_i32, %c0_i32_306 : i32
    %c1_i32_307 = arith.constant 1 : i32
    %636 = arith.select %635, %c1_i32_307, %c32_i32 : i32
    %637 = vector.broadcast %636 : i32 to vector<1x1024xi32>
    %638 = arith.remsi %634, %637 : vector<1x1024xi32>
    %c0_i32_308 = arith.constant 0 : i32
    %639 = vector.broadcast %c0_i32_308 : i32 to vector<1x1024xi32>
    %640 = arith.cmpi ne, %638, %639 : vector<1x1024xi32>
    %c0_i32_309 = arith.constant 0 : i32
    %641 = vector.broadcast %c0_i32_309 : i32 to vector<1x1024xi32>
    %642 = arith.cmpi slt, %638, %641 : vector<1x1024xi32>
    %c0_i32_310 = arith.constant 0 : i32
    %643 = arith.cmpi slt, %636, %c0_i32_310 : i32
    %644 = vector.broadcast %643 : i1 to vector<1x1024xi1>
    %645 = vector.broadcast %644 : vector<1x1024xi1> to vector<1x1024xi1>
    %646 = arith.xori %642, %645 : vector<1x1024xi1>
    %647 = arith.andi %646, %640 : vector<1x1024xi1>
    %648 = vector.broadcast %636 : i32 to vector<1x1024xi32>
    %649 = arith.addi %638, %648 : vector<1x1024xi32>
    %650 = arith.select %647, %649, %638 : vector<1x1024xi1>, vector<1x1024xi32>
    %c1_i32_311 = arith.constant 1 : i32
    %651 = vector.broadcast %c1_i32_311 : i32 to vector<1x1024xi32>
    %652 = arith.cmpi sge, %650, %651 : vector<1x1024xi32>
    %c30_i32 = arith.constant 30 : i32
    %653 = vector.broadcast %c30_i32 : i32 to vector<1x1024xi32>
    %654 = arith.cmpi sle, %650, %653 : vector<1x1024xi32>
    %cst_312 = arith.constant 0.000000e+00 : f32
    %655 = vector.broadcast %cst_312 : f32 to vector<32x1024xf32>
    %656 = vector.extract_strided_slice %633 {offsets = [0, 0], sizes = [32, 1024], strides = [1, 1]} : vector<32x1090xbf16> to vector<32x1024xbf16>
    %cst_313 = arith.constant 0.000000e+00 : bf16
    %657 = vector.broadcast %cst_313 : bf16 to vector<32x1024xbf16>
    %658 = vector.shape_cast %652 : vector<1x1024xi1> to vector<1x1024xi1>
    %659 = vector.broadcast %658 : vector<1x1024xi1> to vector<32x1024xi1>
    %660 = arith.select %659, %656, %657 : vector<32x1024xi1>, vector<32x1024xbf16>
    %c0_314 = arith.constant 0 : index
    %c0_315 = arith.constant 0 : index
    %c0_316 = arith.constant 0 : index
    %661 = vector.load %arg9[%c0_314, %c0_315, %c0_316] : memref<9x32x32xbf16, #tpu.memory_space<vmem>>, vector<1x32x32xbf16>
    %662 = vector.shape_cast %661 : vector<1x32x32xbf16> to vector<32x32xbf16>
    %cst_317 = arith.constant dense<0.000000e+00> : vector<32x1024xf32>
    %663 = tpu.matmul %662, %660, %cst_317 {dimension_numbers = #tpu.dot_dimension_numbers<[1], [0], [0], [1], [0, 0, 1, 1], [], []>} : vector<32x32xbf16>, vector<32x1024xbf16>, vector<32x1024xf32> -> vector<32x1024xf32>
    %664 = arith.addf %655, %663 : vector<32x1024xf32>
    %665 = vector.extract_strided_slice %633 {offsets = [0, 1], sizes = [32, 1024], strides = [1, 1]} : vector<32x1090xbf16> to vector<32x1024xbf16>
    %c1_318 = arith.constant 1 : index
    %c0_319 = arith.constant 0 : index
    %c0_320 = arith.constant 0 : index
    %666 = vector.load %arg9[%c1_318, %c0_319, %c0_320] : memref<9x32x32xbf16, #tpu.memory_space<vmem>>, vector<1x32x32xbf16>
    %667 = vector.shape_cast %666 : vector<1x32x32xbf16> to vector<32x32xbf16>
    %cst_321 = arith.constant dense<0.000000e+00> : vector<32x1024xf32>
    %668 = tpu.matmul %667, %665, %cst_321 {dimension_numbers = #tpu.dot_dimension_numbers<[1], [0], [0], [1], [0, 0, 1, 1], [], []>} : vector<32x32xbf16>, vector<32x1024xbf16>, vector<32x1024xf32> -> vector<32x1024xf32>
    %669 = arith.addf %664, %668 : vector<32x1024xf32>
    %670 = vector.extract_strided_slice %633 {offsets = [0, 2], sizes = [32, 1024], strides = [1, 1]} : vector<32x1090xbf16> to vector<32x1024xbf16>
    %cst_322 = arith.constant 0.000000e+00 : bf16
    %671 = vector.broadcast %cst_322 : bf16 to vector<32x1024xbf16>
    %672 = vector.shape_cast %654 : vector<1x1024xi1> to vector<1x1024xi1>
    %673 = vector.broadcast %672 : vector<1x1024xi1> to vector<32x1024xi1>
    %674 = arith.select %673, %670, %671 : vector<32x1024xi1>, vector<32x1024xbf16>
    %c2_323 = arith.constant 2 : index
    %c0_324 = arith.constant 0 : index
    %c0_325 = arith.constant 0 : index
    %675 = vector.load %arg9[%c2_323, %c0_324, %c0_325] : memref<9x32x32xbf16, #tpu.memory_space<vmem>>, vector<1x32x32xbf16>
    %676 = vector.shape_cast %675 : vector<1x32x32xbf16> to vector<32x32xbf16>
    %cst_326 = arith.constant dense<0.000000e+00> : vector<32x1024xf32>
    %677 = tpu.matmul %676, %674, %cst_326 {dimension_numbers = #tpu.dot_dimension_numbers<[1], [0], [0], [1], [0, 0, 1, 1], [], []>} : vector<32x32xbf16>, vector<32x1024xbf16>, vector<32x1024xf32> -> vector<32x1024xf32>
    %678 = arith.addf %669, %677 : vector<32x1024xf32>
    %679 = vector.extract_strided_slice %633 {offsets = [0, 32], sizes = [32, 1024], strides = [1, 1]} : vector<32x1090xbf16> to vector<32x1024xbf16>
    %cst_327 = arith.constant 0.000000e+00 : bf16
    %680 = vector.broadcast %cst_327 : bf16 to vector<32x1024xbf16>
    %681 = vector.shape_cast %652 : vector<1x1024xi1> to vector<1x1024xi1>
    %682 = vector.broadcast %681 : vector<1x1024xi1> to vector<32x1024xi1>
    %683 = arith.select %682, %679, %680 : vector<32x1024xi1>, vector<32x1024xbf16>
    %c3_328 = arith.constant 3 : index
    %c0_329 = arith.constant 0 : index
    %c0_330 = arith.constant 0 : index
    %684 = vector.load %arg9[%c3_328, %c0_329, %c0_330] : memref<9x32x32xbf16, #tpu.memory_space<vmem>>, vector<1x32x32xbf16>
    %685 = vector.shape_cast %684 : vector<1x32x32xbf16> to vector<32x32xbf16>
    %cst_331 = arith.constant dense<0.000000e+00> : vector<32x1024xf32>
    %686 = tpu.matmul %685, %683, %cst_331 {dimension_numbers = #tpu.dot_dimension_numbers<[1], [0], [0], [1], [0, 0, 1, 1], [], []>} : vector<32x32xbf16>, vector<32x1024xbf16>, vector<32x1024xf32> -> vector<32x1024xf32>
    %687 = arith.addf %678, %686 : vector<32x1024xf32>
    %688 = vector.extract_strided_slice %633 {offsets = [0, 33], sizes = [32, 1024], strides = [1, 1]} : vector<32x1090xbf16> to vector<32x1024xbf16>
    %c4_332 = arith.constant 4 : index
    %c0_333 = arith.constant 0 : index
    %c0_334 = arith.constant 0 : index
    %689 = vector.load %arg9[%c4_332, %c0_333, %c0_334] : memref<9x32x32xbf16, #tpu.memory_space<vmem>>, vector<1x32x32xbf16>
    %690 = vector.shape_cast %689 : vector<1x32x32xbf16> to vector<32x32xbf16>
    %cst_335 = arith.constant dense<0.000000e+00> : vector<32x1024xf32>
    %691 = tpu.matmul %690, %688, %cst_335 {dimension_numbers = #tpu.dot_dimension_numbers<[1], [0], [0], [1], [0, 0, 1, 1], [], []>} : vector<32x32xbf16>, vector<32x1024xbf16>, vector<32x1024xf32> -> vector<32x1024xf32>
    %692 = arith.addf %687, %691 : vector<32x1024xf32>
    %693 = vector.extract_strided_slice %633 {offsets = [0, 34], sizes = [32, 1024], strides = [1, 1]} : vector<32x1090xbf16> to vector<32x1024xbf16>
    %cst_336 = arith.constant 0.000000e+00 : bf16
    %694 = vector.broadcast %cst_336 : bf16 to vector<32x1024xbf16>
    %695 = vector.shape_cast %654 : vector<1x1024xi1> to vector<1x1024xi1>
    %696 = vector.broadcast %695 : vector<1x1024xi1> to vector<32x1024xi1>
    %697 = arith.select %696, %693, %694 : vector<32x1024xi1>, vector<32x1024xbf16>
    %c5_337 = arith.constant 5 : index
    %c0_338 = arith.constant 0 : index
    %c0_339 = arith.constant 0 : index
    %698 = vector.load %arg9[%c5_337, %c0_338, %c0_339] : memref<9x32x32xbf16, #tpu.memory_space<vmem>>, vector<1x32x32xbf16>
    %699 = vector.shape_cast %698 : vector<1x32x32xbf16> to vector<32x32xbf16>
    %cst_340 = arith.constant dense<0.000000e+00> : vector<32x1024xf32>
    %700 = tpu.matmul %699, %697, %cst_340 {dimension_numbers = #tpu.dot_dimension_numbers<[1], [0], [0], [1], [0, 0, 1, 1], [], []>} : vector<32x32xbf16>, vector<32x1024xbf16>, vector<32x1024xf32> -> vector<32x1024xf32>
    %701 = arith.addf %692, %700 : vector<32x1024xf32>
    %702 = vector.extract_strided_slice %633 {offsets = [0, 64], sizes = [32, 1024], strides = [1, 1]} : vector<32x1090xbf16> to vector<32x1024xbf16>
    %cst_341 = arith.constant 0.000000e+00 : bf16
    %703 = vector.broadcast %cst_341 : bf16 to vector<32x1024xbf16>
    %704 = vector.shape_cast %652 : vector<1x1024xi1> to vector<1x1024xi1>
    %705 = vector.broadcast %704 : vector<1x1024xi1> to vector<32x1024xi1>
    %706 = arith.select %705, %702, %703 : vector<32x1024xi1>, vector<32x1024xbf16>
    %c6_342 = arith.constant 6 : index
    %c0_343 = arith.constant 0 : index
    %c0_344 = arith.constant 0 : index
    %707 = vector.load %arg9[%c6_342, %c0_343, %c0_344] : memref<9x32x32xbf16, #tpu.memory_space<vmem>>, vector<1x32x32xbf16>
    %708 = vector.shape_cast %707 : vector<1x32x32xbf16> to vector<32x32xbf16>
    %cst_345 = arith.constant dense<0.000000e+00> : vector<32x1024xf32>
    %709 = tpu.matmul %708, %706, %cst_345 {dimension_numbers = #tpu.dot_dimension_numbers<[1], [0], [0], [1], [0, 0, 1, 1], [], []>} : vector<32x32xbf16>, vector<32x1024xbf16>, vector<32x1024xf32> -> vector<32x1024xf32>
    %710 = arith.addf %701, %709 : vector<32x1024xf32>
    %711 = vector.extract_strided_slice %633 {offsets = [0, 65], sizes = [32, 1024], strides = [1, 1]} : vector<32x1090xbf16> to vector<32x1024xbf16>
    %c7_346 = arith.constant 7 : index
    %c0_347 = arith.constant 0 : index
    %c0_348 = arith.constant 0 : index
    %712 = vector.load %arg9[%c7_346, %c0_347, %c0_348] : memref<9x32x32xbf16, #tpu.memory_space<vmem>>, vector<1x32x32xbf16>
    %713 = vector.shape_cast %712 : vector<1x32x32xbf16> to vector<32x32xbf16>
    %cst_349 = arith.constant dense<0.000000e+00> : vector<32x1024xf32>
    %714 = tpu.matmul %713, %711, %cst_349 {dimension_numbers = #tpu.dot_dimension_numbers<[1], [0], [0], [1], [0, 0, 1, 1], [], []>} : vector<32x32xbf16>, vector<32x1024xbf16>, vector<32x1024xf32> -> vector<32x1024xf32>
    %715 = arith.addf %710, %714 : vector<32x1024xf32>
    %716 = vector.extract_strided_slice %633 {offsets = [0, 66], sizes = [32, 1024], strides = [1, 1]} : vector<32x1090xbf16> to vector<32x1024xbf16>
    %cst_350 = arith.constant 0.000000e+00 : bf16
    %717 = vector.broadcast %cst_350 : bf16 to vector<32x1024xbf16>
    %718 = vector.shape_cast %654 : vector<1x1024xi1> to vector<1x1024xi1>
    %719 = vector.broadcast %718 : vector<1x1024xi1> to vector<32x1024xi1>
    %720 = arith.select %719, %716, %717 : vector<32x1024xi1>, vector<32x1024xbf16>
    %c8_351 = arith.constant 8 : index
    %c0_352 = arith.constant 0 : index
    %c0_353 = arith.constant 0 : index
    %721 = vector.load %arg9[%c8_351, %c0_352, %c0_353] : memref<9x32x32xbf16, #tpu.memory_space<vmem>>, vector<1x32x32xbf16>
    %722 = vector.shape_cast %721 : vector<1x32x32xbf16> to vector<32x32xbf16>
    %cst_354 = arith.constant dense<0.000000e+00> : vector<32x1024xf32>
    %723 = tpu.matmul %722, %720, %cst_354 {dimension_numbers = #tpu.dot_dimension_numbers<[1], [0], [0], [1], [0, 0, 1, 1], [], []>} : vector<32x32xbf16>, vector<32x1024xbf16>, vector<32x1024xf32> -> vector<32x1024xf32>
    %724 = arith.addf %715, %723 : vector<32x1024xf32>
    %c0_355 = arith.constant 0 : index
    %c0_356 = arith.constant 0 : index
    %c0_357 = arith.constant 0 : index
    %725 = vector.load %arg16[%c0_355, %c0_356, %c0_357] : memref<1x32x1024xf32, #tpu.memory_space<vmem>>, vector<1x32x1024xf32>
    %726 = vector.shape_cast %725 : vector<1x32x1024xf32> to vector<32x1024xf32>
    %727 = vector.shape_cast %724 : vector<32x1024xf32> to vector<1x32x1024xf32>
    tpu.vector_store %arg16[%c0_355, %c0_356, %c0_357], %727 {strides = array<i32>} : memref<1x32x1024xf32, #tpu.memory_space<vmem>>, vector<1x32x1024xf32>,
    return
  }
  func.func @transform_0(%arg0: i32) -> (i32, i32, i32) {
    %c0_i32 = arith.constant 0 : i32
    %c0_i32_0 = arith.constant 0 : i32
    %c0_i32_1 = arith.constant 0 : i32
    return %arg0, %c0_i32, %c0_i32_0 : i32, i32, i32
  }
  func.func @transform_1(%arg0: i32) -> (i32, i32, i32) {
    %c0_i32 = arith.constant 0 : i32
    %c0_i32_0 = arith.constant 0 : i32
    %c0_i32_1 = arith.constant 0 : i32
    return %arg0, %c0_i32, %c0_i32_0 : i32, i32, i32
  }
  func.func @transform_2(%arg0: i32) -> (i32, i32, i32) {
    %c0_i32 = arith.constant 0 : i32
    %c0_i32_0 = arith.constant 0 : i32
    %c0_i32_1 = arith.constant 0 : i32
    return %arg0, %c0_i32, %c0_i32_0 : i32, i32, i32
  }
  func.func @transform_3(%arg0: i32) -> (i32, i32, i32) {
    %c0_i32 = arith.constant 0 : i32
    %c0_i32_0 = arith.constant 0 : i32
    %c0_i32_1 = arith.constant 0 : i32
    return %arg0, %c0_i32, %c0_i32_0 : i32, i32, i32
  }
  func.func @transform_4(%arg0: i32) -> (i32, i32) {
    %c0_i32 = arith.constant 0 : i32
    %c0_i32_0 = arith.constant 0 : i32
    %c0_i32_1 = arith.constant 0 : i32
    return %c0_i32, %c0_i32_0 : i32, i32
  }
  func.func @transform_5(%arg0: i32) -> (i32, i32) {
    %c0_i32 = arith.constant 0 : i32
    %c0_i32_0 = arith.constant 0 : i32
    %c0_i32_1 = arith.constant 0 : i32
    return %c0_i32, %c0_i32_0 : i32, i32
  }
  func.func @transform_6(%arg0: i32) -> (i32, i32) {
    %c0_i32 = arith.constant 0 : i32
    %c0_i32_0 = arith.constant 0 : i32
    %c0_i32_1 = arith.constant 0 : i32
    return %c0_i32, %c0_i32_0 : i32, i32
  }
  func.func @transform_7(%arg0: i32) -> (i32, i32) {
    %c0_i32 = arith.constant 0 : i32
    %c0_i32_0 = arith.constant 0 : i32
    %c0_i32_1 = arith.constant 0 : i32
    return %c0_i32, %c0_i32_0 : i32, i32
  }
  func.func @transform_8(%arg0: i32) -> (i32, i32, i32) {
    %c0_i32 = arith.constant 0 : i32
    %c0_i32_0 = arith.constant 0 : i32
    %c0_i32_1 = arith.constant 0 : i32
    %c0_i32_2 = arith.constant 0 : i32
    return %c0_i32, %c0_i32_0, %c0_i32_1 : i32, i32, i32
  }
  func.func @transform_9(%arg0: i32) -> (i32, i32, i32) {
    %c0_i32 = arith.constant 0 : i32
    %c0_i32_0 = arith.constant 0 : i32
    %c0_i32_1 = arith.constant 0 : i32
    %c0_i32_2 = arith.constant 0 : i32
    return %c0_i32, %c0_i32_0, %c0_i32_1 : i32, i32, i32
  }
  func.func @transform_10(%arg0: i32) -> (i32, i32, i32) {
    %c0_i32 = arith.constant 0 : i32
    %c0_i32_0 = arith.constant 0 : i32
    %c0_i32_1 = arith.constant 0 : i32
    %c0_i32_2 = arith.constant 0 : i32
    return %c0_i32, %c0_i32_0, %c0_i32_1 : i32, i32, i32
  }
  func.func @transform_11(%arg0: i32) -> (i32, i32, i32) {
    %c0_i32 = arith.constant 0 : i32
    %c0_i32_0 = arith.constant 0 : i32
    %c0_i32_1 = arith.constant 0 : i32
    %c0_i32_2 = arith.constant 0 : i32
    return %c0_i32, %c0_i32_0, %c0_i32_1 : i32, i32, i32
  }
  func.func @transform_12(%arg0: i32) -> (i32, i32) {
    %c0_i32 = arith.constant 0 : i32
    %c0_i32_0 = arith.constant 0 : i32
    %c0_i32_1 = arith.constant 0 : i32
    return %c0_i32, %c0_i32_0 : i32, i32
  }
  func.func @transform_13(%arg0: i32) -> (i32, i32) {
    %c0_i32 = arith.constant 0 : i32
    %c0_i32_0 = arith.constant 0 : i32
    %c0_i32_1 = arith.constant 0 : i32
    return %c0_i32, %c0_i32_0 : i32, i32
  }
  func.func @transform_14(%arg0: i32) -> (i32, i32) {
    %c0_i32 = arith.constant 0 : i32
    %c0_i32_0 = arith.constant 0 : i32
    %c0_i32_1 = arith.constant 0 : i32
    return %c0_i32, %c0_i32_0 : i32, i32
  }
  func.func @transform_15(%arg0: i32) -> (i32, i32, i32) {
    %c0_i32 = arith.constant 0 : i32
    %c0_i32_0 = arith.constant 0 : i32
    %c0_i32_1 = arith.constant 0 : i32
    return %arg0, %c0_i32, %c0_i32_0 : i32, i32, i32
  }
  func.func @transform_16(%arg0: i32) -> (i32, i32, i32) {
    %c0_i32 = arith.constant 0 : i32
    %c0_i32_0 = arith.constant 0 : i32
    %c0_i32_1 = arith.constant 0 : i32
    return %arg0, %c0_i32, %c0_i32_0 : i32, i32, i32
  }
  func.func @transform_17(%arg0: i32) -> (i32, i32, i32) {
    %c0_i32 = arith.constant 0 : i32
    %c0_i32_0 = arith.constant 0 : i32
    %c0_i32_1 = arith.constant 0 : i32
    return %arg0, %c0_i32, %c0_i32_0 : i32, i32, i32
  }
  func.func @transform_18(%arg0: i32) -> (i32, i32, i32) {
    %c0_i32 = arith.constant 0 : i32
    %c0_i32_0 = arith.constant 0 : i32
    %c0_i32_1 = arith.constant 0 : i32
    return %arg0, %c0_i32, %c0_i32_0 : i32, i32, i32
  }
}

</mosaic_0001>

<llo_original>
// kernel: fpn_forward.1
$region0: #{fpn_forward.1}
  #allocation0 [shape = 'u32[]', space=smem, size = 0x4, offset = 0x4, fixed_abs, tag = 'smem constant byte address 0x4 - core index']
  #allocation1 [shape = 'u32[144,128]{1,0:T(1,128)}', space=vmem, size = 0x12000, scoped, tag = 'internal scratch']
  %s0 = inlined_call_operand.vmem [shape: f32[2,8,1024], index: 0, kind: input, shape index: {}]
  %s1 = inlined_call_operand.vmem [shape: f32[2,16,256], index: 1, kind: input, shape index: {}]
  %s2 = inlined_call_operand.vmem [shape: f32[2,32,64], index: 2, kind: input, shape index: {}]
  %s3 = inlined_call_operand.vmem [shape: f32[2,64,16], index: 3, kind: input, shape index: {}]
  %s4 = inlined_call_operand.vmem [shape: bf16[32,8], index: 4, kind: input, shape index: {}]
  %s5 = inlined_call_operand.vmem [shape: bf16[32,16], index: 5, kind: input, shape index: {}]
  %s6 = inlined_call_operand.vmem [shape: bf16[32,32], index: 6, kind: input, shape index: {}]
  %s7 = inlined_call_operand.vmem [shape: bf16[32,64], index: 7, kind: input, shape index: {}]
  %s8 = inlined_call_operand.vmem [shape: bf16[9,32,32], index: 8, kind: input, shape index: {}]
  %s9 = inlined_call_operand.vmem [shape: bf16[9,32,32], index: 9, kind: input, shape index: {}]
  %s10 = inlined_call_operand.vmem [shape: bf16[9,32,32], index: 10, kind: input, shape index: {}]
  %s11 = inlined_call_operand.vmem [shape: bf16[9,32,32], index: 11, kind: input, shape index: {}]
  %s12 = inlined_call_operand.vmem [shape: bf16[4,8], index: 12, kind: input, shape index: {}]
  %s13 = inlined_call_operand.vmem [shape: bf16[8,16], index: 13, kind: input, shape index: {}]
  %s14 = inlined_call_operand.vmem [shape: bf16[16,32], index: 14, kind: input, shape index: {}]
  %s15 = inlined_call_operand.vmem [shape: f32[2,32,1024], index: 15, kind: output, shape index: {0}]
  %s16 = inlined_call_operand.vmem [shape: f32[2,32,256], index: 16, kind: output, shape index: {1}]
  %s17 = inlined_call_operand.vmem [shape: f32[2,32,64], index: 17, kind: output, shape index: {2}]
  %s18 = inlined_call_operand.vmem [shape: f32[2,32,16], index: 18, kind: output, shape index: {3}]
  %19 = xla_tuple %s15, %s16, %s17, %s18
  %s20 = sld [smem:[#allocation0]]
  $region117: #{fpn_forward.1} parent=0
    _
  %s22 = ssub.s32 1, %s20
  %s23 = scalar_select 0, %s22, %s20
  loop: start=0, step=1, limit=4
  $region2: #{fpn_forward.1} parent=0 // loop_pre_header
    _
  $region3: #{fpn_forward.1} parent=0 // loop_header
    %s25 = sphi 0, %s29
    %p26 = scmp.ge.s32.totalorder %s25, 4
    %s35 = sphi 0, %s37
    %s38 = sphi 0, %s35
    %s39 = sphi 0, %s38
    %s55 = sphi 0, %s39
    %s61 = sphi 0, %s63
    %s64 = sphi 0, %s61
    %s65 = sphi 0, %s64
    %s81 = sphi 0, %s65
    %s87 = sphi 0, %s89
    %s90 = sphi 0, %s87
    %s91 = sphi 0, %s90
    %s107 = sphi 0, %s91
    %s113 = sphi 0, %s115
    %s116 = sphi 0, %s113
    %s117 = sphi 0, %s116
    %s133 = sphi 0, %s117
    %s137 = sphi 0, %s137
    %s139 = sphi 0, %s137
    %s140 = sphi 0, %s139
    %s154 = sphi 0, %s140
    %s158 = sphi 0, %s158
    %s160 = sphi 0, %s158
    %s161 = sphi 0, %s160
    %s175 = sphi 0, %s161
    %s179 = sphi 0, %s179
    %s181 = sphi 0, %s179
    %s182 = sphi 0, %s181
    %s196 = sphi 0, %s182
    %s200 = sphi 0, %s200
    %s202 = sphi 0, %s200
    %s203 = sphi 0, %s202
    %s217 = sphi 0, %s203
    %s221 = sphi 0, %s221
    %s223 = sphi 0, %s221
    %s224 = sphi 0, %s223
    %s238 = sphi 0, %s224
    %s242 = sphi 0, %s242
    %s244 = sphi 0, %s242
    %s245 = sphi 0, %s244
    %s259 = sphi 0, %s245
    %s263 = sphi 0, %s263
    %s265 = sphi 0, %s263
    %s266 = sphi 0, %s265
    %s280 = sphi 0, %s266
    %s284 = sphi 0, %s284
    %s286 = sphi 0, %s284
    %s287 = sphi 0, %s286
    %s301 = sphi 0, %s287
    %s305 = sphi 0, %s305
    %s307 = sphi 0, %s305
    %s308 = sphi 0, %s307
    %s322 = sphi 0, %s308
    %s326 = sphi 0, %s326
    %s328 = sphi 0, %s326
    %s329 = sphi 0, %s328
    %s343 = sphi 0, %s329
    %s347 = sphi 0, %s347
    %s349 = sphi 0, %s347
    %s350 = sphi 0, %s349
    %s364 = sphi 0, %s350
    %s370 = sphi 0, %s372
    %s373 = sphi 0, %s370
    %s374 = sphi 0, %s373
    %s390 = sphi 0, %s374
    %s396 = sphi 0, %s398
    %s399 = sphi 0, %s396
    %s400 = sphi 0, %s399
    %s416 = sphi 0, %s400
    %s422 = sphi 0, %s424
    %s425 = sphi 0, %s422
    %s426 = sphi 0, %s425
    %s442 = sphi 0, %s426
    %s448 = sphi 0, %s450
    %s451 = sphi 0, %s448
    %s452 = sphi 0, %s451
    %s468 = sphi 0, %s452
  $region4: #{fpn_forward.1} parent=0 // loop_header_branch
    %28 = sbr.rel (%p26) target = $region8
  $region5: #{fpn_forward.1} parent=0 // loop_body
    %s30 = ssub.s32 %s25, 1
    %s31 = ssub.s32 %s25, 2
    %s32 = sadd.s32 %s25, 1
    %s33 = ssub.s32 %s25, %s32
    %p34 = scmp.eq.s32.totalorder %s33, 0
    %s36 = sadd.s32 %s35, 1
    %s37 = scalar_select %p34, %s35, %s36
    %p40 = pneg %p34
    %p41 = scmp.eq.s32.totalorder %s25, 1
    %p42 = por %p40, %p41
    %p43 = scmp.ne.s32.totalorder %s35, %s38
    %p44 = scmp.eq.s32.totalorder %s25, 0
    %p45 = por %p43, %p44
    %p46 = scmp.ne.s32.totalorder %s35, %s38
    %p47 = scmp.eq.s32.totalorder %s30, 1
    %p48 = por %p46, %p47
    %p49 = scmp.ne.s32.totalorder %s38, %s39
    %p50 = scmp.eq.s32.totalorder %s30, 0
    %p51 = por %p49, %p50
    %p52 = scmp.ne.s32.totalorder %s38, %s39
    %p53 = scmp.eq.s32.totalorder %s31, 1
    %p54 = por %p52, %p53
    %p56 = scmp.ne.s32.totalorder %s39, %s55
    %p57 = scmp.eq.s32.totalorder %s31, 0
    %p58 = por %p56, %p57
    %s59 = ssub.s32 %s25, %s32
    %p60 = scmp.eq.s32.totalorder %s59, 0
    %s62 = sadd.s32 %s61, 1
    %s63 = scalar_select %p60, %s61, %s62
    %p66 = pneg %p60
    %p67 = scmp.eq.s32.totalorder %s25, 1
    %p68 = por %p66, %p67
    %p69 = scmp.ne.s32.totalorder %s61, %s64
    %p70 = scmp.eq.s32.totalorder %s25, 0
    %p71 = por %p69, %p70
    %p72 = scmp.ne.s32.totalorder %s61, %s64
    %p73 = scmp.eq.s32.totalorder %s30, 1
    %p74 = por %p72, %p73
    %p75 = scmp.ne.s32.totalorder %s64, %s65
    %p76 = scmp.eq.s32.totalorder %s30, 0
    %p77 = por %p75, %p76
    %p78 = scmp.ne.s32.totalorder %s64, %s65
    %p79 = scmp.eq.s32.totalorder %s31, 1
    %p80 = por %p78, %p79
    %p82 = scmp.ne.s32.totalorder %s65, %s81
    %p83 = scmp.eq.s32.totalorder %s31, 0
    %p84 = por %p82, %p83
    %s85 = ssub.s32 %s25, %s32
    %p86 = scmp.eq.s32.totalorder %s85, 0
    %s88 = sadd.s32 %s87, 1
    %s89 = scalar_select %p86, %s87, %s88
    %p92 = pneg %p86
    %p93 = scmp.eq.s32.totalorder %s25, 1
    %p94 = por %p92, %p93
    %p95 = scmp.ne.s32.totalorder %s87, %s90
    %p96 = scmp.eq.s32.totalorder %s25, 0
    %p97 = por %p95, %p96
    %p98 = scmp.ne.s32.totalorder %s87, %s90
    %p99 = scmp.eq.s32.totalorder %s30, 1
    %p100 = por %p98, %p99
    %p101 = scmp.ne.s32.totalorder %s90, %s91
    %p102 = scmp.eq.s32.totalorder %s30, 0
    %p103 = por %p101, %p102
    %p104 = scmp.ne.s32.totalorder %s90, %s91
    %p105 = scmp.eq.s32.totalorder %s31, 1
    %p106 = por %p104, %p105
    %p108 = scmp.ne.s32.totalorder %s91, %s107
    %p109 = scmp.eq.s32.totalorder %s31, 0
    %p110 = por %p108, %p109
    %s111 = ssub.s32 %s25, %s32
    %p112 = scmp.eq.s32.totalorder %s111, 0
    %s114 = sadd.s32 %s113, 1
    %s115 = scalar_select %p112, %s113, %s114
    %p118 = pneg %p112
    %p119 = scmp.eq.s32.totalorder %s25, 1
    %p120 = por %p118, %p119
    %p121 = scmp.ne.s32.totalorder %s113, %s116
    %p122 = scmp.eq.s32.totalorder %s25, 0
    %p123 = por %p121, %p122
    %p124 = scmp.ne.s32.totalorder %s113, %s116
    %p125 = scmp.eq.s32.totalorder %s30, 1
    %p126 = por %p124, %p125
    %p127 = scmp.ne.s32.totalorder %s116, %s117
    %p128 = scmp.eq.s32.totalorder %s30, 0
    %p129 = por %p127, %p128
    %p130 = scmp.ne.s32.totalorder %s116, %s117
    %p131 = scmp.eq.s32.totalorder %s31, 1
    %p132 = por %p130, %p131
    %p134 = scmp.ne.s32.totalorder %s117, %s133
    %p135 = scmp.eq.s32.totalorder %s31, 0
    %p136 = por %p134, %p135
    %s138 = sadd.s32 %s137, 1
    %p141 = scmp.eq.s32.totalorder %s25, 1
    %p142 = scmp.ne.s32.totalorder %s137, %s139
    %p143 = scmp.eq.s32.totalorder %s25, 0
    %p144 = por %p142, %p143
    %p145 = scmp.ne.s32.totalorder %s137, %s139
    %p146 = scmp.eq.s32.totalorder %s30, 1
    %p147 = por %p145, %p146
    %p148 = scmp.ne.s32.totalorder %s139, %s140
    %p149 = scmp.eq.s32.totalorder %s30, 0
    %p150 = por %p148, %p149
    %p151 = scmp.ne.s32.totalorder %s139, %s140
    %p152 = scmp.eq.s32.totalorder %s31, 1
    %p153 = por %p151, %p152
    %p155 = scmp.ne.s32.totalorder %s140, %s154
    %p156 = scmp.eq.s32.totalorder %s31, 0
    %p157 = por %p155, %p156
    %s159 = sadd.s32 %s158, 1
    %p162 = scmp.eq.s32.totalorder %s25, 1
    %p163 = scmp.ne.s32.totalorder %s158, %s160
    %p164 = scmp.eq.s32.totalorder %s25, 0
    %p165 = por %p163, %p164
    %p166 = scmp.ne.s32.totalorder %s158, %s160
    %p167 = scmp.eq.s32.totalorder %s30, 1
    %p168 = por %p166, %p167
    %p169 = scmp.ne.s32.totalorder %s160, %s161
    %p170 = scmp.eq.s32.totalorder %s30, 0
    %p171 = por %p169, %p170
    %p172 = scmp.ne.s32.totalorder %s160, %s161
    %p173 = scmp.eq.s32.totalorder %s31, 1
    %p174 = por %p172, %p173
    %p176 = scmp.ne.s32.totalorder %s161, %s175
    %p177 = scmp.eq.s32.totalorder %s31, 0
    %p178 = por %p176, %p177
    %s180 = sadd.s32 %s179, 1
    %p183 = scmp.eq.s32.totalorder %s25, 1
    %p184 = scmp.ne.s32.totalorder %s179, %s181
    %p185 = scmp.eq.s32.totalorder %s25, 0
    %p186 = por %p184, %p185
    %p187 = scmp.ne.s32.totalorder %s179, %s181
    %p188 = scmp.eq.s32.totalorder %s30, 1
    %p189 = por %p187, %p188
    %p190 = scmp.ne.s32.totalorder %s181, %s182
    %p191 = scmp.eq.s32.totalorder %s30, 0
    %p192 = por %p190, %p191
    %p193 = scmp.ne.s32.totalorder %s181, %s182
    %p194 = scmp.eq.s32.totalorder %s31, 1
    %p195 = por %p193, %p194
    %p197 = scmp.ne.s32.totalorder %s182, %s196
    %p198 = scmp.eq.s32.totalorder %s31, 0
    %p199 = por %p197, %p198
    %s201 = sadd.s32 %s200, 1
    %p204 = scmp.eq.s32.totalorder %s25, 1
    %p205 = scmp.ne.s32.totalorder %s200, %s202
    %p206 = scmp.eq.s32.totalorder %s25, 0
    %p207 = por %p205, %p206
    %p208 = scmp.ne.s32.totalorder %s200, %s202
    %p209 = scmp.eq.s32.totalorder %s30, 1
    %p210 = por %p208, %p209
    %p211 = scmp.ne.s32.totalorder %s202, %s203
    %p212 = scmp.eq.s32.totalorder %s30, 0
    %p213 = por %p211, %p212
    %p214 = scmp.ne.s32.totalorder %s202, %s203
    %p215 = scmp.eq.s32.totalorder %s31, 1
    %p216 = por %p214, %p215
    %p218 = scmp.ne.s32.totalorder %s203, %s217
    %p219 = scmp.eq.s32.totalorder %s31, 0
    %p220 = por %p218, %p219
    %s222 = sadd.s32 %s221, 1
    %p225 = scmp.eq.s32.totalorder %s25, 1
    %p226 = scmp.ne.s32.totalorder %s221, %s223
    %p227 = scmp.eq.s32.totalorder %s25, 0
    %p228 = por %p226, %p227
    %p229 = scmp.ne.s32.totalorder %s221, %s223
    %p230 = scmp.eq.s32.totalorder %s30, 1
    %p231 = por %p229, %p230
    %p232 = scmp.ne.s32.totalorder %s223, %s224
    %p233 = scmp.eq.s32.totalorder %s30, 0
    %p234 = por %p232, %p233
    %p235 = scmp.ne.s32.totalorder %s223, %s224
    %p236 = scmp.eq.s32.totalorder %s31, 1
    %p237 = por %p235, %p236
    %p239 = scmp.ne.s32.totalorder %s224, %s238
    %p240 = scmp.eq.s32.totalorder %s31, 0
    %p241 = por %p239, %p240
    %s243 = sadd.s32 %s242, 1
    %p246 = scmp.eq.s32.totalorder %s25, 1
    %p247 = scmp.ne.s32.totalorder %s242, %s244
    %p248 = scmp.eq.s32.totalorder %s25, 0
    %p249 = por %p247, %p248
    %p250 = scmp.ne.s32.totalorder %s242, %s244
    %p251 = scmp.eq.s32.totalorder %s30, 1
    %p252 = por %p250, %p251
    %p253 = scmp.ne.s32.totalorder %s244, %s245
    %p254 = scmp.eq.s32.totalorder %s30, 0
    %p255 = por %p253, %p254
    %p256 = scmp.ne.s32.totalorder %s244, %s245
    %p257 = scmp.eq.s32.totalorder %s31, 1
    %p258 = por %p256, %p257
    %p260 = scmp.ne.s32.totalorder %s245, %s259
    %p261 = scmp.eq.s32.totalorder %s31, 0
    %p262 = por %p260, %p261
    %s264 = sadd.s32 %s263, 1
    %p267 = scmp.eq.s32.totalorder %s25, 1
    %p268 = scmp.ne.s32.totalorder %s263, %s265
    %p269 = scmp.eq.s32.totalorder %s25, 0
    %p270 = por %p268, %p269
    %p271 = scmp.ne.s32.totalorder %s263, %s265
    %p272 = scmp.eq.s32.totalorder %s30, 1
    %p273 = por %p271, %p272
    %p274 = scmp.ne.s32.totalorder %s265, %s266
    %p275 = scmp.eq.s32.totalorder %s30, 0
    %p276 = por %p274, %p275
    %p277 = scmp.ne.s32.totalorder %s265, %s266
    %p278 = scmp.eq.s32.totalorder %s31, 1
    %p279 = por %p277, %p278
    %p281 = scmp.ne.s32.totalorder %s266, %s280
    %p282 = scmp.eq.s32.totalorder %s31, 0
    %p283 = por %p281, %p282
    %s285 = sadd.s32 %s284, 1
    %p288 = scmp.eq.s32.totalorder %s25, 1
    %p289 = scmp.ne.s32.totalorder %s284, %s286
    %p290 = scmp.eq.s32.totalorder %s25, 0
    %p291 = por %p289, %p290
    %p292 = scmp.ne.s32.totalorder %s284, %s286
    %p293 = scmp.eq.s32.totalorder %s30, 1
    %p294 = por %p292, %p293
    %p295 = scmp.ne.s32.totalorder %s286, %s287
    %p296 = scmp.eq.s32.totalorder %s30, 0
    %p297 = por %p295, %p296
    %p298 = scmp.ne.s32.totalorder %s286, %s287
    %p299 = scmp.eq.s32.totalorder %s31, 1
    %p300 = por %p298, %p299
    %p302 = scmp.ne.s32.totalorder %s287, %s301
    %p303 = scmp.eq.s32.totalorder %s31, 0
    %p304 = por %p302, %p303
    %s306 = sadd.s32 %s305, 1
    %p309 = scmp.eq.s32.totalorder %s25, 1
    %p310 = scmp.ne.s32.totalorder %s305, %s307
    %p311 = scmp.eq.s32.totalorder %s25, 0
    %p312 = por %p310, %p311
    %p313 = scmp.ne.s32.totalorder %s305, %s307
    %p314 = scmp.eq.s32.totalorder %s30, 1
    %p315 = por %p313, %p314
    %p316 = scmp.ne.s32.totalorder %s307, %s308
    %p317 = scmp.eq.s32.totalorder %s30, 0
    %p318 = por %p316, %p317
    %p319 = scmp.ne.s32.totalorder %s307, %s308
    %p320 = scmp.eq.s32.totalorder %s31, 1
    %p321 = por %p319, %p320
    %p323 = scmp.ne.s32.totalorder %s308, %s322
    %p324 = scmp.eq.s32.totalorder %s31, 0
    %p325 = por %p323, %p324
    %s327 = sadd.s32 %s326, 1
    %p330 = scmp.eq.s32.totalorder %s25, 1
    %p331 = scmp.ne.s32.totalorder %s326, %s328
    %p332 = scmp.eq.s32.totalorder %s25, 0
    %p333 = por %p331, %p332
    %p334 = scmp.ne.s32.totalorder %s326, %s328
    %p335 = scmp.eq.s32.totalorder %s30, 1
    %p336 = por %p334, %p335
    %p337 = scmp.ne.s32.totalorder %s328, %s329
    %p338 = scmp.eq.s32.totalorder %s30, 0
    %p339 = por %p337, %p338
    %p340 = scmp.ne.s32.totalorder %s328, %s329
    %p341 = scmp.eq.s32.totalorder %s31, 1
    %p342 = por %p340, %p341
    %p344 = scmp.ne.s32.totalorder %s329, %s343
    %p345 = scmp.eq.s32.totalorder %s31, 0
    %p346 = por %p344, %p345
    %s348 = sadd.s32 %s347, 1
    %p351 = scmp.eq.s32.totalorder %s25, 1
    %p352 = scmp.ne.s32.totalorder %s347, %s349
    %p353 = scmp.eq.s32.totalorder %s25, 0
    %p354 = por %p352, %p353
    %p355 = scmp.ne.s32.totalorder %s347, %s349
    %p356 = scmp.eq.s32.totalorder %s30, 1
    %p357 = por %p355, %p356
    %p358 = scmp.ne.s32.totalorder %s349, %s350
    %p359 = scmp.eq.s32.totalorder %s30, 0
    %p360 = por %p358, %p359
    %p361 = scmp.ne.s32.totalorder %s349, %s350
    %p362 = scmp.eq.s32.totalorder %s31, 1
    %p363 = por %p361, %p362
    %p365 = scmp.ne.s32.totalorder %s350, %s364
    %p366 = scmp.eq.s32.totalorder %s31, 0
    %p367 = por %p365, %p366
    %s368 = ssub.s32 %s25, %s32
    %p369 = scmp.eq.s32.totalorder %s368, 0
    %s371 = sadd.s32 %s370, 1
    %s372 = scalar_select %p369, %s370, %s371
    %p375 = pneg %p369
    %p376 = scmp.eq.s32.totalorder %s25, 1
    %p377 = por %p375, %p376
    %p378 = scmp.ne.s32.totalorder %s370, %s373
    %p379 = scmp.eq.s32.totalorder %s25, 0
    %p380 = por %p378, %p379
    %p381 = scmp.ne.s32.totalorder %s370, %s373
    %p382 = scmp.eq.s32.totalorder %s30, 1
    %p383 = por %p381, %p382
    %p384 = scmp.ne.s32.totalorder %s373, %s374
    %p385 = scmp.eq.s32.totalorder %s30, 0
    %p386 = por %p384, %p385
    %p387 = scmp.ne.s32.totalorder %s373, %s374
    %p388 = scmp.eq.s32.totalorder %s31, 1
    %p389 = por %p387, %p388
    %p391 = scmp.ne.s32.totalorder %s374, %s390
    %p392 = scmp.eq.s32.totalorder %s31, 0
    %p393 = por %p391, %p392
    %s394 = ssub.s32 %s25, %s32
    %p395 = scmp.eq.s32.totalorder %s394, 0
    %s397 = sadd.s32 %s396, 1
    %s398 = scalar_select %p395, %s396, %s397
    %p401 = pneg %p395
    %p402 = scmp.eq.s32.totalorder %s25, 1
    %p403 = por %p401, %p402
    %p404 = scmp.ne.s32.totalorder %s396, %s399
    %p405 = scmp.eq.s32.totalorder %s25, 0
    %p406 = por %p404, %p405
    %p407 = scmp.ne.s32.totalorder %s396, %s399
    %p408 = scmp.eq.s32.totalorder %s30, 1
    %p409 = por %p407, %p408
    %p410 = scmp.ne.s32.totalorder %s399, %s400
    %p411 = scmp.eq.s32.totalorder %s30, 0
    %p412 = por %p410, %p411
    %p413 = scmp.ne.s32.totalorder %s399, %s400
    %p414 = scmp.eq.s32.totalorder %s31, 1
    %p415 = por %p413, %p414
    %p417 = scmp.ne.s32.totalorder %s400, %s416
    %p418 = scmp.eq.s32.totalorder %s31, 0
    %p419 = por %p417, %p418
    %s420 = ssub.s32 %s25, %s32
    %p421 = scmp.eq.s32.totalorder %s420, 0
    %s423 = sadd.s32 %s422, 1
    %s424 = scalar_select %p421, %s422, %s423
    %p427 = pneg %p421
    %p428 = scmp.eq.s32.totalorder %s25, 1
    %p429 = por %p427, %p428
    %p430 = scmp.ne.s32.totalorder %s422, %s425
    %p431 = scmp.eq.s32.totalorder %s25, 0
    %p432 = por %p430, %p431
    %p433 = scmp.ne.s32.totalorder %s422, %s425
    %p434 = scmp.eq.s32.totalorder %s30, 1
    %p435 = por %p433, %p434
    %p436 = scmp.ne.s32.totalorder %s425, %s426
    %p437 = scmp.eq.s32.totalorder %s30, 0
    %p438 = por %p436, %p437
    %p439 = scmp.ne.s32.totalorder %s425, %s426
    %p440 = scmp.eq.s32.totalorder %s31, 1
    %p441 = por %p439, %p440
    %p443 = scmp.ne.s32.totalorder %s426, %s442
    %p444 = scmp.eq.s32.totalorder %s31, 0
    %p445 = por %p443, %p444
    %s446 = ssub.s32 %s25, %s32
    %p447 = scmp.eq.s32.totalorder %s446, 0
    %s449 = sadd.s32 %s448, 1
    %s450 = scalar_select %p447, %s448, %s449
    %p453 = pneg %p447
    %p454 = scmp.eq.s32.totalorder %s25, 1
    %p455 = por %p453, %p454
    %p456 = scmp.ne.s32.totalorder %s448, %s451
    %p457 = scmp.eq.s32.totalorder %s25, 0
    %p458 = por %p456, %p457
    %p459 = scmp.ne.s32.totalorder %s448, %s451
    %p460 = scmp.eq.s32.totalorder %s30, 1
    %p461 = por %p459, %p460
    %p462 = scmp.ne.s32.totalorder %s451, %s452
    %p463 = scmp.eq.s32.totalorder %s30, 0
    %p464 = por %p462, %p463
    %p465 = scmp.ne.s32.totalorder %s451, %s452
    %p466 = scmp.eq.s32.totalorder %s31, 1
    %p467 = por %p465, %p466
    %p469 = scmp.ne.s32.totalorder %s452, %s468
    %p470 = scmp.eq.s32.totalorder %s31, 0
    %p471 = por %p469, %p470
    %p472 = scmp.le.s32.totalorder 1, %s25
    %p473 = scmp.lt.s32.totalorder %s25, 3
    %p474 = pnand %p472, %p473
    %p475 = pneg %p474
    // Predicated region
    $region9: #{fpn_forward.1} parent=5 // pred_check
      _
    $region10: #{fpn_forward.1} parent=5 // pred_check_branch
      %477 = sbr.rel (%p474) target = $region12
    $region11: #{fpn_forward.1} parent=5 // pred_region
      %s478 = ssub.s32 %s25, 1
      // Predicated region
      $region13: #{fpn_forward.1} parent=11 // pred_check
        %p479 = pneg %p150
      $region14: #{fpn_forward.1} parent=11 // pred_check_branch
        %481 = sbr.rel (%p479) target = $region16
      $region15: #{fpn_forward.1} parent=11 // pred_region
        _
      $region16: #{fpn_forward.1} parent=11 // pred_fallthru
        _
      // Predicated region
      $region17: #{fpn_forward.1} parent=11 // pred_check
        %p482 = pneg %p171
      $region18: #{fpn_forward.1} parent=11 // pred_check_branch
        %484 = sbr.rel (%p482) target = $region20
      $region19: #{fpn_forward.1} parent=11 // pred_region
        _
      $region20: #{fpn_forward.1} parent=11 // pred_fallthru
        _
      // Predicated region
      $region21: #{fpn_forward.1} parent=11 // pred_check
        %p485 = pneg %p192
      $region22: #{fpn_forward.1} parent=11 // pred_check_branch
        %487 = sbr.rel (%p485) target = $region24
      $region23: #{fpn_forward.1} parent=11 // pred_region
        _
      $region24: #{fpn_forward.1} parent=11 // pred_fallthru
        _
      // Predicated region
      $region25: #{fpn_forward.1} parent=11 // pred_check
        %p488 = pneg %p213
      $region26: #{fpn_forward.1} parent=11 // pred_check_branch
        %490 = sbr.rel (%p488) target = $region28
      $region27: #{fpn_forward.1} parent=11 // pred_region
        _
      $region28: #{fpn_forward.1} parent=11 // pred_fallthru
        _
      // Predicated region
      $region29: #{fpn_forward.1} parent=11 // pred_check
        %p491 = pneg %p234
      $region30: #{fpn_forward.1} parent=11 // pred_check_branch
        %493 = sbr.rel (%p491) target = $region32
      $region31: #{fpn_forward.1} parent=11 // pred_region
        _
      $region32: #{fpn_forward.1} parent=11 // pred_fallthru
        _
      // Predicated region
      $region33: #{fpn_forward.1} parent=11 // pred_check
        %p494 = pneg %p255
      $region34: #{fpn_forward.1} parent=11 // pred_check_branch
        %496 = sbr.rel (%p494) target = $region36
      $region35: #{fpn_forward.1} parent=11 // pred_region
        _
      $region36: #{fpn_forward.1} parent=11 // pred_fallthru
        _
      // Predicated region
      $region37: #{fpn_forward.1} parent=11 // pred_check
        %p497 = pneg %p276
      $region38: #{fpn_forward.1} parent=11 // pred_check_branch
        %499 = sbr.rel (%p497) target = $region40
      $region39: #{fpn_forward.1} parent=11 // pred_region
        _
      $region40: #{fpn_forward.1} parent=11 // pred_fallthru
        _
      // Predicated region
      $region41: #{fpn_forward.1} parent=11 // pred_check
        %p500 = pneg %p297
      $region42: #{fpn_forward.1} parent=11 // pred_check_branch
        %502 = sbr.rel (%p500) target = $region44
      $region43: #{fpn_forward.1} parent=11 // pred_region
        _
      $region44: #{fpn_forward.1} parent=11 // pred_fallthru
        _
      // Predicated region
      $region45: #{fpn_forward.1} parent=11 // pred_check
        %p503 = pneg %p318
      $region46: #{fpn_forward.1} parent=11 // pred_check_branch
        %505 = sbr.rel (%p503) target = $region48
      $region47: #{fpn_forward.1} parent=11 // pred_region
        _
      $region48: #{fpn_forward.1} parent=11 // pred_fallthru
        _
      // Predicated region
      $region49: #{fpn_forward.1} parent=11 // pred_check
        %p506 = pneg %p339
      $region50: #{fpn_forward.1} parent=11 // pred_check_branch
        %508 = sbr.rel (%p506) target = $region52
      $region51: #{fpn_forward.1} parent=11 // pred_region
        _
      $region52: #{fpn_forward.1} parent=11 // pred_fallthru
        _
      // Predicated region
      $region53: #{fpn_forward.1} parent=11 // pred_check
        %p509 = pneg %p360
      $region54: #{fpn_forward.1} parent=11 // pred_check_branch
        %511 = sbr.rel (%p509) target = $region56
      $region55: #{fpn_forward.1} parent=11 // pred_region
        _
      $region56: #{fpn_forward.1} parent=11 // pred_fallthru
        _
    $region12: #{fpn_forward.1} parent=5 // pred_fallthru
      _
    %p512 = scmp.lt.s32.totalorder %s25, 2
    // Predicated region
    $region57: #{fpn_forward.1} parent=5 // pred_check
      %p513 = pneg %p512
    $region58: #{fpn_forward.1} parent=5 // pred_check_branch
      %515 = sbr.rel (%p513) target = $region60
    $region59: #{fpn_forward.1} parent=5 // pred_region
      // Predicated region
      $region61: #{fpn_forward.1} parent=59 // pred_check
        %p516 = pneg %p45
      $region62: #{fpn_forward.1} parent=59 // pred_check_branch
        %518 = sbr.rel (%p516) target = $region64
      $region63: #{fpn_forward.1} parent=59 // pred_region
        %p519 = scmp.lt.s32.totalorder %s25, 1
        %s520 = scalar_select %p519, %s25, 1
        %s521 = smul.addr %s520, 8
        %s522 = smul.addr %s521, 8
        %s523 = scalar_lea.vmem %s0, %s522
      $region64: #{fpn_forward.1} parent=59 // pred_fallthru
        _
      // Predicated region
      $region65: #{fpn_forward.1} parent=59 // pred_check
        %p524 = pneg %p71
      $region66: #{fpn_forward.1} parent=59 // pred_check_branch
        %526 = sbr.rel (%p524) target = $region68
      $region67: #{fpn_forward.1} parent=59 // pred_region
        %p527 = scmp.lt.s32.totalorder %s25, 1
        %s528 = scalar_select %p527, %s25, 1
        %s529 = smul.addr %s528, 4
        %s530 = smul.addr %s529, 8
        %s531 = scalar_lea.vmem %s1, %s530
      $region68: #{fpn_forward.1} parent=59 // pred_fallthru
        _
      // Predicated region
      $region69: #{fpn_forward.1} parent=59 // pred_check
        %p532 = pneg %p97
      $region70: #{fpn_forward.1} parent=59 // pred_check_branch
        %534 = sbr.rel (%p532) target = $region72
      $region71: #{fpn_forward.1} parent=59 // pred_region
        %p535 = scmp.lt.s32.totalorder %s25, 1
        %s536 = scalar_select %p535, %s25, 1
        %s537 = smul.addr %s536, 4
        %s538 = smul.addr %s537, 8
        %s539 = scalar_lea.vmem %s2, %s538
      $region72: #{fpn_forward.1} parent=59 // pred_fallthru
        _
      // Predicated region
      $region73: #{fpn_forward.1} parent=59 // pred_check
        %p540 = pneg %p123
      $region74: #{fpn_forward.1} parent=59 // pred_check_branch
        %542 = sbr.rel (%p540) target = $region76
      $region75: #{fpn_forward.1} parent=59 // pred_region
        %p543 = scmp.lt.s32.totalorder %s25, 1
        %s544 = scalar_select %p543, %s25, 1
        %s545 = smul.addr %s544, 8
        %s546 = smul.addr %s545, 8
        %s547 = scalar_lea.vmem %s3, %s546
      $region76: #{fpn_forward.1} parent=59 // pred_fallthru
        _
    $region60: #{fpn_forward.1} parent=5 // pred_fallthru
      _
    %p548 = scmp.le.s32.totalorder 1, %s25
    %p549 = scmp.lt.s32.totalorder %s25, 3
    %p550 = pnand %p548, %p549
    %p551 = pneg %p550
    // Predicated region
    $region77: #{fpn_forward.1} parent=5 // pred_check
      _
    $region78: #{fpn_forward.1} parent=5 // pred_check_branch
      %553 = sbr.rel (%p550) target = $region80
    $region79: #{fpn_forward.1} parent=5 // pred_region
      %s554 = ssub.s32 %s25, 1
      %p555 = scmp.lt.s32.totalorder %s30, 1
      %s556 = scalar_select %p555, %s30, 1
      %s557 = smul.addr %s556, 8
      %s558 = smul.addr %s557, 8
      %s559 = scalar_lea.vmem %s0, %s558
      %p560 = pneg %p51
      %p561 = pneg %p48
      %p562 = scmp.lt.s32.totalorder %s30, 1
      %s563 = scalar_select %p562, %s30, 1
      %s564 = smul.addr %s563, 4
      %s565 = smul.addr %s564, 8
      %s566 = scalar_lea.vmem %s1, %s565
      %p567 = pneg %p77
      %p568 = pneg %p74
      %p569 = scmp.lt.s32.totalorder %s30, 1
      %s570 = scalar_select %p569, %s30, 1
      %s571 = smul.addr %s570, 4
      %s572 = smul.addr %s571, 8
      %s573 = scalar_lea.vmem %s2, %s572
      %p574 = pneg %p103
      %p575 = pneg %p100
      %p576 = scmp.lt.s32.totalorder %s30, 1
      %s577 = scalar_select %p576, %s30, 1
      %s578 = smul.addr %s577, 8
      %s579 = smul.addr %s578, 8
      %s580 = scalar_lea.vmem %s3, %s579
      %p581 = pneg %p129
      %p582 = pneg %p126
      %p583 = pneg %p150
      %p584 = pneg %p147
      %p585 = pneg %p171
      %p586 = pneg %p168
      %p587 = pneg %p192
      %p588 = pneg %p189
      %p589 = pneg %p213
      %p590 = pneg %p210
      %p591 = pneg %p234
      %p592 = pneg %p231
      %p593 = pneg %p255
      %p594 = pneg %p252
      %p595 = pneg %p276
      %p596 = pneg %p273
      %p597 = pneg %p297
      %p598 = pneg %p294
      %p599 = pneg %p318
      %p600 = pneg %p315
      %p601 = pneg %p339
      %p602 = pneg %p336
      %p603 = pneg %p360
      %p604 = pneg %p357
      %p605 = pneg %p386
      %p606 = pneg %p383
      %p607 = scmp.lt.s32.totalorder %s30, 1
      %s608 = scalar_select %p607, %s30, 1
      %s609 = smul.addr %s608, 32
      %s610 = smul.addr %s609, 8
      %s611 = scalar_lea.vmem %s15, %s610
      %p612 = pneg %p412
      %p613 = pneg %p409
      %p614 = scmp.lt.s32.totalorder %s30, 1
      %s615 = scalar_select %p614, %s30, 1
      %s616 = smul.addr %s615, 8
      %s617 = smul.addr %s616, 8
      %s618 = scalar_lea.vmem %s16, %s617
      %p619 = pneg %p438
      %p620 = pneg %p435
      %p621 = scmp.lt.s32.totalorder %s30, 1
      %s622 = scalar_select %p621, %s30, 1
      %s623 = smul.addr %s622, 4
      %s624 = smul.addr %s623, 8
      %s625 = scalar_lea.vmem %s17, %s624
      %p626 = pneg %p464
      %p627 = pneg %p461
      %p628 = scmp.lt.s32.totalorder %s30, 1
      %s629 = scalar_select %p628, %s30, 1
      %s630 = smul.addr %s629, 4
      %s631 = smul.addr %s630, 8
      %s632 = scalar_lea.vmem %s18, %s631
      %p633 = scmp.lt.s32.totalorder %s30, 1
      %s634 = scalar_select %p633, %s30, 1
      %s635 = smul.addr %s634, 8
      %s636 = smul.addr %s635, 8
      %s637 = scalar_lea.vmem %s0, %s636
      %p638 = scmp.lt.s32.totalorder %s30, 1
      %s639 = scalar_select %p638, %s30, 1
      %s640 = smul.addr %s639, 4
      %s641 = smul.addr %s640, 8
      %s642 = scalar_lea.vmem %s1, %s641
      %p643 = scmp.lt.s32.totalorder %s30, 1
      %s644 = scalar_select %p643, %s30, 1
      %s645 = smul.addr %s644, 4
      %s646 = smul.addr %s645, 8
      %s647 = scalar_lea.vmem %s2, %s646
      %p648 = scmp.lt.s32.totalorder %s30, 1
      %s649 = scalar_select %p648, %s30, 1
      %s650 = smul.addr %s649, 8
      %s651 = smul.addr %s650, 8
      %s652 = scalar_lea.vmem %s3, %s651
      %p653 = scmp.lt.s32.totalorder %s30, 1
      %s654 = scalar_select %p653, %s30, 1
      %s655 = smul.addr %s654, 32
      %s656 = smul.addr %s655, 8
      %s657 = scalar_lea.vmem %s15, %s656
      %p658 = scmp.lt.s32.totalorder %s30, 1
      %s659 = scalar_select %p658, %s30, 1
      %s660 = smul.addr %s659, 8
      %s661 = smul.addr %s660, 8
      %s662 = scalar_lea.vmem %s16, %s661
      %p663 = scmp.lt.s32.totalorder %s30, 1
      %s664 = scalar_select %p663, %s30, 1
      %s665 = smul.addr %s664, 4
      %s666 = smul.addr %s665, 8
      %s667 = scalar_lea.vmem %s17, %s666
      %p668 = scmp.lt.s32.totalorder %s30, 1
      %s669 = scalar_select %p668, %s30, 1
      %s670 = smul.addr %s669, 4
      %s671 = smul.addr %s670, 8
      %s672 = scalar_lea.vmem %s18, %s671
      %v676 = vld [vmem:[%s652] sm:$0xff]
      %v677 = vld [vmem:[%s652 + $0x8] sm:$0xff]
      %v678 = vld [vmem:[%s652 + $0x10] sm:$0xff]
      %v679 = vld [vmem:[%s652 + $0x18] sm:$0xff]
      %v680 = vld [vmem:[%s652 + $0x20] sm:$0xff]
      %v681 = vld [vmem:[%s652 + $0x28] sm:$0xff]
      %v682 = vld [vmem:[%s652 + $0x30] sm:$0xff]
      %v683 = vld [vmem:[%s652 + $0x38] sm:$0xff]
      %v684 = vpack.c.bf16 %v677, %v676
      %v685 = vpack.c.bf16 %v679, %v678
      %v686 = vpack.c.bf16 %v681, %v680
      %v687 = vpack.c.bf16 %v683, %v682
      %v688 = vld [vmem:[%s7] sm:$0xf]
      %v689 = vld [vmem:[%s7 + $0x4] sm:$0xf]
      %v690 = vld [vmem:[%s7 + $0x8] sm:$0xf]
      %v691 = vld [vmem:[%s7 + $0xc] sm:$0xf]
      %v696 = vunpack.c.l.b16 %v688
      %v697 = vunpack.c.l.b16 %v689
      %v698 = vunpack.c.l.b16 %v690
      %v699 = vunpack.c.l.b16 %v691
      %v700 = vpack.c.b16 %v697, %v696
      %v701 = vpack.c.b16 %v699, %v698
      %vm702 = vcmask 523264
      %v704 = vsel %vm702, %v700, 0
      %v707 = vsel %vm702, %v701, 0
      %709 = vmatprep.subr.bf16.mxu0 0
      %710 = vmatpush1.bf16.msra.mxu0 0
      %711 = vmatprep.subr.bf16.mxu0 0
      %712 = vmatpush1.bf16.msra.mxu0 0
      %713 = vmatprep.subr.bf16.mxu0 0
      %714 = vmatpush1.bf16.msra.mxu0 0
      %715 = vmatprep.subr.bf16.mxu0 0
      %716 = vmatpush1.bf16.msra.mxu0 0
      %717 = vmatprep.subr.bf16.mxu0 0
      %718 = vmatpush1.bf16.msra.mxu0 %v687
      %719 = vmatprep.subr.bf16.mxu0 0
      %720 = vmatpush1.bf16.msra.mxu0 %v686
      %721 = vmatprep.subr.bf16.mxu0 0
      %722 = vmatpush1.bf16.msra.mxu0 %v685
      %723 = vmatprep.subr.bf16.mxu0 0
      %724 = vmatpush1.bf16.msra.mxu0 %v684
      %725 = vmatprep.subr.bf16.mxu0 0
      %726 = vmatpush2.bf16.msra.mxu0 0
      %727 = vmatprep.subr.bf16.mxu0 0
      %728 = vmatpush2.bf16.msra.mxu0 0
      %729 = vmatprep.subr.bf16.mxu0 0
      %730 = vmatpush2.bf16.msra.mxu0 0
      %731 = vmatprep.subr.bf16.mxu0 0
      %732 = vmatpush2.bf16.msra.mxu0 0
      %733 = vmatprep.subr.bf16.mxu0 0
      %734 = vmatpush2.bf16.msra.mxu0 0
      %735 = vmatprep.subr.bf16.mxu0 0
      %736 = vmatpush2.bf16.msra.mxu0 0
      %737 = vmatprep.subr.bf16.mxu0 0
      %738 = vmatpush2.bf16.msra.mxu0 0
      %739 = vmatprep.subr.bf16.mxu0 0
      %740 = vmatpush2.bf16.msra.mxu0 0
      %741 = vmatprep.mubr.bf16.mxu0 0
      %742 = vmatmul.mubr.bf16.gmra.mxu0 %v704
      %v743 = vpop.f32.mrf.mxu0
      %v744 = vadd.f32 0.0, %v743
      %v745 = vpop.f32.mrf.mxu0
      %v746 = vpop.f32.mrf.mxu0
      %v747 = vadd.f32 0.0, %v746
      %v748 = vpop.f32.mrf.mxu0
      %749 = vmatprep.mubr.bf16.mxu0 0
      %750 = vmatmul.mubr.bf16.gmra.mxu0 %v707
      %v751 = vpop.f32.mrf.mxu0
      %v752 = vadd.f32 0.0, %v751
      %v753 = vpop.f32.mrf.mxu0
      %v754 = vpop.f32.mrf.mxu0
      %v755 = vadd.f32 0.0, %v754
      %v756 = vpop.f32.mrf.mxu0
      %757 = vdwg.mxu0
      %v758 = vpack.c.bf16 %v747, %v744
      %v759 = vpack.c.bf16 %v755, %v752
      %762 = vrot.lane.b32.xlu0 %v758, 5
      %v763 = vpop.permute.xlu0 %762
      %764 = vrot.lane.b32.xlu0 %v759, 5
      %v765 = vpop.permute.xlu0 %764
      %vm766 = vcmask 39936
      %v769 = vsel %vm766, 0, %v763
      %v771 = vsel %vm766, 0, %v765
      %vm772 = vcmask 171008
      %v773 = vsel %vm772, %v769, 0
      %v775 = vsel %vm772, %v771, 0
      %v777 = vlaneseq
      %v778 = vand.u32 %v777, 127
      %vm779 = vcmp.lt.s32.totalorder %v778, 0
      %v780 = vsub.s32 0, %v778
      %v781 = vsel %vm779, %v780, %v778
      %v782 = vshrl.u32 %v781, 2
      %v783 = vand.u32 %v781, 3
      %v784 = vsub.s32 0, %v783
      %v785 = vsel %vm779, %v784, %v783
      %vm786 = vcmp.ne.s32.totalorder %v785, 0
      %vm787 = vcmp.lt.s32.totalorder %v785, 0
      %vm788 = vmand %vm787, %vm786
      %v789 = vadd.s32 %v785, 4
      %v790 = vsel %vm788, %v789, %v785
      %vm791 = vcmp.ge.s32.totalorder %v790, 1
      %vm792 = vcmp.le.s32.totalorder %v790, 2
      %v793 = vsel %vm791, 1, 0
      %vm794 = vcmp.eq.s32.totalorder %v793, 1
      %vm795 = vmpackc.low %vm794, %vm794
      %v796 = vsel %vm795, 65537, 0
      %v797 = vlaneseq
      %v798 = vshrl.u32 %v797, 7
      %v799 = vsub.s32 0, %v798
      %v800 = vrot.slane %v796, %v799
      %vm801 = vcmp.ne.s16.totalorder %v800, 0
      %v802 = vsel %vm801, %v773, 0
      %v803 = vsel %vm801, %v775, 0
      %v804 = vld [vmem:[%s11] sm:$0xf]
      %v805 = vld [vmem:[%s11 + $0x4] sm:$0xf]
      %v806 = vld [vmem:[%s11 + $0x8] sm:$0xf]
      %v807 = vld [vmem:[%s11 + $0xc] sm:$0xf]
      %s808 = scalar_lea.vmem %s11, 16
      %v809 = vld [vmem:[%s808] sm:$0xf]
      %v810 = vld [vmem:[%s808 + $0x4] sm:$0xf]
      %v811 = vld [vmem:[%s808 + $0x8] sm:$0xf]
      %v812 = vld [vmem:[%s808 + $0xc] sm:$0xf]
      %v817 = vunpack.c.l.b16 %v809
      %v818 = vunpack.c.l.b16 %v810
      %v819 = vunpack.c.l.b16 %v811
      %v820 = vunpack.c.l.b16 %v812
      %v821 = vpack.c.b16 %v818, %v817
      %v822 = vpack.c.b16 %v820, %v819
      %825 = vrot.lane.b32.xlu0 %v773, 127
      %v826 = vpop.permute.xlu0 %825
      %827 = vrot.lane.b32.xlu0 %v775, 127
      %v828 = vpop.permute.xlu0 %827
      %vm831 = vcmask 261120
      %v833 = vsel %vm831, %v821, 0
      %v836 = vsel %vm831, %v822, 0
      %838 = vmatprep.subr.bf16.mxu0 0
      %839 = vmatpush1.bf16.msra.mxu0 0
      %840 = vmatprep.subr.bf16.mxu0 0
      %841 = vmatpush1.bf16.msra.mxu0 0
      %842 = vmatprep.subr.bf16.mxu0 0
      %843 = vmatpush1.bf16.msra.mxu0 0
      %844 = vmatprep.subr.bf16.mxu0 0
      %845 = vmatpush1.bf16.msra.mxu0 0
      %846 = vmatprep.subr.bf16.mxu0 0
      %847 = vmatpush1.bf16.msra.mxu0 0
      %848 = vmatprep.subr.bf16.mxu0 0
      %849 = vmatpush1.bf16.msra.mxu0 0
      %850 = vmatprep.subr.bf16.mxu0 0
      %851 = vmatpush1.bf16.msra.mxu0 %v828
      %852 = vmatprep.subr.bf16.mxu0 0
      %853 = vmatpush1.bf16.msra.mxu0 %v826
      %854 = vmatprep.subr.bf16.mxu0 0
      %855 = vmatpush2.bf16.msra.mxu0 0
      %856 = vmatprep.subr.bf16.mxu0 0
      %857 = vmatpush2.bf16.msra.mxu0 0
      %858 = vmatprep.subr.bf16.mxu0 0
      %859 = vmatpush2.bf16.msra.mxu0 0
      %860 = vmatprep.subr.bf16.mxu0 0
      %861 = vmatpush2.bf16.msra.mxu0 0
      %862 = vmatprep.subr.bf16.mxu0 0
      %863 = vmatpush2.bf16.msra.mxu0 0
      %864 = vmatprep.subr.bf16.mxu0 0
      %865 = vmatpush2.bf16.msra.mxu0 0
      %866 = vmatprep.subr.bf16.mxu0 0
      %867 = vmatpush2.bf16.msra.mxu0 0
      %868 = vmatprep.subr.bf16.mxu0 0
      %869 = vmatpush2.bf16.msra.mxu0 0
      %870 = vmatprep.mubr.bf16.mxu0 0
      %871 = vmatmul.mubr.bf16.gmra.mxu0 %v833
      %v872 = vpop.f32.mrf.mxu0
      %v873 = vadd.f32 0.0, %v872
      %v874 = vpop.f32.mrf.mxu0
      %v875 = vpop.f32.mrf.mxu0
      %v876 = vadd.f32 0.0, %v875
      %v877 = vpop.f32.mrf.mxu0
      %878 = vmatprep.mubr.bf16.mxu0 0
      %879 = vmatmul.mubr.bf16.gmra.mxu0 %v836
      %v880 = vpop.f32.mrf.mxu0
      %v881 = vadd.f32 0.0, %v880
      %v882 = vpop.f32.mrf.mxu0
      %v883 = vpop.f32.mrf.mxu0
      %v884 = vadd.f32 0.0, %v883
      %v885 = vpop.f32.mrf.mxu0
      %886 = vdwg.mxu0
      %v891 = vunpack.c.l.b16 %v804
      %v892 = vunpack.c.l.b16 %v805
      %v893 = vunpack.c.l.b16 %v806
      %v894 = vunpack.c.l.b16 %v807
      %v895 = vpack.c.b16 %v892, %v891
      %v896 = vpack.c.b16 %v894, %v893
      %v898 = vsel %vm831, %v895, 0
      %v901 = vsel %vm831, %v896, 0
      %903 = vmatprep.subr.bf16.mxu0 0
      %904 = vmatpush1.bf16.msra.mxu0 0
      %905 = vmatprep.subr.bf16.mxu0 0
      %906 = vmatpush1.bf16.msra.mxu0 0
      %907 = vmatprep.subr.bf16.mxu0 0
      %908 = vmatpush1.bf16.msra.mxu0 0
      %909 = vmatprep.subr.bf16.mxu0 0
      %910 = vmatpush1.bf16.msra.mxu0 0
      %911 = vmatprep.subr.bf16.mxu0 0
      %912 = vmatpush1.bf16.msra.mxu0 0
      %913 = vmatprep.subr.bf16.mxu0 0
      %914 = vmatpush1.bf16.msra.mxu0 0
      %915 = vmatprep.subr.bf16.mxu0 0
      %916 = vmatpush1.bf16.msra.mxu0 %v803
      %917 = vmatprep.subr.bf16.mxu0 0
      %918 = vmatpush1.bf16.msra.mxu0 %v802
      %919 = vmatprep.subr.bf16.mxu0 0
      %920 = vmatpush2.bf16.msra.mxu0 0
      %921 = vmatprep.subr.bf16.mxu0 0
      %922 = vmatpush2.bf16.msra.mxu0 0
      %923 = vmatprep.subr.bf16.mxu0 0
      %924 = vmatpush2.bf16.msra.mxu0 0
      %925 = vmatprep.subr.bf16.mxu0 0
      %926 = vmatpush2.bf16.msra.mxu0 0
      %927 = vmatprep.subr.bf16.mxu0 0
      %928 = vmatpush2.bf16.msra.mxu0 0
      %929 = vmatprep.subr.bf16.mxu0 0
      %930 = vmatpush2.bf16.msra.mxu0 0
      %931 = vmatprep.subr.bf16.mxu0 0
      %932 = vmatpush2.bf16.msra.mxu0 0
      %933 = vmatprep.subr.bf16.mxu0 0
      %934 = vmatpush2.bf16.msra.mxu0 0
      %935 = vmatprep.mubr.bf16.mxu0 0
      %936 = vmatmul.mubr.bf16.gmra.mxu0 %v898
      %v937 = vpop.f32.mrf.mxu0
      %v938 = vadd.f32 %v873, %v937
      %v939 = vpop.f32.mrf.mxu0
      %v940 = vpop.f32.mrf.mxu0
      %v941 = vadd.f32 %v876, %v940
      %v942 = vpop.f32.mrf.mxu0
      %943 = vmatprep.mubr.bf16.mxu0 0
      %944 = vmatmul.mubr.bf16.gmra.mxu0 %v901
      %v945 = vpop.f32.mrf.mxu0
      %v946 = vadd.f32 %v881, %v945
      %v947 = vpop.f32.mrf.mxu0
      %v948 = vpop.f32.mrf.mxu0
      %v949 = vadd.f32 %v884, %v948
      %v950 = vpop.f32.mrf.mxu0
      %951 = vdwg.mxu0
      %v952 = vsel %vm792, 1, 0
      %vm953 = vcmp.eq.s32.totalorder %v952, 1
      %vm954 = vmpackc.low %vm953, %vm953
      %v955 = vsel %vm954, 65537, 0
      %v956 = vlaneseq
      %v957 = vshrl.u32 %v956, 7
      %v958 = vsub.s32 0, %v957
      %v959 = vrot.slane %v955, %v958
      %960 = vrot.lane.b32.xlu0 %v959, 2
      %v961 = vpop.permute.xlu0 %960
      %vm962 = vcmp.ne.s16.totalorder %v961, 0
      %v963 = vsel %vm962, %v773, 0
      %v964 = vsel %vm962, %v775, 0
      %s965 = scalar_lea.vmem %s11, 32
      %v966 = vld [vmem:[%s965] sm:$0xf]
      %v967 = vld [vmem:[%s965 + $0x4] sm:$0xf]
      %v968 = vld [vmem:[%s965 + $0x8] sm:$0xf]
      %v969 = vld [vmem:[%s965 + $0xc] sm:$0xf]
      %v974 = vunpack.c.l.b16 %v966
      %v975 = vunpack.c.l.b16 %v967
      %v976 = vunpack.c.l.b16 %v968
      %v977 = vunpack.c.l.b16 %v969
      %v978 = vpack.c.b16 %v975, %v974
      %v979 = vpack.c.b16 %v977, %v976
      %982 = vrot.lane.b32.xlu0 %v963, 126
      %v983 = vpop.permute.xlu0 %982
      %984 = vrot.lane.b32.xlu0 %v964, 126
      %v985 = vpop.permute.xlu0 %984
      %v989 = vsel %vm831, %v978, 0
      %v992 = vsel %vm831, %v979, 0
      %994 = vmatprep.subr.bf16.mxu0 0
      %995 = vmatpush1.bf16.msra.mxu0 0
      %996 = vmatprep.subr.bf16.mxu0 0
      %997 = vmatpush1.bf16.msra.mxu0 0
      %998 = vmatprep.subr.bf16.mxu0 0
      %999 = vmatpush1.bf16.msra.mxu0 0
      %1000 = vmatprep.subr.bf16.mxu0 0
      %1001 = vmatpush1.bf16.msra.mxu0 0
      %1002 = vmatprep.subr.bf16.mxu0 0
      %1003 = vmatpush1.bf16.msra.mxu0 0
      %1004 = vmatprep.subr.bf16.mxu0 0
      %1005 = vmatpush1.bf16.msra.mxu0 0
      %1006 = vmatprep.subr.bf16.mxu0 0
      %1007 = vmatpush1.bf16.msra.mxu0 %v985
      %1008 = vmatprep.subr.bf16.mxu0 0
      %1009 = vmatpush1.bf16.msra.mxu0 %v983
      %1010 = vmatprep.subr.bf16.mxu0 0
      %1011 = vmatpush2.bf16.msra.mxu0 0
      %1012 = vmatprep.subr.bf16.mxu0 0
      %1013 = vmatpush2.bf16.msra.mxu0 0
      %1014 = vmatprep.subr.bf16.mxu0 0
      %1015 = vmatpush2.bf16.msra.mxu0 0
      %1016 = vmatprep.subr.bf16.mxu0 0
      %1017 = vmatpush2.bf16.msra.mxu0 0
      %1018 = vmatprep.subr.bf16.mxu0 0
      %1019 = vmatpush2.bf16.msra.mxu0 0
      %1020 = vmatprep.subr.bf16.mxu0 0
      %1021 = vmatpush2.bf16.msra.mxu0 0
      %1022 = vmatprep.subr.bf16.mxu0 0
      %1023 = vmatpush2.bf16.msra.mxu0 0
      %1024 = vmatprep.subr.bf16.mxu0 0
      %1025 = vmatpush2.bf16.msra.mxu0 0
      %1026 = vmatprep.mubr.bf16.mxu0 0
      %1027 = vmatmul.mubr.bf16.gmra.mxu0 %v989
      %v1028 = vpop.f32.mrf.mxu0
      %v1029 = vadd.f32 0.0, %v1028
      %v1030 = vpop.f32.mrf.mxu0
      %v1031 = vpop.f32.mrf.mxu0
      %v1032 = vadd.f32 0.0, %v1031
      %v1033 = vpop.f32.mrf.mxu0
      %1034 = vmatprep.mubr.bf16.mxu0 0
      %1035 = vmatmul.mubr.bf16.gmra.mxu0 %v992
      %v1036 = vpop.f32.mrf.mxu0
      %v1037 = vadd.f32 0.0, %v1036
      %v1038 = vpop.f32.mrf.mxu0
      %v1039 = vpop.f32.mrf.mxu0
      %v1040 = vadd.f32 0.0, %v1039
      %v1041 = vpop.f32.mrf.mxu0
      %1042 = vdwg.mxu0
      %v1043 = vadd.f32 %v938, %v1029
      %v1044 = vadd.f32 %v941, %v1032
      %v1045 = vadd.f32 %v946, %v1037
      %v1046 = vadd.f32 %v949, %v1040
      %1047 = vrot.lane.b32.xlu0 %v800, 4
      %v1048 = vpop.permute.xlu0 %1047
      %vm1049 = vcmp.ne.s16.totalorder %v1048, 0
      %v1050 = vsel %vm1049, %v773, 0
      %v1051 = vsel %vm1049, %v775, 0
      %s1052 = scalar_lea.vmem %s11, 48
      %v1053 = vld [vmem:[%s1052] sm:$0xf]
      %v1054 = vld [vmem:[%s1052 + $0x4] sm:$0xf]
      %v1055 = vld [vmem:[%s1052 + $0x8] sm:$0xf]
      %v1056 = vld [vmem:[%s1052 + $0xc] sm:$0xf]
      %v1061 = vunpack.c.l.b16 %v1053
      %v1062 = vunpack.c.l.b16 %v1054
      %v1063 = vunpack.c.l.b16 %v1055
      %v1064 = vunpack.c.l.b16 %v1056
      %v1065 = vpack.c.b16 %v1062, %v1061
      %v1066 = vpack.c.b16 %v1064, %v1063
      %1069 = vrot.lane.b32.xlu0 %v1050, 124
      %v1070 = vpop.permute.xlu0 %1069
      %1071 = vrot.lane.b32.xlu0 %v1051, 124
      %v1072 = vpop.permute.xlu0 %1071
      %v1076 = vsel %vm831, %v1065, 0
      %v1079 = vsel %vm831, %v1066, 0
      %1081 = vmatprep.subr.bf16.mxu0 0
      %1082 = vmatpush1.bf16.msra.mxu0 0
      %1083 = vmatprep.subr.bf16.mxu0 0
      %1084 = vmatpush1.bf16.msra.mxu0 0
      %1085 = vmatprep.subr.bf16.mxu0 0
      %1086 = vmatpush1.bf16.msra.mxu0 0
      %1087 = vmatprep.subr.bf16.mxu0 0
      %1088 = vmatpush1.bf16.msra.mxu0 0
      %1089 = vmatprep.subr.bf16.mxu0 0
      %1090 = vmatpush1.bf16.msra.mxu0 0
      %1091 = vmatprep.subr.bf16.mxu0 0
      %1092 = vmatpush1.bf16.msra.mxu0 0
      %1093 = vmatprep.subr.bf16.mxu0 0
      %1094 = vmatpush1.bf16.msra.mxu0 %v1072
      %1095 = vmatprep.subr.bf16.mxu0 0
      %1096 = vmatpush1.bf16.msra.mxu0 %v1070
      %1097 = vmatprep.subr.bf16.mxu0 0
      %1098 = vmatpush2.bf16.msra.mxu0 0
      %1099 = vmatprep.subr.bf16.mxu0 0
      %1100 = vmatpush2.bf16.msra.mxu0 0
      %1101 = vmatprep.subr.bf16.mxu0 0
      %1102 = vmatpush2.bf16.msra.mxu0 0
      %1103 = vmatprep.subr.bf16.mxu0 0
      %1104 = vmatpush2.bf16.msra.mxu0 0
      %1105 = vmatprep.subr.bf16.mxu0 0
      %1106 = vmatpush2.bf16.msra.mxu0 0
      %1107 = vmatprep.subr.bf16.mxu0 0
      %1108 = vmatpush2.bf16.msra.mxu0 0
      %1109 = vmatprep.subr.bf16.mxu0 0
      %1110 = vmatpush2.bf16.msra.mxu0 0
      %1111 = vmatprep.subr.bf16.mxu0 0
      %1112 = vmatpush2.bf16.msra.mxu0 0
      %1113 = vmatprep.mubr.bf16.mxu0 0
      %1114 = vmatmul.mubr.bf16.gmra.mxu0 %v1076
      %v1115 = vpop.f32.mrf.mxu0
      %v1116 = vadd.f32 0.0, %v1115
      %v1117 = vpop.f32.mrf.mxu0
      %v1118 = vpop.f32.mrf.mxu0
      %v1119 = vadd.f32 0.0, %v1118
      %v1120 = vpop.f32.mrf.mxu0
      %1121 = vmatprep.mubr.bf16.mxu0 0
      %1122 = vmatmul.mubr.bf16.gmra.mxu0 %v1079
      %v1123 = vpop.f32.mrf.mxu0
      %v1124 = vadd.f32 0.0, %v1123
      %v1125 = vpop.f32.mrf.mxu0
      %v1126 = vpop.f32.mrf.mxu0
      %v1127 = vadd.f32 0.0, %v1126
      %v1128 = vpop.f32.mrf.mxu0
      %1129 = vdwg.mxu0
      %v1130 = vadd.f32 %v1043, %v1116
      %v1131 = vadd.f32 %v1044, %v1119
      %v1132 = vadd.f32 %v1045, %v1124
      %v1133 = vadd.f32 %v1046, %v1127
      %s1134 = scalar_lea.vmem %s11, 64
      %v1135 = vld [vmem:[%s1134] sm:$0xf]
      %v1136 = vld [vmem:[%s1134 + $0x4] sm:$0xf]
      %v1137 = vld [vmem:[%s1134 + $0x8] sm:$0xf]
      %v1138 = vld [vmem:[%s1134 + $0xc] sm:$0xf]
      %v1143 = vunpack.c.l.b16 %v1135
      %v1144 = vunpack.c.l.b16 %v1136
      %v1145 = vunpack.c.l.b16 %v1137
      %v1146 = vunpack.c.l.b16 %v1138
      %v1147 = vpack.c.b16 %v1144, %v1143
      %v1148 = vpack.c.b16 %v1146, %v1145
      %1149 = vrot.lane.b32.xlu0 %v773, 123
      %v1150 = vpop.permute.xlu0 %1149
      %1151 = vrot.lane.b32.xlu0 %v775, 123
      %v1152 = vpop.permute.xlu0 %1151
      %v1156 = vsel %vm831, %v1147, 0
      %v1159 = vsel %vm831, %v1148, 0
      %1161 = vmatprep.subr.bf16.mxu0 0
      %1162 = vmatpush1.bf16.msra.mxu0 0
      %1163 = vmatprep.subr.bf16.mxu0 0
      %1164 = vmatpush1.bf16.msra.mxu0 0
      %1165 = vmatprep.subr.bf16.mxu0 0
      %1166 = vmatpush1.bf16.msra.mxu0 0
      %1167 = vmatprep.subr.bf16.mxu0 0
      %1168 = vmatpush1.bf16.msra.mxu0 0
      %1169 = vmatprep.subr.bf16.mxu0 0
      %1170 = vmatpush1.bf16.msra.mxu0 0
      %1171 = vmatprep.subr.bf16.mxu0 0
      %1172 = vmatpush1.bf16.msra.mxu0 0
      %1173 = vmatprep.subr.bf16.mxu0 0
      %1174 = vmatpush1.bf16.msra.mxu0 %v1152
      %1175 = vmatprep.subr.bf16.mxu0 0
      %1176 = vmatpush1.bf16.msra.mxu0 %v1150
      %1177 = vmatprep.subr.bf16.mxu0 0
      %1178 = vmatpush2.bf16.msra.mxu0 0
      %1179 = vmatprep.subr.bf16.mxu0 0
      %1180 = vmatpush2.bf16.msra.mxu0 0
      %1181 = vmatprep.subr.bf16.mxu0 0
      %1182 = vmatpush2.bf16.msra.mxu0 0
      %1183 = vmatprep.subr.bf16.mxu0 0
      %1184 = vmatpush2.bf16.msra.mxu0 0
      %1185 = vmatprep.subr.bf16.mxu0 0
      %1186 = vmatpush2.bf16.msra.mxu0 0
      %1187 = vmatprep.subr.bf16.mxu0 0
      %1188 = vmatpush2.bf16.msra.mxu0 0
      %1189 = vmatprep.subr.bf16.mxu0 0
      %1190 = vmatpush2.bf16.msra.mxu0 0
      %1191 = vmatprep.subr.bf16.mxu0 0
      %1192 = vmatpush2.bf16.msra.mxu0 0
      %1193 = vmatprep.mubr.bf16.mxu0 0
      %1194 = vmatmul.mubr.bf16.gmra.mxu0 %v1156
      %v1195 = vpop.f32.mrf.mxu0
      %v1196 = vadd.f32 0.0, %v1195
      %v1197 = vpop.f32.mrf.mxu0
      %v1198 = vpop.f32.mrf.mxu0
      %v1199 = vadd.f32 0.0, %v1198
      %v1200 = vpop.f32.mrf.mxu0
      %1201 = vmatprep.mubr.bf16.mxu0 0
      %1202 = vmatmul.mubr.bf16.gmra.mxu0 %v1159
      %v1203 = vpop.f32.mrf.mxu0
      %v1204 = vadd.f32 0.0, %v1203
      %v1205 = vpop.f32.mrf.mxu0
      %v1206 = vpop.f32.mrf.mxu0
      %v1207 = vadd.f32 0.0, %v1206
      %v1208 = vpop.f32.mrf.mxu0
      %1209 = vdwg.mxu0
      %v1210 = vadd.f32 %v1130, %v1196
      %v1211 = vadd.f32 %v1131, %v1199
      %v1212 = vadd.f32 %v1132, %v1204
      %v1213 = vadd.f32 %v1133, %v1207
      %1214 = vrot.lane.b32.xlu0 %v959, 6
      %v1215 = vpop.permute.xlu0 %1214
      %vm1216 = vcmp.ne.s16.totalorder %v1215, 0
      %v1217 = vsel %vm1216, %v773, 0
      %v1218 = vsel %vm1216, %v775, 0
      %s1219 = scalar_lea.vmem %s11, 80
      %v1220 = vld [vmem:[%s1219] sm:$0xf]
      %v1221 = vld [vmem:[%s1219 + $0x4] sm:$0xf]
      %v1222 = vld [vmem:[%s1219 + $0x8] sm:$0xf]
      %v1223 = vld [vmem:[%s1219 + $0xc] sm:$0xf]
      %v1228 = vunpack.c.l.b16 %v1220
      %v1229 = vunpack.c.l.b16 %v1221
      %v1230 = vunpack.c.l.b16 %v1222
      %v1231 = vunpack.c.l.b16 %v1223
      %v1232 = vpack.c.b16 %v1229, %v1228
      %v1233 = vpack.c.b16 %v1231, %v1230
      %1236 = vrot.lane.b32.xlu0 %v1217, 122
      %v1237 = vpop.permute.xlu0 %1236
      %1238 = vrot.lane.b32.xlu0 %v1218, 122
      %v1239 = vpop.permute.xlu0 %1238
      %v1243 = vsel %vm831, %v1232, 0
      %v1246 = vsel %vm831, %v1233, 0
      %1248 = vmatprep.subr.bf16.mxu0 0
      %1249 = vmatpush1.bf16.msra.mxu0 0
      %1250 = vmatprep.subr.bf16.mxu0 0
      %1251 = vmatpush1.bf16.msra.mxu0 0
      %1252 = vmatprep.subr.bf16.mxu0 0
      %1253 = vmatpush1.bf16.msra.mxu0 0
      %1254 = vmatprep.subr.bf16.mxu0 0
      %1255 = vmatpush1.bf16.msra.mxu0 0
      %1256 = vmatprep.subr.bf16.mxu0 0
      %1257 = vmatpush1.bf16.msra.mxu0 0
      %1258 = vmatprep.subr.bf16.mxu0 0
      %1259 = vmatpush1.bf16.msra.mxu0 0
      %1260 = vmatprep.subr.bf16.mxu0 0
      %1261 = vmatpush1.bf16.msra.mxu0 %v1239
      %1262 = vmatprep.subr.bf16.mxu0 0
      %1263 = vmatpush1.bf16.msra.mxu0 %v1237
      %1264 = vmatprep.subr.bf16.mxu0 0
      %1265 = vmatpush2.bf16.msra.mxu0 0
      %1266 = vmatprep.subr.bf16.mxu0 0
      %1267 = vmatpush2.bf16.msra.mxu0 0
      %1268 = vmatprep.subr.bf16.mxu0 0
      %1269 = vmatpush2.bf16.msra.mxu0 0
      %1270 = vmatprep.subr.bf16.mxu0 0
      %1271 = vmatpush2.bf16.msra.mxu0 0
      %1272 = vmatprep.subr.bf16.mxu0 0
      %1273 = vmatpush2.bf16.msra.mxu0 0
      %1274 = vmatprep.subr.bf16.mxu0 0
      %1275 = vmatpush2.bf16.msra.mxu0 0
      %1276 = vmatprep.subr.bf16.mxu0 0
      %1277 = vmatpush2.bf16.msra.mxu0 0
      %1278 = vmatprep.subr.bf16.mxu0 0
      %1279 = vmatpush2.bf16.msra.mxu0 0
      %1280 = vmatprep.mubr.bf16.mxu0 0
      %1281 = vmatmul.mubr.bf16.gmra.mxu0 %v1243
      %v1282 = vpop.f32.mrf.mxu0
      %v1283 = vadd.f32 0.0, %v1282
      %v1284 = vpop.f32.mrf.mxu0
      %v1285 = vpop.f32.mrf.mxu0
      %v1286 = vadd.f32 0.0, %v1285
      %v1287 = vpop.f32.mrf.mxu0
      %1288 = vmatprep.mubr.bf16.mxu0 0
      %1289 = vmatmul.mubr.bf16.gmra.mxu0 %v1246
      %v1290 = vpop.f32.mrf.mxu0
      %v1291 = vadd.f32 0.0, %v1290
      %v1292 = vpop.f32.mrf.mxu0
      %v1293 = vpop.f32.mrf.mxu0
      %v1294 = vadd.f32 0.0, %v1293
      %v1295 = vpop.f32.mrf.mxu0
      %1296 = vdwg.mxu0
      %v1297 = vadd.f32 %v1210, %v1283
      %v1298 = vadd.f32 %v1211, %v1286
      %v1299 = vadd.f32 %v1212, %v1291
      %v1300 = vadd.f32 %v1213, %v1294
      %1301 = vrot.lane.b32.xlu0 %v800, 8
      %v1302 = vpop.permute.xlu0 %1301
      %vm1303 = vcmp.ne.s16.totalorder %v1302, 0
      %v1304 = vsel %vm1303, %v773, 0
      %v1305 = vsel %vm1303, %v775, 0
      %s1306 = scalar_lea.vmem %s11, 96
      %v1307 = vld [vmem:[%s1306] sm:$0xf]
      %v1308 = vld [vmem:[%s1306 + $0x4] sm:$0xf]
      %v1309 = vld [vmem:[%s1306 + $0x8] sm:$0xf]
      %v1310 = vld [vmem:[%s1306 + $0xc] sm:$0xf]
      %v1315 = vunpack.c.l.b16 %v1307
      %v1316 = vunpack.c.l.b16 %v1308
      %v1317 = vunpack.c.l.b16 %v1309
      %v1318 = vunpack.c.l.b16 %v1310
      %v1319 = vpack.c.b16 %v1316, %v1315
      %v1320 = vpack.c.b16 %v1318, %v1317
      %1323 = vrot.lane.b32.xlu0 %v1304, 120
      %v1324 = vpop.permute.xlu0 %1323
      %1325 = vrot.lane.b32.xlu0 %v1305, 120
      %v1326 = vpop.permute.xlu0 %1325
      %v1330 = vsel %vm831, %v1319, 0
      %v1333 = vsel %vm831, %v1320, 0
      %1335 = vmatprep.subr.bf16.mxu0 0
      %1336 = vmatpush1.bf16.msra.mxu0 0
      %1337 = vmatprep.subr.bf16.mxu0 0
      %1338 = vmatpush1.bf16.msra.mxu0 0
      %1339 = vmatprep.subr.bf16.mxu0 0
      %1340 = vmatpush1.bf16.msra.mxu0 0
      %1341 = vmatprep.subr.bf16.mxu0 0
      %1342 = vmatpush1.bf16.msra.mxu0 0
      %1343 = vmatprep.subr.bf16.mxu0 0
      %1344 = vmatpush1.bf16.msra.mxu0 0
      %1345 = vmatprep.subr.bf16.mxu0 0
      %1346 = vmatpush1.bf16.msra.mxu0 0
      %1347 = vmatprep.subr.bf16.mxu0 0
      %1348 = vmatpush1.bf16.msra.mxu0 %v1326
      %1349 = vmatprep.subr.bf16.mxu0 0
      %1350 = vmatpush1.bf16.msra.mxu0 %v1324
      %1351 = vmatprep.subr.bf16.mxu0 0
      %1352 = vmatpush2.bf16.msra.mxu0 0
      %1353 = vmatprep.subr.bf16.mxu0 0
      %1354 = vmatpush2.bf16.msra.mxu0 0
      %1355 = vmatprep.subr.bf16.mxu0 0
      %1356 = vmatpush2.bf16.msra.mxu0 0
      %1357 = vmatprep.subr.bf16.mxu0 0
      %1358 = vmatpush2.bf16.msra.mxu0 0
      %1359 = vmatprep.subr.bf16.mxu0 0
      %1360 = vmatpush2.bf16.msra.mxu0 0
      %1361 = vmatprep.subr.bf16.mxu0 0
      %1362 = vmatpush2.bf16.msra.mxu0 0
      %1363 = vmatprep.subr.bf16.mxu0 0
      %1364 = vmatpush2.bf16.msra.mxu0 0
      %1365 = vmatprep.subr.bf16.mxu0 0
      %1366 = vmatpush2.bf16.msra.mxu0 0
      %1367 = vmatprep.mubr.bf16.mxu0 0
      %1368 = vmatmul.mubr.bf16.gmra.mxu0 %v1330
      %v1369 = vpop.f32.mrf.mxu0
      %v1370 = vadd.f32 0.0, %v1369
      %v1371 = vpop.f32.mrf.mxu0
      %v1372 = vpop.f32.mrf.mxu0
      %v1373 = vadd.f32 0.0, %v1372
      %v1374 = vpop.f32.mrf.mxu0
      %1375 = vmatprep.mubr.bf16.mxu0 0
      %1376 = vmatmul.mubr.bf16.gmra.mxu0 %v1333
      %v1377 = vpop.f32.mrf.mxu0
      %v1378 = vadd.f32 0.0, %v1377
      %v1379 = vpop.f32.mrf.mxu0
      %v1380 = vpop.f32.mrf.mxu0
      %v1381 = vadd.f32 0.0, %v1380
      %v1382 = vpop.f32.mrf.mxu0
      %1383 = vdwg.mxu0
      %v1384 = vadd.f32 %v1297, %v1370
      %v1385 = vadd.f32 %v1298, %v1373
      %v1386 = vadd.f32 %v1299, %v1378
      %v1387 = vadd.f32 %v1300, %v1381
      %s1388 = scalar_lea.vmem %s11, 112
      %v1389 = vld [vmem:[%s1388] sm:$0xf]
      %v1390 = vld [vmem:[%s1388 + $0x4] sm:$0xf]
      %v1391 = vld [vmem:[%s1388 + $0x8] sm:$0xf]
      %v1392 = vld [vmem:[%s1388 + $0xc] sm:$0xf]
      %v1397 = vunpack.c.l.b16 %v1389
      %v1398 = vunpack.c.l.b16 %v1390
      %v1399 = vunpack.c.l.b16 %v1391
      %v1400 = vunpack.c.l.b16 %v1392
      %v1401 = vpack.c.b16 %v1398, %v1397
      %v1402 = vpack.c.b16 %v1400, %v1399
      %1403 = vrot.lane.b32.xlu0 %v773, 119
      %v1404 = vpop.permute.xlu0 %1403
      %1405 = vrot.lane.b32.xlu0 %v775, 119
      %v1406 = vpop.permute.xlu0 %1405
      %v1410 = vsel %vm831, %v1401, 0
      %v1413 = vsel %vm831, %v1402, 0
      %1415 = vmatprep.subr.bf16.mxu0 0
      %1416 = vmatpush1.bf16.msra.mxu0 0
      %1417 = vmatprep.subr.bf16.mxu0 0
      %1418 = vmatpush1.bf16.msra.mxu0 0
      %1419 = vmatprep.subr.bf16.mxu0 0
      %1420 = vmatpush1.bf16.msra.mxu0 0
      %1421 = vmatprep.subr.bf16.mxu0 0
      %1422 = vmatpush1.bf16.msra.mxu0 0
      %1423 = vmatprep.subr.bf16.mxu0 0
      %1424 = vmatpush1.bf16.msra.mxu0 0
      %1425 = vmatprep.subr.bf16.mxu0 0
      %1426 = vmatpush1.bf16.msra.mxu0 0
      %1427 = vmatprep.subr.bf16.mxu0 0
      %1428 = vmatpush1.bf16.msra.mxu0 %v1406
      %1429 = vmatprep.subr.bf16.mxu0 0
      %1430 = vmatpush1.bf16.msra.mxu0 %v1404
      %1431 = vmatprep.subr.bf16.mxu0 0
      %1432 = vmatpush2.bf16.msra.mxu0 0
      %1433 = vmatprep.subr.bf16.mxu0 0
      %1434 = vmatpush2.bf16.msra.mxu0 0
      %1435 = vmatprep.subr.bf16.mxu0 0
      %1436 = vmatpush2.bf16.msra.mxu0 0
      %1437 = vmatprep.subr.bf16.mxu0 0
      %1438 = vmatpush2.bf16.msra.mxu0 0
      %1439 = vmatprep.subr.bf16.mxu0 0
      %1440 = vmatpush2.bf16.msra.mxu0 0
      %1441 = vmatprep.subr.bf16.mxu0 0
      %1442 = vmatpush2.bf16.msra.mxu0 0
      %1443 = vmatprep.subr.bf16.mxu0 0
      %1444 = vmatpush2.bf16.msra.mxu0 0
      %1445 = vmatprep.subr.bf16.mxu0 0
      %1446 = vmatpush2.bf16.msra.mxu0 0
      %1447 = vmatprep.mubr.bf16.mxu0 0
      %1448 = vmatmul.mubr.bf16.gmra.mxu0 %v1410
      %v1449 = vpop.f32.mrf.mxu0
      %v1450 = vadd.f32 0.0, %v1449
      %v1451 = vpop.f32.mrf.mxu0
      %v1452 = vpop.f32.mrf.mxu0
      %v1453 = vadd.f32 0.0, %v1452
      %v1454 = vpop.f32.mrf.mxu0
      %1455 = vmatprep.mubr.bf16.mxu0 0
      %1456 = vmatmul.mubr.bf16.gmra.mxu0 %v1413
      %v1457 = vpop.f32.mrf.mxu0
      %v1458 = vadd.f32 0.0, %v1457
      %v1459 = vpop.f32.mrf.mxu0
      %v1460 = vpop.f32.mrf.mxu0
      %v1461 = vadd.f32 0.0, %v1460
      %v1462 = vpop.f32.mrf.mxu0
      %1463 = vdwg.mxu0
      %v1464 = vadd.f32 %v1384, %v1450
      %v1465 = vadd.f32 %v1385, %v1453
      %v1466 = vadd.f32 %v1386, %v1458
      %v1467 = vadd.f32 %v1387, %v1461
      %1468 = vrot.lane.b32.xlu0 %v959, 10
      %v1469 = vpop.permute.xlu0 %1468
      %vm1470 = vcmp.ne.s16.totalorder %v1469, 0
      %v1471 = vsel %vm1470, %v773, 0
      %v1472 = vsel %vm1470, %v775, 0
      %s1473 = scalar_lea.vmem %s11, 128
      %v1474 = vld [vmem:[%s1473] sm:$0xf]
      %v1475 = vld [vmem:[%s1473 + $0x4] sm:$0xf]
      %v1476 = vld [vmem:[%s1473 + $0x8] sm:$0xf]
      %v1477 = vld [vmem:[%s1473 + $0xc] sm:$0xf]
      %v1482 = vunpack.c.l.b16 %v1474
      %v1483 = vunpack.c.l.b16 %v1475
      %v1484 = vunpack.c.l.b16 %v1476
      %v1485 = vunpack.c.l.b16 %v1477
      %v1486 = vpack.c.b16 %v1483, %v1482
      %v1487 = vpack.c.b16 %v1485, %v1484
      %1490 = vrot.lane.b32.xlu0 %v1471, 118
      %v1491 = vpop.permute.xlu0 %1490
      %1492 = vrot.lane.b32.xlu0 %v1472, 118
      %v1493 = vpop.permute.xlu0 %1492
      %v1497 = vsel %vm831, %v1486, 0
      %v1500 = vsel %vm831, %v1487, 0
      %1502 = vmatprep.subr.bf16.mxu0 0
      %1503 = vmatpush1.bf16.msra.mxu0 0
      %1504 = vmatprep.subr.bf16.mxu0 0
      %1505 = vmatpush1.bf16.msra.mxu0 0
      %1506 = vmatprep.subr.bf16.mxu0 0
      %1507 = vmatpush1.bf16.msra.mxu0 0
      %1508 = vmatprep.subr.bf16.mxu0 0
      %1509 = vmatpush1.bf16.msra.mxu0 0
      %1510 = vmatprep.subr.bf16.mxu0 0
      %1511 = vmatpush1.bf16.msra.mxu0 0
      %1512 = vmatprep.subr.bf16.mxu0 0
      %1513 = vmatpush1.bf16.msra.mxu0 0
      %1514 = vmatprep.subr.bf16.mxu0 0
      %1515 = vmatpush1.bf16.msra.mxu0 %v1493
      %1516 = vmatprep.subr.bf16.mxu0 0
      %1517 = vmatpush1.bf16.msra.mxu0 %v1491
      %1518 = vmatprep.subr.bf16.mxu0 0
      %1519 = vmatpush2.bf16.msra.mxu0 0
      %1520 = vmatprep.subr.bf16.mxu0 0
      %1521 = vmatpush2.bf16.msra.mxu0 0
      %1522 = vmatprep.subr.bf16.mxu0 0
      %1523 = vmatpush2.bf16.msra.mxu0 0
      %1524 = vmatprep.subr.bf16.mxu0 0
      %1525 = vmatpush2.bf16.msra.mxu0 0
      %1526 = vmatprep.subr.bf16.mxu0 0
      %1527 = vmatpush2.bf16.msra.mxu0 0
      %1528 = vmatprep.subr.bf16.mxu0 0
      %1529 = vmatpush2.bf16.msra.mxu0 0
      %1530 = vmatprep.subr.bf16.mxu0 0
      %1531 = vmatpush2.bf16.msra.mxu0 0
      %1532 = vmatprep.subr.bf16.mxu0 0
      %1533 = vmatpush2.bf16.msra.mxu0 0
      %1534 = vmatprep.mubr.bf16.mxu0 0
      %1535 = vmatmul.mubr.bf16.gmra.mxu0 %v1497
      %v1536 = vpop.f32.mrf.mxu0
      %v1537 = vadd.f32 0.0, %v1536
      %v1538 = vpop.f32.mrf.mxu0
      %v1539 = vpop.f32.mrf.mxu0
      %v1540 = vadd.f32 0.0, %v1539
      %v1541 = vpop.f32.mrf.mxu0
      %1542 = vmatprep.mubr.bf16.mxu0 0
      %1543 = vmatmul.mubr.bf16.gmra.mxu0 %v1500
      %v1544 = vpop.f32.mrf.mxu0
      %v1545 = vadd.f32 0.0, %v1544
      %v1546 = vpop.f32.mrf.mxu0
      %v1547 = vpop.f32.mrf.mxu0
      %v1548 = vadd.f32 0.0, %v1547
      %v1549 = vpop.f32.mrf.mxu0
      %1550 = vdwg.mxu0
      %v1551 = vadd.f32 %v1464, %v1537
      %v1552 = vadd.f32 %v1465, %v1540
      %v1553 = vadd.f32 %v1466, %v1545
      %v1554 = vadd.f32 %v1467, %v1548
      %vm1555 = vcmask 130048
      %1556 = vst.msk [vmem:[%s672] sm:$0xff] %vm1555, %v1551
      %1557 = vst.msk [vmem:[%s672 + $0x8] sm:$0xff] %vm1555, %v1552
      %1558 = vst.msk [vmem:[%s672 + $0x10] sm:$0xff] %vm1555, %v1553
      %1559 = vst.msk [vmem:[%s672 + $0x18] sm:$0xff] %vm1555, %v1554
      %v1560 = vld [vmem:[%s647] sm:$0xff]
      %v1561 = vld [vmem:[%s647 + $0x8] sm:$0xff]
      %v1562 = vld [vmem:[%s647 + $0x10] sm:$0xff]
      %v1563 = vld [vmem:[%s647 + $0x18] sm:$0xff]
      %v1564 = vpack.c.bf16 %v1561, %v1560
      %v1565 = vpack.c.bf16 %v1563, %v1562
      %v1566 = vld [vmem:[%s6] sm:$0xf]
      %v1567 = vld [vmem:[%s6 + $0x4] sm:$0xf]
      %v1568 = vld [vmem:[%s6 + $0x8] sm:$0xf]
      %v1569 = vld [vmem:[%s6 + $0xc] sm:$0xf]
      %v1570 = vld [vmem:[%s12] sm:$0x3]
      %vm1571 = vcmask 31744
      %v1573 = vsel %vm1571, %v758, 0
      %v1576 = vsel %vm1571, %v759, 0
      %vm1578 = vcmask 1041408
      %v1580 = vsel %vm1578, %v1570, 0
      %1582 = vmatprep.subr.bf16.mxu0 0
      %1583 = vmatpush1.bf16.msra.mxu0 0
      %1584 = vmatprep.subr.bf16.mxu0 0
      %1585 = vmatpush1.bf16.msra.mxu0 0
      %1586 = vmatprep.subr.bf16.mxu0 0
      %1587 = vmatpush1.bf16.msra.mxu0 0
      %1588 = vmatprep.subr.bf16.mxu0 0
      %1589 = vmatpush1.bf16.msra.mxu0 0
      %1590 = vmatprep.subr.bf16.mxu0 0
      %1591 = vmatpush1.bf16.msra.mxu0 0
      %1592 = vmatprep.subr.bf16.mxu0 0
      %1593 = vmatpush1.bf16.msra.mxu0 0
      %1594 = vmatprep.subr.bf16.mxu0 0
      %1595 = vmatpush1.bf16.msra.mxu0 0
      %1596 = vmatprep.subr.bf16.mxu0 0
      %1597 = vmatpush1.bf16.msra.mxu0 %v1580
      %1598 = vmatprep.subr.bf16.mxu0 0
      %1599 = vmatpush2.bf16.msra.mxu0 0
      %1600 = vmatprep.subr.bf16.mxu0 0
      %1601 = vmatpush2.bf16.msra.mxu0 0
      %1602 = vmatprep.subr.bf16.mxu0 0
      %1603 = vmatpush2.bf16.msra.mxu0 0
      %1604 = vmatprep.subr.bf16.mxu0 0
      %1605 = vmatpush2.bf16.msra.mxu0 0
      %1606 = vmatprep.subr.bf16.mxu0 0
      %1607 = vmatpush2.bf16.msra.mxu0 0
      %1608 = vmatprep.subr.bf16.mxu0 0
      %1609 = vmatpush2.bf16.msra.mxu0 0
      %1610 = vmatprep.subr.bf16.mxu0 0
      %1611 = vmatpush2.bf16.msra.mxu0 0
      %1612 = vmatprep.subr.bf16.mxu0 0
      %1613 = vmatpush2.bf16.msra.mxu0 0
      %1614 = vmatprep.mubr.bf16.mxu0 0
      %1615 = vmatmul.mubr.bf16.gmra.mxu0 %v1573
      %v1616 = vpop.f32.mrf.mxu0
      %v1617 = vadd.f32 0.0, %v1616
      %v1618 = vpop.f32.mrf.mxu0
      %v1619 = vpop.f32.mrf.mxu0
      %v1620 = vadd.f32 0.0, %v1619
      %v1621 = vpop.f32.mrf.mxu0
      %1622 = vmatprep.mubr.bf16.mxu0 0
      %1623 = vmatmul.mubr.bf16.gmra.mxu0 %v1576
      %v1624 = vpop.f32.mrf.mxu0
      %v1625 = vadd.f32 0.0, %v1624
      %v1626 = vpop.f32.mrf.mxu0
      %v1627 = vpop.f32.mrf.mxu0
      %v1628 = vadd.f32 0.0, %v1627
      %v1629 = vpop.f32.mrf.mxu0
      %1630 = vdwg.mxu0
      %1631 = vrot.lane.b32.xlu0 %v758, 124
      %v1632 = vpop.permute.xlu0 %1631
      %1633 = vrot.lane.b32.xlu0 %v759, 124
      %v1634 = vpop.permute.xlu0 %1633
      %v1636 = vsel %vm1571, %v1632, 0
      %v1639 = vsel %vm1571, %v1634, 0
      %1641 = vmatprep.subr.bf16.mxu0 0
      %1642 = vmatpush1.bf16.msra.mxu0 0
      %1643 = vmatprep.subr.bf16.mxu0 0
      %1644 = vmatpush1.bf16.msra.mxu0 0
      %1645 = vmatprep.subr.bf16.mxu0 0
      %1646 = vmatpush1.bf16.msra.mxu0 0
      %1647 = vmatprep.subr.bf16.mxu0 0
      %1648 = vmatpush1.bf16.msra.mxu0 0
      %1649 = vmatprep.subr.bf16.mxu0 0
      %1650 = vmatpush1.bf16.msra.mxu0 0
      %1651 = vmatprep.subr.bf16.mxu0 0
      %1652 = vmatpush1.bf16.msra.mxu0 0
      %1653 = vmatprep.subr.bf16.mxu0 0
      %1654 = vmatpush1.bf16.msra.mxu0 0
      %1655 = vmatprep.subr.bf16.mxu0 0
      %1656 = vmatpush1.bf16.msra.mxu0 %v1580
      %1657 = vmatprep.subr.bf16.mxu0 0
      %1658 = vmatpush2.bf16.msra.mxu0 0
      %1659 = vmatprep.subr.bf16.mxu0 0
      %1660 = vmatpush2.bf16.msra.mxu0 0
      %1661 = vmatprep.subr.bf16.mxu0 0
      %1662 = vmatpush2.bf16.msra.mxu0 0
      %1663 = vmatprep.subr.bf16.mxu0 0
      %1664 = vmatpush2.bf16.msra.mxu0 0
      %1665 = vmatprep.subr.bf16.mxu0 0
      %1666 = vmatpush2.bf16.msra.mxu0 0
      %1667 = vmatprep.subr.bf16.mxu0 0
      %1668 = vmatpush2.bf16.msra.mxu0 0
      %1669 = vmatprep.subr.bf16.mxu0 0
      %1670 = vmatpush2.bf16.msra.mxu0 0
      %1671 = vmatprep.subr.bf16.mxu0 0
      %1672 = vmatpush2.bf16.msra.mxu0 0
      %1673 = vmatprep.mubr.bf16.mxu0 0
      %1674 = vmatmul.mubr.bf16.gmra.mxu0 %v1636
      %v1675 = vpop.f32.mrf.mxu0
      %v1676 = vadd.f32 0.0, %v1675
      %v1677 = vpop.f32.mrf.mxu0
      %v1678 = vpop.f32.mrf.mxu0
      %v1679 = vadd.f32 0.0, %v1678
      %v1680 = vpop.f32.mrf.mxu0
      %1681 = vmatprep.mubr.bf16.mxu0 0
      %1682 = vmatmul.mubr.bf16.gmra.mxu0 %v1639
      %v1683 = vpop.f32.mrf.mxu0
      %v1684 = vadd.f32 0.0, %v1683
      %v1685 = vpop.f32.mrf.mxu0
      %v1686 = vpop.f32.mrf.mxu0
      %v1687 = vadd.f32 0.0, %v1686
      %v1688 = vpop.f32.mrf.mxu0
      %1689 = vdwg.mxu0
      %1690 = vrot.lane.b32.xlu0 %v758, 120
      %v1691 = vpop.permute.xlu0 %1690
      %1692 = vrot.lane.b32.xlu0 %v759, 120
      %v1693 = vpop.permute.xlu0 %1692
      %v1695 = vsel %vm1571, %v1691, 0
      %v1698 = vsel %vm1571, %v1693, 0
      %1700 = vmatprep.subr.bf16.mxu0 0
      %1701 = vmatpush1.bf16.msra.mxu0 0
      %1702 = vmatprep.subr.bf16.mxu0 0
      %1703 = vmatpush1.bf16.msra.mxu0 0
      %1704 = vmatprep.subr.bf16.mxu0 0
      %1705 = vmatpush1.bf16.msra.mxu0 0
      %1706 = vmatprep.subr.bf16.mxu0 0
      %1707 = vmatpush1.bf16.msra.mxu0 0
      %1708 = vmatprep.subr.bf16.mxu0 0
      %1709 = vmatpush1.bf16.msra.mxu0 0
      %1710 = vmatprep.subr.bf16.mxu0 0
      %1711 = vmatpush1.bf16.msra.mxu0 0
      %1712 = vmatprep.subr.bf16.mxu0 0
      %1713 = vmatpush1.bf16.msra.mxu0 0
      %1714 = vmatprep.subr.bf16.mxu0 0
      %1715 = vmatpush1.bf16.msra.mxu0 %v1580
      %1716 = vmatprep.subr.bf16.mxu0 0
      %1717 = vmatpush2.bf16.msra.mxu0 0
      %1718 = vmatprep.subr.bf16.mxu0 0
      %1719 = vmatpush2.bf16.msra.mxu0 0
      %1720 = vmatprep.subr.bf16.mxu0 0
      %1721 = vmatpush2.bf16.msra.mxu0 0
      %1722 = vmatprep.subr.bf16.mxu0 0
      %1723 = vmatpush2.bf16.msra.mxu0 0
      %1724 = vmatprep.subr.bf16.mxu0 0
      %1725 = vmatpush2.bf16.msra.mxu0 0
      %1726 = vmatprep.subr.bf16.mxu0 0
      %1727 = vmatpush2.bf16.msra.mxu0 0
      %1728 = vmatprep.subr.bf16.mxu0 0
      %1729 = vmatpush2.bf16.msra.mxu0 0
      %1730 = vmatprep.subr.bf16.mxu0 0
      %1731 = vmatpush2.bf16.msra.mxu0 0
      %1732 = vmatprep.mubr.bf16.mxu0 0
      %1733 = vmatmul.mubr.bf16.gmra.mxu0 %v1695
      %v1734 = vpop.f32.mrf.mxu0
      %v1735 = vadd.f32 0.0, %v1734
      %v1736 = vpop.f32.mrf.mxu0
      %v1737 = vpop.f32.mrf.mxu0
      %v1738 = vadd.f32 0.0, %v1737
      %v1739 = vpop.f32.mrf.mxu0
      %1740 = vmatprep.mubr.bf16.mxu0 0
      %1741 = vmatmul.mubr.bf16.gmra.mxu0 %v1698
      %v1742 = vpop.f32.mrf.mxu0
      %v1743 = vadd.f32 0.0, %v1742
      %v1744 = vpop.f32.mrf.mxu0
      %v1745 = vpop.f32.mrf.mxu0
      %v1746 = vadd.f32 0.0, %v1745
      %v1747 = vpop.f32.mrf.mxu0
      %1748 = vdwg.mxu0
      %1749 = vrot.lane.b32.xlu0 %v758, 116
      %v1750 = vpop.permute.xlu0 %1749
      %1751 = vrot.lane.b32.xlu0 %v759, 116
      %v1752 = vpop.permute.xlu0 %1751
      %v1754 = vsel %vm1571, %v1750, 0
      %v1757 = vsel %vm1571, %v1752, 0
      %1759 = vmatprep.subr.bf16.mxu0 0
      %1760 = vmatpush1.bf16.msra.mxu0 0
      %1761 = vmatprep.subr.bf16.mxu0 0
      %1762 = vmatpush1.bf16.msra.mxu0 0
      %1763 = vmatprep.subr.bf16.mxu0 0
      %1764 = vmatpush1.bf16.msra.mxu0 0
      %1765 = vmatprep.subr.bf16.mxu0 0
      %1766 = vmatpush1.bf16.msra.mxu0 0
      %1767 = vmatprep.subr.bf16.mxu0 0
      %1768 = vmatpush1.bf16.msra.mxu0 0
      %1769 = vmatprep.subr.bf16.mxu0 0
      %1770 = vmatpush1.bf16.msra.mxu0 0
      %1771 = vmatprep.subr.bf16.mxu0 0
      %1772 = vmatpush1.bf16.msra.mxu0 0
      %1773 = vmatprep.subr.bf16.mxu0 0
      %1774 = vmatpush1.bf16.msra.mxu0 %v1580
      %1775 = vmatprep.subr.bf16.mxu0 0
      %1776 = vmatpush2.bf16.msra.mxu0 0
      %1777 = vmatprep.subr.bf16.mxu0 0
      %1778 = vmatpush2.bf16.msra.mxu0 0
      %1779 = vmatprep.subr.bf16.mxu0 0
      %1780 = vmatpush2.bf16.msra.mxu0 0
      %1781 = vmatprep.subr.bf16.mxu0 0
      %1782 = vmatpush2.bf16.msra.mxu0 0
      %1783 = vmatprep.subr.bf16.mxu0 0
      %1784 = vmatpush2.bf16.msra.mxu0 0
      %1785 = vmatprep.subr.bf16.mxu0 0
      %1786 = vmatpush2.bf16.msra.mxu0 0
      %1787 = vmatprep.subr.bf16.mxu0 0
      %1788 = vmatpush2.bf16.msra.mxu0 0
      %1789 = vmatprep.subr.bf16.mxu0 0
      %1790 = vmatpush2.bf16.msra.mxu0 0
      %1791 = vmatprep.mubr.bf16.mxu0 0
      %1792 = vmatmul.mubr.bf16.gmra.mxu0 %v1754
      %v1793 = vpop.f32.mrf.mxu0
      %v1794 = vadd.f32 0.0, %v1793
      %v1795 = vpop.f32.mrf.mxu0
      %v1796 = vpop.f32.mrf.mxu0
      %v1797 = vadd.f32 0.0, %v1796
      %v1798 = vpop.f32.mrf.mxu0
      %1799 = vmatprep.mubr.bf16.mxu0 0
      %1800 = vmatmul.mubr.bf16.gmra.mxu0 %v1757
      %v1801 = vpop.f32.mrf.mxu0
      %v1802 = vadd.f32 0.0, %v1801
      %v1803 = vpop.f32.mrf.mxu0
      %v1804 = vpop.f32.mrf.mxu0
      %v1805 = vadd.f32 0.0, %v1804
      %v1806 = vpop.f32.mrf.mxu0
      %1807 = vdwg.mxu0
      %v1808 = vmul.f32 %v1617, 0.5714286
      %v1809 = vmul.f32 %v1620, 0.5714286
      %v1810 = vmul.f32 %v1625, 0.5714286
      %v1811 = vmul.f32 %v1628, 0.5714286
      %v1812 = vmul.f32 %v1676, 0.42857143
      %v1813 = vmul.f32 %v1679, 0.42857143
      %v1814 = vmul.f32 %v1684, 0.42857143
      %v1815 = vmul.f32 %v1687, 0.42857143
      %v1816 = vadd.f32 %v1808, %v1812
      %v1817 = vadd.f32 %v1809, %v1813
      %v1818 = vadd.f32 %v1810, %v1814
      %v1819 = vadd.f32 %v1811, %v1815
      %v1820 = vmul.f32 %v1617, 0.14285715
      %v1821 = vmul.f32 %v1620, 0.14285715
      %v1822 = vmul.f32 %v1625, 0.14285715
      %v1823 = vmul.f32 %v1628, 0.14285715
      %v1824 = vmul.f32 %v1676, 0.85714287
      %v1825 = vmul.f32 %v1679, 0.85714287
      %v1826 = vmul.f32 %v1684, 0.85714287
      %v1827 = vmul.f32 %v1687, 0.85714287
      %v1828 = vadd.f32 %v1820, %v1824
      %v1829 = vadd.f32 %v1821, %v1825
      %v1830 = vadd.f32 %v1822, %v1826
      %v1831 = vadd.f32 %v1823, %v1827
      %v1832 = vmul.f32 %v1676, 0.71428573
      %v1833 = vmul.f32 %v1679, 0.71428573
      %v1834 = vmul.f32 %v1684, 0.71428573
      %v1835 = vmul.f32 %v1687, 0.71428573
      %v1836 = vmul.f32 %v1735, 0.2857143
      %v1837 = vmul.f32 %v1738, 0.2857143
      %v1838 = vmul.f32 %v1743, 0.2857143
      %v1839 = vmul.f32 %v1746, 0.2857143
      %v1840 = vadd.f32 %v1832, %v1836
      %v1841 = vadd.f32 %v1833, %v1837
      %v1842 = vadd.f32 %v1834, %v1838
      %v1843 = vadd.f32 %v1835, %v1839
      %v1844 = vmul.f32 %v1676, 0.2857143
      %v1845 = vmul.f32 %v1679, 0.2857143
      %v1846 = vmul.f32 %v1684, 0.2857143
      %v1847 = vmul.f32 %v1687, 0.2857143
      %v1848 = vmul.f32 %v1735, 0.71428573
      %v1849 = vmul.f32 %v1738, 0.71428573
      %v1850 = vmul.f32 %v1743, 0.71428573
      %v1851 = vmul.f32 %v1746, 0.71428573
      %v1852 = vadd.f32 %v1844, %v1848
      %v1853 = vadd.f32 %v1845, %v1849
      %v1854 = vadd.f32 %v1846, %v1850
      %v1855 = vadd.f32 %v1847, %v1851
      %v1856 = vmul.f32 %v1735, 0.85714287
      %v1857 = vmul.f32 %v1738, 0.85714287
      %v1858 = vmul.f32 %v1743, 0.85714287
      %v1859 = vmul.f32 %v1746, 0.85714287
      %v1860 = vmul.f32 %v1794, 0.14285715
      %v1861 = vmul.f32 %v1797, 0.14285715
      %v1862 = vmul.f32 %v1802, 0.14285715
      %v1863 = vmul.f32 %v1805, 0.14285715
      %v1864 = vadd.f32 %v1856, %v1860
      %v1865 = vadd.f32 %v1857, %v1861
      %v1866 = vadd.f32 %v1858, %v1862
      %v1867 = vadd.f32 %v1859, %v1863
      %v1868 = vmul.f32 %v1735, 0.42857143
      %v1869 = vmul.f32 %v1738, 0.42857143
      %v1870 = vmul.f32 %v1743, 0.42857143
      %v1871 = vmul.f32 %v1746, 0.42857143
      %v1872 = vmul.f32 %v1794, 0.5714286
      %v1873 = vmul.f32 %v1797, 0.5714286
      %v1874 = vmul.f32 %v1802, 0.5714286
      %v1875 = vmul.f32 %v1805, 0.5714286
      %v1876 = vadd.f32 %v1868, %v1872
      %v1877 = vadd.f32 %v1869, %v1873
      %v1878 = vadd.f32 %v1870, %v1874
      %v1879 = vadd.f32 %v1871, %v1875
      %1884 = vrot.lane.b32.xlu0 %v1816, 8
      %v1885 = vpop.permute.xlu0 %1884
      %1886 = vrot.lane.b32.xlu0 %v1817, 8
      %v1887 = vpop.permute.xlu0 %1886
      %1888 = vrot.lane.b32.xlu0 %v1818, 8
      %v1889 = vpop.permute.xlu0 %1888
      %1890 = vrot.lane.b32.xlu0 %v1819, 8
      %v1891 = vpop.permute.xlu0 %1890
      %1900 = vrot.lane.b32.xlu0 %v1828, 16
      %v1901 = vpop.permute.xlu0 %1900
      %1902 = vrot.lane.b32.xlu0 %v1829, 16
      %v1903 = vpop.permute.xlu0 %1902
      %1904 = vrot.lane.b32.xlu0 %v1830, 16
      %v1905 = vpop.permute.xlu0 %1904
      %1906 = vrot.lane.b32.xlu0 %v1831, 16
      %v1907 = vpop.permute.xlu0 %1906
      %1916 = vrot.lane.b32.xlu0 %v1840, 24
      %v1917 = vpop.permute.xlu0 %1916
      %1918 = vrot.lane.b32.xlu0 %v1841, 24
      %v1919 = vpop.permute.xlu0 %1918
      %1920 = vrot.lane.b32.xlu0 %v1842, 24
      %v1921 = vpop.permute.xlu0 %1920
      %1922 = vrot.lane.b32.xlu0 %v1843, 24
      %v1923 = vpop.permute.xlu0 %1922
      %1932 = vrot.lane.b32.xlu0 %v1852, 32
      %v1933 = vpop.permute.xlu0 %1932
      %1934 = vrot.lane.b32.xlu0 %v1853, 32
      %v1935 = vpop.permute.xlu0 %1934
      %1936 = vrot.lane.b32.xlu0 %v1854, 32
      %v1937 = vpop.permute.xlu0 %1936
      %1938 = vrot.lane.b32.xlu0 %v1855, 32
      %v1939 = vpop.permute.xlu0 %1938
      %1948 = vrot.lane.b32.xlu0 %v1864, 40
      %v1949 = vpop.permute.xlu0 %1948
      %1950 = vrot.lane.b32.xlu0 %v1865, 40
      %v1951 = vpop.permute.xlu0 %1950
      %1952 = vrot.lane.b32.xlu0 %v1866, 40
      %v1953 = vpop.permute.xlu0 %1952
      %1954 = vrot.lane.b32.xlu0 %v1867, 40
      %v1955 = vpop.permute.xlu0 %1954
      %1964 = vrot.lane.b32.xlu0 %v1876, 48
      %v1965 = vpop.permute.xlu0 %1964
      %1966 = vrot.lane.b32.xlu0 %v1877, 48
      %v1967 = vpop.permute.xlu0 %1966
      %1968 = vrot.lane.b32.xlu0 %v1878, 48
      %v1969 = vpop.permute.xlu0 %1968
      %1970 = vrot.lane.b32.xlu0 %v1879, 48
      %v1971 = vpop.permute.xlu0 %1970
      %1980 = vrot.lane.b32.xlu0 %v1794, 56
      %v1981 = vpop.permute.xlu0 %1980
      %1982 = vrot.lane.b32.xlu0 %v1797, 56
      %v1983 = vpop.permute.xlu0 %1982
      %1984 = vrot.lane.b32.xlu0 %v1802, 56
      %v1985 = vpop.permute.xlu0 %1984
      %1986 = vrot.lane.b32.xlu0 %v1805, 56
      %v1987 = vpop.permute.xlu0 %1986
      %vm1992 = vcmask 64512
      %v1993 = vsel %vm1992, %v1617, %v1885
      %v1994 = vsel %vm1992, %v1620, %v1887
      %v1995 = vsel %vm1992, %v1625, %v1889
      %v1996 = vsel %vm1992, %v1628, %v1891
      %v1997 = vsel %vm1555, %v1993, %v1901
      %v1998 = vsel %vm1555, %v1994, %v1903
      %v1999 = vsel %vm1555, %v1995, %v1905
      %v2000 = vsel %vm1555, %v1996, %v1907
      %vm2001 = vcmask 195584
      %v2002 = vsel %vm2001, %v1997, %v1917
      %v2003 = vsel %vm2001, %v1998, %v1919
      %v2004 = vsel %vm2001, %v1999, %v1921
      %v2005 = vsel %vm2001, %v2000, %v1923
      %v2006 = vsel %vm831, %v2002, %v1933
      %v2007 = vsel %vm831, %v2003, %v1935
      %v2008 = vsel %vm831, %v2004, %v1937
      %v2009 = vsel %vm831, %v2005, %v1939
      %vm2010 = vcmask 326656
      %v2011 = vsel %vm2010, %v2006, %v1949
      %v2012 = vsel %vm2010, %v2007, %v1951
      %v2013 = vsel %vm2010, %v2008, %v1953
      %v2014 = vsel %vm2010, %v2009, %v1955
      %vm2015 = vcmask 392192
      %v2016 = vsel %vm2015, %v2011, %v1965
      %v2017 = vsel %vm2015, %v2012, %v1967
      %v2018 = vsel %vm2015, %v2013, %v1969
      %v2019 = vsel %vm2015, %v2014, %v1971
      %vm2020 = vcmask 457728
      %v2021 = vsel %vm2020, %v2016, %v1981
      %v2022 = vsel %vm2020, %v2017, %v1983
      %v2023 = vsel %vm2020, %v2018, %v1985
      %v2024 = vsel %vm2020, %v2019, %v1987
      %v2029 = vunpack.c.l.b16 %v1566
      %v2030 = vunpack.c.l.b16 %v1567
      %v2031 = vunpack.c.l.b16 %v1568
      %v2032 = vunpack.c.l.b16 %v1569
      %v2033 = vpack.c.b16 %v2030, %v2029
      %v2034 = vpack.c.b16 %v2032, %v2031
      %v2036 = vsel %vm831, %v2033, 0
      %v2039 = vsel %vm831, %v2034, 0
      %2041 = vmatprep.subr.bf16.mxu0 0
      %2042 = vmatpush1.bf16.msra.mxu0 0
      %2043 = vmatprep.subr.bf16.mxu0 0
      %2044 = vmatpush1.bf16.msra.mxu0 0
      %2045 = vmatprep.subr.bf16.mxu0 0
      %2046 = vmatpush1.bf16.msra.mxu0 0
      %2047 = vmatprep.subr.bf16.mxu0 0
      %2048 = vmatpush1.bf16.msra.mxu0 0
      %2049 = vmatprep.subr.bf16.mxu0 0
      %2050 = vmatpush1.bf16.msra.mxu0 0
      %2051 = vmatprep.subr.bf16.mxu0 0
      %2052 = vmatpush1.bf16.msra.mxu0 0
      %2053 = vmatprep.subr.bf16.mxu0 0
      %2054 = vmatpush1.bf16.msra.mxu0 %v1565
      %2055 = vmatprep.subr.bf16.mxu0 0
      %2056 = vmatpush1.bf16.msra.mxu0 %v1564
      %2057 = vmatprep.subr.bf16.mxu0 0
      %2058 = vmatpush2.bf16.msra.mxu0 0
      %2059 = vmatprep.subr.bf16.mxu0 0
      %2060 = vmatpush2.bf16.msra.mxu0 0
      %2061 = vmatprep.subr.bf16.mxu0 0
      %2062 = vmatpush2.bf16.msra.mxu0 0
      %2063 = vmatprep.subr.bf16.mxu0 0
      %2064 = vmatpush2.bf16.msra.mxu0 0
      %2065 = vmatprep.subr.bf16.mxu0 0
      %2066 = vmatpush2.bf16.msra.mxu0 0
      %2067 = vmatprep.subr.bf16.mxu0 0
      %2068 = vmatpush2.bf16.msra.mxu0 0
      %2069 = vmatprep.subr.bf16.mxu0 0
      %2070 = vmatpush2.bf16.msra.mxu0 0
      %2071 = vmatprep.subr.bf16.mxu0 0
      %2072 = vmatpush2.bf16.msra.mxu0 0
      %2073 = vmatprep.mubr.bf16.mxu0 0
      %2074 = vmatmul.mubr.bf16.gmra.mxu0 %v2036
      %v2075 = vpop.f32.mrf.mxu0
      %v2076 = vadd.f32 %v2021, %v2075
      %v2077 = vpop.f32.mrf.mxu0
      %v2078 = vpop.f32.mrf.mxu0
      %v2079 = vadd.f32 %v2022, %v2078
      %v2080 = vpop.f32.mrf.mxu0
      %2081 = vmatprep.mubr.bf16.mxu0 0
      %2082 = vmatmul.mubr.bf16.gmra.mxu0 %v2039
      %v2083 = vpop.f32.mrf.mxu0
      %v2084 = vadd.f32 %v2023, %v2083
      %v2085 = vpop.f32.mrf.mxu0
      %v2086 = vpop.f32.mrf.mxu0
      %v2087 = vadd.f32 %v2024, %v2086
      %v2088 = vpop.f32.mrf.mxu0
      %2089 = vdwg.mxu0
      %v2090 = vpack.c.bf16 %v2079, %v2076
      %v2091 = vpack.c.bf16 %v2087, %v2084
      %2094 = vrot.lane.b32.xlu0 %v2090, 9
      %v2095 = vpop.permute.xlu0 %2094
      %2096 = vrot.lane.b32.xlu0 %v2091, 9
      %v2097 = vpop.permute.xlu0 %2096
      %vm2098 = vcmask 72704
      %v2100 = vsel %vm2098, 0, %v2095
      %v2102 = vsel %vm2098, 0, %v2097
      %vm2103 = vcmask 596992
      %v2104 = vsel %vm2103, %v2100, 0
      %v2106 = vsel %vm2103, %v2102, 0
      %vm2108 = vcmp.lt.s32.totalorder %v778, 0
      %v2109 = vsub.s32 0, %v778
      %v2110 = vsel %vm2108, %v2109, %v778
      %v2111 = vshrl.u32 %v2110, 3
      %v2112 = vand.u32 %v2110, 7
      %v2113 = vsub.s32 0, %v2112
      %v2114 = vsel %vm2108, %v2113, %v2112
      %vm2115 = vcmp.ne.s32.totalorder %v2114, 0
      %vm2116 = vcmp.lt.s32.totalorder %v2114, 0
      %vm2117 = vmand %vm2116, %vm2115
      %v2118 = vadd.s32 %v2114, 8
      %v2119 = vsel %vm2117, %v2118, %v2114
      %vm2120 = vcmp.ge.s32.totalorder %v2119, 1
      %vm2121 = vcmp.le.s32.totalorder %v2119, 6
      %v2122 = vsel %vm2120, 1, 0
      %vm2123 = vcmp.eq.s32.totalorder %v2122, 1
      %vm2124 = vmpackc.low %vm2123, %vm2123
      %v2125 = vsel %vm2124, 65537, 0
      %v2126 = vlaneseq
      %v2127 = vshrl.u32 %v2126, 7
      %v2128 = vsub.s32 0, %v2127
      %v2129 = vrot.slane %v2125, %v2128
      %vm2130 = vcmp.ne.s16.totalorder %v2129, 0
      %v2131 = vsel %vm2130, %v2104, 0
      %v2132 = vsel %vm2130, %v2106, 0
      %v2133 = vld [vmem:[%s10] sm:$0xf]
      %v2134 = vld [vmem:[%s10 + $0x4] sm:$0xf]
      %v2135 = vld [vmem:[%s10 + $0x8] sm:$0xf]
      %v2136 = vld [vmem:[%s10 + $0xc] sm:$0xf]
      %s2137 = scalar_lea.vmem %s10, 16
      %v2138 = vld [vmem:[%s2137] sm:$0xf]
      %v2139 = vld [vmem:[%s2137 + $0x4] sm:$0xf]
      %v2140 = vld [vmem:[%s2137 + $0x8] sm:$0xf]
      %v2141 = vld [vmem:[%s2137 + $0xc] sm:$0xf]
      %v2146 = vunpack.c.l.b16 %v2138
      %v2147 = vunpack.c.l.b16 %v2139
      %v2148 = vunpack.c.l.b16 %v2140
      %v2149 = vunpack.c.l.b16 %v2141
      %v2150 = vpack.c.b16 %v2147, %v2146
      %v2151 = vpack.c.b16 %v2149, %v2148
      %2154 = vrot.lane.b32.xlu0 %v2104, 127
      %v2155 = vpop.permute.xlu0 %2154
      %2156 = vrot.lane.b32.xlu0 %v2106, 127
      %v2157 = vpop.permute.xlu0 %2156
      %v2161 = vsel %vm831, %v2150, 0
      %v2164 = vsel %vm831, %v2151, 0
      %2166 = vmatprep.subr.bf16.mxu0 0
      %2167 = vmatpush1.bf16.msra.mxu0 0
      %2168 = vmatprep.subr.bf16.mxu0 0
      %2169 = vmatpush1.bf16.msra.mxu0 0
      %2170 = vmatprep.subr.bf16.mxu0 0
      %2171 = vmatpush1.bf16.msra.mxu0 0
      %2172 = vmatprep.subr.bf16.mxu0 0
      %2173 = vmatpush1.bf16.msra.mxu0 0
      %2174 = vmatprep.subr.bf16.mxu0 0
      %2175 = vmatpush1.bf16.msra.mxu0 0
      %2176 = vmatprep.subr.bf16.mxu0 0
      %2177 = vmatpush1.bf16.msra.mxu0 0
      %2178 = vmatprep.subr.bf16.mxu0 0
      %2179 = vmatpush1.bf16.msra.mxu0 %v2157
      %2180 = vmatprep.subr.bf16.mxu0 0
      %2181 = vmatpush1.bf16.msra.mxu0 %v2155
      %2182 = vmatprep.subr.bf16.mxu0 0
      %2183 = vmatpush2.bf16.msra.mxu0 0
      %2184 = vmatprep.subr.bf16.mxu0 0
      %2185 = vmatpush2.bf16.msra.mxu0 0
      %2186 = vmatprep.subr.bf16.mxu0 0
      %2187 = vmatpush2.bf16.msra.mxu0 0
      %2188 = vmatprep.subr.bf16.mxu0 0
      %2189 = vmatpush2.bf16.msra.mxu0 0
      %2190 = vmatprep.subr.bf16.mxu0 0
      %2191 = vmatpush2.bf16.msra.mxu0 0
      %2192 = vmatprep.subr.bf16.mxu0 0
      %2193 = vmatpush2.bf16.msra.mxu0 0
      %2194 = vmatprep.subr.bf16.mxu0 0
      %2195 = vmatpush2.bf16.msra.mxu0 0
      %2196 = vmatprep.subr.bf16.mxu0 0
      %2197 = vmatpush2.bf16.msra.mxu0 0
      %2198 = vmatprep.mubr.bf16.mxu0 0
      %2199 = vmatmul.mubr.bf16.gmra.mxu0 %v2161
      %v2200 = vpop.f32.mrf.mxu0
      %v2201 = vadd.f32 0.0, %v2200
      %v2202 = vpop.f32.mrf.mxu0
      %v2203 = vpop.f32.mrf.mxu0
      %v2204 = vadd.f32 0.0, %v2203
      %v2205 = vpop.f32.mrf.mxu0
      %2206 = vmatprep.mubr.bf16.mxu0 0
      %2207 = vmatmul.mubr.bf16.gmra.mxu0 %v2164
      %v2208 = vpop.f32.mrf.mxu0
      %v2209 = vadd.f32 0.0, %v2208
      %v2210 = vpop.f32.mrf.mxu0
      %v2211 = vpop.f32.mrf.mxu0
      %v2212 = vadd.f32 0.0, %v2211
      %v2213 = vpop.f32.mrf.mxu0
      %2214 = vdwg.mxu0
      %v2219 = vunpack.c.l.b16 %v2133
      %v2220 = vunpack.c.l.b16 %v2134
      %v2221 = vunpack.c.l.b16 %v2135
      %v2222 = vunpack.c.l.b16 %v2136
      %v2223 = vpack.c.b16 %v2220, %v2219
      %v2224 = vpack.c.b16 %v2222, %v2221
      %v2226 = vsel %vm831, %v2223, 0
      %v2229 = vsel %vm831, %v2224, 0
      %2231 = vmatprep.subr.bf16.mxu0 0
      %2232 = vmatpush1.bf16.msra.mxu0 0
      %2233 = vmatprep.subr.bf16.mxu0 0
      %2234 = vmatpush1.bf16.msra.mxu0 0
      %2235 = vmatprep.subr.bf16.mxu0 0
      %2236 = vmatpush1.bf16.msra.mxu0 0
      %2237 = vmatprep.subr.bf16.mxu0 0
      %2238 = vmatpush1.bf16.msra.mxu0 0
      %2239 = vmatprep.subr.bf16.mxu0 0
      %2240 = vmatpush1.bf16.msra.mxu0 0
      %2241 = vmatprep.subr.bf16.mxu0 0
      %2242 = vmatpush1.bf16.msra.mxu0 0
      %2243 = vmatprep.subr.bf16.mxu0 0
      %2244 = vmatpush1.bf16.msra.mxu0 %v2132
      %2245 = vmatprep.subr.bf16.mxu0 0
      %2246 = vmatpush1.bf16.msra.mxu0 %v2131
      %2247 = vmatprep.subr.bf16.mxu0 0
      %2248 = vmatpush2.bf16.msra.mxu0 0
      %2249 = vmatprep.subr.bf16.mxu0 0
      %2250 = vmatpush2.bf16.msra.mxu0 0
      %2251 = vmatprep.subr.bf16.mxu0 0
      %2252 = vmatpush2.bf16.msra.mxu0 0
      %2253 = vmatprep.subr.bf16.mxu0 0
      %2254 = vmatpush2.bf16.msra.mxu0 0
      %2255 = vmatprep.subr.bf16.mxu0 0
      %2256 = vmatpush2.bf16.msra.mxu0 0
      %2257 = vmatprep.subr.bf16.mxu0 0
      %2258 = vmatpush2.bf16.msra.mxu0 0
      %2259 = vmatprep.subr.bf16.mxu0 0
      %2260 = vmatpush2.bf16.msra.mxu0 0
      %2261 = vmatprep.subr.bf16.mxu0 0
      %2262 = vmatpush2.bf16.msra.mxu0 0
      %2263 = vmatprep.mubr.bf16.mxu0 0
      %2264 = vmatmul.mubr.bf16.gmra.mxu0 %v2226
      %v2265 = vpop.f32.mrf.mxu0
      %v2266 = vadd.f32 %v2201, %v2265
      %v2267 = vpop.f32.mrf.mxu0
      %v2268 = vpop.f32.mrf.mxu0
      %v2269 = vadd.f32 %v2204, %v2268
      %v2270 = vpop.f32.mrf.mxu0
      %2271 = vmatprep.mubr.bf16.mxu0 0
      %2272 = vmatmul.mubr.bf16.gmra.mxu0 %v2229
      %v2273 = vpop.f32.mrf.mxu0
      %v2274 = vadd.f32 %v2209, %v2273
      %v2275 = vpop.f32.mrf.mxu0
      %v2276 = vpop.f32.mrf.mxu0
      %v2277 = vadd.f32 %v2212, %v2276
      %v2278 = vpop.f32.mrf.mxu0
      %2279 = vdwg.mxu0
      %v2280 = vsel %vm2121, 1, 0
      %vm2281 = vcmp.eq.s32.totalorder %v2280, 1
      %vm2282 = vmpackc.low %vm2281, %vm2281
      %v2283 = vsel %vm2282, 65537, 0
      %v2284 = vlaneseq
      %v2285 = vshrl.u32 %v2284, 7
      %v2286 = vsub.s32 0, %v2285
      %v2287 = vrot.slane %v2283, %v2286
      %2288 = vrot.lane.b32.xlu0 %v2287, 2
      %v2289 = vpop.permute.xlu0 %2288
      %vm2290 = vcmp.ne.s16.totalorder %v2289, 0
      %v2291 = vsel %vm2290, %v2104, 0
      %v2292 = vsel %vm2290, %v2106, 0
      %s2293 = scalar_lea.vmem %s10, 32
      %v2294 = vld [vmem:[%s2293] sm:$0xf]
      %v2295 = vld [vmem:[%s2293 + $0x4] sm:$0xf]
      %v2296 = vld [vmem:[%s2293 + $0x8] sm:$0xf]
      %v2297 = vld [vmem:[%s2293 + $0xc] sm:$0xf]
      %v2302 = vunpack.c.l.b16 %v2294
      %v2303 = vunpack.c.l.b16 %v2295
      %v2304 = vunpack.c.l.b16 %v2296
      %v2305 = vunpack.c.l.b16 %v2297
      %v2306 = vpack.c.b16 %v2303, %v2302
      %v2307 = vpack.c.b16 %v2305, %v2304
      %2310 = vrot.lane.b32.xlu0 %v2291, 126
      %v2311 = vpop.permute.xlu0 %2310
      %2312 = vrot.lane.b32.xlu0 %v2292, 126
      %v2313 = vpop.permute.xlu0 %2312
      %v2317 = vsel %vm831, %v2306, 0
      %v2320 = vsel %vm831, %v2307, 0
      %2322 = vmatprep.subr.bf16.mxu0 0
      %2323 = vmatpush1.bf16.msra.mxu0 0
      %2324 = vmatprep.subr.bf16.mxu0 0
      %2325 = vmatpush1.bf16.msra.mxu0 0
      %2326 = vmatprep.subr.bf16.mxu0 0
      %2327 = vmatpush1.bf16.msra.mxu0 0
      %2328 = vmatprep.subr.bf16.mxu0 0
      %2329 = vmatpush1.bf16.msra.mxu0 0
      %2330 = vmatprep.subr.bf16.mxu0 0
      %2331 = vmatpush1.bf16.msra.mxu0 0
      %2332 = vmatprep.subr.bf16.mxu0 0
      %2333 = vmatpush1.bf16.msra.mxu0 0
      %2334 = vmatprep.subr.bf16.mxu0 0
      %2335 = vmatpush1.bf16.msra.mxu0 %v2313
      %2336 = vmatprep.subr.bf16.mxu0 0
      %2337 = vmatpush1.bf16.msra.mxu0 %v2311
      %2338 = vmatprep.subr.bf16.mxu0 0
      %2339 = vmatpush2.bf16.msra.mxu0 0
      %2340 = vmatprep.subr.bf16.mxu0 0
      %2341 = vmatpush2.bf16.msra.mxu0 0
      %2342 = vmatprep.subr.bf16.mxu0 0
      %2343 = vmatpush2.bf16.msra.mxu0 0
      %2344 = vmatprep.subr.bf16.mxu0 0
      %2345 = vmatpush2.bf16.msra.mxu0 0
      %2346 = vmatprep.subr.bf16.mxu0 0
      %2347 = vmatpush2.bf16.msra.mxu0 0
      %2348 = vmatprep.subr.bf16.mxu0 0
      %2349 = vmatpush2.bf16.msra.mxu0 0
      %2350 = vmatprep.subr.bf16.mxu0 0
      %2351 = vmatpush2.bf16.msra.mxu0 0
      %2352 = vmatprep.subr.bf16.mxu0 0
      %2353 = vmatpush2.bf16.msra.mxu0 0
      %2354 = vmatprep.mubr.bf16.mxu0 0
      %2355 = vmatmul.mubr.bf16.gmra.mxu0 %v2317
      %v2356 = vpop.f32.mrf.mxu0
      %v2357 = vadd.f32 0.0, %v2356
      %v2358 = vpop.f32.mrf.mxu0
      %v2359 = vpop.f32.mrf.mxu0
      %v2360 = vadd.f32 0.0, %v2359
      %v2361 = vpop.f32.mrf.mxu0
      %2362 = vmatprep.mubr.bf16.mxu0 0
      %2363 = vmatmul.mubr.bf16.gmra.mxu0 %v2320
      %v2364 = vpop.f32.mrf.mxu0
      %v2365 = vadd.f32 0.0, %v2364
      %v2366 = vpop.f32.mrf.mxu0
      %v2367 = vpop.f32.mrf.mxu0
      %v2368 = vadd.f32 0.0, %v2367
      %v2369 = vpop.f32.mrf.mxu0
      %2370 = vdwg.mxu0
      %v2371 = vadd.f32 %v2266, %v2357
      %v2372 = vadd.f32 %v2269, %v2360
      %v2373 = vadd.f32 %v2274, %v2365
      %v2374 = vadd.f32 %v2277, %v2368
      %2375 = vrot.lane.b32.xlu0 %v2129, 8
      %v2376 = vpop.permute.xlu0 %2375
      %vm2377 = vcmp.ne.s16.totalorder %v2376, 0
      %v2378 = vsel %vm2377, %v2104, 0
      %v2379 = vsel %vm2377, %v2106, 0
      %s2380 = scalar_lea.vmem %s10, 48
      %v2381 = vld [vmem:[%s2380] sm:$0xf]
      %v2382 = vld [vmem:[%s2380 + $0x4] sm:$0xf]
      %v2383 = vld [vmem:[%s2380 + $0x8] sm:$0xf]
      %v2384 = vld [vmem:[%s2380 + $0xc] sm:$0xf]
      %v2389 = vunpack.c.l.b16 %v2381
      %v2390 = vunpack.c.l.b16 %v2382
      %v2391 = vunpack.c.l.b16 %v2383
      %v2392 = vunpack.c.l.b16 %v2384
      %v2393 = vpack.c.b16 %v2390, %v2389
      %v2394 = vpack.c.b16 %v2392, %v2391
      %2397 = vrot.lane.b32.xlu0 %v2378, 120
      %v2398 = vpop.permute.xlu0 %2397
      %2399 = vrot.lane.b32.xlu0 %v2379, 120
      %v2400 = vpop.permute.xlu0 %2399
      %v2404 = vsel %vm831, %v2393, 0
      %v2407 = vsel %vm831, %v2394, 0
      %2409 = vmatprep.subr.bf16.mxu0 0
      %2410 = vmatpush1.bf16.msra.mxu0 0
      %2411 = vmatprep.subr.bf16.mxu0 0
      %2412 = vmatpush1.bf16.msra.mxu0 0
      %2413 = vmatprep.subr.bf16.mxu0 0
      %2414 = vmatpush1.bf16.msra.mxu0 0
      %2415 = vmatprep.subr.bf16.mxu0 0
      %2416 = vmatpush1.bf16.msra.mxu0 0
      %2417 = vmatprep.subr.bf16.mxu0 0
      %2418 = vmatpush1.bf16.msra.mxu0 0
      %2419 = vmatprep.subr.bf16.mxu0 0
      %2420 = vmatpush1.bf16.msra.mxu0 0
      %2421 = vmatprep.subr.bf16.mxu0 0
      %2422 = vmatpush1.bf16.msra.mxu0 %v2400
      %2423 = vmatprep.subr.bf16.mxu0 0
      %2424 = vmatpush1.bf16.msra.mxu0 %v2398
      %2425 = vmatprep.subr.bf16.mxu0 0
      %2426 = vmatpush2.bf16.msra.mxu0 0
      %2427 = vmatprep.subr.bf16.mxu0 0
      %2428 = vmatpush2.bf16.msra.mxu0 0
      %2429 = vmatprep.subr.bf16.mxu0 0
      %2430 = vmatpush2.bf16.msra.mxu0 0
      %2431 = vmatprep.subr.bf16.mxu0 0
      %2432 = vmatpush2.bf16.msra.mxu0 0
      %2433 = vmatprep.subr.bf16.mxu0 0
      %2434 = vmatpush2.bf16.msra.mxu0 0
      %2435 = vmatprep.subr.bf16.mxu0 0
      %2436 = vmatpush2.bf16.msra.mxu0 0
      %2437 = vmatprep.subr.bf16.mxu0 0
      %2438 = vmatpush2.bf16.msra.mxu0 0
      %2439 = vmatprep.subr.bf16.mxu0 0
      %2440 = vmatpush2.bf16.msra.mxu0 0
      %2441 = vmatprep.mubr.bf16.mxu0 0
      %2442 = vmatmul.mubr.bf16.gmra.mxu0 %v2404
      %v2443 = vpop.f32.mrf.mxu0
      %v2444 = vadd.f32 0.0, %v2443
      %v2445 = vpop.f32.mrf.mxu0
      %v2446 = vpop.f32.mrf.mxu0
      %v2447 = vadd.f32 0.0, %v2446
      %v2448 = vpop.f32.mrf.mxu0
      %2449 = vmatprep.mubr.bf16.mxu0 0
      %2450 = vmatmul.mubr.bf16.gmra.mxu0 %v2407
      %v2451 = vpop.f32.mrf.mxu0
      %v2452 = vadd.f32 0.0, %v2451
      %v2453 = vpop.f32.mrf.mxu0
      %v2454 = vpop.f32.mrf.mxu0
      %v2455 = vadd.f32 0.0, %v2454
      %v2456 = vpop.f32.mrf.mxu0
      %2457 = vdwg.mxu0
      %v2458 = vadd.f32 %v2371, %v2444
      %v2459 = vadd.f32 %v2372, %v2447
      %v2460 = vadd.f32 %v2373, %v2452
      %v2461 = vadd.f32 %v2374, %v2455
      %s2462 = scalar_lea.vmem %s10, 64
      %v2463 = vld [vmem:[%s2462] sm:$0xf]
      %v2464 = vld [vmem:[%s2462 + $0x4] sm:$0xf]
      %v2465 = vld [vmem:[%s2462 + $0x8] sm:$0xf]
      %v2466 = vld [vmem:[%s2462 + $0xc] sm:$0xf]
      %v2471 = vunpack.c.l.b16 %v2463
      %v2472 = vunpack.c.l.b16 %v2464
      %v2473 = vunpack.c.l.b16 %v2465
      %v2474 = vunpack.c.l.b16 %v2466
      %v2475 = vpack.c.b16 %v2472, %v2471
      %v2476 = vpack.c.b16 %v2474, %v2473
      %2477 = vrot.lane.b32.xlu0 %v2104, 119
      %v2478 = vpop.permute.xlu0 %2477
      %2479 = vrot.lane.b32.xlu0 %v2106, 119
      %v2480 = vpop.permute.xlu0 %2479
      %v2484 = vsel %vm831, %v2475, 0
      %v2487 = vsel %vm831, %v2476, 0
      %2489 = vmatprep.subr.bf16.mxu0 0
      %2490 = vmatpush1.bf16.msra.mxu0 0
      %2491 = vmatprep.subr.bf16.mxu0 0
      %2492 = vmatpush1.bf16.msra.mxu0 0
      %2493 = vmatprep.subr.bf16.mxu0 0
      %2494 = vmatpush1.bf16.msra.mxu0 0
      %2495 = vmatprep.subr.bf16.mxu0 0
      %2496 = vmatpush1.bf16.msra.mxu0 0
      %2497 = vmatprep.subr.bf16.mxu0 0
      %2498 = vmatpush1.bf16.msra.mxu0 0
      %2499 = vmatprep.subr.bf16.mxu0 0
      %2500 = vmatpush1.bf16.msra.mxu0 0
      %2501 = vmatprep.subr.bf16.mxu0 0
      %2502 = vmatpush1.bf16.msra.mxu0 %v2480
      %2503 = vmatprep.subr.bf16.mxu0 0
      %2504 = vmatpush1.bf16.msra.mxu0 %v2478
      %2505 = vmatprep.subr.bf16.mxu0 0
      %2506 = vmatpush2.bf16.msra.mxu0 0
      %2507 = vmatprep.subr.bf16.mxu0 0
      %2508 = vmatpush2.bf16.msra.mxu0 0
      %2509 = vmatprep.subr.bf16.mxu0 0
      %2510 = vmatpush2.bf16.msra.mxu0 0
      %2511 = vmatprep.subr.bf16.mxu0 0
      %2512 = vmatpush2.bf16.msra.mxu0 0
      %2513 = vmatprep.subr.bf16.mxu0 0
      %2514 = vmatpush2.bf16.msra.mxu0 0
      %2515 = vmatprep.subr.bf16.mxu0 0
      %2516 = vmatpush2.bf16.msra.mxu0 0
      %2517 = vmatprep.subr.bf16.mxu0 0
      %2518 = vmatpush2.bf16.msra.mxu0 0
      %2519 = vmatprep.subr.bf16.mxu0 0
      %2520 = vmatpush2.bf16.msra.mxu0 0
      %2521 = vmatprep.mubr.bf16.mxu0 0
      %2522 = vmatmul.mubr.bf16.gmra.mxu0 %v2484
      %v2523 = vpop.f32.mrf.mxu0
      %v2524 = vadd.f32 0.0, %v2523
      %v2525 = vpop.f32.mrf.mxu0
      %v2526 = vpop.f32.mrf.mxu0
      %v2527 = vadd.f32 0.0, %v2526
      %v2528 = vpop.f32.mrf.mxu0
      %2529 = vmatprep.mubr.bf16.mxu0 0
      %2530 = vmatmul.mubr.bf16.gmra.mxu0 %v2487
      %v2531 = vpop.f32.mrf.mxu0
      %v2532 = vadd.f32 0.0, %v2531
      %v2533 = vpop.f32.mrf.mxu0
      %v2534 = vpop.f32.mrf.mxu0
      %v2535 = vadd.f32 0.0, %v2534
      %v2536 = vpop.f32.mrf.mxu0
      %2537 = vdwg.mxu0
      %v2538 = vadd.f32 %v2458, %v2524
      %v2539 = vadd.f32 %v2459, %v2527
      %v2540 = vadd.f32 %v2460, %v2532
      %v2541 = vadd.f32 %v2461, %v2535
      %2542 = vrot.lane.b32.xlu0 %v2287, 10
      %v2543 = vpop.permute.xlu0 %2542
      %vm2544 = vcmp.ne.s16.totalorder %v2543, 0
      %v2545 = vsel %vm2544, %v2104, 0
      %v2546 = vsel %vm2544, %v2106, 0
      %s2547 = scalar_lea.vmem %s10, 80
      %v2548 = vld [vmem:[%s2547] sm:$0xf]
      %v2549 = vld [vmem:[%s2547 + $0x4] sm:$0xf]
      %v2550 = vld [vmem:[%s2547 + $0x8] sm:$0xf]
      %v2551 = vld [vmem:[%s2547 + $0xc] sm:$0xf]
      %v2556 = vunpack.c.l.b16 %v2548
      %v2557 = vunpack.c.l.b16 %v2549
      %v2558 = vunpack.c.l.b16 %v2550
      %v2559 = vunpack.c.l.b16 %v2551
      %v2560 = vpack.c.b16 %v2557, %v2556
      %v2561 = vpack.c.b16 %v2559, %v2558
      %2564 = vrot.lane.b32.xlu0 %v2545, 118
      %v2565 = vpop.permute.xlu0 %2564
      %2566 = vrot.lane.b32.xlu0 %v2546, 118
      %v2567 = vpop.permute.xlu0 %2566
      %v2571 = vsel %vm831, %v2560, 0
      %v2574 = vsel %vm831, %v2561, 0
      %2576 = vmatprep.subr.bf16.mxu0 0
      %2577 = vmatpush1.bf16.msra.mxu0 0
      %2578 = vmatprep.subr.bf16.mxu0 0
      %2579 = vmatpush1.bf16.msra.mxu0 0
      %2580 = vmatprep.subr.bf16.mxu0 0
      %2581 = vmatpush1.bf16.msra.mxu0 0
      %2582 = vmatprep.subr.bf16.mxu0 0
      %2583 = vmatpush1.bf16.msra.mxu0 0
      %2584 = vmatprep.subr.bf16.mxu0 0
      %2585 = vmatpush1.bf16.msra.mxu0 0
      %2586 = vmatprep.subr.bf16.mxu0 0
      %2587 = vmatpush1.bf16.msra.mxu0 0
      %2588 = vmatprep.subr.bf16.mxu0 0
      %2589 = vmatpush1.bf16.msra.mxu0 %v2567
      %2590 = vmatprep.subr.bf16.mxu0 0
      %2591 = vmatpush1.bf16.msra.mxu0 %v2565
      %2592 = vmatprep.subr.bf16.mxu0 0
      %2593 = vmatpush2.bf16.msra.mxu0 0
      %2594 = vmatprep.subr.bf16.mxu0 0
      %2595 = vmatpush2.bf16.msra.mxu0 0
      %2596 = vmatprep.subr.bf16.mxu0 0
      %2597 = vmatpush2.bf16.msra.mxu0 0
      %2598 = vmatprep.subr.bf16.mxu0 0
      %2599 = vmatpush2.bf16.msra.mxu0 0
      %2600 = vmatprep.subr.bf16.mxu0 0
      %2601 = vmatpush2.bf16.msra.mxu0 0
      %2602 = vmatprep.subr.bf16.mxu0 0
      %2603 = vmatpush2.bf16.msra.mxu0 0
      %2604 = vmatprep.subr.bf16.mxu0 0
      %2605 = vmatpush2.bf16.msra.mxu0 0
      %2606 = vmatprep.subr.bf16.mxu0 0
      %2607 = vmatpush2.bf16.msra.mxu0 0
      %2608 = vmatprep.mubr.bf16.mxu0 0
      %2609 = vmatmul.mubr.bf16.gmra.mxu0 %v2571
      %v2610 = vpop.f32.mrf.mxu0
      %v2611 = vadd.f32 0.0, %v2610
      %v2612 = vpop.f32.mrf.mxu0
      %v2613 = vpop.f32.mrf.mxu0
      %v2614 = vadd.f32 0.0, %v2613
      %v2615 = vpop.f32.mrf.mxu0
      %2616 = vmatprep.mubr.bf16.mxu0 0
      %2617 = vmatmul.mubr.bf16.gmra.mxu0 %v2574
      %v2618 = vpop.f32.mrf.mxu0
      %v2619 = vadd.f32 0.0, %v2618
      %v2620 = vpop.f32.mrf.mxu0
      %v2621 = vpop.f32.mrf.mxu0
      %v2622 = vadd.f32 0.0, %v2621
      %v2623 = vpop.f32.mrf.mxu0
      %2624 = vdwg.mxu0
      %v2625 = vadd.f32 %v2538, %v2611
      %v2626 = vadd.f32 %v2539, %v2614
      %v2627 = vadd.f32 %v2540, %v2619
      %v2628 = vadd.f32 %v2541, %v2622
      %2629 = vrot.lane.b32.xlu0 %v2129, 16
      %v2630 = vpop.permute.xlu0 %2629
      %vm2631 = vcmp.ne.s16.totalorder %v2630, 0
      %v2632 = vsel %vm2631, %v2104, 0
      %v2633 = vsel %vm2631, %v2106, 0
      %s2634 = scalar_lea.vmem %s10, 96
      %v2635 = vld [vmem:[%s2634] sm:$0xf]
      %v2636 = vld [vmem:[%s2634 + $0x4] sm:$0xf]
      %v2637 = vld [vmem:[%s2634 + $0x8] sm:$0xf]
      %v2638 = vld [vmem:[%s2634 + $0xc] sm:$0xf]
      %v2643 = vunpack.c.l.b16 %v2635
      %v2644 = vunpack.c.l.b16 %v2636
      %v2645 = vunpack.c.l.b16 %v2637
      %v2646 = vunpack.c.l.b16 %v2638
      %v2647 = vpack.c.b16 %v2644, %v2643
      %v2648 = vpack.c.b16 %v2646, %v2645
      %2651 = vrot.lane.b32.xlu0 %v2632, 112
      %v2652 = vpop.permute.xlu0 %2651
      %2653 = vrot.lane.b32.xlu0 %v2633, 112
      %v2654 = vpop.permute.xlu0 %2653
      %v2658 = vsel %vm831, %v2647, 0
      %v2661 = vsel %vm831, %v2648, 0
      %2663 = vmatprep.subr.bf16.mxu0 0
      %2664 = vmatpush1.bf16.msra.mxu0 0
      %2665 = vmatprep.subr.bf16.mxu0 0
      %2666 = vmatpush1.bf16.msra.mxu0 0
      %2667 = vmatprep.subr.bf16.mxu0 0
      %2668 = vmatpush1.bf16.msra.mxu0 0
      %2669 = vmatprep.subr.bf16.mxu0 0
      %2670 = vmatpush1.bf16.msra.mxu0 0
      %2671 = vmatprep.subr.bf16.mxu0 0
      %2672 = vmatpush1.bf16.msra.mxu0 0
      %2673 = vmatprep.subr.bf16.mxu0 0
      %2674 = vmatpush1.bf16.msra.mxu0 0
      %2675 = vmatprep.subr.bf16.mxu0 0
      %2676 = vmatpush1.bf16.msra.mxu0 %v2654
      %2677 = vmatprep.subr.bf16.mxu0 0
      %2678 = vmatpush1.bf16.msra.mxu0 %v2652
      %2679 = vmatprep.subr.bf16.mxu0 0
      %2680 = vmatpush2.bf16.msra.mxu0 0
      %2681 = vmatprep.subr.bf16.mxu0 0
      %2682 = vmatpush2.bf16.msra.mxu0 0
      %2683 = vmatprep.subr.bf16.mxu0 0
      %2684 = vmatpush2.bf16.msra.mxu0 0
      %2685 = vmatprep.subr.bf16.mxu0 0
      %2686 = vmatpush2.bf16.msra.mxu0 0
      %2687 = vmatprep.subr.bf16.mxu0 0
      %2688 = vmatpush2.bf16.msra.mxu0 0
      %2689 = vmatprep.subr.bf16.mxu0 0
      %2690 = vmatpush2.bf16.msra.mxu0 0
      %2691 = vmatprep.subr.bf16.mxu0 0
      %2692 = vmatpush2.bf16.msra.mxu0 0
      %2693 = vmatprep.subr.bf16.mxu0 0
      %2694 = vmatpush2.bf16.msra.mxu0 0
      %2695 = vmatprep.mubr.bf16.mxu0 0
      %2696 = vmatmul.mubr.bf16.gmra.mxu0 %v2658
      %v2697 = vpop.f32.mrf.mxu0
      %v2698 = vadd.f32 0.0, %v2697
      %v2699 = vpop.f32.mrf.mxu0
      %v2700 = vpop.f32.mrf.mxu0
      %v2701 = vadd.f32 0.0, %v2700
      %v2702 = vpop.f32.mrf.mxu0
      %2703 = vmatprep.mubr.bf16.mxu0 0
      %2704 = vmatmul.mubr.bf16.gmra.mxu0 %v2661
      %v2705 = vpop.f32.mrf.mxu0
      %v2706 = vadd.f32 0.0, %v2705
      %v2707 = vpop.f32.mrf.mxu0
      %v2708 = vpop.f32.mrf.mxu0
      %v2709 = vadd.f32 0.0, %v2708
      %v2710 = vpop.f32.mrf.mxu0
      %2711 = vdwg.mxu0
      %v2712 = vadd.f32 %v2625, %v2698
      %v2713 = vadd.f32 %v2626, %v2701
      %v2714 = vadd.f32 %v2627, %v2706
      %v2715 = vadd.f32 %v2628, %v2709
      %s2716 = scalar_lea.vmem %s10, 112
      %v2717 = vld [vmem:[%s2716] sm:$0xf]
      %v2718 = vld [vmem:[%s2716 + $0x4] sm:$0xf]
      %v2719 = vld [vmem:[%s2716 + $0x8] sm:$0xf]
      %v2720 = vld [vmem:[%s2716 + $0xc] sm:$0xf]
      %v2725 = vunpack.c.l.b16 %v2717
      %v2726 = vunpack.c.l.b16 %v2718
      %v2727 = vunpack.c.l.b16 %v2719
      %v2728 = vunpack.c.l.b16 %v2720
      %v2729 = vpack.c.b16 %v2726, %v2725
      %v2730 = vpack.c.b16 %v2728, %v2727
      %2731 = vrot.lane.b32.xlu0 %v2104, 111
      %v2732 = vpop.permute.xlu0 %2731
      %2733 = vrot.lane.b32.xlu0 %v2106, 111
      %v2734 = vpop.permute.xlu0 %2733
      %v2738 = vsel %vm831, %v2729, 0
      %v2741 = vsel %vm831, %v2730, 0
      %2743 = vmatprep.subr.bf16.mxu0 0
      %2744 = vmatpush1.bf16.msra.mxu0 0
      %2745 = vmatprep.subr.bf16.mxu0 0
      %2746 = vmatpush1.bf16.msra.mxu0 0
      %2747 = vmatprep.subr.bf16.mxu0 0
      %2748 = vmatpush1.bf16.msra.mxu0 0
      %2749 = vmatprep.subr.bf16.mxu0 0
      %2750 = vmatpush1.bf16.msra.mxu0 0
      %2751 = vmatprep.subr.bf16.mxu0 0
      %2752 = vmatpush1.bf16.msra.mxu0 0
      %2753 = vmatprep.subr.bf16.mxu0 0
      %2754 = vmatpush1.bf16.msra.mxu0 0
      %2755 = vmatprep.subr.bf16.mxu0 0
      %2756 = vmatpush1.bf16.msra.mxu0 %v2734
      %2757 = vmatprep.subr.bf16.mxu0 0
      %2758 = vmatpush1.bf16.msra.mxu0 %v2732
      %2759 = vmatprep.subr.bf16.mxu0 0
      %2760 = vmatpush2.bf16.msra.mxu0 0
      %2761 = vmatprep.subr.bf16.mxu0 0
      %2762 = vmatpush2.bf16.msra.mxu0 0
      %2763 = vmatprep.subr.bf16.mxu0 0
      %2764 = vmatpush2.bf16.msra.mxu0 0
      %2765 = vmatprep.subr.bf16.mxu0 0
      %2766 = vmatpush2.bf16.msra.mxu0 0
      %2767 = vmatprep.subr.bf16.mxu0 0
      %2768 = vmatpush2.bf16.msra.mxu0 0
      %2769 = vmatprep.subr.bf16.mxu0 0
      %2770 = vmatpush2.bf16.msra.mxu0 0
      %2771 = vmatprep.subr.bf16.mxu0 0
      %2772 = vmatpush2.bf16.msra.mxu0 0
      %2773 = vmatprep.subr.bf16.mxu0 0
      %2774 = vmatpush2.bf16.msra.mxu0 0
      %2775 = vmatprep.mubr.bf16.mxu0 0
      %2776 = vmatmul.mubr.bf16.gmra.mxu0 %v2738
      %v2777 = vpop.f32.mrf.mxu0
      %v2778 = vadd.f32 0.0, %v2777
      %v2779 = vpop.f32.mrf.mxu0
      %v2780 = vpop.f32.mrf.mxu0
      %v2781 = vadd.f32 0.0, %v2780
      %v2782 = vpop.f32.mrf.mxu0
      %2783 = vmatprep.mubr.bf16.mxu0 0
      %2784 = vmatmul.mubr.bf16.gmra.mxu0 %v2741
      %v2785 = vpop.f32.mrf.mxu0
      %v2786 = vadd.f32 0.0, %v2785
      %v2787 = vpop.f32.mrf.mxu0
      %v2788 = vpop.f32.mrf.mxu0
      %v2789 = vadd.f32 0.0, %v2788
      %v2790 = vpop.f32.mrf.mxu0
      %2791 = vdwg.mxu0
      %v2792 = vadd.f32 %v2712, %v2778
      %v2793 = vadd.f32 %v2713, %v2781
      %v2794 = vadd.f32 %v2714, %v2786
      %v2795 = vadd.f32 %v2715, %v2789
      %2796 = vrot.lane.b32.xlu0 %v2287, 18
      %v2797 = vpop.permute.xlu0 %2796
      %vm2798 = vcmp.ne.s16.totalorder %v2797, 0
      %v2799 = vsel %vm2798, %v2104, 0
      %v2800 = vsel %vm2798, %v2106, 0
      %s2801 = scalar_lea.vmem %s10, 128
      %v2802 = vld [vmem:[%s2801] sm:$0xf]
      %v2803 = vld [vmem:[%s2801 + $0x4] sm:$0xf]
      %v2804 = vld [vmem:[%s2801 + $0x8] sm:$0xf]
      %v2805 = vld [vmem:[%s2801 + $0xc] sm:$0xf]
      %v2810 = vunpack.c.l.b16 %v2802
      %v2811 = vunpack.c.l.b16 %v2803
      %v2812 = vunpack.c.l.b16 %v2804
      %v2813 = vunpack.c.l.b16 %v2805
      %v2814 = vpack.c.b16 %v2811, %v2810
      %v2815 = vpack.c.b16 %v2813, %v2812
      %2818 = vrot.lane.b32.xlu0 %v2799, 110
      %v2819 = vpop.permute.xlu0 %2818
      %2820 = vrot.lane.b32.xlu0 %v2800, 110
      %v2821 = vpop.permute.xlu0 %2820
      %v2825 = vsel %vm831, %v2814, 0
      %v2828 = vsel %vm831, %v2815, 0
      %2830 = vmatprep.subr.bf16.mxu0 0
      %2831 = vmatpush1.bf16.msra.mxu0 0
      %2832 = vmatprep.subr.bf16.mxu0 0
      %2833 = vmatpush1.bf16.msra.mxu0 0
      %2834 = vmatprep.subr.bf16.mxu0 0
      %2835 = vmatpush1.bf16.msra.mxu0 0
      %2836 = vmatprep.subr.bf16.mxu0 0
      %2837 = vmatpush1.bf16.msra.mxu0 0
      %2838 = vmatprep.subr.bf16.mxu0 0
      %2839 = vmatpush1.bf16.msra.mxu0 0
      %2840 = vmatprep.subr.bf16.mxu0 0
      %2841 = vmatpush1.bf16.msra.mxu0 0
      %2842 = vmatprep.subr.bf16.mxu0 0
      %2843 = vmatpush1.bf16.msra.mxu0 %v2821
      %2844 = vmatprep.subr.bf16.mxu0 0
      %2845 = vmatpush1.bf16.msra.mxu0 %v2819
      %2846 = vmatprep.subr.bf16.mxu0 0
      %2847 = vmatpush2.bf16.msra.mxu0 0
      %2848 = vmatprep.subr.bf16.mxu0 0
      %2849 = vmatpush2.bf16.msra.mxu0 0
      %2850 = vmatprep.subr.bf16.mxu0 0
      %2851 = vmatpush2.bf16.msra.mxu0 0
      %2852 = vmatprep.subr.bf16.mxu0 0
      %2853 = vmatpush2.bf16.msra.mxu0 0
      %2854 = vmatprep.subr.bf16.mxu0 0
      %2855 = vmatpush2.bf16.msra.mxu0 0
      %2856 = vmatprep.subr.bf16.mxu0 0
      %2857 = vmatpush2.bf16.msra.mxu0 0
      %2858 = vmatprep.subr.bf16.mxu0 0
      %2859 = vmatpush2.bf16.msra.mxu0 0
      %2860 = vmatprep.subr.bf16.mxu0 0
      %2861 = vmatpush2.bf16.msra.mxu0 0
      %2862 = vmatprep.mubr.bf16.mxu0 0
      %2863 = vmatmul.mubr.bf16.gmra.mxu0 %v2825
      %v2864 = vpop.f32.mrf.mxu0
      %v2865 = vadd.f32 0.0, %v2864
      %v2866 = vpop.f32.mrf.mxu0
      %v2867 = vpop.f32.mrf.mxu0
      %v2868 = vadd.f32 0.0, %v2867
      %v2869 = vpop.f32.mrf.mxu0
      %2870 = vmatprep.mubr.bf16.mxu0 0
      %2871 = vmatmul.mubr.bf16.gmra.mxu0 %v2828
      %v2872 = vpop.f32.mrf.mxu0
      %v2873 = vadd.f32 0.0, %v2872
      %v2874 = vpop.f32.mrf.mxu0
      %v2875 = vpop.f32.mrf.mxu0
      %v2876 = vadd.f32 0.0, %v2875
      %v2877 = vpop.f32.mrf.mxu0
      %2878 = vdwg.mxu0
      %v2879 = vadd.f32 %v2792, %v2865
      %v2880 = vadd.f32 %v2793, %v2868
      %v2881 = vadd.f32 %v2794, %v2873
      %v2882 = vadd.f32 %v2795, %v2876
      %2883 = vst.msk [vmem:[%s667] sm:$0xff] %vm702, %v2879
      %2884 = vst.msk [vmem:[%s667 + $0x8] sm:$0xff] %vm702, %v2880
      %2885 = vst.msk [vmem:[%s667 + $0x10] sm:$0xff] %vm702, %v2881
      %2886 = vst.msk [vmem:[%s667 + $0x18] sm:$0xff] %vm702, %v2882
      %v2887 = vld [vmem:[%s642] sm:$0xff]
      %v2888 = vld [vmem:[%s642 + $0x8] sm:$0xff]
      %v2889 = vld [vmem:[%s642 + $0x10] sm:$0xff]
      %v2890 = vld [vmem:[%s642 + $0x18] sm:$0xff]
      %v2891 = vpack.c.bf16 %v2889, %v2887
      %v2892 = vpack.c.bf16 %v2890, %v2888
      %v2893 = vld [vmem:[%s5] sm:$0xf]
      %v2894 = vld [vmem:[%s5 + $0x4] sm:$0xf]
      %v2895 = vld [vmem:[%s5 + $0x8] sm:$0xf]
      %v2896 = vld [vmem:[%s5 + $0xc] sm:$0xf]
      %v2897 = vld [vmem:[%s13] sm:$0xf]
      %v2899 = vsel %vm1992, %v2090, 0
      %v2902 = vsel %vm1992, %v2091, 0
      %vm2904 = vcmask 1043456
      %v2906 = vsel %vm2904, %v2897, 0
      %2908 = vmatprep.subr.bf16.mxu0 0
      %2909 = vmatpush1.bf16.msra.mxu0 0
      %2910 = vmatprep.subr.bf16.mxu0 0
      %2911 = vmatpush1.bf16.msra.mxu0 0
      %2912 = vmatprep.subr.bf16.mxu0 0
      %2913 = vmatpush1.bf16.msra.mxu0 0
      %2914 = vmatprep.subr.bf16.mxu0 0
      %2915 = vmatpush1.bf16.msra.mxu0 0
      %2916 = vmatprep.subr.bf16.mxu0 0
      %2917 = vmatpush1.bf16.msra.mxu0 0
      %2918 = vmatprep.subr.bf16.mxu0 0
      %2919 = vmatpush1.bf16.msra.mxu0 0
      %2920 = vmatprep.subr.bf16.mxu0 0
      %2921 = vmatpush1.bf16.msra.mxu0 0
      %2922 = vmatprep.subr.bf16.mxu0 0
      %2923 = vmatpush1.bf16.msra.mxu0 %v2906
      %2924 = vmatprep.subr.bf16.mxu0 0
      %2925 = vmatpush2.bf16.msra.mxu0 0
      %2926 = vmatprep.subr.bf16.mxu0 0
      %2927 = vmatpush2.bf16.msra.mxu0 0
      %2928 = vmatprep.subr.bf16.mxu0 0
      %2929 = vmatpush2.bf16.msra.mxu0 0
      %2930 = vmatprep.subr.bf16.mxu0 0
      %2931 = vmatpush2.bf16.msra.mxu0 0
      %2932 = vmatprep.subr.bf16.mxu0 0
      %2933 = vmatpush2.bf16.msra.mxu0 0
      %2934 = vmatprep.subr.bf16.mxu0 0
      %2935 = vmatpush2.bf16.msra.mxu0 0
      %2936 = vmatprep.subr.bf16.mxu0 0
      %2937 = vmatpush2.bf16.msra.mxu0 0
      %2938 = vmatprep.subr.bf16.mxu0 0
      %2939 = vmatpush2.bf16.msra.mxu0 0
      %2940 = vmatprep.mubr.bf16.mxu0 0
      %2941 = vmatmul.mubr.bf16.gmra.mxu0 %v2899
      %v2942 = vpop.f32.mrf.mxu0
      %v2943 = vadd.f32 0.0, %v2942
      %v2944 = vpop.f32.mrf.mxu0
      %v2945 = vpop.f32.mrf.mxu0
      %v2946 = vadd.f32 0.0, %v2945
      %v2947 = vpop.f32.mrf.mxu0
      %2948 = vmatprep.mubr.bf16.mxu0 0
      %2949 = vmatmul.mubr.bf16.gmra.mxu0 %v2902
      %v2950 = vpop.f32.mrf.mxu0
      %v2951 = vadd.f32 0.0, %v2950
      %v2952 = vpop.f32.mrf.mxu0
      %v2953 = vpop.f32.mrf.mxu0
      %v2954 = vadd.f32 0.0, %v2953
      %v2955 = vpop.f32.mrf.mxu0
      %2956 = vdwg.mxu0
      %2957 = vrot.lane.b32.xlu0 %v2090, 120
      %v2958 = vpop.permute.xlu0 %2957
      %2959 = vrot.lane.b32.xlu0 %v2091, 120
      %v2960 = vpop.permute.xlu0 %2959
      %v2962 = vsel %vm1992, %v2958, 0
      %v2965 = vsel %vm1992, %v2960, 0
      %2967 = vmatprep.subr.bf16.mxu0 0
      %2968 = vmatpush1.bf16.msra.mxu0 0
      %2969 = vmatprep.subr.bf16.mxu0 0
      %2970 = vmatpush1.bf16.msra.mxu0 0
      %2971 = vmatprep.subr.bf16.mxu0 0
      %2972 = vmatpush1.bf16.msra.mxu0 0
      %2973 = vmatprep.subr.bf16.mxu0 0
      %2974 = vmatpush1.bf16.msra.mxu0 0
      %2975 = vmatprep.subr.bf16.mxu0 0
      %2976 = vmatpush1.bf16.msra.mxu0 0
      %2977 = vmatprep.subr.bf16.mxu0 0
      %2978 = vmatpush1.bf16.msra.mxu0 0
      %2979 = vmatprep.subr.bf16.mxu0 0
      %2980 = vmatpush1.bf16.msra.mxu0 0
      %2981 = vmatprep.subr.bf16.mxu0 0
      %2982 = vmatpush1.bf16.msra.mxu0 %v2906
      %2983 = vmatprep.subr.bf16.mxu0 0
      %2984 = vmatpush2.bf16.msra.mxu0 0
      %2985 = vmatprep.subr.bf16.mxu0 0
      %2986 = vmatpush2.bf16.msra.mxu0 0
      %2987 = vmatprep.subr.bf16.mxu0 0
      %2988 = vmatpush2.bf16.msra.mxu0 0
      %2989 = vmatprep.subr.bf16.mxu0 0
      %2990 = vmatpush2.bf16.msra.mxu0 0
      %2991 = vmatprep.subr.bf16.mxu0 0
      %2992 = vmatpush2.bf16.msra.mxu0 0
      %2993 = vmatprep.subr.bf16.mxu0 0
      %2994 = vmatpush2.bf16.msra.mxu0 0
      %2995 = vmatprep.subr.bf16.mxu0 0
      %2996 = vmatpush2.bf16.msra.mxu0 0
      %2997 = vmatprep.subr.bf16.mxu0 0
      %2998 = vmatpush2.bf16.msra.mxu0 0
      %2999 = vmatprep.mubr.bf16.mxu0 0
      %3000 = vmatmul.mubr.bf16.gmra.mxu0 %v2962
      %v3001 = vpop.f32.mrf.mxu0
      %v3002 = vadd.f32 0.0, %v3001
      %v3003 = vpop.f32.mrf.mxu0
      %v3004 = vpop.f32.mrf.mxu0
      %v3005 = vadd.f32 0.0, %v3004
      %v3006 = vpop.f32.mrf.mxu0
      %3007 = vmatprep.mubr.bf16.mxu0 0
      %3008 = vmatmul.mubr.bf16.gmra.mxu0 %v2965
      %v3009 = vpop.f32.mrf.mxu0
      %v3010 = vadd.f32 0.0, %v3009
      %v3011 = vpop.f32.mrf.mxu0
      %v3012 = vpop.f32.mrf.mxu0
      %v3013 = vadd.f32 0.0, %v3012
      %v3014 = vpop.f32.mrf.mxu0
      %3015 = vdwg.mxu0
      %3016 = vrot.lane.b32.xlu0 %v2090, 112
      %v3017 = vpop.permute.xlu0 %3016
      %3018 = vrot.lane.b32.xlu0 %v2091, 112
      %v3019 = vpop.permute.xlu0 %3018
      %v3021 = vsel %vm1992, %v3017, 0
      %v3024 = vsel %vm1992, %v3019, 0
      %3026 = vmatprep.subr.bf16.mxu0 0
      %3027 = vmatpush1.bf16.msra.mxu0 0
      %3028 = vmatprep.subr.bf16.mxu0 0
      %3029 = vmatpush1.bf16.msra.mxu0 0
      %3030 = vmatprep.subr.bf16.mxu0 0
      %3031 = vmatpush1.bf16.msra.mxu0 0
      %3032 = vmatprep.subr.bf16.mxu0 0
      %3033 = vmatpush1.bf16.msra.mxu0 0
      %3034 = vmatprep.subr.bf16.mxu0 0
      %3035 = vmatpush1.bf16.msra.mxu0 0
      %3036 = vmatprep.subr.bf16.mxu0 0
      %3037 = vmatpush1.bf16.msra.mxu0 0
      %3038 = vmatprep.subr.bf16.mxu0 0
      %3039 = vmatpush1.bf16.msra.mxu0 0
      %3040 = vmatprep.subr.bf16.mxu0 0
      %3041 = vmatpush1.bf16.msra.mxu0 %v2906
      %3042 = vmatprep.subr.bf16.mxu0 0
      %3043 = vmatpush2.bf16.msra.mxu0 0
      %3044 = vmatprep.subr.bf16.mxu0 0
      %3045 = vmatpush2.bf16.msra.mxu0 0
      %3046 = vmatprep.subr.bf16.mxu0 0
      %3047 = vmatpush2.bf16.msra.mxu0 0
      %3048 = vmatprep.subr.bf16.mxu0 0
      %3049 = vmatpush2.bf16.msra.mxu0 0
      %3050 = vmatprep.subr.bf16.mxu0 0
      %3051 = vmatpush2.bf16.msra.mxu0 0
      %3052 = vmatprep.subr.bf16.mxu0 0
      %3053 = vmatpush2.bf16.msra.mxu0 0
      %3054 = vmatprep.subr.bf16.mxu0 0
      %3055 = vmatpush2.bf16.msra.mxu0 0
      %3056 = vmatprep.subr.bf16.mxu0 0
      %3057 = vmatpush2.bf16.msra.mxu0 0
      %3058 = vmatprep.mubr.bf16.mxu0 0
      %3059 = vmatmul.mubr.bf16.gmra.mxu0 %v3021
      %v3060 = vpop.f32.mrf.mxu0
      %v3061 = vadd.f32 0.0, %v3060
      %v3062 = vpop.f32.mrf.mxu0
      %v3063 = vpop.f32.mrf.mxu0
      %v3064 = vadd.f32 0.0, %v3063
      %v3065 = vpop.f32.mrf.mxu0
      %3066 = vmatprep.mubr.bf16.mxu0 0
      %3067 = vmatmul.mubr.bf16.gmra.mxu0 %v3024
      %v3068 = vpop.f32.mrf.mxu0
      %v3069 = vadd.f32 0.0, %v3068
      %v3070 = vpop.f32.mrf.mxu0
      %v3071 = vpop.f32.mrf.mxu0
      %v3072 = vadd.f32 0.0, %v3071
      %v3073 = vpop.f32.mrf.mxu0
      %3074 = vdwg.mxu0
      %3075 = vrot.lane.b32.xlu0 %v2090, 104
      %v3076 = vpop.permute.xlu0 %3075
      %3077 = vrot.lane.b32.xlu0 %v2091, 104
      %v3078 = vpop.permute.xlu0 %3077
      %v3080 = vsel %vm1992, %v3076, 0
      %v3083 = vsel %vm1992, %v3078, 0
      %3085 = vmatprep.subr.bf16.mxu0 0
      %3086 = vmatpush1.bf16.msra.mxu0 0
      %3087 = vmatprep.subr.bf16.mxu0 0
      %3088 = vmatpush1.bf16.msra.mxu0 0
      %3089 = vmatprep.subr.bf16.mxu0 0
      %3090 = vmatpush1.bf16.msra.mxu0 0
      %3091 = vmatprep.subr.bf16.mxu0 0
      %3092 = vmatpush1.bf16.msra.mxu0 0
      %3093 = vmatprep.subr.bf16.mxu0 0
      %3094 = vmatpush1.bf16.msra.mxu0 0
      %3095 = vmatprep.subr.bf16.mxu0 0
      %3096 = vmatpush1.bf16.msra.mxu0 0
      %3097 = vmatprep.subr.bf16.mxu0 0
      %3098 = vmatpush1.bf16.msra.mxu0 0
      %3099 = vmatprep.subr.bf16.mxu0 0
      %3100 = vmatpush1.bf16.msra.mxu0 %v2906
      %3101 = vmatprep.subr.bf16.mxu0 0
      %3102 = vmatpush2.bf16.msra.mxu0 0
      %3103 = vmatprep.subr.bf16.mxu0 0
      %3104 = vmatpush2.bf16.msra.mxu0 0
      %3105 = vmatprep.subr.bf16.mxu0 0
      %3106 = vmatpush2.bf16.msra.mxu0 0
      %3107 = vmatprep.subr.bf16.mxu0 0
      %3108 = vmatpush2.bf16.msra.mxu0 0
      %3109 = vmatprep.subr.bf16.mxu0 0
      %3110 = vmatpush2.bf16.msra.mxu0 0
      %3111 = vmatprep.subr.bf16.mxu0 0
      %3112 = vmatpush2.bf16.msra.mxu0 0
      %3113 = vmatprep.subr.bf16.mxu0 0
      %3114 = vmatpush2.bf16.msra.mxu0 0
      %3115 = vmatprep.subr.bf16.mxu0 0
      %3116 = vmatpush2.bf16.msra.mxu0 0
      %3117 = vmatprep.mubr.bf16.mxu0 0
      %3118 = vmatmul.mubr.bf16.gmra.mxu0 %v3080
      %v3119 = vpop.f32.mrf.mxu0
      %v3120 = vadd.f32 0.0, %v3119
      %v3121 = vpop.f32.mrf.mxu0
      %v3122 = vpop.f32.mrf.mxu0
      %v3123 = vadd.f32 0.0, %v3122
      %v3124 = vpop.f32.mrf.mxu0
      %3125 = vmatprep.mubr.bf16.mxu0 0
      %3126 = vmatmul.mubr.bf16.gmra.mxu0 %v3083
      %v3127 = vpop.f32.mrf.mxu0
      %v3128 = vadd.f32 0.0, %v3127
      %v3129 = vpop.f32.mrf.mxu0
      %v3130 = vpop.f32.mrf.mxu0
      %v3131 = vadd.f32 0.0, %v3130
      %v3132 = vpop.f32.mrf.mxu0
      %3133 = vdwg.mxu0
      %3134 = vrot.lane.b32.xlu0 %v2090, 96
      %v3135 = vpop.permute.xlu0 %3134
      %3136 = vrot.lane.b32.xlu0 %v2091, 96
      %v3137 = vpop.permute.xlu0 %3136
      %v3139 = vsel %vm1992, %v3135, 0
      %v3142 = vsel %vm1992, %v3137, 0
      %3144 = vmatprep.subr.bf16.mxu0 0
      %3145 = vmatpush1.bf16.msra.mxu0 0
      %3146 = vmatprep.subr.bf16.mxu0 0
      %3147 = vmatpush1.bf16.msra.mxu0 0
      %3148 = vmatprep.subr.bf16.mxu0 0
      %3149 = vmatpush1.bf16.msra.mxu0 0
      %3150 = vmatprep.subr.bf16.mxu0 0
      %3151 = vmatpush1.bf16.msra.mxu0 0
      %3152 = vmatprep.subr.bf16.mxu0 0
      %3153 = vmatpush1.bf16.msra.mxu0 0
      %3154 = vmatprep.subr.bf16.mxu0 0
      %3155 = vmatpush1.bf16.msra.mxu0 0
      %3156 = vmatprep.subr.bf16.mxu0 0
      %3157 = vmatpush1.bf16.msra.mxu0 0
      %3158 = vmatprep.subr.bf16.mxu0 0
      %3159 = vmatpush1.bf16.msra.mxu0 %v2906
      %3160 = vmatprep.subr.bf16.mxu0 0
      %3161 = vmatpush2.bf16.msra.mxu0 0
      %3162 = vmatprep.subr.bf16.mxu0 0
      %3163 = vmatpush2.bf16.msra.mxu0 0
      %3164 = vmatprep.subr.bf16.mxu0 0
      %3165 = vmatpush2.bf16.msra.mxu0 0
      %3166 = vmatprep.subr.bf16.mxu0 0
      %3167 = vmatpush2.bf16.msra.mxu0 0
      %3168 = vmatprep.subr.bf16.mxu0 0
      %3169 = vmatpush2.bf16.msra.mxu0 0
      %3170 = vmatprep.subr.bf16.mxu0 0
      %3171 = vmatpush2.bf16.msra.mxu0 0
      %3172 = vmatprep.subr.bf16.mxu0 0
      %3173 = vmatpush2.bf16.msra.mxu0 0
      %3174 = vmatprep.subr.bf16.mxu0 0
      %3175 = vmatpush2.bf16.msra.mxu0 0
      %3176 = vmatprep.mubr.bf16.mxu0 0
      %3177 = vmatmul.mubr.bf16.gmra.mxu0 %v3139
      %v3178 = vpop.f32.mrf.mxu0
      %v3179 = vadd.f32 0.0, %v3178
      %v3180 = vpop.f32.mrf.mxu0
      %v3181 = vpop.f32.mrf.mxu0
      %v3182 = vadd.f32 0.0, %v3181
      %v3183 = vpop.f32.mrf.mxu0
      %3184 = vmatprep.mubr.bf16.mxu0 0
      %3185 = vmatmul.mubr.bf16.gmra.mxu0 %v3142
      %v3186 = vpop.f32.mrf.mxu0
      %v3187 = vadd.f32 0.0, %v3186
      %v3188 = vpop.f32.mrf.mxu0
      %v3189 = vpop.f32.mrf.mxu0
      %v3190 = vadd.f32 0.0, %v3189
      %v3191 = vpop.f32.mrf.mxu0
      %3192 = vdwg.mxu0
      %3193 = vrot.lane.b32.xlu0 %v2090, 88
      %v3194 = vpop.permute.xlu0 %3193
      %3195 = vrot.lane.b32.xlu0 %v2091, 88
      %v3196 = vpop.permute.xlu0 %3195
      %v3198 = vsel %vm1992, %v3194, 0
      %v3201 = vsel %vm1992, %v3196, 0
      %3203 = vmatprep.subr.bf16.mxu0 0
      %3204 = vmatpush1.bf16.msra.mxu0 0
      %3205 = vmatprep.subr.bf16.mxu0 0
      %3206 = vmatpush1.bf16.msra.mxu0 0
      %3207 = vmatprep.subr.bf16.mxu0 0
      %3208 = vmatpush1.bf16.msra.mxu0 0
      %3209 = vmatprep.subr.bf16.mxu0 0
      %3210 = vmatpush1.bf16.msra.mxu0 0
      %3211 = vmatprep.subr.bf16.mxu0 0
      %3212 = vmatpush1.bf16.msra.mxu0 0
      %3213 = vmatprep.subr.bf16.mxu0 0
      %3214 = vmatpush1.bf16.msra.mxu0 0
      %3215 = vmatprep.subr.bf16.mxu0 0
      %3216 = vmatpush1.bf16.msra.mxu0 0
      %3217 = vmatprep.subr.bf16.mxu0 0
      %3218 = vmatpush1.bf16.msra.mxu0 %v2906
      %3219 = vmatprep.subr.bf16.mxu0 0
      %3220 = vmatpush2.bf16.msra.mxu0 0
      %3221 = vmatprep.subr.bf16.mxu0 0
      %3222 = vmatpush2.bf16.msra.mxu0 0
      %3223 = vmatprep.subr.bf16.mxu0 0
      %3224 = vmatpush2.bf16.msra.mxu0 0
      %3225 = vmatprep.subr.bf16.mxu0 0
      %3226 = vmatpush2.bf16.msra.mxu0 0
      %3227 = vmatprep.subr.bf16.mxu0 0
      %3228 = vmatpush2.bf16.msra.mxu0 0
      %3229 = vmatprep.subr.bf16.mxu0 0
      %3230 = vmatpush2.bf16.msra.mxu0 0
      %3231 = vmatprep.subr.bf16.mxu0 0
      %3232 = vmatpush2.bf16.msra.mxu0 0
      %3233 = vmatprep.subr.bf16.mxu0 0
      %3234 = vmatpush2.bf16.msra.mxu0 0
      %3235 = vmatprep.mubr.bf16.mxu0 0
      %3236 = vmatmul.mubr.bf16.gmra.mxu0 %v3198
      %v3237 = vpop.f32.mrf.mxu0
      %v3238 = vadd.f32 0.0, %v3237
      %v3239 = vpop.f32.mrf.mxu0
      %v3240 = vpop.f32.mrf.mxu0
      %v3241 = vadd.f32 0.0, %v3240
      %v3242 = vpop.f32.mrf.mxu0
      %3243 = vmatprep.mubr.bf16.mxu0 0
      %3244 = vmatmul.mubr.bf16.gmra.mxu0 %v3201
      %v3245 = vpop.f32.mrf.mxu0
      %v3246 = vadd.f32 0.0, %v3245
      %v3247 = vpop.f32.mrf.mxu0
      %v3248 = vpop.f32.mrf.mxu0
      %v3249 = vadd.f32 0.0, %v3248
      %v3250 = vpop.f32.mrf.mxu0
      %3251 = vdwg.mxu0
      %3252 = vrot.lane.b32.xlu0 %v2090, 80
      %v3253 = vpop.permute.xlu0 %3252
      %3254 = vrot.lane.b32.xlu0 %v2091, 80
      %v3255 = vpop.permute.xlu0 %3254
      %v3257 = vsel %vm1992, %v3253, 0
      %v3260 = vsel %vm1992, %v3255, 0
      %3262 = vmatprep.subr.bf16.mxu0 0
      %3263 = vmatpush1.bf16.msra.mxu0 0
      %3264 = vmatprep.subr.bf16.mxu0 0
      %3265 = vmatpush1.bf16.msra.mxu0 0
      %3266 = vmatprep.subr.bf16.mxu0 0
      %3267 = vmatpush1.bf16.msra.mxu0 0
      %3268 = vmatprep.subr.bf16.mxu0 0
      %3269 = vmatpush1.bf16.msra.mxu0 0
      %3270 = vmatprep.subr.bf16.mxu0 0
      %3271 = vmatpush1.bf16.msra.mxu0 0
      %3272 = vmatprep.subr.bf16.mxu0 0
      %3273 = vmatpush1.bf16.msra.mxu0 0
      %3274 = vmatprep.subr.bf16.mxu0 0
      %3275 = vmatpush1.bf16.msra.mxu0 0
      %3276 = vmatprep.subr.bf16.mxu0 0
      %3277 = vmatpush1.bf16.msra.mxu0 %v2906
      %3278 = vmatprep.subr.bf16.mxu0 0
      %3279 = vmatpush2.bf16.msra.mxu0 0
      %3280 = vmatprep.subr.bf16.mxu0 0
      %3281 = vmatpush2.bf16.msra.mxu0 0
      %3282 = vmatprep.subr.bf16.mxu0 0
      %3283 = vmatpush2.bf16.msra.mxu0 0
      %3284 = vmatprep.subr.bf16.mxu0 0
      %3285 = vmatpush2.bf16.msra.mxu0 0
      %3286 = vmatprep.subr.bf16.mxu0 0
      %3287 = vmatpush2.bf16.msra.mxu0 0
      %3288 = vmatprep.subr.bf16.mxu0 0
      %3289 = vmatpush2.bf16.msra.mxu0 0
      %3290 = vmatprep.subr.bf16.mxu0 0
      %3291 = vmatpush2.bf16.msra.mxu0 0
      %3292 = vmatprep.subr.bf16.mxu0 0
      %3293 = vmatpush2.bf16.msra.mxu0 0
      %3294 = vmatprep.mubr.bf16.mxu0 0
      %3295 = vmatmul.mubr.bf16.gmra.mxu0 %v3257
      %v3296 = vpop.f32.mrf.mxu0
      %v3297 = vadd.f32 0.0, %v3296
      %v3298 = vpop.f32.mrf.mxu0
      %v3299 = vpop.f32.mrf.mxu0
      %v3300 = vadd.f32 0.0, %v3299
      %v3301 = vpop.f32.mrf.mxu0
      %3302 = vmatprep.mubr.bf16.mxu0 0
      %3303 = vmatmul.mubr.bf16.gmra.mxu0 %v3260
      %v3304 = vpop.f32.mrf.mxu0
      %v3305 = vadd.f32 0.0, %v3304
      %v3306 = vpop.f32.mrf.mxu0
      %v3307 = vpop.f32.mrf.mxu0
      %v3308 = vadd.f32 0.0, %v3307
      %v3309 = vpop.f32.mrf.mxu0
      %3310 = vdwg.mxu0
      %3311 = vrot.lane.b32.xlu0 %v2090, 72
      %v3312 = vpop.permute.xlu0 %3311
      %3313 = vrot.lane.b32.xlu0 %v2091, 72
      %v3314 = vpop.permute.xlu0 %3313
      %v3316 = vsel %vm1992, %v3312, 0
      %v3319 = vsel %vm1992, %v3314, 0
      %3321 = vmatprep.subr.bf16.mxu0 0
      %3322 = vmatpush1.bf16.msra.mxu0 0
      %3323 = vmatprep.subr.bf16.mxu0 0
      %3324 = vmatpush1.bf16.msra.mxu0 0
      %3325 = vmatprep.subr.bf16.mxu0 0
      %3326 = vmatpush1.bf16.msra.mxu0 0
      %3327 = vmatprep.subr.bf16.mxu0 0
      %3328 = vmatpush1.bf16.msra.mxu0 0
      %3329 = vmatprep.subr.bf16.mxu0 0
      %3330 = vmatpush1.bf16.msra.mxu0 0
      %3331 = vmatprep.subr.bf16.mxu0 0
      %3332 = vmatpush1.bf16.msra.mxu0 0
      %3333 = vmatprep.subr.bf16.mxu0 0
      %3334 = vmatpush1.bf16.msra.mxu0 0
      %3335 = vmatprep.subr.bf16.mxu0 0
      %3336 = vmatpush1.bf16.msra.mxu0 %v2906
      %3337 = vmatprep.subr.bf16.mxu0 0
      %3338 = vmatpush2.bf16.msra.mxu0 0
      %3339 = vmatprep.subr.bf16.mxu0 0
      %3340 = vmatpush2.bf16.msra.mxu0 0
      %3341 = vmatprep.subr.bf16.mxu0 0
      %3342 = vmatpush2.bf16.msra.mxu0 0
      %3343 = vmatprep.subr.bf16.mxu0 0
      %3344 = vmatpush2.bf16.msra.mxu0 0
      %3345 = vmatprep.subr.bf16.mxu0 0
      %3346 = vmatpush2.bf16.msra.mxu0 0
      %3347 = vmatprep.subr.bf16.mxu0 0
      %3348 = vmatpush2.bf16.msra.mxu0 0
      %3349 = vmatprep.subr.bf16.mxu0 0
      %3350 = vmatpush2.bf16.msra.mxu0 0
      %3351 = vmatprep.subr.bf16.mxu0 0
      %3352 = vmatpush2.bf16.msra.mxu0 0
      %3353 = vmatprep.mubr.bf16.mxu0 0
      %3354 = vmatmul.mubr.bf16.gmra.mxu0 %v3316
      %v3355 = vpop.f32.mrf.mxu0
      %v3356 = vadd.f32 0.0, %v3355
      %v3357 = vpop.f32.mrf.mxu0
      %v3358 = vpop.f32.mrf.mxu0
      %v3359 = vadd.f32 0.0, %v3358
      %v3360 = vpop.f32.mrf.mxu0
      %3361 = vmatprep.mubr.bf16.mxu0 0
      %3362 = vmatmul.mubr.bf16.gmra.mxu0 %v3319
      %v3363 = vpop.f32.mrf.mxu0
      %v3364 = vadd.f32 0.0, %v3363
      %v3365 = vpop.f32.mrf.mxu0
      %v3366 = vpop.f32.mrf.mxu0
      %v3367 = vadd.f32 0.0, %v3366
      %v3368 = vpop.f32.mrf.mxu0
      %3369 = vdwg.mxu0
      %v3370 = vmul.f32 %v2943, 0.53333336
      %v3371 = vmul.f32 %v2946, 0.53333336
      %v3372 = vmul.f32 %v2951, 0.53333336
      %v3373 = vmul.f32 %v2954, 0.53333336
      %v3374 = vmul.f32 %v3002, 0.46666667
      %v3375 = vmul.f32 %v3005, 0.46666667
      %v3376 = vmul.f32 %v3010, 0.46666667
      %v3377 = vmul.f32 %v3013, 0.46666667
      %v3378 = vadd.f32 %v3370, %v3374
      %v3379 = vadd.f32 %v3371, %v3375
      %v3380 = vadd.f32 %v3372, %v3376
      %v3381 = vadd.f32 %v3373, %v3377
      %v3382 = vmul.f32 %v2943, 0.06666667
      %v3383 = vmul.f32 %v2946, 0.06666667
      %v3384 = vmul.f32 %v2951, 0.06666667
      %v3385 = vmul.f32 %v2954, 0.06666667
      %v3386 = vmul.f32 %v3002, 0.93333334
      %v3387 = vmul.f32 %v3005, 0.93333334
      %v3388 = vmul.f32 %v3010, 0.93333334
      %v3389 = vmul.f32 %v3013, 0.93333334
      %v3390 = vadd.f32 %v3382, %v3386
      %v3391 = vadd.f32 %v3383, %v3387
      %v3392 = vadd.f32 %v3384, %v3388
      %v3393 = vadd.f32 %v3385, %v3389
      %v3394 = vmul.f32 %v3002, 0.6
      %v3395 = vmul.f32 %v3005, 0.6
      %v3396 = vmul.f32 %v3010, 0.6
      %v3397 = vmul.f32 %v3013, 0.6
      %v3398 = vmul.f32 %v3061, 0.4
      %v3399 = vmul.f32 %v3064, 0.4
      %v3400 = vmul.f32 %v3069, 0.4
      %v3401 = vmul.f32 %v3072, 0.4
      %v3402 = vadd.f32 %v3394, %v3398
      %v3403 = vadd.f32 %v3395, %v3399
      %v3404 = vadd.f32 %v3396, %v3400
      %v3405 = vadd.f32 %v3397, %v3401
      %v3406 = vmul.f32 %v3002, 0.13333334
      %v3407 = vmul.f32 %v3005, 0.13333334
      %v3408 = vmul.f32 %v3010, 0.13333334
      %v3409 = vmul.f32 %v3013, 0.13333334
      %v3410 = vmul.f32 %v3061, 0.8666667
      %v3411 = vmul.f32 %v3064, 0.8666667
      %v3412 = vmul.f32 %v3069, 0.8666667
      %v3413 = vmul.f32 %v3072, 0.8666667
      %v3414 = vadd.f32 %v3406, %v3410
      %v3415 = vadd.f32 %v3407, %v3411
      %v3416 = vadd.f32 %v3408, %v3412
      %v3417 = vadd.f32 %v3409, %v3413
      %v3418 = vmul.f32 %v3061, 0.6666667
      %v3419 = vmul.f32 %v3064, 0.6666667
      %v3420 = vmul.f32 %v3069, 0.6666667
      %v3421 = vmul.f32 %v3072, 0.6666667
      %v3422 = vmul.f32 %v3120, 0.33333334
      %v3423 = vmul.f32 %v3123, 0.33333334
      %v3424 = vmul.f32 %v3128, 0.33333334
      %v3425 = vmul.f32 %v3131, 0.33333334
      %v3426 = vadd.f32 %v3418, %v3422
      %v3427 = vadd.f32 %v3419, %v3423
      %v3428 = vadd.f32 %v3420, %v3424
      %v3429 = vadd.f32 %v3421, %v3425
      %v3430 = vmul.f32 %v3061, 0.2
      %v3431 = vmul.f32 %v3064, 0.2
      %v3432 = vmul.f32 %v3069, 0.2
      %v3433 = vmul.f32 %v3072, 0.2
      %v3434 = vmul.f32 %v3120, 0.8
      %v3435 = vmul.f32 %v3123, 0.8
      %v3436 = vmul.f32 %v3128, 0.8
      %v3437 = vmul.f32 %v3131, 0.8
      %v3438 = vadd.f32 %v3430, %v3434
      %v3439 = vadd.f32 %v3431, %v3435
      %v3440 = vadd.f32 %v3432, %v3436
      %v3441 = vadd.f32 %v3433, %v3437
      %v3442 = vmul.f32 %v3120, 0.73333335
      %v3443 = vmul.f32 %v3123, 0.73333335
      %v3444 = vmul.f32 %v3128, 0.73333335
      %v3445 = vmul.f32 %v3131, 0.73333335
      %v3446 = vmul.f32 %v3179, 0.26666668
      %v3447 = vmul.f32 %v3182, 0.26666668
      %v3448 = vmul.f32 %v3187, 0.26666668
      %v3449 = vmul.f32 %v3190, 0.26666668
      %v3450 = vadd.f32 %v3442, %v3446
      %v3451 = vadd.f32 %v3443, %v3447
      %v3452 = vadd.f32 %v3444, %v3448
      %v3453 = vadd.f32 %v3445, %v3449
      %v3454 = vmul.f32 %v3120, 0.26666668
      %v3455 = vmul.f32 %v3123, 0.26666668
      %v3456 = vmul.f32 %v3128, 0.26666668
      %v3457 = vmul.f32 %v3131, 0.26666668
      %v3458 = vmul.f32 %v3179, 0.73333335
      %v3459 = vmul.f32 %v3182, 0.73333335
      %v3460 = vmul.f32 %v3187, 0.73333335
      %v3461 = vmul.f32 %v3190, 0.73333335
      %v3462 = vadd.f32 %v3454, %v3458
      %v3463 = vadd.f32 %v3455, %v3459
      %v3464 = vadd.f32 %v3456, %v3460
      %v3465 = vadd.f32 %v3457, %v3461
      %v3466 = vmul.f32 %v3179, 0.8
      %v3467 = vmul.f32 %v3182, 0.8
      %v3468 = vmul.f32 %v3187, 0.8
      %v3469 = vmul.f32 %v3190, 0.8
      %v3470 = vmul.f32 %v3238, 0.2
      %v3471 = vmul.f32 %v3241, 0.2
      %v3472 = vmul.f32 %v3246, 0.2
      %v3473 = vmul.f32 %v3249, 0.2
      %v3474 = vadd.f32 %v3466, %v3470
      %v3475 = vadd.f32 %v3467, %v3471
      %v3476 = vadd.f32 %v3468, %v3472
      %v3477 = vadd.f32 %v3469, %v3473
      %v3478 = vmul.f32 %v3179, 0.33333334
      %v3479 = vmul.f32 %v3182, 0.33333334
      %v3480 = vmul.f32 %v3187, 0.33333334
      %v3481 = vmul.f32 %v3190, 0.33333334
      %v3482 = vmul.f32 %v3238, 0.6666667
      %v3483 = vmul.f32 %v3241, 0.6666667
      %v3484 = vmul.f32 %v3246, 0.6666667
      %v3485 = vmul.f32 %v3249, 0.6666667
      %v3486 = vadd.f32 %v3478, %v3482
      %v3487 = vadd.f32 %v3479, %v3483
      %v3488 = vadd.f32 %v3480, %v3484
      %v3489 = vadd.f32 %v3481, %v3485
      %v3490 = vmul.f32 %v3238, 0.8666667
      %v3491 = vmul.f32 %v3241, 0.8666667
      %v3492 = vmul.f32 %v3246, 0.8666667
      %v3493 = vmul.f32 %v3249, 0.8666667
      %v3494 = vmul.f32 %v3297, 0.13333334
      %v3495 = vmul.f32 %v3300, 0.13333334
      %v3496 = vmul.f32 %v3305, 0.13333334
      %v3497 = vmul.f32 %v3308, 0.13333334
      %v3498 = vadd.f32 %v3490, %v3494
      %v3499 = vadd.f32 %v3491, %v3495
      %v3500 = vadd.f32 %v3492, %v3496
      %v3501 = vadd.f32 %v3493, %v3497
      %v3502 = vmul.f32 %v3238, 0.4
      %v3503 = vmul.f32 %v3241, 0.4
      %v3504 = vmul.f32 %v3246, 0.4
      %v3505 = vmul.f32 %v3249, 0.4
      %v3506 = vmul.f32 %v3297, 0.6
      %v3507 = vmul.f32 %v3300, 0.6
      %v3508 = vmul.f32 %v3305, 0.6
      %v3509 = vmul.f32 %v3308, 0.6
      %v3510 = vadd.f32 %v3502, %v3506
      %v3511 = vadd.f32 %v3503, %v3507
      %v3512 = vadd.f32 %v3504, %v3508
      %v3513 = vadd.f32 %v3505, %v3509
      %v3514 = vmul.f32 %v3297, 0.93333334
      %v3515 = vmul.f32 %v3300, 0.93333334
      %v3516 = vmul.f32 %v3305, 0.93333334
      %v3517 = vmul.f32 %v3308, 0.93333334
      %v3518 = vmul.f32 %v3356, 0.06666667
      %v3519 = vmul.f32 %v3359, 0.06666667
      %v3520 = vmul.f32 %v3364, 0.06666667
      %v3521 = vmul.f32 %v3367, 0.06666667
      %v3522 = vadd.f32 %v3514, %v3518
      %v3523 = vadd.f32 %v3515, %v3519
      %v3524 = vadd.f32 %v3516, %v3520
      %v3525 = vadd.f32 %v3517, %v3521
      %v3526 = vmul.f32 %v3297, 0.46666667
      %v3527 = vmul.f32 %v3300, 0.46666667
      %v3528 = vmul.f32 %v3305, 0.46666667
      %v3529 = vmul.f32 %v3308, 0.46666667
      %v3530 = vmul.f32 %v3356, 0.53333336
      %v3531 = vmul.f32 %v3359, 0.53333336
      %v3532 = vmul.f32 %v3364, 0.53333336
      %v3533 = vmul.f32 %v3367, 0.53333336
      %v3534 = vadd.f32 %v3526, %v3530
      %v3535 = vadd.f32 %v3527, %v3531
      %v3536 = vadd.f32 %v3528, %v3532
      %v3537 = vadd.f32 %v3529, %v3533
      %3542 = vrot.lane.b32.xlu0 %v3378, 16
      %v3543 = vpop.permute.xlu0 %3542
      %3544 = vrot.lane.b32.xlu0 %v3379, 16
      %v3545 = vpop.permute.xlu0 %3544
      %3546 = vrot.lane.b32.xlu0 %v3380, 16
      %v3547 = vpop.permute.xlu0 %3546
      %3548 = vrot.lane.b32.xlu0 %v3381, 16
      %v3549 = vpop.permute.xlu0 %3548
      %3558 = vrot.lane.b32.xlu0 %v3390, 32
      %v3559 = vpop.permute.xlu0 %3558
      %3560 = vrot.lane.b32.xlu0 %v3391, 32
      %v3561 = vpop.permute.xlu0 %3560
      %3562 = vrot.lane.b32.xlu0 %v3392, 32
      %v3563 = vpop.permute.xlu0 %3562
      %3564 = vrot.lane.b32.xlu0 %v3393, 32
      %v3565 = vpop.permute.xlu0 %3564
      %3574 = vrot.lane.b32.xlu0 %v3402, 48
      %v3575 = vpop.permute.xlu0 %3574
      %3576 = vrot.lane.b32.xlu0 %v3403, 48
      %v3577 = vpop.permute.xlu0 %3576
      %3578 = vrot.lane.b32.xlu0 %v3404, 48
      %v3579 = vpop.permute.xlu0 %3578
      %3580 = vrot.lane.b32.xlu0 %v3405, 48
      %v3581 = vpop.permute.xlu0 %3580
      %3590 = vrot.lane.b32.xlu0 %v3414, 64
      %v3591 = vpop.permute.xlu0 %3590
      %3592 = vrot.lane.b32.xlu0 %v3415, 64
      %v3593 = vpop.permute.xlu0 %3592
      %3594 = vrot.lane.b32.xlu0 %v3416, 64
      %v3595 = vpop.permute.xlu0 %3594
      %3596 = vrot.lane.b32.xlu0 %v3417, 64
      %v3597 = vpop.permute.xlu0 %3596
      %3606 = vrot.lane.b32.xlu0 %v3426, 80
      %v3607 = vpop.permute.xlu0 %3606
      %3608 = vrot.lane.b32.xlu0 %v3427, 80
      %v3609 = vpop.permute.xlu0 %3608
      %3610 = vrot.lane.b32.xlu0 %v3428, 80
      %v3611 = vpop.permute.xlu0 %3610
      %3612 = vrot.lane.b32.xlu0 %v3429, 80
      %v3613 = vpop.permute.xlu0 %3612
      %3622 = vrot.lane.b32.xlu0 %v3438, 96
      %v3623 = vpop.permute.xlu0 %3622
      %3624 = vrot.lane.b32.xlu0 %v3439, 96
      %v3625 = vpop.permute.xlu0 %3624
      %3626 = vrot.lane.b32.xlu0 %v3440, 96
      %v3627 = vpop.permute.xlu0 %3626
      %3628 = vrot.lane.b32.xlu0 %v3441, 96
      %v3629 = vpop.permute.xlu0 %3628
      %3638 = vrot.lane.b32.xlu0 %v3450, 112
      %v3639 = vpop.permute.xlu0 %3638
      %3640 = vrot.lane.b32.xlu0 %v3451, 112
      %v3641 = vpop.permute.xlu0 %3640
      %3642 = vrot.lane.b32.xlu0 %v3452, 112
      %v3643 = vpop.permute.xlu0 %3642
      %3644 = vrot.lane.b32.xlu0 %v3453, 112
      %v3645 = vpop.permute.xlu0 %3644
      %3654 = vrot.lane.b32.xlu0 %v3474, 16
      %v3655 = vpop.permute.xlu0 %3654
      %3656 = vrot.lane.b32.xlu0 %v3475, 16
      %v3657 = vpop.permute.xlu0 %3656
      %3658 = vrot.lane.b32.xlu0 %v3476, 16
      %v3659 = vpop.permute.xlu0 %3658
      %3660 = vrot.lane.b32.xlu0 %v3477, 16
      %v3661 = vpop.permute.xlu0 %3660
      %3670 = vrot.lane.b32.xlu0 %v3486, 32
      %v3671 = vpop.permute.xlu0 %3670
      %3672 = vrot.lane.b32.xlu0 %v3487, 32
      %v3673 = vpop.permute.xlu0 %3672
      %3674 = vrot.lane.b32.xlu0 %v3488, 32
      %v3675 = vpop.permute.xlu0 %3674
      %3676 = vrot.lane.b32.xlu0 %v3489, 32
      %v3677 = vpop.permute.xlu0 %3676
      %3686 = vrot.lane.b32.xlu0 %v3498, 48
      %v3687 = vpop.permute.xlu0 %3686
      %3688 = vrot.lane.b32.xlu0 %v3499, 48
      %v3689 = vpop.permute.xlu0 %3688
      %3690 = vrot.lane.b32.xlu0 %v3500, 48
      %v3691 = vpop.permute.xlu0 %3690
      %3692 = vrot.lane.b32.xlu0 %v3501, 48
      %v3693 = vpop.permute.xlu0 %3692
      %3702 = vrot.lane.b32.xlu0 %v3510, 64
      %v3703 = vpop.permute.xlu0 %3702
      %3704 = vrot.lane.b32.xlu0 %v3511, 64
      %v3705 = vpop.permute.xlu0 %3704
      %3706 = vrot.lane.b32.xlu0 %v3512, 64
      %v3707 = vpop.permute.xlu0 %3706
      %3708 = vrot.lane.b32.xlu0 %v3513, 64
      %v3709 = vpop.permute.xlu0 %3708
      %3718 = vrot.lane.b32.xlu0 %v3522, 80
      %v3719 = vpop.permute.xlu0 %3718
      %3720 = vrot.lane.b32.xlu0 %v3523, 80
      %v3721 = vpop.permute.xlu0 %3720
      %3722 = vrot.lane.b32.xlu0 %v3524, 80
      %v3723 = vpop.permute.xlu0 %3722
      %3724 = vrot.lane.b32.xlu0 %v3525, 80
      %v3725 = vpop.permute.xlu0 %3724
      %3734 = vrot.lane.b32.xlu0 %v3534, 96
      %v3735 = vpop.permute.xlu0 %3734
      %3736 = vrot.lane.b32.xlu0 %v3535, 96
      %v3737 = vpop.permute.xlu0 %3736
      %3738 = vrot.lane.b32.xlu0 %v3536, 96
      %v3739 = vpop.permute.xlu0 %3738
      %3740 = vrot.lane.b32.xlu0 %v3537, 96
      %v3741 = vpop.permute.xlu0 %3740
      %3750 = vrot.lane.b32.xlu0 %v3356, 112
      %v3751 = vpop.permute.xlu0 %3750
      %3752 = vrot.lane.b32.xlu0 %v3359, 112
      %v3753 = vpop.permute.xlu0 %3752
      %3754 = vrot.lane.b32.xlu0 %v3364, 112
      %v3755 = vpop.permute.xlu0 %3754
      %3756 = vrot.lane.b32.xlu0 %v3367, 112
      %v3757 = vpop.permute.xlu0 %3756
      %v3762 = vsel %vm1555, %v2943, %v3543
      %v3763 = vsel %vm1555, %v2946, %v3545
      %v3764 = vsel %vm1555, %v2951, %v3547
      %v3765 = vsel %vm1555, %v2954, %v3549
      %v3766 = vsel %vm831, %v3762, %v3559
      %v3767 = vsel %vm831, %v3763, %v3561
      %v3768 = vsel %vm831, %v3764, %v3563
      %v3769 = vsel %vm831, %v3765, %v3565
      %v3770 = vsel %vm2015, %v3766, %v3575
      %v3771 = vsel %vm2015, %v3767, %v3577
      %v3772 = vsel %vm2015, %v3768, %v3579
      %v3773 = vsel %vm2015, %v3769, %v3581
      %v3774 = vsel %vm702, %v3770, %v3591
      %v3775 = vsel %vm702, %v3771, %v3593
      %v3776 = vsel %vm702, %v3772, %v3595
      %v3777 = vsel %vm702, %v3773, %v3597
      %vm3778 = vcmask 654336
      %v3779 = vsel %vm3778, %v3774, %v3607
      %v3780 = vsel %vm3778, %v3775, %v3609
      %v3781 = vsel %vm3778, %v3776, %v3611
      %v3782 = vsel %vm3778, %v3777, %v3613
      %vm3783 = vcmask 785408
      %v3784 = vsel %vm3783, %v3779, %v3623
      %v3785 = vsel %vm3783, %v3780, %v3625
      %v3786 = vsel %vm3783, %v3781, %v3627
      %v3787 = vsel %vm3783, %v3782, %v3629
      %vm3788 = vcmask 916480
      %v3789 = vsel %vm3788, %v3784, %v3639
      %v3790 = vsel %vm3788, %v3785, %v3641
      %v3791 = vsel %vm3788, %v3786, %v3643
      %v3792 = vsel %vm3788, %v3787, %v3645
      %v3793 = vsel %vm1555, %v3462, %v3655
      %v3794 = vsel %vm1555, %v3463, %v3657
      %v3795 = vsel %vm1555, %v3464, %v3659
      %v3796 = vsel %vm1555, %v3465, %v3661
      %v3797 = vsel %vm831, %v3793, %v3671
      %v3798 = vsel %vm831, %v3794, %v3673
      %v3799 = vsel %vm831, %v3795, %v3675
      %v3800 = vsel %vm831, %v3796, %v3677
      %v3801 = vsel %vm2015, %v3797, %v3687
      %v3802 = vsel %vm2015, %v3798, %v3689
      %v3803 = vsel %vm2015, %v3799, %v3691
      %v3804 = vsel %vm2015, %v3800, %v3693
      %v3805 = vsel %vm702, %v3801, %v3703
      %v3806 = vsel %vm702, %v3802, %v3705
      %v3807 = vsel %vm702, %v3803, %v3707
      %v3808 = vsel %vm702, %v3804, %v3709
      %v3809 = vsel %vm3778, %v3805, %v3719
      %v3810 = vsel %vm3778, %v3806, %v3721
      %v3811 = vsel %vm3778, %v3807, %v3723
      %v3812 = vsel %vm3778, %v3808, %v3725
      %v3813 = vsel %vm3783, %v3809, %v3735
      %v3814 = vsel %vm3783, %v3810, %v3737
      %v3815 = vsel %vm3783, %v3811, %v3739
      %v3816 = vsel %vm3783, %v3812, %v3741
      %v3817 = vsel %vm3788, %v3813, %v3751
      %v3818 = vsel %vm3788, %v3814, %v3753
      %v3819 = vsel %vm3788, %v3815, %v3755
      %v3820 = vsel %vm3788, %v3816, %v3757
      %v3825 = vunpack.c.l.b16 %v2893
      %v3826 = vunpack.c.l.b16 %v2894
      %v3827 = vunpack.c.l.b16 %v2895
      %v3828 = vunpack.c.l.b16 %v2896
      %v3829 = vpack.c.b16 %v3826, %v3825
      %v3830 = vpack.c.b16 %v3828, %v3827
      %v3832 = vsel %vm1555, %v3829, 0
      %v3835 = vsel %vm1555, %v3830, 0
      %3837 = vmatprep.subr.bf16.mxu0 0
      %3838 = vmatpush1.bf16.msra.mxu0 0
      %3839 = vmatprep.subr.bf16.mxu0 0
      %3840 = vmatpush1.bf16.msra.mxu0 0
      %3841 = vmatprep.subr.bf16.mxu0 0
      %3842 = vmatpush1.bf16.msra.mxu0 0
      %3843 = vmatprep.subr.bf16.mxu0 0
      %3844 = vmatpush1.bf16.msra.mxu0 0
      %3845 = vmatprep.subr.bf16.mxu0 0
      %3846 = vmatpush1.bf16.msra.mxu0 0
      %3847 = vmatprep.subr.bf16.mxu0 0
      %3848 = vmatpush1.bf16.msra.mxu0 0
      %3849 = vmatprep.subr.bf16.mxu0 0
      %3850 = vmatpush1.bf16.msra.mxu0 0
      %3851 = vmatprep.subr.bf16.mxu0 %v2892
      %3852 = vmatpush1.bf16.msra.mxu0 %v2891
      %3853 = vmatprep.subr.bf16.mxu0 0
      %3854 = vmatpush2.bf16.msra.mxu0 0
      %3855 = vmatprep.subr.bf16.mxu0 0
      %3856 = vmatpush2.bf16.msra.mxu0 0
      %3857 = vmatprep.subr.bf16.mxu0 0
      %3858 = vmatpush2.bf16.msra.mxu0 0
      %3859 = vmatprep.subr.bf16.mxu0 0
      %3860 = vmatpush2.bf16.msra.mxu0 0
      %3861 = vmatprep.subr.bf16.mxu0 0
      %3862 = vmatpush2.bf16.msra.mxu0 0
      %3863 = vmatprep.subr.bf16.mxu0 0
      %3864 = vmatpush2.bf16.msra.mxu0 0
      %3865 = vmatprep.subr.bf16.mxu0 0
      %3866 = vmatpush2.bf16.msra.mxu0 0
      %3867 = vmatprep.subr.bf16.mxu0 0
      %3868 = vmatpush2.bf16.msra.mxu0 0
      %3869 = vmatprep.mubr.bf16.mxu0 0
      %3870 = vmatmul.mubr.bf16.gmra.mxu0 %v3832
      %v3871 = vpop.f32.mrf.mxu0
      %v3872 = vadd.f32 %v3789, %v3871
      %v3873 = vpop.f32.mrf.mxu0
      %v3874 = vadd.f32 %v3817, %v3873
      %v3875 = vpop.f32.mrf.mxu0
      %v3876 = vadd.f32 %v3790, %v3875
      %v3877 = vpop.f32.mrf.mxu0
      %v3878 = vadd.f32 %v3818, %v3877
      %3879 = vmatprep.mubr.bf16.mxu0 0
      %3880 = vmatmul.mubr.bf16.gmra.mxu0 %v3835
      %v3881 = vpop.f32.mrf.mxu0
      %v3882 = vadd.f32 %v3791, %v3881
      %v3883 = vpop.f32.mrf.mxu0
      %v3884 = vadd.f32 %v3819, %v3883
      %v3885 = vpop.f32.mrf.mxu0
      %v3886 = vadd.f32 %v3792, %v3885
      %v3887 = vpop.f32.mrf.mxu0
      %v3888 = vadd.f32 %v3820, %v3887
      %3889 = vdwg.mxu0
      %v3890 = vpack.c.bf16 %v3876, %v3872
      %v3891 = vpack.c.bf16 %v3878, %v3874
      %v3892 = vpack.c.bf16 %v3886, %v3882
      %v3893 = vpack.c.bf16 %v3888, %v3884
      %3898 = vrot.lane.b32.xlu0 %v3890, 17
      %v3899 = vpop.permute.xlu0 %3898
      %3900 = vrot.lane.b32.xlu0 %v3891, 17
      %v3901 = vpop.permute.xlu0 %3900
      %3902 = vrot.lane.b32.xlu0 %v3892, 17
      %v3903 = vpop.permute.xlu0 %3902
      %3904 = vrot.lane.b32.xlu0 %v3893, 17
      %v3905 = vpop.permute.xlu0 %3904
      %vm3906 = vcmask 138240
      %v3907 = vsel %vm3906, %v3899, %v3901
      %v3908 = vsel %vm3906, %v3903, %v3905
      %vm3911 = vcmask 138240
      %v3913 = vsel %vm3911, 0, %v3899
      %v3916 = vsel %vm3911, 0, %v3903
      %v3919 = vsel %vm3911, %v3901, 0
      %v3922 = vsel %vm3911, %v3905, 0
      %v3924 = vadd.s32 %v778, 128
      %vm3925 = vcmp.lt.s32.totalorder %v778, 0
      %v3926 = vsub.s32 0, %v778
      %v3927 = vsel %vm3925, %v3926, %v778
      %v3928 = vshrl.u32 %v3927, 4
      %v3929 = vand.u32 %v3927, 15
      %v3930 = vsub.s32 0, %v3929
      %v3931 = vsel %vm3925, %v3930, %v3929
      %vm3932 = vcmp.lt.s32.totalorder %v3924, 0
      %v3933 = vsub.s32 0, %v3924
      %v3934 = vsel %vm3932, %v3933, %v3924
      %v3935 = vshrl.u32 %v3934, 4
      %v3936 = vand.u32 %v3934, 15
      %v3937 = vsub.s32 0, %v3936
      %v3938 = vsel %vm3932, %v3937, %v3936
      %vm3939 = vcmp.ne.s32.totalorder %v3931, 0
      %vm3940 = vcmp.ne.s32.totalorder %v3938, 0
      %vm3941 = vcmp.lt.s32.totalorder %v3931, 0
      %vm3942 = vcmp.lt.s32.totalorder %v3938, 0
      %vm3943 = vmand %vm3941, %vm3939
      %vm3944 = vmand %vm3942, %vm3940
      %v3945 = vadd.s32 %v3931, 16
      %v3946 = vadd.s32 %v3938, 16
      %v3947 = vsel %vm3943, %v3945, %v3931
      %v3948 = vsel %vm3944, %v3946, %v3938
      %vm3949 = vcmp.ge.s32.totalorder %v3947, 1
      %vm3950 = vcmp.ge.s32.totalorder %v3948, 1
      %vm3951 = vcmp.le.s32.totalorder %v3947, 14
      %vm3952 = vcmp.le.s32.totalorder %v3948, 14
      %v3953 = vsel %vm3949, 1, 0
      %v3954 = vsel %vm3950, 1, 0
      %vm3955 = vcmp.eq.s32.totalorder %v3953, 1
      %vm3956 = vcmp.eq.s32.totalorder %v3954, 1
      %vm3957 = vmpackc.low %vm3956, %vm3955
      %v3958 = vsel %vm3957, 65537, 0
      %v3959 = vlaneseq
      %v3960 = vshrl.u32 %v3959, 7
      %v3961 = vsub.s32 0, %v3960
      %v3962 = vrot.slane %v3958, %v3961
      %v3963 = vlaneseq
      %v3964 = vshrl.u32 %v3963, 7
      %v3965 = vsub.s32 4, %v3964
      %v3966 = vrot.slane %v3958, %v3965
      %vm3967 = vcmp.ne.s16.totalorder %v3962, 0
      %vm3968 = vcmp.ne.s16.totalorder %v3966, 0
      %v3969 = vsel %vm3967, %v3913, 0
      %v3970 = vsel %vm3968, %v3907, 0
      %v3971 = vsel %vm3967, %v3916, 0
      %v3972 = vsel %vm3968, %v3908, 0
      %v3973 = vld [vmem:[%s9] sm:$0xf]
      %v3974 = vld [vmem:[%s9 + $0x4] sm:$0xf]
      %v3975 = vld [vmem:[%s9 + $0x8] sm:$0xf]
      %v3976 = vld [vmem:[%s9 + $0xc] sm:$0xf]
      %s3977 = scalar_lea.vmem %s9, 16
      %v3978 = vld [vmem:[%s3977] sm:$0xf]
      %v3979 = vld [vmem:[%s3977 + $0x4] sm:$0xf]
      %v3980 = vld [vmem:[%s3977 + $0x8] sm:$0xf]
      %v3981 = vld [vmem:[%s3977 + $0xc] sm:$0xf]
      %v3986 = vunpack.c.l.b16 %v3978
      %v3987 = vunpack.c.l.b16 %v3979
      %v3988 = vunpack.c.l.b16 %v3980
      %v3989 = vunpack.c.l.b16 %v3981
      %v3990 = vpack.c.b16 %v3987, %v3986
      %v3991 = vpack.c.b16 %v3989, %v3988
      %3996 = vrot.lane.b32.xlu0 %v3913, 127
      %v3997 = vpop.permute.xlu0 %3996
      %3998 = vrot.lane.b32.xlu0 %v3907, 127
      %v3999 = vpop.permute.xlu0 %3998
      %4000 = vrot.lane.b32.xlu0 %v3919, 127
      %v4001 = vpop.permute.xlu0 %4000
      %4002 = vrot.lane.b32.xlu0 %v3916, 127
      %v4003 = vpop.permute.xlu0 %4002
      %4004 = vrot.lane.b32.xlu0 %v3908, 127
      %v4005 = vpop.permute.xlu0 %4004
      %4006 = vrot.lane.b32.xlu0 %v3922, 127
      %v4007 = vpop.permute.xlu0 %4006
      %vm4008 = vcmask 1039360
      %v4009 = vsel %vm4008, %v3997, %v3999
      %v4010 = vsel %vm4008, %v3999, %v4001
      %v4011 = vsel %vm4008, %v4003, %v4005
      %v4012 = vsel %vm4008, %v4005, %v4007
      %v4018 = vsel %vm831, %v3990, 0
      %v4021 = vsel %vm831, %v3991, 0
      %4023 = vmatprep.subr.bf16.mxu0 0
      %4024 = vmatpush1.bf16.msra.mxu0 0
      %4025 = vmatprep.subr.bf16.mxu0 0
      %4026 = vmatpush1.bf16.msra.mxu0 0
      %4027 = vmatprep.subr.bf16.mxu0 0
      %4028 = vmatpush1.bf16.msra.mxu0 0
      %4029 = vmatprep.subr.bf16.mxu0 0
      %4030 = vmatpush1.bf16.msra.mxu0 0
      %4031 = vmatprep.subr.bf16.mxu0 0
      %4032 = vmatpush1.bf16.msra.mxu0 0
      %4033 = vmatprep.subr.bf16.mxu0 0
      %4034 = vmatpush1.bf16.msra.mxu0 0
      %4035 = vmatprep.subr.bf16.mxu0 %v4012
      %4036 = vmatpush1.bf16.msra.mxu0 %v4011
      %4037 = vmatprep.subr.bf16.mxu0 %v4010
      %4038 = vmatpush1.bf16.msra.mxu0 %v4009
      %4039 = vmatprep.subr.bf16.mxu0 0
      %4040 = vmatpush2.bf16.msra.mxu0 0
      %4041 = vmatprep.subr.bf16.mxu0 0
      %4042 = vmatpush2.bf16.msra.mxu0 0
      %4043 = vmatprep.subr.bf16.mxu0 0
      %4044 = vmatpush2.bf16.msra.mxu0 0
      %4045 = vmatprep.subr.bf16.mxu0 0
      %4046 = vmatpush2.bf16.msra.mxu0 0
      %4047 = vmatprep.subr.bf16.mxu0 0
      %4048 = vmatpush2.bf16.msra.mxu0 0
      %4049 = vmatprep.subr.bf16.mxu0 0
      %4050 = vmatpush2.bf16.msra.mxu0 0
      %4051 = vmatprep.subr.bf16.mxu0 0
      %4052 = vmatpush2.bf16.msra.mxu0 0
      %4053 = vmatprep.subr.bf16.mxu0 0
      %4054 = vmatpush2.bf16.msra.mxu0 0
      %4055 = vmatprep.mubr.bf16.mxu0 0
      %4056 = vmatmul.mubr.bf16.gmra.mxu0 %v4018
      %v4057 = vpop.f32.mrf.mxu0
      %v4058 = vadd.f32 0.0, %v4057
      %v4059 = vpop.f32.mrf.mxu0
      %v4060 = vadd.f32 0.0, %v4059
      %v4061 = vpop.f32.mrf.mxu0
      %v4062 = vadd.f32 0.0, %v4061
      %v4063 = vpop.f32.mrf.mxu0
      %v4064 = vadd.f32 0.0, %v4063
      %4065 = vmatprep.mubr.bf16.mxu0 0
      %4066 = vmatmul.mubr.bf16.gmra.mxu0 %v4021
      %v4067 = vpop.f32.mrf.mxu0
      %v4068 = vadd.f32 0.0, %v4067
      %v4069 = vpop.f32.mrf.mxu0
      %v4070 = vadd.f32 0.0, %v4069
      %v4071 = vpop.f32.mrf.mxu0
      %v4072 = vadd.f32 0.0, %v4071
      %v4073 = vpop.f32.mrf.mxu0
      %v4074 = vadd.f32 0.0, %v4073
      %4075 = vdwg.mxu0
      %v4080 = vunpack.c.l.b16 %v3973
      %v4081 = vunpack.c.l.b16 %v3974
      %v4082 = vunpack.c.l.b16 %v3975
      %v4083 = vunpack.c.l.b16 %v3976
      %v4084 = vpack.c.b16 %v4081, %v4080
      %v4085 = vpack.c.b16 %v4083, %v4082
      %v4087 = vsel %vm831, %v4084, 0
      %v4090 = vsel %vm831, %v4085, 0
      %4092 = vmatprep.subr.bf16.mxu0 0
      %4093 = vmatpush1.bf16.msra.mxu0 0
      %4094 = vmatprep.subr.bf16.mxu0 0
      %4095 = vmatpush1.bf16.msra.mxu0 0
      %4096 = vmatprep.subr.bf16.mxu0 0
      %4097 = vmatpush1.bf16.msra.mxu0 0
      %4098 = vmatprep.subr.bf16.mxu0 0
      %4099 = vmatpush1.bf16.msra.mxu0 0
      %4100 = vmatprep.subr.bf16.mxu0 0
      %4101 = vmatpush1.bf16.msra.mxu0 0
      %4102 = vmatprep.subr.bf16.mxu0 0
      %4103 = vmatpush1.bf16.msra.mxu0 0
      %4104 = vmatprep.subr.bf16.mxu0 %v3972
      %4105 = vmatpush1.bf16.msra.mxu0 %v3971
      %4106 = vmatprep.subr.bf16.mxu0 %v3970
      %4107 = vmatpush1.bf16.msra.mxu0 %v3969
      %4108 = vmatprep.subr.bf16.mxu0 0
      %4109 = vmatpush2.bf16.msra.mxu0 0
      %4110 = vmatprep.subr.bf16.mxu0 0
      %4111 = vmatpush2.bf16.msra.mxu0 0
      %4112 = vmatprep.subr.bf16.mxu0 0
      %4113 = vmatpush2.bf16.msra.mxu0 0
      %4114 = vmatprep.subr.bf16.mxu0 0
      %4115 = vmatpush2.bf16.msra.mxu0 0
      %4116 = vmatprep.subr.bf16.mxu0 0
      %4117 = vmatpush2.bf16.msra.mxu0 0
      %4118 = vmatprep.subr.bf16.mxu0 0
      %4119 = vmatpush2.bf16.msra.mxu0 0
      %4120 = vmatprep.subr.bf16.mxu0 0
      %4121 = vmatpush2.bf16.msra.mxu0 0
      %4122 = vmatprep.subr.bf16.mxu0 0
      %4123 = vmatpush2.bf16.msra.mxu0 0
      %4124 = vmatprep.mubr.bf16.mxu0 0
      %4125 = vmatmul.mubr.bf16.gmra.mxu0 %v4087
      %v4126 = vpop.f32.mrf.mxu0
      %v4127 = vadd.f32 %v4058, %v4126
      %v4128 = vpop.f32.mrf.mxu0
      %v4129 = vadd.f32 %v4060, %v4128
      %v4130 = vpop.f32.mrf.mxu0
      %v4131 = vadd.f32 %v4062, %v4130
      %v4132 = vpop.f32.mrf.mxu0
      %v4133 = vadd.f32 %v4064, %v4132
      %4134 = vmatprep.mubr.bf16.mxu0 0
      %4135 = vmatmul.mubr.bf16.gmra.mxu0 %v4090
      %v4136 = vpop.f32.mrf.mxu0
      %v4137 = vadd.f32 %v4068, %v4136
      %v4138 = vpop.f32.mrf.mxu0
      %v4139 = vadd.f32 %v4070, %v4138
      %v4140 = vpop.f32.mrf.mxu0
      %v4141 = vadd.f32 %v4072, %v4140
      %v4142 = vpop.f32.mrf.mxu0
      %v4143 = vadd.f32 %v4074, %v4142
      %4144 = vdwg.mxu0
      %v4145 = vsel %vm3951, 1, 0
      %v4146 = vsel %vm3952, 1, 0
      %vm4147 = vcmp.eq.s32.totalorder %v4145, 1
      %vm4148 = vcmp.eq.s32.totalorder %v4146, 1
      %vm4149 = vmpackc.low %vm4148, %vm4147
      %v4150 = vsel %vm4149, 65537, 0
      %v4151 = vlaneseq
      %v4152 = vshrl.u32 %v4151, 7
      %v4153 = vsub.s32 0, %v4152
      %v4154 = vrot.slane %v4150, %v4153
      %v4155 = vlaneseq
      %v4156 = vshrl.u32 %v4155, 7
      %v4157 = vsub.s32 4, %v4156
      %v4158 = vrot.slane %v4150, %v4157
      %4159 = vrot.lane.b32.xlu0 %v4154, 2
      %v4160 = vpop.permute.xlu0 %4159
      %4161 = vrot.lane.b32.xlu0 %v4158, 2
      %v4162 = vpop.permute.xlu0 %4161
      %vm4163 = vcmask 15360
      %v4164 = vsel %vm4163, %v4160, %v4162
      %vm4165 = vcmp.ne.s16.totalorder %v4160, 0
      %vm4166 = vcmp.ne.s16.totalorder %v4164, 0
      %vm4167 = vcmp.ne.s16.totalorder %v4162, 0
      %v4168 = vsel %vm4165, %v3913, 0
      %v4169 = vsel %vm4166, %v3907, 0
      %v4170 = vsel %vm4167, %v3919, 0
      %v4171 = vsel %vm4165, %v3916, 0
      %v4172 = vsel %vm4166, %v3908, 0
      %v4173 = vsel %vm4167, %v3922, 0
      %s4174 = scalar_lea.vmem %s9, 32
      %v4175 = vld [vmem:[%s4174] sm:$0xf]
      %v4176 = vld [vmem:[%s4174 + $0x4] sm:$0xf]
      %v4177 = vld [vmem:[%s4174 + $0x8] sm:$0xf]
      %v4178 = vld [vmem:[%s4174 + $0xc] sm:$0xf]
      %v4183 = vunpack.c.l.b16 %v4175
      %v4184 = vunpack.c.l.b16 %v4176
      %v4185 = vunpack.c.l.b16 %v4177
      %v4186 = vunpack.c.l.b16 %v4178
      %v4187 = vpack.c.b16 %v4184, %v4183
      %v4188 = vpack.c.b16 %v4186, %v4185
      %4195 = vrot.lane.b32.xlu0 %v4168, 126
      %v4196 = vpop.permute.xlu0 %4195
      %4197 = vrot.lane.b32.xlu0 %v4169, 126
      %v4198 = vpop.permute.xlu0 %4197
      %4199 = vrot.lane.b32.xlu0 %v4170, 126
      %v4200 = vpop.permute.xlu0 %4199
      %4201 = vrot.lane.b32.xlu0 %v4171, 126
      %v4202 = vpop.permute.xlu0 %4201
      %4203 = vrot.lane.b32.xlu0 %v4172, 126
      %v4204 = vpop.permute.xlu0 %4203
      %4205 = vrot.lane.b32.xlu0 %v4173, 126
      %v4206 = vpop.permute.xlu0 %4205
      %vm4207 = vcmask 1031168
      %v4208 = vsel %vm4207, %v4196, %v4198
      %v4209 = vsel %vm4207, %v4198, %v4200
      %v4210 = vsel %vm4207, %v4202, %v4204
      %v4211 = vsel %vm4207, %v4204, %v4206
      %v4217 = vsel %vm831, %v4187, 0
      %v4220 = vsel %vm831, %v4188, 0
      %4222 = vmatprep.subr.bf16.mxu0 0
      %4223 = vmatpush1.bf16.msra.mxu0 0
      %4224 = vmatprep.subr.bf16.mxu0 0
      %4225 = vmatpush1.bf16.msra.mxu0 0
      %4226 = vmatprep.subr.bf16.mxu0 0
      %4227 = vmatpush1.bf16.msra.mxu0 0
      %4228 = vmatprep.subr.bf16.mxu0 0
      %4229 = vmatpush1.bf16.msra.mxu0 0
      %4230 = vmatprep.subr.bf16.mxu0 0
      %4231 = vmatpush1.bf16.msra.mxu0 0
      %4232 = vmatprep.subr.bf16.mxu0 0
      %4233 = vmatpush1.bf16.msra.mxu0 0
      %4234 = vmatprep.subr.bf16.mxu0 %v4211
      %4235 = vmatpush1.bf16.msra.mxu0 %v4210
      %4236 = vmatprep.subr.bf16.mxu0 %v4209
      %4237 = vmatpush1.bf16.msra.mxu0 %v4208
      %4238 = vmatprep.subr.bf16.mxu0 0
      %4239 = vmatpush2.bf16.msra.mxu0 0
      %4240 = vmatprep.subr.bf16.mxu0 0
      %4241 = vmatpush2.bf16.msra.mxu0 0
      %4242 = vmatprep.subr.bf16.mxu0 0
      %4243 = vmatpush2.bf16.msra.mxu0 0
      %4244 = vmatprep.subr.bf16.mxu0 0
      %4245 = vmatpush2.bf16.msra.mxu0 0
      %4246 = vmatprep.subr.bf16.mxu0 0
      %4247 = vmatpush2.bf16.msra.mxu0 0
      %4248 = vmatprep.subr.bf16.mxu0 0
      %4249 = vmatpush2.bf16.msra.mxu0 0
      %4250 = vmatprep.subr.bf16.mxu0 0
      %4251 = vmatpush2.bf16.msra.mxu0 0
      %4252 = vmatprep.subr.bf16.mxu0 0
      %4253 = vmatpush2.bf16.msra.mxu0 0
      %4254 = vmatprep.mubr.bf16.mxu0 0
      %4255 = vmatmul.mubr.bf16.gmra.mxu0 %v4217
      %v4256 = vpop.f32.mrf.mxu0
      %v4257 = vadd.f32 0.0, %v4256
      %v4258 = vpop.f32.mrf.mxu0
      %v4259 = vadd.f32 0.0, %v4258
      %v4260 = vpop.f32.mrf.mxu0
      %v4261 = vadd.f32 0.0, %v4260
      %v4262 = vpop.f32.mrf.mxu0
      %v4263 = vadd.f32 0.0, %v4262
      %4264 = vmatprep.mubr.bf16.mxu0 0
      %4265 = vmatmul.mubr.bf16.gmra.mxu0 %v4220
      %v4266 = vpop.f32.mrf.mxu0
      %v4267 = vadd.f32 0.0, %v4266
      %v4268 = vpop.f32.mrf.mxu0
      %v4269 = vadd.f32 0.0, %v4268
      %v4270 = vpop.f32.mrf.mxu0
      %v4271 = vadd.f32 0.0, %v4270
      %v4272 = vpop.f32.mrf.mxu0
      %v4273 = vadd.f32 0.0, %v4272
      %4274 = vdwg.mxu0
      %v4275 = vadd.f32 %v4127, %v4257
      %v4276 = vadd.f32 %v4129, %v4259
      %v4277 = vadd.f32 %v4131, %v4261
      %v4278 = vadd.f32 %v4133, %v4263
      %v4279 = vadd.f32 %v4137, %v4267
      %v4280 = vadd.f32 %v4139, %v4269
      %v4281 = vadd.f32 %v4141, %v4271
      %v4282 = vadd.f32 %v4143, %v4273
      %4283 = vrot.lane.b32.xlu0 %v3962, 16
      %v4284 = vpop.permute.xlu0 %4283
      %4285 = vrot.lane.b32.xlu0 %v3966, 16
      %v4286 = vpop.permute.xlu0 %4285
      %vm4287 = vcmask 130048
      %v4288 = vsel %vm4287, %v4284, %v4286
      %vm4289 = vcmp.ne.s16.totalorder %v4284, 0
      %vm4290 = vcmp.ne.s16.totalorder %v4288, 0
      %vm4291 = vcmp.ne.s16.totalorder %v4286, 0
      %v4292 = vsel %vm4289, %v3913, 0
      %v4293 = vsel %vm4290, %v3907, 0
      %v4294 = vsel %vm4291, %v3919, 0
      %v4295 = vsel %vm4289, %v3916, 0
      %v4296 = vsel %vm4290, %v3908, 0
      %v4297 = vsel %vm4291, %v3922, 0
      %s4298 = scalar_lea.vmem %s9, 48
      %v4299 = vld [vmem:[%s4298] sm:$0xf]
      %v4300 = vld [vmem:[%s4298 + $0x4] sm:$0xf]
      %v4301 = vld [vmem:[%s4298 + $0x8] sm:$0xf]
      %v4302 = vld [vmem:[%s4298 + $0xc] sm:$0xf]
      %v4307 = vunpack.c.l.b16 %v4299
      %v4308 = vunpack.c.l.b16 %v4300
      %v4309 = vunpack.c.l.b16 %v4301
      %v4310 = vunpack.c.l.b16 %v4302
      %v4311 = vpack.c.b16 %v4308, %v4307
      %v4312 = vpack.c.b16 %v4310, %v4309
      %4319 = vrot.lane.b32.xlu0 %v4292, 112
      %v4320 = vpop.permute.xlu0 %4319
      %4321 = vrot.lane.b32.xlu0 %v4293, 112
      %v4322 = vpop.permute.xlu0 %4321
      %4323 = vrot.lane.b32.xlu0 %v4294, 112
      %v4324 = vpop.permute.xlu0 %4323
      %4325 = vrot.lane.b32.xlu0 %v4295, 112
      %v4326 = vpop.permute.xlu0 %4325
      %4327 = vrot.lane.b32.xlu0 %v4296, 112
      %v4328 = vpop.permute.xlu0 %4327
      %4329 = vrot.lane.b32.xlu0 %v4297, 112
      %v4330 = vpop.permute.xlu0 %4329
      %vm4331 = vcmask 916480
      %v4332 = vsel %vm4331, %v4320, %v4322
      %v4333 = vsel %vm4331, %v4322, %v4324
      %v4334 = vsel %vm4331, %v4326, %v4328
      %v4335 = vsel %vm4331, %v4328, %v4330
      %v4341 = vsel %vm831, %v4311, 0
      %v4344 = vsel %vm831, %v4312, 0
      %4346 = vmatprep.subr.bf16.mxu0 0
      %4347 = vmatpush1.bf16.msra.mxu0 0
      %4348 = vmatprep.subr.bf16.mxu0 0
      %4349 = vmatpush1.bf16.msra.mxu0 0
      %4350 = vmatprep.subr.bf16.mxu0 0
      %4351 = vmatpush1.bf16.msra.mxu0 0
      %4352 = vmatprep.subr.bf16.mxu0 0
      %4353 = vmatpush1.bf16.msra.mxu0 0
      %4354 = vmatprep.subr.bf16.mxu0 0
      %4355 = vmatpush1.bf16.msra.mxu0 0
      %4356 = vmatprep.subr.bf16.mxu0 0
      %4357 = vmatpush1.bf16.msra.mxu0 0
      %4358 = vmatprep.subr.bf16.mxu0 %v4335
      %4359 = vmatpush1.bf16.msra.mxu0 %v4334
      %4360 = vmatprep.subr.bf16.mxu0 %v4333
      %4361 = vmatpush1.bf16.msra.mxu0 %v4332
      %4362 = vmatprep.subr.bf16.mxu0 0
      %4363 = vmatpush2.bf16.msra.mxu0 0
      %4364 = vmatprep.subr.bf16.mxu0 0
      %4365 = vmatpush2.bf16.msra.mxu0 0
      %4366 = vmatprep.subr.bf16.mxu0 0
      %4367 = vmatpush2.bf16.msra.mxu0 0
      %4368 = vmatprep.subr.bf16.mxu0 0
      %4369 = vmatpush2.bf16.msra.mxu0 0
      %4370 = vmatprep.subr.bf16.mxu0 0
      %4371 = vmatpush2.bf16.msra.mxu0 0
      %4372 = vmatprep.subr.bf16.mxu0 0
      %4373 = vmatpush2.bf16.msra.mxu0 0
      %4374 = vmatprep.subr.bf16.mxu0 0
      %4375 = vmatpush2.bf16.msra.mxu0 0
      %4376 = vmatprep.subr.bf16.mxu0 0
      %4377 = vmatpush2.bf16.msra.mxu0 0
      %4378 = vmatprep.mubr.bf16.mxu0 0
      %4379 = vmatmul.mubr.bf16.gmra.mxu0 %v4341
      %v4380 = vpop.f32.mrf.mxu0
      %v4381 = vadd.f32 0.0, %v4380
      %v4382 = vpop.f32.mrf.mxu0
      %v4383 = vadd.f32 0.0, %v4382
      %v4384 = vpop.f32.mrf.mxu0
      %v4385 = vadd.f32 0.0, %v4384
      %v4386 = vpop.f32.mrf.mxu0
      %v4387 = vadd.f32 0.0, %v4386
      %4388 = vmatprep.mubr.bf16.mxu0 0
      %4389 = vmatmul.mubr.bf16.gmra.mxu0 %v4344
      %v4390 = vpop.f32.mrf.mxu0
      %v4391 = vadd.f32 0.0, %v4390
      %v4392 = vpop.f32.mrf.mxu0
      %v4393 = vadd.f32 0.0, %v4392
      %v4394 = vpop.f32.mrf.mxu0
      %v4395 = vadd.f32 0.0, %v4394
      %v4396 = vpop.f32.mrf.mxu0
      %v4397 = vadd.f32 0.0, %v4396
      %4398 = vdwg.mxu0
      %v4399 = vadd.f32 %v4275, %v4381
      %v4400 = vadd.f32 %v4276, %v4383
      %v4401 = vadd.f32 %v4277, %v4385
      %v4402 = vadd.f32 %v4278, %v4387
      %v4403 = vadd.f32 %v4279, %v4391
      %v4404 = vadd.f32 %v4280, %v4393
      %v4405 = vadd.f32 %v4281, %v4395
      %v4406 = vadd.f32 %v4282, %v4397
      %s4407 = scalar_lea.vmem %s9, 64
      %v4408 = vld [vmem:[%s4407] sm:$0xf]
      %v4409 = vld [vmem:[%s4407 + $0x4] sm:$0xf]
      %v4410 = vld [vmem:[%s4407 + $0x8] sm:$0xf]
      %v4411 = vld [vmem:[%s4407 + $0xc] sm:$0xf]
      %v4416 = vunpack.c.l.b16 %v4408
      %v4417 = vunpack.c.l.b16 %v4409
      %v4418 = vunpack.c.l.b16 %v4410
      %v4419 = vunpack.c.l.b16 %v4411
      %v4420 = vpack.c.b16 %v4417, %v4416
      %v4421 = vpack.c.b16 %v4419, %v4418
      %4422 = vrot.lane.b32.xlu0 %v3913, 111
      %v4423 = vpop.permute.xlu0 %4422
      %4424 = vrot.lane.b32.xlu0 %v3907, 111
      %v4425 = vpop.permute.xlu0 %4424
      %4426 = vrot.lane.b32.xlu0 %v3919, 111
      %v4427 = vpop.permute.xlu0 %4426
      %4428 = vrot.lane.b32.xlu0 %v3916, 111
      %v4429 = vpop.permute.xlu0 %4428
      %4430 = vrot.lane.b32.xlu0 %v3908, 111
      %v4431 = vpop.permute.xlu0 %4430
      %4432 = vrot.lane.b32.xlu0 %v3922, 111
      %v4433 = vpop.permute.xlu0 %4432
      %vm4434 = vcmask 908288
      %v4435 = vsel %vm4434, %v4423, %v4425
      %v4436 = vsel %vm4434, %v4425, %v4427
      %v4437 = vsel %vm4434, %v4429, %v4431
      %v4438 = vsel %vm4434, %v4431, %v4433
      %v4444 = vsel %vm831, %v4420, 0
      %v4447 = vsel %vm831, %v4421, 0
      %4449 = vmatprep.subr.bf16.mxu0 0
      %4450 = vmatpush1.bf16.msra.mxu0 0
      %4451 = vmatprep.subr.bf16.mxu0 0
      %4452 = vmatpush1.bf16.msra.mxu0 0
      %4453 = vmatprep.subr.bf16.mxu0 0
      %4454 = vmatpush1.bf16.msra.mxu0 0
      %4455 = vmatprep.subr.bf16.mxu0 0
      %4456 = vmatpush1.bf16.msra.mxu0 0
      %4457 = vmatprep.subr.bf16.mxu0 0
      %4458 = vmatpush1.bf16.msra.mxu0 0
      %4459 = vmatprep.subr.bf16.mxu0 0
      %4460 = vmatpush1.bf16.msra.mxu0 0
      %4461 = vmatprep.subr.bf16.mxu0 %v4438
      %4462 = vmatpush1.bf16.msra.mxu0 %v4437
      %4463 = vmatprep.subr.bf16.mxu0 %v4436
      %4464 = vmatpush1.bf16.msra.mxu0 %v4435
      %4465 = vmatprep.subr.bf16.mxu0 0
      %4466 = vmatpush2.bf16.msra.mxu0 0
      %4467 = vmatprep.subr.bf16.mxu0 0
      %4468 = vmatpush2.bf16.msra.mxu0 0
      %4469 = vmatprep.subr.bf16.mxu0 0
      %4470 = vmatpush2.bf16.msra.mxu0 0
      %4471 = vmatprep.subr.bf16.mxu0 0
      %4472 = vmatpush2.bf16.msra.mxu0 0
      %4473 = vmatprep.subr.bf16.mxu0 0
      %4474 = vmatpush2.bf16.msra.mxu0 0
      %4475 = vmatprep.subr.bf16.mxu0 0
      %4476 = vmatpush2.bf16.msra.mxu0 0
      %4477 = vmatprep.subr.bf16.mxu0 0
      %4478 = vmatpush2.bf16.msra.mxu0 0
      %4479 = vmatprep.subr.bf16.mxu0 0
      %4480 = vmatpush2.bf16.msra.mxu0 0
      %4481 = vmatprep.mubr.bf16.mxu0 0
      %4482 = vmatmul.mubr.bf16.gmra.mxu0 %v4444
      %v4483 = vpop.f32.mrf.mxu0
      %v4484 = vadd.f32 0.0, %v4483
      %v4485 = vpop.f32.mrf.mxu0
      %v4486 = vadd.f32 0.0, %v4485
      %v4487 = vpop.f32.mrf.mxu0
      %v4488 = vadd.f32 0.0, %v4487
      %v4489 = vpop.f32.mrf.mxu0
      %v4490 = vadd.f32 0.0, %v4489
      %4491 = vmatprep.mubr.bf16.mxu0 0
      %4492 = vmatmul.mubr.bf16.gmra.mxu0 %v4447
      %v4493 = vpop.f32.mrf.mxu0
      %v4494 = vadd.f32 0.0, %v4493
      %v4495 = vpop.f32.mrf.mxu0
      %v4496 = vadd.f32 0.0, %v4495
      %v4497 = vpop.f32.mrf.mxu0
      %v4498 = vadd.f32 0.0, %v4497
      %v4499 = vpop.f32.mrf.mxu0
      %v4500 = vadd.f32 0.0, %v4499
      %4501 = vdwg.mxu0
      %v4502 = vadd.f32 %v4399, %v4484
      %v4503 = vadd.f32 %v4400, %v4486
      %v4504 = vadd.f32 %v4401, %v4488
      %v4505 = vadd.f32 %v4402, %v4490
      %v4506 = vadd.f32 %v4403, %v4494
      %v4507 = vadd.f32 %v4404, %v4496
      %v4508 = vadd.f32 %v4405, %v4498
      %v4509 = vadd.f32 %v4406, %v4500
      %4510 = vrot.lane.b32.xlu0 %v4154, 18
      %v4511 = vpop.permute.xlu0 %4510
      %4512 = vrot.lane.b32.xlu0 %v4158, 18
      %v4513 = vpop.permute.xlu0 %4512
      %vm4514 = vcmask 146432
      %v4515 = vsel %vm4514, %v4511, %v4513
      %vm4516 = vcmp.ne.s16.totalorder %v4511, 0
      %vm4517 = vcmp.ne.s16.totalorder %v4515, 0
      %vm4518 = vcmp.ne.s16.totalorder %v4513, 0
      %v4519 = vsel %vm4516, %v3913, 0
      %v4520 = vsel %vm4517, %v3907, 0
      %v4521 = vsel %vm4518, %v3919, 0
      %v4522 = vsel %vm4516, %v3916, 0
      %v4523 = vsel %vm4517, %v3908, 0
      %v4524 = vsel %vm4518, %v3922, 0
      %s4525 = scalar_lea.vmem %s9, 80
      %v4526 = vld [vmem:[%s4525] sm:$0xf]
      %v4527 = vld [vmem:[%s4525 + $0x4] sm:$0xf]
      %v4528 = vld [vmem:[%s4525 + $0x8] sm:$0xf]
      %v4529 = vld [vmem:[%s4525 + $0xc] sm:$0xf]
      %v4534 = vunpack.c.l.b16 %v4526
      %v4535 = vunpack.c.l.b16 %v4527
      %v4536 = vunpack.c.l.b16 %v4528
      %v4537 = vunpack.c.l.b16 %v4529
      %v4538 = vpack.c.b16 %v4535, %v4534
      %v4539 = vpack.c.b16 %v4537, %v4536
      %4546 = vrot.lane.b32.xlu0 %v4519, 110
      %v4547 = vpop.permute.xlu0 %4546
      %4548 = vrot.lane.b32.xlu0 %v4520, 110
      %v4549 = vpop.permute.xlu0 %4548
      %4550 = vrot.lane.b32.xlu0 %v4521, 110
      %v4551 = vpop.permute.xlu0 %4550
      %4552 = vrot.lane.b32.xlu0 %v4522, 110
      %v4553 = vpop.permute.xlu0 %4552
      %4554 = vrot.lane.b32.xlu0 %v4523, 110
      %v4555 = vpop.permute.xlu0 %4554
      %4556 = vrot.lane.b32.xlu0 %v4524, 110
      %v4557 = vpop.permute.xlu0 %4556
      %vm4558 = vcmask 900096
      %v4559 = vsel %vm4558, %v4547, %v4549
      %v4560 = vsel %vm4558, %v4549, %v4551
      %v4561 = vsel %vm4558, %v4553, %v4555
      %v4562 = vsel %vm4558, %v4555, %v4557
      %v4568 = vsel %vm831, %v4538, 0
      %v4571 = vsel %vm831, %v4539, 0
      %4573 = vmatprep.subr.bf16.mxu0 0
      %4574 = vmatpush1.bf16.msra.mxu0 0
      %4575 = vmatprep.subr.bf16.mxu0 0
      %4576 = vmatpush1.bf16.msra.mxu0 0
      %4577 = vmatprep.subr.bf16.mxu0 0
      %4578 = vmatpush1.bf16.msra.mxu0 0
      %4579 = vmatprep.subr.bf16.mxu0 0
      %4580 = vmatpush1.bf16.msra.mxu0 0
      %4581 = vmatprep.subr.bf16.mxu0 0
      %4582 = vmatpush1.bf16.msra.mxu0 0
      %4583 = vmatprep.subr.bf16.mxu0 0
      %4584 = vmatpush1.bf16.msra.mxu0 0
      %4585 = vmatprep.subr.bf16.mxu0 %v4562
      %4586 = vmatpush1.bf16.msra.mxu0 %v4561
      %4587 = vmatprep.subr.bf16.mxu0 %v4560
      %4588 = vmatpush1.bf16.msra.mxu0 %v4559
      %4589 = vmatprep.subr.bf16.mxu0 0
      %4590 = vmatpush2.bf16.msra.mxu0 0
      %4591 = vmatprep.subr.bf16.mxu0 0
      %4592 = vmatpush2.bf16.msra.mxu0 0
      %4593 = vmatprep.subr.bf16.mxu0 0
      %4594 = vmatpush2.bf16.msra.mxu0 0
      %4595 = vmatprep.subr.bf16.mxu0 0
      %4596 = vmatpush2.bf16.msra.mxu0 0
      %4597 = vmatprep.subr.bf16.mxu0 0
      %4598 = vmatpush2.bf16.msra.mxu0 0
      %4599 = vmatprep.subr.bf16.mxu0 0
      %4600 = vmatpush2.bf16.msra.mxu0 0
      %4601 = vmatprep.subr.bf16.mxu0 0
      %4602 = vmatpush2.bf16.msra.mxu0 0
      %4603 = vmatprep.subr.bf16.mxu0 0
      %4604 = vmatpush2.bf16.msra.mxu0 0
      %4605 = vmatprep.mubr.bf16.mxu0 0
      %4606 = vmatmul.mubr.bf16.gmra.mxu0 %v4568
      %v4607 = vpop.f32.mrf.mxu0
      %v4608 = vadd.f32 0.0, %v4607
      %v4609 = vpop.f32.mrf.mxu0
      %v4610 = vadd.f32 0.0, %v4609
      %v4611 = vpop.f32.mrf.mxu0
      %v4612 = vadd.f32 0.0, %v4611
      %v4613 = vpop.f32.mrf.mxu0
      %v4614 = vadd.f32 0.0, %v4613
      %4615 = vmatprep.mubr.bf16.mxu0 0
      %4616 = vmatmul.mubr.bf16.gmra.mxu0 %v4571
      %v4617 = vpop.f32.mrf.mxu0
      %v4618 = vadd.f32 0.0, %v4617
      %v4619 = vpop.f32.mrf.mxu0
      %v4620 = vadd.f32 0.0, %v4619
      %v4621 = vpop.f32.mrf.mxu0
      %v4622 = vadd.f32 0.0, %v4621
      %v4623 = vpop.f32.mrf.mxu0
      %v4624 = vadd.f32 0.0, %v4623
      %4625 = vdwg.mxu0
      %v4626 = vadd.f32 %v4502, %v4608
      %v4627 = vadd.f32 %v4503, %v4610
      %v4628 = vadd.f32 %v4504, %v4612
      %v4629 = vadd.f32 %v4505, %v4614
      %v4630 = vadd.f32 %v4506, %v4618
      %v4631 = vadd.f32 %v4507, %v4620
      %v4632 = vadd.f32 %v4508, %v4622
      %v4633 = vadd.f32 %v4509, %v4624
      %4634 = vrot.lane.b32.xlu0 %v3962, 32
      %v4635 = vpop.permute.xlu0 %4634
      %4636 = vrot.lane.b32.xlu0 %v3966, 32
      %v4637 = vpop.permute.xlu0 %4636
      %vm4638 = vcmask 261120
      %v4639 = vsel %vm4638, %v4635, %v4637
      %vm4640 = vcmp.ne.s16.totalorder %v4635, 0
      %vm4641 = vcmp.ne.s16.totalorder %v4639, 0
      %vm4642 = vcmp.ne.s16.totalorder %v4637, 0
      %v4643 = vsel %vm4640, %v3913, 0
      %v4644 = vsel %vm4641, %v3907, 0
      %v4645 = vsel %vm4642, %v3919, 0
      %v4646 = vsel %vm4640, %v3916, 0
      %v4647 = vsel %vm4641, %v3908, 0
      %v4648 = vsel %vm4642, %v3922, 0
      %s4649 = scalar_lea.vmem %s9, 96
      %v4650 = vld [vmem:[%s4649] sm:$0xf]
      %v4651 = vld [vmem:[%s4649 + $0x4] sm:$0xf]
      %v4652 = vld [vmem:[%s4649 + $0x8] sm:$0xf]
      %v4653 = vld [vmem:[%s4649 + $0xc] sm:$0xf]
      %v4658 = vunpack.c.l.b16 %v4650
      %v4659 = vunpack.c.l.b16 %v4651
      %v4660 = vunpack.c.l.b16 %v4652
      %v4661 = vunpack.c.l.b16 %v4653
      %v4662 = vpack.c.b16 %v4659, %v4658
      %v4663 = vpack.c.b16 %v4661, %v4660
      %4670 = vrot.lane.b32.xlu0 %v4643, 96
      %v4671 = vpop.permute.xlu0 %4670
      %4672 = vrot.lane.b32.xlu0 %v4644, 96
      %v4673 = vpop.permute.xlu0 %4672
      %4674 = vrot.lane.b32.xlu0 %v4645, 96
      %v4675 = vpop.permute.xlu0 %4674
      %4676 = vrot.lane.b32.xlu0 %v4646, 96
      %v4677 = vpop.permute.xlu0 %4676
      %4678 = vrot.lane.b32.xlu0 %v4647, 96
      %v4679 = vpop.permute.xlu0 %4678
      %4680 = vrot.lane.b32.xlu0 %v4648, 96
      %v4681 = vpop.permute.xlu0 %4680
      %vm4682 = vcmask 785408
      %v4683 = vsel %vm4682, %v4671, %v4673
      %v4684 = vsel %vm4682, %v4673, %v4675
      %v4685 = vsel %vm4682, %v4677, %v4679
      %v4686 = vsel %vm4682, %v4679, %v4681
      %v4692 = vsel %vm831, %v4662, 0
      %v4695 = vsel %vm831, %v4663, 0
      %4697 = vmatprep.subr.bf16.mxu0 0
      %4698 = vmatpush1.bf16.msra.mxu0 0
      %4699 = vmatprep.subr.bf16.mxu0 0
      %4700 = vmatpush1.bf16.msra.mxu0 0
      %4701 = vmatprep.subr.bf16.mxu0 0
      %4702 = vmatpush1.bf16.msra.mxu0 0
      %4703 = vmatprep.subr.bf16.mxu0 0
      %4704 = vmatpush1.bf16.msra.mxu0 0
      %4705 = vmatprep.subr.bf16.mxu0 0
      %4706 = vmatpush1.bf16.msra.mxu0 0
      %4707 = vmatprep.subr.bf16.mxu0 0
      %4708 = vmatpush1.bf16.msra.mxu0 0
      %4709 = vmatprep.subr.bf16.mxu0 %v4686
      %4710 = vmatpush1.bf16.msra.mxu0 %v4685
      %4711 = vmatprep.subr.bf16.mxu0 %v4684
      %4712 = vmatpush1.bf16.msra.mxu0 %v4683
      %4713 = vmatprep.subr.bf16.mxu0 0
      %4714 = vmatpush2.bf16.msra.mxu0 0
      %4715 = vmatprep.subr.bf16.mxu0 0
      %4716 = vmatpush2.bf16.msra.mxu0 0
      %4717 = vmatprep.subr.bf16.mxu0 0
      %4718 = vmatpush2.bf16.msra.mxu0 0
      %4719 = vmatprep.subr.bf16.mxu0 0
      %4720 = vmatpush2.bf16.msra.mxu0 0
      %4721 = vmatprep.subr.bf16.mxu0 0
      %4722 = vmatpush2.bf16.msra.mxu0 0
      %4723 = vmatprep.subr.bf16.mxu0 0
      %4724 = vmatpush2.bf16.msra.mxu0 0
      %4725 = vmatprep.subr.bf16.mxu0 0
      %4726 = vmatpush2.bf16.msra.mxu0 0
      %4727 = vmatprep.subr.bf16.mxu0 0
      %4728 = vmatpush2.bf16.msra.mxu0 0
      %4729 = vmatprep.mubr.bf16.mxu0 0
      %4730 = vmatmul.mubr.bf16.gmra.mxu0 %v4692
      %v4731 = vpop.f32.mrf.mxu0
      %v4732 = vadd.f32 0.0, %v4731
      %v4733 = vpop.f32.mrf.mxu0
      %v4734 = vadd.f32 0.0, %v4733
      %v4735 = vpop.f32.mrf.mxu0
      %v4736 = vadd.f32 0.0, %v4735
      %v4737 = vpop.f32.mrf.mxu0
      %v4738 = vadd.f32 0.0, %v4737
      %4739 = vmatprep.mubr.bf16.mxu0 0
      %4740 = vmatmul.mubr.bf16.gmra.mxu0 %v4695
      %v4741 = vpop.f32.mrf.mxu0
      %v4742 = vadd.f32 0.0, %v4741
      %v4743 = vpop.f32.mrf.mxu0
      %v4744 = vadd.f32 0.0, %v4743
      %v4745 = vpop.f32.mrf.mxu0
      %v4746 = vadd.f32 0.0, %v4745
      %v4747 = vpop.f32.mrf.mxu0
      %v4748 = vadd.f32 0.0, %v4747
      %4749 = vdwg.mxu0
      %v4750 = vadd.f32 %v4626, %v4732
      %v4751 = vadd.f32 %v4627, %v4734
      %v4752 = vadd.f32 %v4628, %v4736
      %v4753 = vadd.f32 %v4629, %v4738
      %v4754 = vadd.f32 %v4630, %v4742
      %v4755 = vadd.f32 %v4631, %v4744
      %v4756 = vadd.f32 %v4632, %v4746
      %v4757 = vadd.f32 %v4633, %v4748
      %s4758 = scalar_lea.vmem %s9, 112
      %v4759 = vld [vmem:[%s4758] sm:$0xf]
      %v4760 = vld [vmem:[%s4758 + $0x4] sm:$0xf]
      %v4761 = vld [vmem:[%s4758 + $0x8] sm:$0xf]
      %v4762 = vld [vmem:[%s4758 + $0xc] sm:$0xf]
      %v4767 = vunpack.c.l.b16 %v4759
      %v4768 = vunpack.c.l.b16 %v4760
      %v4769 = vunpack.c.l.b16 %v4761
      %v4770 = vunpack.c.l.b16 %v4762
      %v4771 = vpack.c.b16 %v4768, %v4767
      %v4772 = vpack.c.b16 %v4770, %v4769
      %4773 = vrot.lane.b32.xlu0 %v3913, 95
      %v4774 = vpop.permute.xlu0 %4773
      %4775 = vrot.lane.b32.xlu0 %v3907, 95
      %v4776 = vpop.permute.xlu0 %4775
      %4777 = vrot.lane.b32.xlu0 %v3919, 95
      %v4778 = vpop.permute.xlu0 %4777
      %4779 = vrot.lane.b32.xlu0 %v3916, 95
      %v4780 = vpop.permute.xlu0 %4779
      %4781 = vrot.lane.b32.xlu0 %v3908, 95
      %v4782 = vpop.permute.xlu0 %4781
      %4783 = vrot.lane.b32.xlu0 %v3922, 95
      %v4784 = vpop.permute.xlu0 %4783
      %vm4785 = vcmask 777216
      %v4786 = vsel %vm4785, %v4774, %v4776
      %v4787 = vsel %vm4785, %v4776, %v4778
      %v4788 = vsel %vm4785, %v4780, %v4782
      %v4789 = vsel %vm4785, %v4782, %v4784
      %v4795 = vsel %vm831, %v4771, 0
      %v4798 = vsel %vm831, %v4772, 0
      %4800 = vmatprep.subr.bf16.mxu0 0
      %4801 = vmatpush1.bf16.msra.mxu0 0
      %4802 = vmatprep.subr.bf16.mxu0 0
      %4803 = vmatpush1.bf16.msra.mxu0 0
      %4804 = vmatprep.subr.bf16.mxu0 0
      %4805 = vmatpush1.bf16.msra.mxu0 0
      %4806 = vmatprep.subr.bf16.mxu0 0
      %4807 = vmatpush1.bf16.msra.mxu0 0
      %4808 = vmatprep.subr.bf16.mxu0 0
      %4809 = vmatpush1.bf16.msra.mxu0 0
      %4810 = vmatprep.subr.bf16.mxu0 0
      %4811 = vmatpush1.bf16.msra.mxu0 0
      %4812 = vmatprep.subr.bf16.mxu0 %v4789
      %4813 = vmatpush1.bf16.msra.mxu0 %v4788
      %4814 = vmatprep.subr.bf16.mxu0 %v4787
      %4815 = vmatpush1.bf16.msra.mxu0 %v4786
      %4816 = vmatprep.subr.bf16.mxu0 0
      %4817 = vmatpush2.bf16.msra.mxu0 0
      %4818 = vmatprep.subr.bf16.mxu0 0
      %4819 = vmatpush2.bf16.msra.mxu0 0
      %4820 = vmatprep.subr.bf16.mxu0 0
      %4821 = vmatpush2.bf16.msra.mxu0 0
      %4822 = vmatprep.subr.bf16.mxu0 0
      %4823 = vmatpush2.bf16.msra.mxu0 0
      %4824 = vmatprep.subr.bf16.mxu0 0
      %4825 = vmatpush2.bf16.msra.mxu0 0
      %4826 = vmatprep.subr.bf16.mxu0 0
      %4827 = vmatpush2.bf16.msra.mxu0 0
      %4828 = vmatprep.subr.bf16.mxu0 0
      %4829 = vmatpush2.bf16.msra.mxu0 0
      %4830 = vmatprep.subr.bf16.mxu0 0
      %4831 = vmatpush2.bf16.msra.mxu0 0
      %4832 = vmatprep.mubr.bf16.mxu0 0
      %4833 = vmatmul.mubr.bf16.gmra.mxu0 %v4795
      %v4834 = vpop.f32.mrf.mxu0
      %v4835 = vadd.f32 0.0, %v4834
      %v4836 = vpop.f32.mrf.mxu0
      %v4837 = vadd.f32 0.0, %v4836
      %v4838 = vpop.f32.mrf.mxu0
      %v4839 = vadd.f32 0.0, %v4838
      %v4840 = vpop.f32.mrf.mxu0
      %v4841 = vadd.f32 0.0, %v4840
      %4842 = vmatprep.mubr.bf16.mxu0 0
      %4843 = vmatmul.mubr.bf16.gmra.mxu0 %v4798
      %v4844 = vpop.f32.mrf.mxu0
      %v4845 = vadd.f32 0.0, %v4844
      %v4846 = vpop.f32.mrf.mxu0
      %v4847 = vadd.f32 0.0, %v4846
      %v4848 = vpop.f32.mrf.mxu0
      %v4849 = vadd.f32 0.0, %v4848
      %v4850 = vpop.f32.mrf.mxu0
      %v4851 = vadd.f32 0.0, %v4850
      %4852 = vdwg.mxu0
      %v4853 = vadd.f32 %v4750, %v4835
      %v4854 = vadd.f32 %v4751, %v4837
      %v4855 = vadd.f32 %v4752, %v4839
      %v4856 = vadd.f32 %v4753, %v4841
      %v4857 = vadd.f32 %v4754, %v4845
      %v4858 = vadd.f32 %v4755, %v4847
      %v4859 = vadd.f32 %v4756, %v4849
      %v4860 = vadd.f32 %v4757, %v4851
      %4861 = vrot.lane.b32.xlu0 %v4154, 34
      %v4862 = vpop.permute.xlu0 %4861
      %4863 = vrot.lane.b32.xlu0 %v4158, 34
      %v4864 = vpop.permute.xlu0 %4863
      %vm4865 = vcmask 277504
      %v4866 = vsel %vm4865, %v4862, %v4864
      %vm4867 = vcmp.ne.s16.totalorder %v4862, 0
      %vm4868 = vcmp.ne.s16.totalorder %v4866, 0
      %vm4869 = vcmp.ne.s16.totalorder %v4864, 0
      %v4870 = vsel %vm4867, %v3913, 0
      %v4871 = vsel %vm4868, %v3907, 0
      %v4872 = vsel %vm4869, %v3919, 0
      %v4873 = vsel %vm4867, %v3916, 0
      %v4874 = vsel %vm4868, %v3908, 0
      %v4875 = vsel %vm4869, %v3922, 0
      %s4876 = scalar_lea.vmem %s9, 128
      %v4877 = vld [vmem:[%s4876] sm:$0xf]
      %v4878 = vld [vmem:[%s4876 + $0x4] sm:$0xf]
      %v4879 = vld [vmem:[%s4876 + $0x8] sm:$0xf]
      %v4880 = vld [vmem:[%s4876 + $0xc] sm:$0xf]
      %v4885 = vunpack.c.l.b16 %v4877
      %v4886 = vunpack.c.l.b16 %v4878
      %v4887 = vunpack.c.l.b16 %v4879
      %v4888 = vunpack.c.l.b16 %v4880
      %v4889 = vpack.c.b16 %v4886, %v4885
      %v4890 = vpack.c.b16 %v4888, %v4887
      %4897 = vrot.lane.b32.xlu0 %v4870, 94
      %v4898 = vpop.permute.xlu0 %4897
      %4899 = vrot.lane.b32.xlu0 %v4871, 94
      %v4900 = vpop.permute.xlu0 %4899
      %4901 = vrot.lane.b32.xlu0 %v4872, 94
      %v4902 = vpop.permute.xlu0 %4901
      %4903 = vrot.lane.b32.xlu0 %v4873, 94
      %v4904 = vpop.permute.xlu0 %4903
      %4905 = vrot.lane.b32.xlu0 %v4874, 94
      %v4906 = vpop.permute.xlu0 %4905
      %4907 = vrot.lane.b32.xlu0 %v4875, 94
      %v4908 = vpop.permute.xlu0 %4907
      %vm4909 = vcmask 769024
      %v4910 = vsel %vm4909, %v4898, %v4900
      %v4911 = vsel %vm4909, %v4900, %v4902
      %v4912 = vsel %vm4909, %v4904, %v4906
      %v4913 = vsel %vm4909, %v4906, %v4908
      %v4919 = vsel %vm831, %v4889, 0
      %v4922 = vsel %vm831, %v4890, 0
      %4924 = vmatprep.subr.bf16.mxu0 0
      %4925 = vmatpush1.bf16.msra.mxu0 0
      %4926 = vmatprep.subr.bf16.mxu0 0
      %4927 = vmatpush1.bf16.msra.mxu0 0
      %4928 = vmatprep.subr.bf16.mxu0 0
      %4929 = vmatpush1.bf16.msra.mxu0 0
      %4930 = vmatprep.subr.bf16.mxu0 0
      %4931 = vmatpush1.bf16.msra.mxu0 0
      %4932 = vmatprep.subr.bf16.mxu0 0
      %4933 = vmatpush1.bf16.msra.mxu0 0
      %4934 = vmatprep.subr.bf16.mxu0 0
      %4935 = vmatpush1.bf16.msra.mxu0 0
      %4936 = vmatprep.subr.bf16.mxu0 %v4913
      %4937 = vmatpush1.bf16.msra.mxu0 %v4912
      %4938 = vmatprep.subr.bf16.mxu0 %v4911
      %4939 = vmatpush1.bf16.msra.mxu0 %v4910
      %4940 = vmatprep.subr.bf16.mxu0 0
      %4941 = vmatpush2.bf16.msra.mxu0 0
      %4942 = vmatprep.subr.bf16.mxu0 0
      %4943 = vmatpush2.bf16.msra.mxu0 0
      %4944 = vmatprep.subr.bf16.mxu0 0
      %4945 = vmatpush2.bf16.msra.mxu0 0
      %4946 = vmatprep.subr.bf16.mxu0 0
      %4947 = vmatpush2.bf16.msra.mxu0 0
      %4948 = vmatprep.subr.bf16.mxu0 0
      %4949 = vmatpush2.bf16.msra.mxu0 0
      %4950 = vmatprep.subr.bf16.mxu0 0
      %4951 = vmatpush2.bf16.msra.mxu0 0
      %4952 = vmatprep.subr.bf16.mxu0 0
      %4953 = vmatpush2.bf16.msra.mxu0 0
      %4954 = vmatprep.subr.bf16.mxu0 0
      %4955 = vmatpush2.bf16.msra.mxu0 0
      %4956 = vmatprep.mubr.bf16.mxu0 0
      %4957 = vmatmul.mubr.bf16.gmra.mxu0 %v4919
      %v4958 = vpop.f32.mrf.mxu0
      %v4959 = vadd.f32 0.0, %v4958
      %v4960 = vpop.f32.mrf.mxu0
      %v4961 = vadd.f32 0.0, %v4960
      %v4962 = vpop.f32.mrf.mxu0
      %v4963 = vadd.f32 0.0, %v4962
      %v4964 = vpop.f32.mrf.mxu0
      %v4965 = vadd.f32 0.0, %v4964
      %4966 = vmatprep.mubr.bf16.mxu0 0
      %4967 = vmatmul.mubr.bf16.gmra.mxu0 %v4922
      %v4968 = vpop.f32.mrf.mxu0
      %v4969 = vadd.f32 0.0, %v4968
      %v4970 = vpop.f32.mrf.mxu0
      %v4971 = vadd.f32 0.0, %v4970
      %v4972 = vpop.f32.mrf.mxu0
      %v4973 = vadd.f32 0.0, %v4972
      %v4974 = vpop.f32.mrf.mxu0
      %v4975 = vadd.f32 0.0, %v4974
      %4976 = vdwg.mxu0
      %v4977 = vadd.f32 %v4853, %v4959
      %v4978 = vadd.f32 %v4854, %v4961
      %v4979 = vadd.f32 %v4855, %v4963
      %v4980 = vadd.f32 %v4856, %v4965
      %v4981 = vadd.f32 %v4857, %v4969
      %v4982 = vadd.f32 %v4858, %v4971
      %v4983 = vadd.f32 %v4859, %v4973
      %v4984 = vadd.f32 %v4860, %v4975
      %4985 = vst [vmem:[%s662] sm:$0xff] %v4977
      %4986 = vst [vmem:[%s662 + $0x8] sm:$0xff] %v4978
      %4987 = vst [vmem:[%s662 + $0x10] sm:$0xff] %v4979
      %4988 = vst [vmem:[%s662 + $0x18] sm:$0xff] %v4980
      %4989 = vst [vmem:[%s662 + $0x20] sm:$0xff] %v4981
      %4990 = vst [vmem:[%s662 + $0x28] sm:$0xff] %v4982
      %4991 = vst [vmem:[%s662 + $0x30] sm:$0xff] %v4983
      %4992 = vst [vmem:[%s662 + $0x38] sm:$0xff] %v4984
      %v4993 = vld [vmem:[%s637] sm:$0xff]
      %v4994 = vld [vmem:[%s637 + $0x8] sm:$0xff]
      %v4995 = vld [vmem:[%s637 + $0x10] sm:$0xff]
      %v4996 = vld [vmem:[%s637 + $0x18] sm:$0xff]
      %v4997 = vld [vmem:[%s637 + $0x20] sm:$0xff]
      %v4998 = vld [vmem:[%s637 + $0x28] sm:$0xff]
      %v4999 = vld [vmem:[%s637 + $0x30] sm:$0xff]
      %v5000 = vld [vmem:[%s637 + $0x38] sm:$0xff]
      %v5001 = vpack.c.bf16 %v4993, %v4993
      %v5002 = vpack.c.bf16 %v4994, %v4994
      %v5003 = vpack.c.bf16 %v4995, %v4995
      %v5004 = vpack.c.bf16 %v4996, %v4996
      %v5005 = vpack.c.bf16 %v4997, %v4997
      %v5006 = vpack.c.bf16 %v4998, %v4998
      %v5007 = vpack.c.bf16 %v4999, %v4999
      %v5008 = vpack.c.bf16 %v5000, %v5000
      %v5009 = vld [vmem:[%s4] sm:$0xf]
      %v5010 = vld [vmem:[%s4 + $0x4] sm:$0xf]
      %v5011 = vld [vmem:[%s4 + $0x8] sm:$0xf]
      %v5012 = vld [vmem:[%s4 + $0xc] sm:$0xf]
      %v5013 = vld [vmem:[%s14] sm:$0xf]
      %v5014 = vld [vmem:[%s14 + $0x4] sm:$0xf]
      %v5017 = vunpack.c.l.b16 %v5013
      %v5018 = vunpack.c.l.b16 %v5014
      %v5019 = vpack.c.b16 %v5018, %v5017
      %v5022 = vsel %vm1555, %v3890, 0
      %v5025 = vsel %vm1555, %v3892, 0
      %5027 = vmatprep.subr.bf16.mxu0 0
      %5028 = vmatpush1.bf16.msra.mxu0 0
      %5029 = vmatprep.subr.bf16.mxu0 0
      %5030 = vmatpush1.bf16.msra.mxu0 0
      %5031 = vmatprep.subr.bf16.mxu0 0
      %5032 = vmatpush1.bf16.msra.mxu0 0
      %5033 = vmatprep.subr.bf16.mxu0 0
      %5034 = vmatpush1.bf16.msra.mxu0 0
      %5035 = vmatprep.subr.bf16.mxu0 0
      %5036 = vmatpush1.bf16.msra.mxu0 0
      %5037 = vmatprep.subr.bf16.mxu0 0
      %5038 = vmatpush1.bf16.msra.mxu0 0
      %5039 = vmatprep.subr.bf16.mxu0 0
      %5040 = vmatpush1.bf16.msra.mxu0 0
      %5041 = vmatprep.subr.bf16.mxu0 0
      %5042 = vmatpush1.bf16.msra.mxu0 %v5019
      %5043 = vmatprep.subr.bf16.mxu0 0
      %5044 = vmatpush2.bf16.msra.mxu0 0
      %5045 = vmatprep.subr.bf16.mxu0 0
      %5046 = vmatpush2.bf16.msra.mxu0 0
      %5047 = vmatprep.subr.bf16.mxu0 0
      %5048 = vmatpush2.bf16.msra.mxu0 0
      %5049 = vmatprep.subr.bf16.mxu0 0
      %5050 = vmatpush2.bf16.msra.mxu0 0
      %5051 = vmatprep.subr.bf16.mxu0 0
      %5052 = vmatpush2.bf16.msra.mxu0 0
      %5053 = vmatprep.subr.bf16.mxu0 0
      %5054 = vmatpush2.bf16.msra.mxu0 0
      %5055 = vmatprep.subr.bf16.mxu0 0
      %5056 = vmatpush2.bf16.msra.mxu0 0
      %5057 = vmatprep.subr.bf16.mxu0 0
      %5058 = vmatpush2.bf16.msra.mxu0 0
      %5059 = vmatprep.mubr.bf16.mxu0 0
      %5060 = vmatmul.mubr.bf16.gmra.mxu0 %v5022
      %v5061 = vpop.f32.mrf.mxu0
      %v5062 = vadd.f32 0.0, %v5061
      %v5063 = vpop.f32.mrf.mxu0
      %v5064 = vpop.f32.mrf.mxu0
      %v5065 = vadd.f32 0.0, %v5064
      %v5066 = vpop.f32.mrf.mxu0
      %5067 = vmatprep.mubr.bf16.mxu0 0
      %5068 = vmatmul.mubr.bf16.gmra.mxu0 %v5025
      %v5069 = vpop.f32.mrf.mxu0
      %v5070 = vadd.f32 0.0, %v5069
      %v5071 = vpop.f32.mrf.mxu0
      %v5072 = vpop.f32.mrf.mxu0
      %v5073 = vadd.f32 0.0, %v5072
      %v5074 = vpop.f32.mrf.mxu0
      %5075 = vdwg.mxu0
      %5076 = vrot.lane.b32.xlu0 %v3890, 112
      %v5077 = vpop.permute.xlu0 %5076
      %5078 = vrot.lane.b32.xlu0 %v3892, 112
      %v5079 = vpop.permute.xlu0 %5078
      %v5081 = vsel %vm1555, %v5077, 0
      %v5084 = vsel %vm1555, %v5079, 0
      %5086 = vmatprep.subr.bf16.mxu0 0
      %5087 = vmatpush1.bf16.msra.mxu0 0
      %5088 = vmatprep.subr.bf16.mxu0 0
      %5089 = vmatpush1.bf16.msra.mxu0 0
      %5090 = vmatprep.subr.bf16.mxu0 0
      %5091 = vmatpush1.bf16.msra.mxu0 0
      %5092 = vmatprep.subr.bf16.mxu0 0
      %5093 = vmatpush1.bf16.msra.mxu0 0
      %5094 = vmatprep.subr.bf16.mxu0 0
      %5095 = vmatpush1.bf16.msra.mxu0 0
      %5096 = vmatprep.subr.bf16.mxu0 0
      %5097 = vmatpush1.bf16.msra.mxu0 0
      %5098 = vmatprep.subr.bf16.mxu0 0
      %5099 = vmatpush1.bf16.msra.mxu0 0
      %5100 = vmatprep.subr.bf16.mxu0 0
      %5101 = vmatpush1.bf16.msra.mxu0 %v5019
      %5102 = vmatprep.subr.bf16.mxu0 0
      %5103 = vmatpush2.bf16.msra.mxu0 0
      %5104 = vmatprep.subr.bf16.mxu0 0
      %5105 = vmatpush2.bf16.msra.mxu0 0
      %5106 = vmatprep.subr.bf16.mxu0 0
      %5107 = vmatpush2.bf16.msra.mxu0 0
      %5108 = vmatprep.subr.bf16.mxu0 0
      %5109 = vmatpush2.bf16.msra.mxu0 0
      %5110 = vmatprep.subr.bf16.mxu0 0
      %5111 = vmatpush2.bf16.msra.mxu0 0
      %5112 = vmatprep.subr.bf16.mxu0 0
      %5113 = vmatpush2.bf16.msra.mxu0 0
      %5114 = vmatprep.subr.bf16.mxu0 0
      %5115 = vmatpush2.bf16.msra.mxu0 0
      %5116 = vmatprep.subr.bf16.mxu0 0
      %5117 = vmatpush2.bf16.msra.mxu0 0
      %5118 = vmatprep.mubr.bf16.mxu0 0
      %5119 = vmatmul.mubr.bf16.gmra.mxu0 %v5081
      %v5120 = vpop.f32.mrf.mxu0
      %v5121 = vadd.f32 0.0, %v5120
      %v5122 = vpop.f32.mrf.mxu0
      %v5123 = vpop.f32.mrf.mxu0
      %v5124 = vadd.f32 0.0, %v5123
      %v5125 = vpop.f32.mrf.mxu0
      %5126 = vmatprep.mubr.bf16.mxu0 0
      %5127 = vmatmul.mubr.bf16.gmra.mxu0 %v5084
      %v5128 = vpop.f32.mrf.mxu0
      %v5129 = vadd.f32 0.0, %v5128
      %v5130 = vpop.f32.mrf.mxu0
      %v5131 = vpop.f32.mrf.mxu0
      %v5132 = vadd.f32 0.0, %v5131
      %v5133 = vpop.f32.mrf.mxu0
      %5134 = vdwg.mxu0
      %5135 = vrot.lane.b32.xlu0 %v3890, 96
      %v5136 = vpop.permute.xlu0 %5135
      %5137 = vrot.lane.b32.xlu0 %v3892, 96
      %v5138 = vpop.permute.xlu0 %5137
      %v5140 = vsel %vm1555, %v5136, 0
      %v5143 = vsel %vm1555, %v5138, 0
      %5145 = vmatprep.subr.bf16.mxu0 0
      %5146 = vmatpush1.bf16.msra.mxu0 0
      %5147 = vmatprep.subr.bf16.mxu0 0
      %5148 = vmatpush1.bf16.msra.mxu0 0
      %5149 = vmatprep.subr.bf16.mxu0 0
      %5150 = vmatpush1.bf16.msra.mxu0 0
      %5151 = vmatprep.subr.bf16.mxu0 0
      %5152 = vmatpush1.bf16.msra.mxu0 0
      %5153 = vmatprep.subr.bf16.mxu0 0
      %5154 = vmatpush1.bf16.msra.mxu0 0
      %5155 = vmatprep.subr.bf16.mxu0 0
      %5156 = vmatpush1.bf16.msra.mxu0 0
      %5157 = vmatprep.subr.bf16.mxu0 0
      %5158 = vmatpush1.bf16.msra.mxu0 0
      %5159 = vmatprep.subr.bf16.mxu0 0
      %5160 = vmatpush1.bf16.msra.mxu0 %v5019
      %5161 = vmatprep.subr.bf16.mxu0 0
      %5162 = vmatpush2.bf16.msra.mxu0 0
      %5163 = vmatprep.subr.bf16.mxu0 0
      %5164 = vmatpush2.bf16.msra.mxu0 0
      %5165 = vmatprep.subr.bf16.mxu0 0
      %5166 = vmatpush2.bf16.msra.mxu0 0
      %5167 = vmatprep.subr.bf16.mxu0 0
      %5168 = vmatpush2.bf16.msra.mxu0 0
      %5169 = vmatprep.subr.bf16.mxu0 0
      %5170 = vmatpush2.bf16.msra.mxu0 0
      %5171 = vmatprep.subr.bf16.mxu0 0
      %5172 = vmatpush2.bf16.msra.mxu0 0
      %5173 = vmatprep.subr.bf16.mxu0 0
      %5174 = vmatpush2.bf16.msra.mxu0 0
      %5175 = vmatprep.subr.bf16.mxu0 0
      %5176 = vmatpush2.bf16.msra.mxu0 0
      %5177 = vmatprep.mubr.bf16.mxu0 0
      %5178 = vmatmul.mubr.bf16.gmra.mxu0 %v5140
      %v5179 = vpop.f32.mrf.mxu0
      %v5180 = vadd.f32 0.0, %v5179
      %v5181 = vpop.f32.mrf.mxu0
      %v5182 = vpop.f32.mrf.mxu0
      %v5183 = vadd.f32 0.0, %v5182
      %v5184 = vpop.f32.mrf.mxu0
      %5185 = vmatprep.mubr.bf16.mxu0 0
      %5186 = vmatmul.mubr.bf16.gmra.mxu0 %v5143
      %v5187 = vpop.f32.mrf.mxu0
      %v5188 = vadd.f32 0.0, %v5187
      %v5189 = vpop.f32.mrf.mxu0
      %v5190 = vpop.f32.mrf.mxu0
      %v5191 = vadd.f32 0.0, %v5190
      %v5192 = vpop.f32.mrf.mxu0
      %5193 = vdwg.mxu0
      %5194 = vrot.lane.b32.xlu0 %v3890, 80
      %v5195 = vpop.permute.xlu0 %5194
      %5196 = vrot.lane.b32.xlu0 %v3892, 80
      %v5197 = vpop.permute.xlu0 %5196
      %v5199 = vsel %vm1555, %v5195, 0
      %v5202 = vsel %vm1555, %v5197, 0
      %5204 = vmatprep.subr.bf16.mxu0 0
      %5205 = vmatpush1.bf16.msra.mxu0 0
      %5206 = vmatprep.subr.bf16.mxu0 0
      %5207 = vmatpush1.bf16.msra.mxu0 0
      %5208 = vmatprep.subr.bf16.mxu0 0
      %5209 = vmatpush1.bf16.msra.mxu0 0
      %5210 = vmatprep.subr.bf16.mxu0 0
      %5211 = vmatpush1.bf16.msra.mxu0 0
      %5212 = vmatprep.subr.bf16.mxu0 0
      %5213 = vmatpush1.bf16.msra.mxu0 0
      %5214 = vmatprep.subr.bf16.mxu0 0
      %5215 = vmatpush1.bf16.msra.mxu0 0
      %5216 = vmatprep.subr.bf16.mxu0 0
      %5217 = vmatpush1.bf16.msra.mxu0 0
      %5218 = vmatprep.subr.bf16.mxu0 0
      %5219 = vmatpush1.bf16.msra.mxu0 %v5019
      %5220 = vmatprep.subr.bf16.mxu0 0
      %5221 = vmatpush2.bf16.msra.mxu0 0
      %5222 = vmatprep.subr.bf16.mxu0 0
      %5223 = vmatpush2.bf16.msra.mxu0 0
      %5224 = vmatprep.subr.bf16.mxu0 0
      %5225 = vmatpush2.bf16.msra.mxu0 0
      %5226 = vmatprep.subr.bf16.mxu0 0
      %5227 = vmatpush2.bf16.msra.mxu0 0
      %5228 = vmatprep.subr.bf16.mxu0 0
      %5229 = vmatpush2.bf16.msra.mxu0 0
      %5230 = vmatprep.subr.bf16.mxu0 0
      %5231 = vmatpush2.bf16.msra.mxu0 0
      %5232 = vmatprep.subr.bf16.mxu0 0
      %5233 = vmatpush2.bf16.msra.mxu0 0
      %5234 = vmatprep.subr.bf16.mxu0 0
      %5235 = vmatpush2.bf16.msra.mxu0 0
      %5236 = vmatprep.mubr.bf16.mxu0 0
      %5237 = vmatmul.mubr.bf16.gmra.mxu0 %v5199
      %v5238 = vpop.f32.mrf.mxu0
      %v5239 = vadd.f32 0.0, %v5238
      %v5240 = vpop.f32.mrf.mxu0
      %v5241 = vpop.f32.mrf.mxu0
      %v5242 = vadd.f32 0.0, %v5241
      %v5243 = vpop.f32.mrf.mxu0
      %5244 = vmatprep.mubr.bf16.mxu0 0
      %5245 = vmatmul.mubr.bf16.gmra.mxu0 %v5202
      %v5246 = vpop.f32.mrf.mxu0
      %v5247 = vadd.f32 0.0, %v5246
      %v5248 = vpop.f32.mrf.mxu0
      %v5249 = vpop.f32.mrf.mxu0
      %v5250 = vadd.f32 0.0, %v5249
      %v5251 = vpop.f32.mrf.mxu0
      %5252 = vdwg.mxu0
      %5253 = vrot.lane.b32.xlu0 %v3890, 64
      %v5254 = vpop.permute.xlu0 %5253
      %5255 = vrot.lane.b32.xlu0 %v3892, 64
      %v5256 = vpop.permute.xlu0 %5255
      %v5258 = vsel %vm1555, %v5254, 0
      %v5261 = vsel %vm1555, %v5256, 0
      %5263 = vmatprep.subr.bf16.mxu0 0
      %5264 = vmatpush1.bf16.msra.mxu0 0
      %5265 = vmatprep.subr.bf16.mxu0 0
      %5266 = vmatpush1.bf16.msra.mxu0 0
      %5267 = vmatprep.subr.bf16.mxu0 0
      %5268 = vmatpush1.bf16.msra.mxu0 0
      %5269 = vmatprep.subr.bf16.mxu0 0
      %5270 = vmatpush1.bf16.msra.mxu0 0
      %5271 = vmatprep.subr.bf16.mxu0 0
      %5272 = vmatpush1.bf16.msra.mxu0 0
      %5273 = vmatprep.subr.bf16.mxu0 0
      %5274 = vmatpush1.bf16.msra.mxu0 0
      %5275 = vmatprep.subr.bf16.mxu0 0
      %5276 = vmatpush1.bf16.msra.mxu0 0
      %5277 = vmatprep.subr.bf16.mxu0 0
      %5278 = vmatpush1.bf16.msra.mxu0 %v5019
      %5279 = vmatprep.subr.bf16.mxu0 0
      %5280 = vmatpush2.bf16.msra.mxu0 0
      %5281 = vmatprep.subr.bf16.mxu0 0
      %5282 = vmatpush2.bf16.msra.mxu0 0
      %5283 = vmatprep.subr.bf16.mxu0 0
      %5284 = vmatpush2.bf16.msra.mxu0 0
      %5285 = vmatprep.subr.bf16.mxu0 0
      %5286 = vmatpush2.bf16.msra.mxu0 0
      %5287 = vmatprep.subr.bf16.mxu0 0
      %5288 = vmatpush2.bf16.msra.mxu0 0
      %5289 = vmatprep.subr.bf16.mxu0 0
      %5290 = vmatpush2.bf16.msra.mxu0 0
      %5291 = vmatprep.subr.bf16.mxu0 0
      %5292 = vmatpush2.bf16.msra.mxu0 0
      %5293 = vmatprep.subr.bf16.mxu0 0
      %5294 = vmatpush2.bf16.msra.mxu0 0
      %5295 = vmatprep.mubr.bf16.mxu0 0
      %5296 = vmatmul.mubr.bf16.gmra.mxu0 %v5258
      %v5297 = vpop.f32.mrf.mxu0
      %v5298 = vadd.f32 0.0, %v5297
      %v5299 = vpop.f32.mrf.mxu0
      %v5300 = vpop.f32.mrf.mxu0
      %v5301 = vadd.f32 0.0, %v5300
      %v5302 = vpop.f32.mrf.mxu0
      %5303 = vmatprep.mubr.bf16.mxu0 0
      %5304 = vmatmul.mubr.bf16.gmra.mxu0 %v5261
      %v5305 = vpop.f32.mrf.mxu0
      %v5306 = vadd.f32 0.0, %v5305
      %v5307 = vpop.f32.mrf.mxu0
      %v5308 = vpop.f32.mrf.mxu0
      %v5309 = vadd.f32 0.0, %v5308
      %v5310 = vpop.f32.mrf.mxu0
      %5311 = vdwg.mxu0
      %5312 = vrot.lane.b32.xlu0 %v3890, 48
      %v5313 = vpop.permute.xlu0 %5312
      %5314 = vrot.lane.b32.xlu0 %v3892, 48
      %v5315 = vpop.permute.xlu0 %5314
      %v5317 = vsel %vm1555, %v5313, 0
      %v5320 = vsel %vm1555, %v5315, 0
      %5322 = vmatprep.subr.bf16.mxu0 0
      %5323 = vmatpush1.bf16.msra.mxu0 0
      %5324 = vmatprep.subr.bf16.mxu0 0
      %5325 = vmatpush1.bf16.msra.mxu0 0
      %5326 = vmatprep.subr.bf16.mxu0 0
      %5327 = vmatpush1.bf16.msra.mxu0 0
      %5328 = vmatprep.subr.bf16.mxu0 0
      %5329 = vmatpush1.bf16.msra.mxu0 0
      %5330 = vmatprep.subr.bf16.mxu0 0
      %5331 = vmatpush1.bf16.msra.mxu0 0
      %5332 = vmatprep.subr.bf16.mxu0 0
      %5333 = vmatpush1.bf16.msra.mxu0 0
      %5334 = vmatprep.subr.bf16.mxu0 0
      %5335 = vmatpush1.bf16.msra.mxu0 0
      %5336 = vmatprep.subr.bf16.mxu0 0
      %5337 = vmatpush1.bf16.msra.mxu0 %v5019
      %5338 = vmatprep.subr.bf16.mxu0 0
      %5339 = vmatpush2.bf16.msra.mxu0 0
      %5340 = vmatprep.subr.bf16.mxu0 0
      %5341 = vmatpush2.bf16.msra.mxu0 0
      %5342 = vmatprep.subr.bf16.mxu0 0
      %5343 = vmatpush2.bf16.msra.mxu0 0
      %5344 = vmatprep.subr.bf16.mxu0 0
      %5345 = vmatpush2.bf16.msra.mxu0 0
      %5346 = vmatprep.subr.bf16.mxu0 0
      %5347 = vmatpush2.bf16.msra.mxu0 0
      %5348 = vmatprep.subr.bf16.mxu0 0
      %5349 = vmatpush2.bf16.msra.mxu0 0
      %5350 = vmatprep.subr.bf16.mxu0 0
      %5351 = vmatpush2.bf16.msra.mxu0 0
      %5352 = vmatprep.subr.bf16.mxu0 0
      %5353 = vmatpush2.bf16.msra.mxu0 0
      %5354 = vmatprep.mubr.bf16.mxu0 0
      %5355 = vmatmul.mubr.bf16.gmra.mxu0 %v5317
      %v5356 = vpop.f32.mrf.mxu0
      %v5357 = vadd.f32 0.0, %v5356
      %v5358 = vpop.f32.mrf.mxu0
      %v5359 = vpop.f32.mrf.mxu0
      %v5360 = vadd.f32 0.0, %v5359
      %v5361 = vpop.f32.mrf.mxu0
      %5362 = vmatprep.mubr.bf16.mxu0 0
      %5363 = vmatmul.mubr.bf16.gmra.mxu0 %v5320
      %v5364 = vpop.f32.mrf.mxu0
      %v5365 = vadd.f32 0.0, %v5364
      %v5366 = vpop.f32.mrf.mxu0
      %v5367 = vpop.f32.mrf.mxu0
      %v5368 = vadd.f32 0.0, %v5367
      %v5369 = vpop.f32.mrf.mxu0
      %5370 = vdwg.mxu0
      %5371 = vrot.lane.b32.xlu0 %v3890, 32
      %v5372 = vpop.permute.xlu0 %5371
      %5373 = vrot.lane.b32.xlu0 %v3892, 32
      %v5374 = vpop.permute.xlu0 %5373
      %v5376 = vsel %vm1555, %v5372, 0
      %v5379 = vsel %vm1555, %v5374, 0
      %5381 = vmatprep.subr.bf16.mxu0 0
      %5382 = vmatpush1.bf16.msra.mxu0 0
      %5383 = vmatprep.subr.bf16.mxu0 0
      %5384 = vmatpush1.bf16.msra.mxu0 0
      %5385 = vmatprep.subr.bf16.mxu0 0
      %5386 = vmatpush1.bf16.msra.mxu0 0
      %5387 = vmatprep.subr.bf16.mxu0 0
      %5388 = vmatpush1.bf16.msra.mxu0 0
      %5389 = vmatprep.subr.bf16.mxu0 0
      %5390 = vmatpush1.bf16.msra.mxu0 0
      %5391 = vmatprep.subr.bf16.mxu0 0
      %5392 = vmatpush1.bf16.msra.mxu0 0
      %5393 = vmatprep.subr.bf16.mxu0 0
      %5394 = vmatpush1.bf16.msra.mxu0 0
      %5395 = vmatprep.subr.bf16.mxu0 0
      %5396 = vmatpush1.bf16.msra.mxu0 %v5019
      %5397 = vmatprep.subr.bf16.mxu0 0
      %5398 = vmatpush2.bf16.msra.mxu0 0
      %5399 = vmatprep.subr.bf16.mxu0 0
      %5400 = vmatpush2.bf16.msra.mxu0 0
      %5401 = vmatprep.subr.bf16.mxu0 0
      %5402 = vmatpush2.bf16.msra.mxu0 0
      %5403 = vmatprep.subr.bf16.mxu0 0
      %5404 = vmatpush2.bf16.msra.mxu0 0
      %5405 = vmatprep.subr.bf16.mxu0 0
      %5406 = vmatpush2.bf16.msra.mxu0 0
      %5407 = vmatprep.subr.bf16.mxu0 0
      %5408 = vmatpush2.bf16.msra.mxu0 0
      %5409 = vmatprep.subr.bf16.mxu0 0
      %5410 = vmatpush2.bf16.msra.mxu0 0
      %5411 = vmatprep.subr.bf16.mxu0 0
      %5412 = vmatpush2.bf16.msra.mxu0 0
      %5413 = vmatprep.mubr.bf16.mxu0 0
      %5414 = vmatmul.mubr.bf16.gmra.mxu0 %v5376
      %v5415 = vpop.f32.mrf.mxu0
      %v5416 = vadd.f32 0.0, %v5415
      %v5417 = vpop.f32.mrf.mxu0
      %v5418 = vpop.f32.mrf.mxu0
      %v5419 = vadd.f32 0.0, %v5418
      %v5420 = vpop.f32.mrf.mxu0
      %5421 = vmatprep.mubr.bf16.mxu0 0
      %5422 = vmatmul.mubr.bf16.gmra.mxu0 %v5379
      %v5423 = vpop.f32.mrf.mxu0
      %v5424 = vadd.f32 0.0, %v5423
      %v5425 = vpop.f32.mrf.mxu0
      %v5426 = vpop.f32.mrf.mxu0
      %v5427 = vadd.f32 0.0, %v5426
      %v5428 = vpop.f32.mrf.mxu0
      %5429 = vdwg.mxu0
      %5430 = vrot.lane.b32.xlu0 %v3890, 16
      %v5431 = vpop.permute.xlu0 %5430
      %5432 = vrot.lane.b32.xlu0 %v3892, 16
      %v5433 = vpop.permute.xlu0 %5432
      %v5435 = vsel %vm1555, %v5431, 0
      %v5438 = vsel %vm1555, %v5433, 0
      %5440 = vmatprep.subr.bf16.mxu0 0
      %5441 = vmatpush1.bf16.msra.mxu0 0
      %5442 = vmatprep.subr.bf16.mxu0 0
      %5443 = vmatpush1.bf16.msra.mxu0 0
      %5444 = vmatprep.subr.bf16.mxu0 0
      %5445 = vmatpush1.bf16.msra.mxu0 0
      %5446 = vmatprep.subr.bf16.mxu0 0
      %5447 = vmatpush1.bf16.msra.mxu0 0
      %5448 = vmatprep.subr.bf16.mxu0 0
      %5449 = vmatpush1.bf16.msra.mxu0 0
      %5450 = vmatprep.subr.bf16.mxu0 0
      %5451 = vmatpush1.bf16.msra.mxu0 0
      %5452 = vmatprep.subr.bf16.mxu0 0
      %5453 = vmatpush1.bf16.msra.mxu0 0
      %5454 = vmatprep.subr.bf16.mxu0 0
      %5455 = vmatpush1.bf16.msra.mxu0 %v5019
      %5456 = vmatprep.subr.bf16.mxu0 0
      %5457 = vmatpush2.bf16.msra.mxu0 0
      %5458 = vmatprep.subr.bf16.mxu0 0
      %5459 = vmatpush2.bf16.msra.mxu0 0
      %5460 = vmatprep.subr.bf16.mxu0 0
      %5461 = vmatpush2.bf16.msra.mxu0 0
      %5462 = vmatprep.subr.bf16.mxu0 0
      %5463 = vmatpush2.bf16.msra.mxu0 0
      %5464 = vmatprep.subr.bf16.mxu0 0
      %5465 = vmatpush2.bf16.msra.mxu0 0
      %5466 = vmatprep.subr.bf16.mxu0 0
      %5467 = vmatpush2.bf16.msra.mxu0 0
      %5468 = vmatprep.subr.bf16.mxu0 0
      %5469 = vmatpush2.bf16.msra.mxu0 0
      %5470 = vmatprep.subr.bf16.mxu0 0
      %5471 = vmatpush2.bf16.msra.mxu0 0
      %5472 = vmatprep.mubr.bf16.mxu0 0
      %5473 = vmatmul.mubr.bf16.gmra.mxu0 %v5435
      %v5474 = vpop.f32.mrf.mxu0
      %v5475 = vadd.f32 0.0, %v5474
      %v5476 = vpop.f32.mrf.mxu0
      %v5477 = vpop.f32.mrf.mxu0
      %v5478 = vadd.f32 0.0, %v5477
      %v5479 = vpop.f32.mrf.mxu0
      %5480 = vmatprep.mubr.bf16.mxu0 0
      %5481 = vmatmul.mubr.bf16.gmra.mxu0 %v5438
      %v5482 = vpop.f32.mrf.mxu0
      %v5483 = vadd.f32 0.0, %v5482
      %v5484 = vpop.f32.mrf.mxu0
      %v5485 = vpop.f32.mrf.mxu0
      %v5486 = vadd.f32 0.0, %v5485
      %v5487 = vpop.f32.mrf.mxu0
      %5488 = vdwg.mxu0
      %v5490 = vsel %vm1555, %v3891, 0
      %v5493 = vsel %vm1555, %v3893, 0
      %5495 = vmatprep.subr.bf16.mxu0 0
      %5496 = vmatpush1.bf16.msra.mxu0 0
      %5497 = vmatprep.subr.bf16.mxu0 0
      %5498 = vmatpush1.bf16.msra.mxu0 0
      %5499 = vmatprep.subr.bf16.mxu0 0
      %5500 = vmatpush1.bf16.msra.mxu0 0
      %5501 = vmatprep.subr.bf16.mxu0 0
      %5502 = vmatpush1.bf16.msra.mxu0 0
      %5503 = vmatprep.subr.bf16.mxu0 0
      %5504 = vmatpush1.bf16.msra.mxu0 0
      %5505 = vmatprep.subr.bf16.mxu0 0
      %5506 = vmatpush1.bf16.msra.mxu0 0
      %5507 = vmatprep.subr.bf16.mxu0 0
      %5508 = vmatpush1.bf16.msra.mxu0 0
      %5509 = vmatprep.subr.bf16.mxu0 0
      %5510 = vmatpush1.bf16.msra.mxu0 %v5019
      %5511 = vmatprep.subr.bf16.mxu0 0
      %5512 = vmatpush2.bf16.msra.mxu0 0
      %5513 = vmatprep.subr.bf16.mxu0 0
      %5514 = vmatpush2.bf16.msra.mxu0 0
      %5515 = vmatprep.subr.bf16.mxu0 0
      %5516 = vmatpush2.bf16.msra.mxu0 0
      %5517 = vmatprep.subr.bf16.mxu0 0
      %5518 = vmatpush2.bf16.msra.mxu0 0
      %5519 = vmatprep.subr.bf16.mxu0 0
      %5520 = vmatpush2.bf16.msra.mxu0 0
      %5521 = vmatprep.subr.bf16.mxu0 0
      %5522 = vmatpush2.bf16.msra.mxu0 0
      %5523 = vmatprep.subr.bf16.mxu0 0
      %5524 = vmatpush2.bf16.msra.mxu0 0
      %5525 = vmatprep.subr.bf16.mxu0 0
      %5526 = vmatpush2.bf16.msra.mxu0 0
      %5527 = vmatprep.mubr.bf16.mxu0 0
      %5528 = vmatmul.mubr.bf16.gmra.mxu0 %v5490
      %v5529 = vpop.f32.mrf.mxu0
      %v5530 = vadd.f32 0.0, %v5529
      %v5531 = vpop.f32.mrf.mxu0
      %v5532 = vpop.f32.mrf.mxu0
      %v5533 = vadd.f32 0.0, %v5532
      %v5534 = vpop.f32.mrf.mxu0
      %5535 = vmatprep.mubr.bf16.mxu0 0
      %5536 = vmatmul.mubr.bf16.gmra.mxu0 %v5493
      %v5537 = vpop.f32.mrf.mxu0
      %v5538 = vadd.f32 0.0, %v5537
      %v5539 = vpop.f32.mrf.mxu0
      %v5540 = vpop.f32.mrf.mxu0
      %v5541 = vadd.f32 0.0, %v5540
      %v5542 = vpop.f32.mrf.mxu0
      %5543 = vdwg.mxu0
      %5544 = vrot.lane.b32.xlu0 %v3891, 112
      %v5545 = vpop.permute.xlu0 %5544
      %5546 = vrot.lane.b32.xlu0 %v3893, 112
      %v5547 = vpop.permute.xlu0 %5546
      %v5549 = vsel %vm1555, %v5545, 0
      %v5552 = vsel %vm1555, %v5547, 0
      %5554 = vmatprep.subr.bf16.mxu0 0
      %5555 = vmatpush1.bf16.msra.mxu0 0
      %5556 = vmatprep.subr.bf16.mxu0 0
      %5557 = vmatpush1.bf16.msra.mxu0 0
      %5558 = vmatprep.subr.bf16.mxu0 0
      %5559 = vmatpush1.bf16.msra.mxu0 0
      %5560 = vmatprep.subr.bf16.mxu0 0
      %5561 = vmatpush1.bf16.msra.mxu0 0
      %5562 = vmatprep.subr.bf16.mxu0 0
      %5563 = vmatpush1.bf16.msra.mxu0 0
      %5564 = vmatprep.subr.bf16.mxu0 0
      %5565 = vmatpush1.bf16.msra.mxu0 0
      %5566 = vmatprep.subr.bf16.mxu0 0
      %5567 = vmatpush1.bf16.msra.mxu0 0
      %5568 = vmatprep.subr.bf16.mxu0 0
      %5569 = vmatpush1.bf16.msra.mxu0 %v5019
      %5570 = vmatprep.subr.bf16.mxu0 0
      %5571 = vmatpush2.bf16.msra.mxu0 0
      %5572 = vmatprep.subr.bf16.mxu0 0
      %5573 = vmatpush2.bf16.msra.mxu0 0
      %5574 = vmatprep.subr.bf16.mxu0 0
      %5575 = vmatpush2.bf16.msra.mxu0 0
      %5576 = vmatprep.subr.bf16.mxu0 0
      %5577 = vmatpush2.bf16.msra.mxu0 0
      %5578 = vmatprep.subr.bf16.mxu0 0
      %5579 = vmatpush2.bf16.msra.mxu0 0
      %5580 = vmatprep.subr.bf16.mxu0 0
      %5581 = vmatpush2.bf16.msra.mxu0 0
      %5582 = vmatprep.subr.bf16.mxu0 0
      %5583 = vmatpush2.bf16.msra.mxu0 0
      %5584 = vmatprep.subr.bf16.mxu0 0
      %5585 = vmatpush2.bf16.msra.mxu0 0
      %5586 = vmatprep.mubr.bf16.mxu0 0
      %5587 = vmatmul.mubr.bf16.gmra.mxu0 %v5549
      %v5588 = vpop.f32.mrf.mxu0
      %v5589 = vadd.f32 0.0, %v5588
      %v5590 = vpop.f32.mrf.mxu0
      %v5591 = vpop.f32.mrf.mxu0
      %v5592 = vadd.f32 0.0, %v5591
      %v5593 = vpop.f32.mrf.mxu0
      %5594 = vmatprep.mubr.bf16.mxu0 0
      %5595 = vmatmul.mubr.bf16.gmra.mxu0 %v5552
      %v5596 = vpop.f32.mrf.mxu0
      %v5597 = vadd.f32 0.0, %v5596
      %v5598 = vpop.f32.mrf.mxu0
      %v5599 = vpop.f32.mrf.mxu0
      %v5600 = vadd.f32 0.0, %v5599
      %v5601 = vpop.f32.mrf.mxu0
      %5602 = vdwg.mxu0
      %5603 = vrot.lane.b32.xlu0 %v3891, 96
      %v5604 = vpop.permute.xlu0 %5603
      %5605 = vrot.lane.b32.xlu0 %v3893, 96
      %v5606 = vpop.permute.xlu0 %5605
      %v5608 = vsel %vm1555, %v5604, 0
      %v5611 = vsel %vm1555, %v5606, 0
      %5613 = vmatprep.subr.bf16.mxu0 0
      %5614 = vmatpush1.bf16.msra.mxu0 0
      %5615 = vmatprep.subr.bf16.mxu0 0
      %5616 = vmatpush1.bf16.msra.mxu0 0
      %5617 = vmatprep.subr.bf16.mxu0 0
      %5618 = vmatpush1.bf16.msra.mxu0 0
      %5619 = vmatprep.subr.bf16.mxu0 0
      %5620 = vmatpush1.bf16.msra.mxu0 0
      %5621 = vmatprep.subr.bf16.mxu0 0
      %5622 = vmatpush1.bf16.msra.mxu0 0
      %5623 = vmatprep.subr.bf16.mxu0 0
      %5624 = vmatpush1.bf16.msra.mxu0 0
      %5625 = vmatprep.subr.bf16.mxu0 0
      %5626 = vmatpush1.bf16.msra.mxu0 0
      %5627 = vmatprep.subr.bf16.mxu0 0
      %5628 = vmatpush1.bf16.msra.mxu0 %v5019
      %5629 = vmatprep.subr.bf16.mxu0 0
      %5630 = vmatpush2.bf16.msra.mxu0 0
      %5631 = vmatprep.subr.bf16.mxu0 0
      %5632 = vmatpush2.bf16.msra.mxu0 0
      %5633 = vmatprep.subr.bf16.mxu0 0
      %5634 = vmatpush2.bf16.msra.mxu0 0
      %5635 = vmatprep.subr.bf16.mxu0 0
      %5636 = vmatpush2.bf16.msra.mxu0 0
      %5637 = vmatprep.subr.bf16.mxu0 0
      %5638 = vmatpush2.bf16.msra.mxu0 0
      %5639 = vmatprep.subr.bf16.mxu0 0
      %5640 = vmatpush2.bf16.msra.mxu0 0
      %5641 = vmatprep.subr.bf16.mxu0 0
      %5642 = vmatpush2.bf16.msra.mxu0 0
      %5643 = vmatprep.subr.bf16.mxu0 0
      %5644 = vmatpush2.bf16.msra.mxu0 0
      %5645 = vmatprep.mubr.bf16.mxu0 0
      %5646 = vmatmul.mubr.bf16.gmra.mxu0 %v5608
      %v5647 = vpop.f32.mrf.mxu0
      %v5648 = vadd.f32 0.0, %v5647
      %v5649 = vpop.f32.mrf.mxu0
      %v5650 = vpop.f32.mrf.mxu0
      %v5651 = vadd.f32 0.0, %v5650
      %v5652 = vpop.f32.mrf.mxu0
      %5653 = vmatprep.mubr.bf16.mxu0 0
      %5654 = vmatmul.mubr.bf16.gmra.mxu0 %v5611
      %v5655 = vpop.f32.mrf.mxu0
      %v5656 = vadd.f32 0.0, %v5655
      %v5657 = vpop.f32.mrf.mxu0
      %v5658 = vpop.f32.mrf.mxu0
      %v5659 = vadd.f32 0.0, %v5658
      %v5660 = vpop.f32.mrf.mxu0
      %5661 = vdwg.mxu0
      %5662 = vrot.lane.b32.xlu0 %v3891, 80
      %v5663 = vpop.permute.xlu0 %5662
      %5664 = vrot.lane.b32.xlu0 %v3893, 80
      %v5665 = vpop.permute.xlu0 %5664
      %v5667 = vsel %vm1555, %v5663, 0
      %v5670 = vsel %vm1555, %v5665, 0
      %5672 = vmatprep.subr.bf16.mxu0 0
      %5673 = vmatpush1.bf16.msra.mxu0 0
      %5674 = vmatprep.subr.bf16.mxu0 0
      %5675 = vmatpush1.bf16.msra.mxu0 0
      %5676 = vmatprep.subr.bf16.mxu0 0
      %5677 = vmatpush1.bf16.msra.mxu0 0
      %5678 = vmatprep.subr.bf16.mxu0 0
      %5679 = vmatpush1.bf16.msra.mxu0 0
      %5680 = vmatprep.subr.bf16.mxu0 0
      %5681 = vmatpush1.bf16.msra.mxu0 0
      %5682 = vmatprep.subr.bf16.mxu0 0
      %5683 = vmatpush1.bf16.msra.mxu0 0
      %5684 = vmatprep.subr.bf16.mxu0 0
      %5685 = vmatpush1.bf16.msra.mxu0 0
      %5686 = vmatprep.subr.bf16.mxu0 0
      %5687 = vmatpush1.bf16.msra.mxu0 %v5019
      %5688 = vmatprep.subr.bf16.mxu0 0
      %5689 = vmatpush2.bf16.msra.mxu0 0
      %5690 = vmatprep.subr.bf16.mxu0 0
      %5691 = vmatpush2.bf16.msra.mxu0 0
      %5692 = vmatprep.subr.bf16.mxu0 0
      %5693 = vmatpush2.bf16.msra.mxu0 0
      %5694 = vmatprep.subr.bf16.mxu0 0
      %5695 = vmatpush2.bf16.msra.mxu0 0
      %5696 = vmatprep.subr.bf16.mxu0 0
      %5697 = vmatpush2.bf16.msra.mxu0 0
      %5698 = vmatprep.subr.bf16.mxu0 0
      %5699 = vmatpush2.bf16.msra.mxu0 0
      %5700 = vmatprep.subr.bf16.mxu0 0
      %5701 = vmatpush2.bf16.msra.mxu0 0
      %5702 = vmatprep.subr.bf16.mxu0 0
      %5703 = vmatpush2.bf16.msra.mxu0 0
      %5704 = vmatprep.mubr.bf16.mxu0 0
      %5705 = vmatmul.mubr.bf16.gmra.mxu0 %v5667
      %v5706 = vpop.f32.mrf.mxu0
      %v5707 = vadd.f32 0.0, %v5706
      %v5708 = vpop.f32.mrf.mxu0
      %v5709 = vpop.f32.mrf.mxu0
      %v5710 = vadd.f32 0.0, %v5709
      %v5711 = vpop.f32.mrf.mxu0
      %5712 = vmatprep.mubr.bf16.mxu0 0
      %5713 = vmatmul.mubr.bf16.gmra.mxu0 %v5670
      %v5714 = vpop.f32.mrf.mxu0
      %v5715 = vadd.f32 0.0, %v5714
      %v5716 = vpop.f32.mrf.mxu0
      %v5717 = vpop.f32.mrf.mxu0
      %v5718 = vadd.f32 0.0, %v5717
      %v5719 = vpop.f32.mrf.mxu0
      %5720 = vdwg.mxu0
      %5721 = vrot.lane.b32.xlu0 %v3891, 64
      %v5722 = vpop.permute.xlu0 %5721
      %5723 = vrot.lane.b32.xlu0 %v3893, 64
      %v5724 = vpop.permute.xlu0 %5723
      %v5726 = vsel %vm1555, %v5722, 0
      %v5729 = vsel %vm1555, %v5724, 0
      %5731 = vmatprep.subr.bf16.mxu0 0
      %5732 = vmatpush1.bf16.msra.mxu0 0
      %5733 = vmatprep.subr.bf16.mxu0 0
      %5734 = vmatpush1.bf16.msra.mxu0 0
      %5735 = vmatprep.subr.bf16.mxu0 0
      %5736 = vmatpush1.bf16.msra.mxu0 0
      %5737 = vmatprep.subr.bf16.mxu0 0
      %5738 = vmatpush1.bf16.msra.mxu0 0
      %5739 = vmatprep.subr.bf16.mxu0 0
      %5740 = vmatpush1.bf16.msra.mxu0 0
      %5741 = vmatprep.subr.bf16.mxu0 0
      %5742 = vmatpush1.bf16.msra.mxu0 0
      %5743 = vmatprep.subr.bf16.mxu0 0
      %5744 = vmatpush1.bf16.msra.mxu0 0
      %5745 = vmatprep.subr.bf16.mxu0 0
      %5746 = vmatpush1.bf16.msra.mxu0 %v5019
      %5747 = vmatprep.subr.bf16.mxu0 0
      %5748 = vmatpush2.bf16.msra.mxu0 0
      %5749 = vmatprep.subr.bf16.mxu0 0
      %5750 = vmatpush2.bf16.msra.mxu0 0
      %5751 = vmatprep.subr.bf16.mxu0 0
      %5752 = vmatpush2.bf16.msra.mxu0 0
      %5753 = vmatprep.subr.bf16.mxu0 0
      %5754 = vmatpush2.bf16.msra.mxu0 0
      %5755 = vmatprep.subr.bf16.mxu0 0
      %5756 = vmatpush2.bf16.msra.mxu0 0
      %5757 = vmatprep.subr.bf16.mxu0 0
      %5758 = vmatpush2.bf16.msra.mxu0 0
      %5759 = vmatprep.subr.bf16.mxu0 0
      %5760 = vmatpush2.bf16.msra.mxu0 0
      %5761 = vmatprep.subr.bf16.mxu0 0
      %5762 = vmatpush2.bf16.msra.mxu0 0
      %5763 = vmatprep.mubr.bf16.mxu0 0
      %5764 = vmatmul.mubr.bf16.gmra.mxu0 %v5726
      %v5765 = vpop.f32.mrf.mxu0
      %v5766 = vadd.f32 0.0, %v5765
      %v5767 = vpop.f32.mrf.mxu0
      %v5768 = vpop.f32.mrf.mxu0
      %v5769 = vadd.f32 0.0, %v5768
      %v5770 = vpop.f32.mrf.mxu0
      %5771 = vmatprep.mubr.bf16.mxu0 0
      %5772 = vmatmul.mubr.bf16.gmra.mxu0 %v5729
      %v5773 = vpop.f32.mrf.mxu0
      %v5774 = vadd.f32 0.0, %v5773
      %v5775 = vpop.f32.mrf.mxu0
      %v5776 = vpop.f32.mrf.mxu0
      %v5777 = vadd.f32 0.0, %v5776
      %v5778 = vpop.f32.mrf.mxu0
      %5779 = vdwg.mxu0
      %5780 = vrot.lane.b32.xlu0 %v3891, 48
      %v5781 = vpop.permute.xlu0 %5780
      %5782 = vrot.lane.b32.xlu0 %v3893, 48
      %v5783 = vpop.permute.xlu0 %5782
      %v5785 = vsel %vm1555, %v5781, 0
      %v5788 = vsel %vm1555, %v5783, 0
      %5790 = vmatprep.subr.bf16.mxu0 0
      %5791 = vmatpush1.bf16.msra.mxu0 0
      %5792 = vmatprep.subr.bf16.mxu0 0
      %5793 = vmatpush1.bf16.msra.mxu0 0
      %5794 = vmatprep.subr.bf16.mxu0 0
      %5795 = vmatpush1.bf16.msra.mxu0 0
      %5796 = vmatprep.subr.bf16.mxu0 0
      %5797 = vmatpush1.bf16.msra.mxu0 0
      %5798 = vmatprep.subr.bf16.mxu0 0
      %5799 = vmatpush1.bf16.msra.mxu0 0
      %5800 = vmatprep.subr.bf16.mxu0 0
      %5801 = vmatpush1.bf16.msra.mxu0 0
      %5802 = vmatprep.subr.bf16.mxu0 0
      %5803 = vmatpush1.bf16.msra.mxu0 0
      %5804 = vmatprep.subr.bf16.mxu0 0
      %5805 = vmatpush1.bf16.msra.mxu0 %v5019
      %5806 = vmatprep.subr.bf16.mxu0 0
      %5807 = vmatpush2.bf16.msra.mxu0 0
      %5808 = vmatprep.subr.bf16.mxu0 0
      %5809 = vmatpush2.bf16.msra.mxu0 0
      %5810 = vmatprep.subr.bf16.mxu0 0
      %5811 = vmatpush2.bf16.msra.mxu0 0
      %5812 = vmatprep.subr.bf16.mxu0 0
      %5813 = vmatpush2.bf16.msra.mxu0 0
      %5814 = vmatprep.subr.bf16.mxu0 0
      %5815 = vmatpush2.bf16.msra.mxu0 0
      %5816 = vmatprep.subr.bf16.mxu0 0
      %5817 = vmatpush2.bf16.msra.mxu0 0
      %5818 = vmatprep.subr.bf16.mxu0 0
      %5819 = vmatpush2.bf16.msra.mxu0 0
      %5820 = vmatprep.subr.bf16.mxu0 0
      %5821 = vmatpush2.bf16.msra.mxu0 0
      %5822 = vmatprep.mubr.bf16.mxu0 0
      %5823 = vmatmul.mubr.bf16.gmra.mxu0 %v5785
      %v5824 = vpop.f32.mrf.mxu0
      %v5825 = vadd.f32 0.0, %v5824
      %v5826 = vpop.f32.mrf.mxu0
      %v5827 = vpop.f32.mrf.mxu0
      %v5828 = vadd.f32 0.0, %v5827
      %v5829 = vpop.f32.mrf.mxu0
      %5830 = vmatprep.mubr.bf16.mxu0 0
      %5831 = vmatmul.mubr.bf16.gmra.mxu0 %v5788
      %v5832 = vpop.f32.mrf.mxu0
      %v5833 = vadd.f32 0.0, %v5832
      %v5834 = vpop.f32.mrf.mxu0
      %v5835 = vpop.f32.mrf.mxu0
      %v5836 = vadd.f32 0.0, %v5835
      %v5837 = vpop.f32.mrf.mxu0
      %5838 = vdwg.mxu0
      %5839 = vrot.lane.b32.xlu0 %v3891, 32
      %v5840 = vpop.permute.xlu0 %5839
      %5841 = vrot.lane.b32.xlu0 %v3893, 32
      %v5842 = vpop.permute.xlu0 %5841
      %v5844 = vsel %vm1555, %v5840, 0
      %v5847 = vsel %vm1555, %v5842, 0
      %5849 = vmatprep.subr.bf16.mxu0 0
      %5850 = vmatpush1.bf16.msra.mxu0 0
      %5851 = vmatprep.subr.bf16.mxu0 0
      %5852 = vmatpush1.bf16.msra.mxu0 0
      %5853 = vmatprep.subr.bf16.mxu0 0
      %5854 = vmatpush1.bf16.msra.mxu0 0
      %5855 = vmatprep.subr.bf16.mxu0 0
      %5856 = vmatpush1.bf16.msra.mxu0 0
      %5857 = vmatprep.subr.bf16.mxu0 0
      %5858 = vmatpush1.bf16.msra.mxu0 0
      %5859 = vmatprep.subr.bf16.mxu0 0
      %5860 = vmatpush1.bf16.msra.mxu0 0
      %5861 = vmatprep.subr.bf16.mxu0 0
      %5862 = vmatpush1.bf16.msra.mxu0 0
      %5863 = vmatprep.subr.bf16.mxu0 0
      %5864 = vmatpush1.bf16.msra.mxu0 %v5019
      %5865 = vmatprep.subr.bf16.mxu0 0
      %5866 = vmatpush2.bf16.msra.mxu0 0
      %5867 = vmatprep.subr.bf16.mxu0 0
      %5868 = vmatpush2.bf16.msra.mxu0 0
      %5869 = vmatprep.subr.bf16.mxu0 0
      %5870 = vmatpush2.bf16.msra.mxu0 0
      %5871 = vmatprep.subr.bf16.mxu0 0
      %5872 = vmatpush2.bf16.msra.mxu0 0
      %5873 = vmatprep.subr.bf16.mxu0 0
      %5874 = vmatpush2.bf16.msra.mxu0 0
      %5875 = vmatprep.subr.bf16.mxu0 0
      %5876 = vmatpush2.bf16.msra.mxu0 0
      %5877 = vmatprep.subr.bf16.mxu0 0
      %5878 = vmatpush2.bf16.msra.mxu0 0
      %5879 = vmatprep.subr.bf16.mxu0 0
      %5880 = vmatpush2.bf16.msra.mxu0 0
      %5881 = vmatprep.mubr.bf16.mxu0 0
      %5882 = vmatmul.mubr.bf16.gmra.mxu0 %v5844
      %v5883 = vpop.f32.mrf.mxu0
      %v5884 = vadd.f32 0.0, %v5883
      %v5885 = vpop.f32.mrf.mxu0
      %v5886 = vpop.f32.mrf.mxu0
      %v5887 = vadd.f32 0.0, %v5886
      %v5888 = vpop.f32.mrf.mxu0
      %5889 = vmatprep.mubr.bf16.mxu0 0
      %5890 = vmatmul.mubr.bf16.gmra.mxu0 %v5847
      %v5891 = vpop.f32.mrf.mxu0
      %v5892 = vadd.f32 0.0, %v5891
      %v5893 = vpop.f32.mrf.mxu0
      %v5894 = vpop.f32.mrf.mxu0
      %v5895 = vadd.f32 0.0, %v5894
      %v5896 = vpop.f32.mrf.mxu0
      %5897 = vdwg.mxu0
      %5898 = vrot.lane.b32.xlu0 %v3891, 16
      %v5899 = vpop.permute.xlu0 %5898
      %5900 = vrot.lane.b32.xlu0 %v3893, 16
      %v5901 = vpop.permute.xlu0 %5900
      %v5903 = vsel %vm1555, %v5899, 0
      %v5906 = vsel %vm1555, %v5901, 0
      %5908 = vmatprep.subr.bf16.mxu0 0
      %5909 = vmatpush1.bf16.msra.mxu0 0
      %5910 = vmatprep.subr.bf16.mxu0 0
      %5911 = vmatpush1.bf16.msra.mxu0 0
      %5912 = vmatprep.subr.bf16.mxu0 0
      %5913 = vmatpush1.bf16.msra.mxu0 0
      %5914 = vmatprep.subr.bf16.mxu0 0
      %5915 = vmatpush1.bf16.msra.mxu0 0
      %5916 = vmatprep.subr.bf16.mxu0 0
      %5917 = vmatpush1.bf16.msra.mxu0 0
      %5918 = vmatprep.subr.bf16.mxu0 0
      %5919 = vmatpush1.bf16.msra.mxu0 0
      %5920 = vmatprep.subr.bf16.mxu0 0
      %5921 = vmatpush1.bf16.msra.mxu0 0
      %5922 = vmatprep.subr.bf16.mxu0 0
      %5923 = vmatpush1.bf16.msra.mxu0 %v5019
      %5924 = vmatprep.subr.bf16.mxu0 0
      %5925 = vmatpush2.bf16.msra.mxu0 0
      %5926 = vmatprep.subr.bf16.mxu0 0
      %5927 = vmatpush2.bf16.msra.mxu0 0
      %5928 = vmatprep.subr.bf16.mxu0 0
      %5929 = vmatpush2.bf16.msra.mxu0 0
      %5930 = vmatprep.subr.bf16.mxu0 0
      %5931 = vmatpush2.bf16.msra.mxu0 0
      %5932 = vmatprep.subr.bf16.mxu0 0
      %5933 = vmatpush2.bf16.msra.mxu0 0
      %5934 = vmatprep.subr.bf16.mxu0 0
      %5935 = vmatpush2.bf16.msra.mxu0 0
      %5936 = vmatprep.subr.bf16.mxu0 0
      %5937 = vmatpush2.bf16.msra.mxu0 0
      %5938 = vmatprep.subr.bf16.mxu0 0
      %5939 = vmatpush2.bf16.msra.mxu0 0
      %5940 = vmatprep.mubr.bf16.mxu0 0
      %5941 = vmatmul.mubr.bf16.gmra.mxu0 %v5903
      %v5942 = vpop.f32.mrf.mxu0
      %v5943 = vadd.f32 0.0, %v5942
      %v5944 = vpop.f32.mrf.mxu0
      %v5945 = vpop.f32.mrf.mxu0
      %v5946 = vadd.f32 0.0, %v5945
      %v5947 = vpop.f32.mrf.mxu0
      %5948 = vmatprep.mubr.bf16.mxu0 0
      %5949 = vmatmul.mubr.bf16.gmra.mxu0 %v5906
      %v5950 = vpop.f32.mrf.mxu0
      %v5951 = vadd.f32 0.0, %v5950
      %v5952 = vpop.f32.mrf.mxu0
      %v5953 = vpop.f32.mrf.mxu0
      %v5954 = vadd.f32 0.0, %v5953
      %v5955 = vpop.f32.mrf.mxu0
      %5956 = vdwg.mxu0
      %v5957 = vmul.f32 %v5062, 0.516129
      %v5958 = vmul.f32 %v5065, 0.516129
      %v5959 = vmul.f32 %v5070, 0.516129
      %v5960 = vmul.f32 %v5073, 0.516129
      %v5961 = vmul.f32 %v5121, 0.48387095
      %v5962 = vmul.f32 %v5124, 0.48387095
      %v5963 = vmul.f32 %v5129, 0.48387095
      %v5964 = vmul.f32 %v5132, 0.48387095
      %v5965 = vadd.f32 %v5957, %v5961
      %v5966 = vadd.f32 %v5958, %v5962
      %v5967 = vadd.f32 %v5959, %v5963
      %v5968 = vadd.f32 %v5960, %v5964
      %v5969 = vmul.f32 %v5062, 0.032258064
      %v5970 = vmul.f32 %v5065, 0.032258064
      %v5971 = vmul.f32 %v5070, 0.032258064
      %v5972 = vmul.f32 %v5073, 0.032258064
      %v5973 = vmul.f32 %v5121, 0.9677419
      %v5974 = vmul.f32 %v5124, 0.9677419
      %v5975 = vmul.f32 %v5129, 0.9677419
      %v5976 = vmul.f32 %v5132, 0.9677419
      %v5977 = vadd.f32 %v5969, %v5973
      %v5978 = vadd.f32 %v5970, %v5974
      %v5979 = vadd.f32 %v5971, %v5975
      %v5980 = vadd.f32 %v5972, %v5976
      %v5981 = vmul.f32 %v5121, 0.5483871
      %v5982 = vmul.f32 %v5124, 0.5483871
      %v5983 = vmul.f32 %v5129, 0.5483871
      %v5984 = vmul.f32 %v5132, 0.5483871
      %v5985 = vmul.f32 %v5180, 0.4516129
      %v5986 = vmul.f32 %v5183, 0.4516129
      %v5987 = vmul.f32 %v5188, 0.4516129
      %v5988 = vmul.f32 %v5191, 0.4516129
      %v5989 = vadd.f32 %v5981, %v5985
      %v5990 = vadd.f32 %v5982, %v5986
      %v5991 = vadd.f32 %v5983, %v5987
      %v5992 = vadd.f32 %v5984, %v5988
      %v5993 = vmul.f32 %v5121, 0.06451613
      %v5994 = vmul.f32 %v5124, 0.06451613
      %v5995 = vmul.f32 %v5129, 0.06451613
      %v5996 = vmul.f32 %v5132, 0.06451613
      %v5997 = vmul.f32 %v5180, 0.9354839
      %v5998 = vmul.f32 %v5183, 0.9354839
      %v5999 = vmul.f32 %v5188, 0.9354839
      %v6000 = vmul.f32 %v5191, 0.9354839
      %v6001 = vadd.f32 %v5993, %v5997
      %v6002 = vadd.f32 %v5994, %v5998
      %v6003 = vadd.f32 %v5995, %v5999
      %v6004 = vadd.f32 %v5996, %v6000
      %v6005 = vmul.f32 %v5180, 0.58064514
      %v6006 = vmul.f32 %v5183, 0.58064514
      %v6007 = vmul.f32 %v5188, 0.58064514
      %v6008 = vmul.f32 %v5191, 0.58064514
      %v6009 = vmul.f32 %v5239, 0.41935483
      %v6010 = vmul.f32 %v5242, 0.41935483
      %v6011 = vmul.f32 %v5247, 0.41935483
      %v6012 = vmul.f32 %v5250, 0.41935483
      %v6013 = vadd.f32 %v6005, %v6009
      %v6014 = vadd.f32 %v6006, %v6010
      %v6015 = vadd.f32 %v6007, %v6011
      %v6016 = vadd.f32 %v6008, %v6012
      %v6017 = vmul.f32 %v5180, 0.09677419
      %v6018 = vmul.f32 %v5183, 0.09677419
      %v6019 = vmul.f32 %v5188, 0.09677419
      %v6020 = vmul.f32 %v5191, 0.09677419
      %v6021 = vmul.f32 %v5239, 0.9032258
      %v6022 = vmul.f32 %v5242, 0.9032258
      %v6023 = vmul.f32 %v5247, 0.9032258
      %v6024 = vmul.f32 %v5250, 0.9032258
      %v6025 = vadd.f32 %v6017, %v6021
      %v6026 = vadd.f32 %v6018, %v6022
      %v6027 = vadd.f32 %v6019, %v6023
      %v6028 = vadd.f32 %v6020, %v6024
      %v6029 = vmul.f32 %v5239, 0.61290324
      %v6030 = vmul.f32 %v5242, 0.61290324
      %v6031 = vmul.f32 %v5247, 0.61290324
      %v6032 = vmul.f32 %v5250, 0.61290324
      %v6033 = vmul.f32 %v5298, 0.38709676
      %v6034 = vmul.f32 %v5301, 0.38709676
      %v6035 = vmul.f32 %v5306, 0.38709676
      %v6036 = vmul.f32 %v5309, 0.38709676
      %v6037 = vadd.f32 %v6029, %v6033
      %v6038 = vadd.f32 %v6030, %v6034
      %v6039 = vadd.f32 %v6031, %v6035
      %v6040 = vadd.f32 %v6032, %v6036
      %v6041 = vmul.f32 %v5239, 0.12903225
      %v6042 = vmul.f32 %v5242, 0.12903225
      %v6043 = vmul.f32 %v5247, 0.12903225
      %v6044 = vmul.f32 %v5250, 0.12903225
      %v6045 = vmul.f32 %v5298, 0.87096775
      %v6046 = vmul.f32 %v5301, 0.87096775
      %v6047 = vmul.f32 %v5306, 0.87096775
      %v6048 = vmul.f32 %v5309, 0.87096775
      %v6049 = vadd.f32 %v6041, %v6045
      %v6050 = vadd.f32 %v6042, %v6046
      %v6051 = vadd.f32 %v6043, %v6047
      %v6052 = vadd.f32 %v6044, %v6048
      %v6053 = vmul.f32 %v5298, 0.6451613
      %v6054 = vmul.f32 %v5301, 0.6451613
      %v6055 = vmul.f32 %v5306, 0.6451613
      %v6056 = vmul.f32 %v5309, 0.6451613
      %v6057 = vmul.f32 %v5357, 0.3548387
      %v6058 = vmul.f32 %v5360, 0.3548387
      %v6059 = vmul.f32 %v5365, 0.3548387
      %v6060 = vmul.f32 %v5368, 0.3548387
      %v6061 = vadd.f32 %v6053, %v6057
      %v6062 = vadd.f32 %v6054, %v6058
      %v6063 = vadd.f32 %v6055, %v6059
      %v6064 = vadd.f32 %v6056, %v6060
      %v6065 = vmul.f32 %v5298, 0.16129032
      %v6066 = vmul.f32 %v5301, 0.16129032
      %v6067 = vmul.f32 %v5306, 0.16129032
      %v6068 = vmul.f32 %v5309, 0.16129032
      %v6069 = vmul.f32 %v5357, 0.83870965
      %v6070 = vmul.f32 %v5360, 0.83870965
      %v6071 = vmul.f32 %v5365, 0.83870965
      %v6072 = vmul.f32 %v5368, 0.83870965
      %v6073 = vadd.f32 %v6065, %v6069
      %v6074 = vadd.f32 %v6066, %v6070
      %v6075 = vadd.f32 %v6067, %v6071
      %v6076 = vadd.f32 %v6068, %v6072
      %v6077 = vmul.f32 %v5357, 0.67741936
      %v6078 = vmul.f32 %v5360, 0.67741936
      %v6079 = vmul.f32 %v5365, 0.67741936
      %v6080 = vmul.f32 %v5368, 0.67741936
      %v6081 = vmul.f32 %v5416, 0.32258064
      %v6082 = vmul.f32 %v5419, 0.32258064
      %v6083 = vmul.f32 %v5424, 0.32258064
      %v6084 = vmul.f32 %v5427, 0.32258064
      %v6085 = vadd.f32 %v6077, %v6081
      %v6086 = vadd.f32 %v6078, %v6082
      %v6087 = vadd.f32 %v6079, %v6083
      %v6088 = vadd.f32 %v6080, %v6084
      %v6089 = vmul.f32 %v5357, 0.19354838
      %v6090 = vmul.f32 %v5360, 0.19354838
      %v6091 = vmul.f32 %v5365, 0.19354838
      %v6092 = vmul.f32 %v5368, 0.19354838
      %v6093 = vmul.f32 %v5416, 0.8064516
      %v6094 = vmul.f32 %v5419, 0.8064516
      %v6095 = vmul.f32 %v5424, 0.8064516
      %v6096 = vmul.f32 %v5427, 0.8064516
      %v6097 = vadd.f32 %v6089, %v6093
      %v6098 = vadd.f32 %v6090, %v6094
      %v6099 = vadd.f32 %v6091, %v6095
      %v6100 = vadd.f32 %v6092, %v6096
      %v6101 = vmul.f32 %v5416, 0.7096774
      %v6102 = vmul.f32 %v5419, 0.7096774
      %v6103 = vmul.f32 %v5424, 0.7096774
      %v6104 = vmul.f32 %v5427, 0.7096774
      %v6105 = vmul.f32 %v5475, 0.29032257
      %v6106 = vmul.f32 %v5478, 0.29032257
      %v6107 = vmul.f32 %v5483, 0.29032257
      %v6108 = vmul.f32 %v5486, 0.29032257
      %v6109 = vadd.f32 %v6101, %v6105
      %v6110 = vadd.f32 %v6102, %v6106
      %v6111 = vadd.f32 %v6103, %v6107
      %v6112 = vadd.f32 %v6104, %v6108
      %v6113 = vmul.f32 %v5416, 0.22580644
      %v6114 = vmul.f32 %v5419, 0.22580644
      %v6115 = vmul.f32 %v5424, 0.22580644
      %v6116 = vmul.f32 %v5427, 0.22580644
      %v6117 = vmul.f32 %v5475, 0.7741935
      %v6118 = vmul.f32 %v5478, 0.7741935
      %v6119 = vmul.f32 %v5483, 0.7741935
      %v6120 = vmul.f32 %v5486, 0.7741935
      %v6121 = vadd.f32 %v6113, %v6117
      %v6122 = vadd.f32 %v6114, %v6118
      %v6123 = vadd.f32 %v6115, %v6119
      %v6124 = vadd.f32 %v6116, %v6120
      %v6125 = vmul.f32 %v5475, 0.7419355
      %v6126 = vmul.f32 %v5478, 0.7419355
      %v6127 = vmul.f32 %v5483, 0.7419355
      %v6128 = vmul.f32 %v5486, 0.7419355
      %v6129 = vmul.f32 %v5530, 0.2580645
      %v6130 = vmul.f32 %v5533, 0.2580645
      %v6131 = vmul.f32 %v5538, 0.2580645
      %v6132 = vmul.f32 %v5541, 0.2580645
      %v6133 = vadd.f32 %v6125, %v6129
      %v6134 = vadd.f32 %v6126, %v6130
      %v6135 = vadd.f32 %v6127, %v6131
      %v6136 = vadd.f32 %v6128, %v6132
      %v6137 = vmul.f32 %v5475, 0.2580645
      %v6138 = vmul.f32 %v5478, 0.2580645
      %v6139 = vmul.f32 %v5483, 0.2580645
      %v6140 = vmul.f32 %v5486, 0.2580645
      %v6141 = vmul.f32 %v5530, 0.7419355
      %v6142 = vmul.f32 %v5533, 0.7419355
      %v6143 = vmul.f32 %v5538, 0.7419355
      %v6144 = vmul.f32 %v5541, 0.7419355
      %v6145 = vadd.f32 %v6137, %v6141
      %v6146 = vadd.f32 %v6138, %v6142
      %v6147 = vadd.f32 %v6139, %v6143
      %v6148 = vadd.f32 %v6140, %v6144
      %v6149 = vmul.f32 %v5530, 0.7741935
      %v6150 = vmul.f32 %v5533, 0.7741935
      %v6151 = vmul.f32 %v5538, 0.7741935
      %v6152 = vmul.f32 %v5541, 0.7741935
      %v6153 = vmul.f32 %v5589, 0.22580644
      %v6154 = vmul.f32 %v5592, 0.22580644
      %v6155 = vmul.f32 %v5597, 0.22580644
      %v6156 = vmul.f32 %v5600, 0.22580644
      %v6157 = vadd.f32 %v6149, %v6153
      %v6158 = vadd.f32 %v6150, %v6154
      %v6159 = vadd.f32 %v6151, %v6155
      %v6160 = vadd.f32 %v6152, %v6156
      %v6161 = vmul.f32 %v5530, 0.29032257
      %v6162 = vmul.f32 %v5533, 0.29032257
      %v6163 = vmul.f32 %v5538, 0.29032257
      %v6164 = vmul.f32 %v5541, 0.29032257
      %v6165 = vmul.f32 %v5589, 0.7096774
      %v6166 = vmul.f32 %v5592, 0.7096774
      %v6167 = vmul.f32 %v5597, 0.7096774
      %v6168 = vmul.f32 %v5600, 0.7096774
      %v6169 = vadd.f32 %v6161, %v6165
      %v6170 = vadd.f32 %v6162, %v6166
      %v6171 = vadd.f32 %v6163, %v6167
      %v6172 = vadd.f32 %v6164, %v6168
      %v6173 = vmul.f32 %v5589, 0.8064516
      %v6174 = vmul.f32 %v5592, 0.8064516
      %v6175 = vmul.f32 %v5597, 0.8064516
      %v6176 = vmul.f32 %v5600, 0.8064516
      %v6177 = vmul.f32 %v5648, 0.19354838
      %v6178 = vmul.f32 %v5651, 0.19354838
      %v6179 = vmul.f32 %v5656, 0.19354838
      %v6180 = vmul.f32 %v5659, 0.19354838
      %v6181 = vadd.f32 %v6173, %v6177
      %v6182 = vadd.f32 %v6174, %v6178
      %v6183 = vadd.f32 %v6175, %v6179
      %v6184 = vadd.f32 %v6176, %v6180
      %v6185 = vmul.f32 %v5589, 0.32258064
      %v6186 = vmul.f32 %v5592, 0.32258064
      %v6187 = vmul.f32 %v5597, 0.32258064
      %v6188 = vmul.f32 %v5600, 0.32258064
      %v6189 = vmul.f32 %v5648, 0.67741936
      %v6190 = vmul.f32 %v5651, 0.67741936
      %v6191 = vmul.f32 %v5656, 0.67741936
      %v6192 = vmul.f32 %v5659, 0.67741936
      %v6193 = vadd.f32 %v6185, %v6189
      %v6194 = vadd.f32 %v6186, %v6190
      %v6195 = vadd.f32 %v6187, %v6191
      %v6196 = vadd.f32 %v6188, %v6192
      %v6197 = vmul.f32 %v5648, 0.83870965
      %v6198 = vmul.f32 %v5651, 0.83870965
      %v6199 = vmul.f32 %v5656, 0.83870965
      %v6200 = vmul.f32 %v5659, 0.83870965
      %v6201 = vmul.f32 %v5707, 0.16129032
      %v6202 = vmul.f32 %v5710, 0.16129032
      %v6203 = vmul.f32 %v5715, 0.16129032
      %v6204 = vmul.f32 %v5718, 0.16129032
      %v6205 = vadd.f32 %v6197, %v6201
      %v6206 = vadd.f32 %v6198, %v6202
      %v6207 = vadd.f32 %v6199, %v6203
      %v6208 = vadd.f32 %v6200, %v6204
      %v6209 = vmul.f32 %v5648, 0.3548387
      %v6210 = vmul.f32 %v5651, 0.3548387
      %v6211 = vmul.f32 %v5656, 0.3548387
      %v6212 = vmul.f32 %v5659, 0.3548387
      %v6213 = vmul.f32 %v5707, 0.6451613
      %v6214 = vmul.f32 %v5710, 0.6451613
      %v6215 = vmul.f32 %v5715, 0.6451613
      %v6216 = vmul.f32 %v5718, 0.6451613
      %v6217 = vadd.f32 %v6209, %v6213
      %v6218 = vadd.f32 %v6210, %v6214
      %v6219 = vadd.f32 %v6211, %v6215
      %v6220 = vadd.f32 %v6212, %v6216
      %v6221 = vmul.f32 %v5707, 0.87096775
      %v6222 = vmul.f32 %v5710, 0.87096775
      %v6223 = vmul.f32 %v5715, 0.87096775
      %v6224 = vmul.f32 %v5718, 0.87096775
      %v6225 = vmul.f32 %v5766, 0.12903225
      %v6226 = vmul.f32 %v5769, 0.12903225
      %v6227 = vmul.f32 %v5774, 0.12903225
      %v6228 = vmul.f32 %v5777, 0.12903225
      %v6229 = vadd.f32 %v6221, %v6225
      %v6230 = vadd.f32 %v6222, %v6226
      %v6231 = vadd.f32 %v6223, %v6227
      %v6232 = vadd.f32 %v6224, %v6228
      %v6233 = vmul.f32 %v5707, 0.38709676
      %v6234 = vmul.f32 %v5710, 0.38709676
      %v6235 = vmul.f32 %v5715, 0.38709676
      %v6236 = vmul.f32 %v5718, 0.38709676
      %v6237 = vmul.f32 %v5766, 0.61290324
      %v6238 = vmul.f32 %v5769, 0.61290324
      %v6239 = vmul.f32 %v5774, 0.61290324
      %v6240 = vmul.f32 %v5777, 0.61290324
      %v6241 = vadd.f32 %v6233, %v6237
      %v6242 = vadd.f32 %v6234, %v6238
      %v6243 = vadd.f32 %v6235, %v6239
      %v6244 = vadd.f32 %v6236, %v6240
      %v6245 = vmul.f32 %v5766, 0.9032258
      %v6246 = vmul.f32 %v5769, 0.9032258
      %v6247 = vmul.f32 %v5774, 0.9032258
      %v6248 = vmul.f32 %v5777, 0.9032258
      %v6249 = vmul.f32 %v5825, 0.09677419
      %v6250 = vmul.f32 %v5828, 0.09677419
      %v6251 = vmul.f32 %v5833, 0.09677419
      %v6252 = vmul.f32 %v5836, 0.09677419
      %v6253 = vadd.f32 %v6245, %v6249
      %v6254 = vadd.f32 %v6246, %v6250
      %v6255 = vadd.f32 %v6247, %v6251
      %v6256 = vadd.f32 %v6248, %v6252
      %v6257 = vmul.f32 %v5766, 0.41935483
      %v6258 = vmul.f32 %v5769, 0.41935483
      %v6259 = vmul.f32 %v5774, 0.41935483
      %v6260 = vmul.f32 %v5777, 0.41935483
      %v6261 = vmul.f32 %v5825, 0.58064514
      %v6262 = vmul.f32 %v5828, 0.58064514
      %v6263 = vmul.f32 %v5833, 0.58064514
      %v6264 = vmul.f32 %v5836, 0.58064514
      %v6265 = vadd.f32 %v6257, %v6261
      %v6266 = vadd.f32 %v6258, %v6262
      %v6267 = vadd.f32 %v6259, %v6263
      %v6268 = vadd.f32 %v6260, %v6264
      %v6269 = vmul.f32 %v5825, 0.9354839
      %v6270 = vmul.f32 %v5828, 0.9354839
      %v6271 = vmul.f32 %v5833, 0.9354839
      %v6272 = vmul.f32 %v5836, 0.9354839
      %v6273 = vmul.f32 %v5884, 0.06451613
      %v6274 = vmul.f32 %v5887, 0.06451613
      %v6275 = vmul.f32 %v5892, 0.06451613
      %v6276 = vmul.f32 %v5895, 0.06451613
      %v6277 = vadd.f32 %v6269, %v6273
      %v6278 = vadd.f32 %v6270, %v6274
      %v6279 = vadd.f32 %v6271, %v6275
      %v6280 = vadd.f32 %v6272, %v6276
      %v6281 = vmul.f32 %v5825, 0.4516129
      %v6282 = vmul.f32 %v5828, 0.4516129
      %v6283 = vmul.f32 %v5833, 0.4516129
      %v6284 = vmul.f32 %v5836, 0.4516129
      %v6285 = vmul.f32 %v5884, 0.5483871
      %v6286 = vmul.f32 %v5887, 0.5483871
      %v6287 = vmul.f32 %v5892, 0.5483871
      %v6288 = vmul.f32 %v5895, 0.5483871
      %v6289 = vadd.f32 %v6281, %v6285
      %v6290 = vadd.f32 %v6282, %v6286
      %v6291 = vadd.f32 %v6283, %v6287
      %v6292 = vadd.f32 %v6284, %v6288
      %v6293 = vmul.f32 %v5884, 0.9677419
      %v6294 = vmul.f32 %v5887, 0.9677419
      %v6295 = vmul.f32 %v5892, 0.9677419
      %v6296 = vmul.f32 %v5895, 0.9677419
      %v6297 = vmul.f32 %v5943, 0.032258064
      %v6298 = vmul.f32 %v5946, 0.032258064
      %v6299 = vmul.f32 %v5951, 0.032258064
      %v6300 = vmul.f32 %v5954, 0.032258064
      %v6301 = vadd.f32 %v6293, %v6297
      %v6302 = vadd.f32 %v6294, %v6298
      %v6303 = vadd.f32 %v6295, %v6299
      %v6304 = vadd.f32 %v6296, %v6300
      %v6305 = vmul.f32 %v5884, 0.48387095
      %v6306 = vmul.f32 %v5887, 0.48387095
      %v6307 = vmul.f32 %v5892, 0.48387095
      %v6308 = vmul.f32 %v5895, 0.48387095
      %v6309 = vmul.f32 %v5943, 0.516129
      %v6310 = vmul.f32 %v5946, 0.516129
      %v6311 = vmul.f32 %v5951, 0.516129
      %v6312 = vmul.f32 %v5954, 0.516129
      %v6313 = vadd.f32 %v6305, %v6309
      %v6314 = vadd.f32 %v6306, %v6310
      %v6315 = vadd.f32 %v6307, %v6311
      %v6316 = vadd.f32 %v6308, %v6312
      %6321 = vrot.lane.b32.xlu0 %v5965, 32
      %v6322 = vpop.permute.xlu0 %6321
      %6323 = vrot.lane.b32.xlu0 %v5966, 32
      %v6324 = vpop.permute.xlu0 %6323
      %6325 = vrot.lane.b32.xlu0 %v5967, 32
      %v6326 = vpop.permute.xlu0 %6325
      %6327 = vrot.lane.b32.xlu0 %v5968, 32
      %v6328 = vpop.permute.xlu0 %6327
      %6337 = vrot.lane.b32.xlu0 %v5977, 64
      %v6338 = vpop.permute.xlu0 %6337
      %6339 = vrot.lane.b32.xlu0 %v5978, 64
      %v6340 = vpop.permute.xlu0 %6339
      %6341 = vrot.lane.b32.xlu0 %v5979, 64
      %v6342 = vpop.permute.xlu0 %6341
      %6343 = vrot.lane.b32.xlu0 %v5980, 64
      %v6344 = vpop.permute.xlu0 %6343
      %6353 = vrot.lane.b32.xlu0 %v5989, 96
      %v6354 = vpop.permute.xlu0 %6353
      %6355 = vrot.lane.b32.xlu0 %v5990, 96
      %v6356 = vpop.permute.xlu0 %6355
      %6357 = vrot.lane.b32.xlu0 %v5991, 96
      %v6358 = vpop.permute.xlu0 %6357
      %6359 = vrot.lane.b32.xlu0 %v5992, 96
      %v6360 = vpop.permute.xlu0 %6359
      %6369 = vrot.lane.b32.xlu0 %v6013, 32
      %v6370 = vpop.permute.xlu0 %6369
      %6371 = vrot.lane.b32.xlu0 %v6014, 32
      %v6372 = vpop.permute.xlu0 %6371
      %6373 = vrot.lane.b32.xlu0 %v6015, 32
      %v6374 = vpop.permute.xlu0 %6373
      %6375 = vrot.lane.b32.xlu0 %v6016, 32
      %v6376 = vpop.permute.xlu0 %6375
      %6385 = vrot.lane.b32.xlu0 %v6025, 64
      %v6386 = vpop.permute.xlu0 %6385
      %6387 = vrot.lane.b32.xlu0 %v6026, 64
      %v6388 = vpop.permute.xlu0 %6387
      %6389 = vrot.lane.b32.xlu0 %v6027, 64
      %v6390 = vpop.permute.xlu0 %6389
      %6391 = vrot.lane.b32.xlu0 %v6028, 64
      %v6392 = vpop.permute.xlu0 %6391
      %6401 = vrot.lane.b32.xlu0 %v6037, 96
      %v6402 = vpop.permute.xlu0 %6401
      %6403 = vrot.lane.b32.xlu0 %v6038, 96
      %v6404 = vpop.permute.xlu0 %6403
      %6405 = vrot.lane.b32.xlu0 %v6039, 96
      %v6406 = vpop.permute.xlu0 %6405
      %6407 = vrot.lane.b32.xlu0 %v6040, 96
      %v6408 = vpop.permute.xlu0 %6407
      %6417 = vrot.lane.b32.xlu0 %v6061, 32
      %v6418 = vpop.permute.xlu0 %6417
      %6419 = vrot.lane.b32.xlu0 %v6062, 32
      %v6420 = vpop.permute.xlu0 %6419
      %6421 = vrot.lane.b32.xlu0 %v6063, 32
      %v6422 = vpop.permute.xlu0 %6421
      %6423 = vrot.lane.b32.xlu0 %v6064, 32
      %v6424 = vpop.permute.xlu0 %6423
      %6433 = vrot.lane.b32.xlu0 %v6073, 64
      %v6434 = vpop.permute.xlu0 %6433
      %6435 = vrot.lane.b32.xlu0 %v6074, 64
      %v6436 = vpop.permute.xlu0 %6435
      %6437 = vrot.lane.b32.xlu0 %v6075, 64
      %v6438 = vpop.permute.xlu0 %6437
      %6439 = vrot.lane.b32.xlu0 %v6076, 64
      %v6440 = vpop.permute.xlu0 %6439
      %6449 = vrot.lane.b32.xlu0 %v6085, 96
      %v6450 = vpop.permute.xlu0 %6449
      %6451 = vrot.lane.b32.xlu0 %v6086, 96
      %v6452 = vpop.permute.xlu0 %6451
      %6453 = vrot.lane.b32.xlu0 %v6087, 96
      %v6454 = vpop.permute.xlu0 %6453
      %6455 = vrot.lane.b32.xlu0 %v6088, 96
      %v6456 = vpop.permute.xlu0 %6455
      %6465 = vrot.lane.b32.xlu0 %v6109, 32
      %v6466 = vpop.permute.xlu0 %6465
      %6467 = vrot.lane.b32.xlu0 %v6110, 32
      %v6468 = vpop.permute.xlu0 %6467
      %6469 = vrot.lane.b32.xlu0 %v6111, 32
      %v6470 = vpop.permute.xlu0 %6469
      %6471 = vrot.lane.b32.xlu0 %v6112, 32
      %v6472 = vpop.permute.xlu0 %6471
      %6481 = vrot.lane.b32.xlu0 %v6121, 64
      %v6482 = vpop.permute.xlu0 %6481
      %6483 = vrot.lane.b32.xlu0 %v6122, 64
      %v6484 = vpop.permute.xlu0 %6483
      %6485 = vrot.lane.b32.xlu0 %v6123, 64
      %v6486 = vpop.permute.xlu0 %6485
      %6487 = vrot.lane.b32.xlu0 %v6124, 64
      %v6488 = vpop.permute.xlu0 %6487
      %6497 = vrot.lane.b32.xlu0 %v6133, 96
      %v6498 = vpop.permute.xlu0 %6497
      %6499 = vrot.lane.b32.xlu0 %v6134, 96
      %v6500 = vpop.permute.xlu0 %6499
      %6501 = vrot.lane.b32.xlu0 %v6135, 96
      %v6502 = vpop.permute.xlu0 %6501
      %6503 = vrot.lane.b32.xlu0 %v6136, 96
      %v6504 = vpop.permute.xlu0 %6503
      %v6509 = vsel %vm831, %v5062, %v6322
      %v6510 = vsel %vm831, %v5065, %v6324
      %v6511 = vsel %vm831, %v5070, %v6326
      %v6512 = vsel %vm831, %v5073, %v6328
      %v6513 = vsel %vm702, %v6509, %v6338
      %v6514 = vsel %vm702, %v6510, %v6340
      %v6515 = vsel %vm702, %v6511, %v6342
      %v6516 = vsel %vm702, %v6512, %v6344
      %v6517 = vsel %vm3783, %v6513, %v6354
      %v6518 = vsel %vm3783, %v6514, %v6356
      %v6519 = vsel %vm3783, %v6515, %v6358
      %v6520 = vsel %vm3783, %v6516, %v6360
      %v6521 = vsel %vm831, %v6001, %v6370
      %v6522 = vsel %vm831, %v6002, %v6372
      %v6523 = vsel %vm831, %v6003, %v6374
      %v6524 = vsel %vm831, %v6004, %v6376
      %v6525 = vsel %vm702, %v6521, %v6386
      %v6526 = vsel %vm702, %v6522, %v6388
      %v6527 = vsel %vm702, %v6523, %v6390
      %v6528 = vsel %vm702, %v6524, %v6392
      %v6529 = vsel %vm3783, %v6525, %v6402
      %v6530 = vsel %vm3783, %v6526, %v6404
      %v6531 = vsel %vm3783, %v6527, %v6406
      %v6532 = vsel %vm3783, %v6528, %v6408
      %v6533 = vsel %vm831, %v6049, %v6418
      %v6534 = vsel %vm831, %v6050, %v6420
      %v6535 = vsel %vm831, %v6051, %v6422
      %v6536 = vsel %vm831, %v6052, %v6424
      %v6537 = vsel %vm702, %v6533, %v6434
      %v6538 = vsel %vm702, %v6534, %v6436
      %v6539 = vsel %vm702, %v6535, %v6438
      %v6540 = vsel %vm702, %v6536, %v6440
      %v6541 = vsel %vm3783, %v6537, %v6450
      %v6542 = vsel %vm3783, %v6538, %v6452
      %v6543 = vsel %vm3783, %v6539, %v6454
      %v6544 = vsel %vm3783, %v6540, %v6456
      %v6545 = vsel %vm831, %v6097, %v6466
      %v6546 = vsel %vm831, %v6098, %v6468
      %v6547 = vsel %vm831, %v6099, %v6470
      %v6548 = vsel %vm831, %v6100, %v6472
      %v6549 = vsel %vm702, %v6545, %v6482
      %v6550 = vsel %vm702, %v6546, %v6484
      %v6551 = vsel %vm702, %v6547, %v6486
      %v6552 = vsel %vm702, %v6548, %v6488
      %v6553 = vsel %vm3783, %v6549, %v6498
      %v6554 = vsel %vm3783, %v6550, %v6500
      %v6555 = vsel %vm3783, %v6551, %v6502
      %v6556 = vsel %vm3783, %v6552, %v6504
      %6561 = vrot.lane.b32.xlu0 %v6157, 32
      %v6562 = vpop.permute.xlu0 %6561
      %6563 = vrot.lane.b32.xlu0 %v6158, 32
      %v6564 = vpop.permute.xlu0 %6563
      %6565 = vrot.lane.b32.xlu0 %v6159, 32
      %v6566 = vpop.permute.xlu0 %6565
      %6567 = vrot.lane.b32.xlu0 %v6160, 32
      %v6568 = vpop.permute.xlu0 %6567
      %6577 = vrot.lane.b32.xlu0 %v6169, 64
      %v6578 = vpop.permute.xlu0 %6577
      %6579 = vrot.lane.b32.xlu0 %v6170, 64
      %v6580 = vpop.permute.xlu0 %6579
      %6581 = vrot.lane.b32.xlu0 %v6171, 64
      %v6582 = vpop.permute.xlu0 %6581
      %6583 = vrot.lane.b32.xlu0 %v6172, 64
      %v6584 = vpop.permute.xlu0 %6583
      %6593 = vrot.lane.b32.xlu0 %v6181, 96
      %v6594 = vpop.permute.xlu0 %6593
      %6595 = vrot.lane.b32.xlu0 %v6182, 96
      %v6596 = vpop.permute.xlu0 %6595
      %6597 = vrot.lane.b32.xlu0 %v6183, 96
      %v6598 = vpop.permute.xlu0 %6597
      %6599 = vrot.lane.b32.xlu0 %v6184, 96
      %v6600 = vpop.permute.xlu0 %6599
      %6609 = vrot.lane.b32.xlu0 %v6205, 32
      %v6610 = vpop.permute.xlu0 %6609
      %6611 = vrot.lane.b32.xlu0 %v6206, 32
      %v6612 = vpop.permute.xlu0 %6611
      %6613 = vrot.lane.b32.xlu0 %v6207, 32
      %v6614 = vpop.permute.xlu0 %6613
      %6615 = vrot.lane.b32.xlu0 %v6208, 32
      %v6616 = vpop.permute.xlu0 %6615
      %6625 = vrot.lane.b32.xlu0 %v6217, 64
      %v6626 = vpop.permute.xlu0 %6625
      %6627 = vrot.lane.b32.xlu0 %v6218, 64
      %v6628 = vpop.permute.xlu0 %6627
      %6629 = vrot.lane.b32.xlu0 %v6219, 64
      %v6630 = vpop.permute.xlu0 %6629
      %6631 = vrot.lane.b32.xlu0 %v6220, 64
      %v6632 = vpop.permute.xlu0 %6631
      %6641 = vrot.lane.b32.xlu0 %v6229, 96
      %v6642 = vpop.permute.xlu0 %6641
      %6643 = vrot.lane.b32.xlu0 %v6230, 96
      %v6644 = vpop.permute.xlu0 %6643
      %6645 = vrot.lane.b32.xlu0 %v6231, 96
      %v6646 = vpop.permute.xlu0 %6645
      %6647 = vrot.lane.b32.xlu0 %v6232, 96
      %v6648 = vpop.permute.xlu0 %6647
      %6657 = vrot.lane.b32.xlu0 %v6253, 32
      %v6658 = vpop.permute.xlu0 %6657
      %6659 = vrot.lane.b32.xlu0 %v6254, 32
      %v6660 = vpop.permute.xlu0 %6659
      %6661 = vrot.lane.b32.xlu0 %v6255, 32
      %v6662 = vpop.permute.xlu0 %6661
      %6663 = vrot.lane.b32.xlu0 %v6256, 32
      %v6664 = vpop.permute.xlu0 %6663
      %6673 = vrot.lane.b32.xlu0 %v6265, 64
      %v6674 = vpop.permute.xlu0 %6673
      %6675 = vrot.lane.b32.xlu0 %v6266, 64
      %v6676 = vpop.permute.xlu0 %6675
      %6677 = vrot.lane.b32.xlu0 %v6267, 64
      %v6678 = vpop.permute.xlu0 %6677
      %6679 = vrot.lane.b32.xlu0 %v6268, 64
      %v6680 = vpop.permute.xlu0 %6679
      %6689 = vrot.lane.b32.xlu0 %v6277, 96
      %v6690 = vpop.permute.xlu0 %6689
      %6691 = vrot.lane.b32.xlu0 %v6278, 96
      %v6692 = vpop.permute.xlu0 %6691
      %6693 = vrot.lane.b32.xlu0 %v6279, 96
      %v6694 = vpop.permute.xlu0 %6693
      %6695 = vrot.lane.b32.xlu0 %v6280, 96
      %v6696 = vpop.permute.xlu0 %6695
      %6705 = vrot.lane.b32.xlu0 %v6301, 32
      %v6706 = vpop.permute.xlu0 %6705
      %6707 = vrot.lane.b32.xlu0 %v6302, 32
      %v6708 = vpop.permute.xlu0 %6707
      %6709 = vrot.lane.b32.xlu0 %v6303, 32
      %v6710 = vpop.permute.xlu0 %6709
      %6711 = vrot.lane.b32.xlu0 %v6304, 32
      %v6712 = vpop.permute.xlu0 %6711
      %6721 = vrot.lane.b32.xlu0 %v6313, 64
      %v6722 = vpop.permute.xlu0 %6721
      %6723 = vrot.lane.b32.xlu0 %v6314, 64
      %v6724 = vpop.permute.xlu0 %6723
      %6725 = vrot.lane.b32.xlu0 %v6315, 64
      %v6726 = vpop.permute.xlu0 %6725
      %6727 = vrot.lane.b32.xlu0 %v6316, 64
      %v6728 = vpop.permute.xlu0 %6727
      %6737 = vrot.lane.b32.xlu0 %v5943, 96
      %v6738 = vpop.permute.xlu0 %6737
      %6739 = vrot.lane.b32.xlu0 %v5946, 96
      %v6740 = vpop.permute.xlu0 %6739
      %6741 = vrot.lane.b32.xlu0 %v5951, 96
      %v6742 = vpop.permute.xlu0 %6741
      %6743 = vrot.lane.b32.xlu0 %v5954, 96
      %v6744 = vpop.permute.xlu0 %6743
      %v6749 = vsel %vm831, %v6145, %v6562
      %v6750 = vsel %vm831, %v6146, %v6564
      %v6751 = vsel %vm831, %v6147, %v6566
      %v6752 = vsel %vm831, %v6148, %v6568
      %v6753 = vsel %vm702, %v6749, %v6578
      %v6754 = vsel %vm702, %v6750, %v6580
      %v6755 = vsel %vm702, %v6751, %v6582
      %v6756 = vsel %vm702, %v6752, %v6584
      %v6757 = vsel %vm3783, %v6753, %v6594
      %v6758 = vsel %vm3783, %v6754, %v6596
      %v6759 = vsel %vm3783, %v6755, %v6598
      %v6760 = vsel %vm3783, %v6756, %v6600
      %v6761 = vsel %vm831, %v6193, %v6610
      %v6762 = vsel %vm831, %v6194, %v6612
      %v6763 = vsel %vm831, %v6195, %v6614
      %v6764 = vsel %vm831, %v6196, %v6616
      %v6765 = vsel %vm702, %v6761, %v6626
      %v6766 = vsel %vm702, %v6762, %v6628
      %v6767 = vsel %vm702, %v6763, %v6630
      %v6768 = vsel %vm702, %v6764, %v6632
      %v6769 = vsel %vm3783, %v6765, %v6642
      %v6770 = vsel %vm3783, %v6766, %v6644
      %v6771 = vsel %vm3783, %v6767, %v6646
      %v6772 = vsel %vm3783, %v6768, %v6648
      %v6773 = vsel %vm831, %v6241, %v6658
      %v6774 = vsel %vm831, %v6242, %v6660
      %v6775 = vsel %vm831, %v6243, %v6662
      %v6776 = vsel %vm831, %v6244, %v6664
      %v6777 = vsel %vm702, %v6773, %v6674
      %v6778 = vsel %vm702, %v6774, %v6676
      %v6779 = vsel %vm702, %v6775, %v6678
      %v6780 = vsel %vm702, %v6776, %v6680
      %v6781 = vsel %vm3783, %v6777, %v6690
      %v6782 = vsel %vm3783, %v6778, %v6692
      %v6783 = vsel %vm3783, %v6779, %v6694
      %v6784 = vsel %vm3783, %v6780, %v6696
      %v6785 = vsel %vm831, %v6289, %v6706
      %v6786 = vsel %vm831, %v6290, %v6708
      %v6787 = vsel %vm831, %v6291, %v6710
      %v6788 = vsel %vm831, %v6292, %v6712
      %v6789 = vsel %vm702, %v6785, %v6722
      %v6790 = vsel %vm702, %v6786, %v6724
      %v6791 = vsel %vm702, %v6787, %v6726
      %v6792 = vsel %vm702, %v6788, %v6728
      %v6793 = vsel %vm3783, %v6789, %v6738
      %v6794 = vsel %vm3783, %v6790, %v6740
      %v6795 = vsel %vm3783, %v6791, %v6742
      %v6796 = vsel %vm3783, %v6792, %v6744
      %v6801 = vunpack.c.l.b16 %v5009
      %v6802 = vunpack.c.l.b16 %v5010
      %v6803 = vunpack.c.l.b16 %v5011
      %v6804 = vunpack.c.l.b16 %v5012
      %v6805 = vpack.c.b16 %v6802, %v6801
      %v6806 = vpack.c.b16 %v6804, %v6803
      %v6808 = vsel %vm1992, %v6805, 0
      %v6811 = vsel %vm1992, %v6806, 0
      %v6814 = vsel %vm2904, %v5001, 0
      %v6817 = vsel %vm2904, %v5002, 0
      %v6820 = vsel %vm2904, %v5003, 0
      %v6823 = vsel %vm2904, %v5004, 0
      %v6826 = vsel %vm2904, %v5005, 0
      %v6829 = vsel %vm2904, %v5006, 0
      %v6832 = vsel %vm2904, %v5007, 0
      %v6835 = vsel %vm2904, %v5008, 0
      %6837 = vmatprep.subr.bf16.mxu0 0
      %6838 = vmatpush1.bf16.msra.mxu0 0
      %6839 = vmatprep.subr.bf16.mxu0 0
      %6840 = vmatpush1.bf16.msra.mxu0 0
      %6841 = vmatprep.subr.bf16.mxu0 0
      %6842 = vmatpush1.bf16.msra.mxu0 0
      %6843 = vmatprep.subr.bf16.mxu0 0
      %6844 = vmatpush1.bf16.msra.mxu0 0
      %6845 = vmatprep.subr.bf16.mxu0 0
      %6846 = vmatpush1.bf16.msra.mxu0 0
      %6847 = vmatprep.subr.bf16.mxu0 0
      %6848 = vmatpush1.bf16.msra.mxu0 0
      %6849 = vmatprep.subr.bf16.mxu0 0
      %6850 = vmatpush1.bf16.msra.mxu0 0
      %6851 = vmatprep.subr.bf16.mxu0 %v6817
      %6852 = vmatpush1.bf16.msra.mxu0 %v6814
      %6853 = vmatprep.subr.bf16.mxu0 0
      %6854 = vmatpush2.bf16.msra.mxu0 0
      %6855 = vmatprep.subr.bf16.mxu0 0
      %6856 = vmatpush2.bf16.msra.mxu0 0
      %6857 = vmatprep.subr.bf16.mxu0 0
      %6858 = vmatpush2.bf16.msra.mxu0 0
      %6859 = vmatprep.subr.bf16.mxu0 0
      %6860 = vmatpush2.bf16.msra.mxu0 0
      %6861 = vmatprep.subr.bf16.mxu0 0
      %6862 = vmatpush2.bf16.msra.mxu0 0
      %6863 = vmatprep.subr.bf16.mxu0 0
      %6864 = vmatpush2.bf16.msra.mxu0 0
      %6865 = vmatprep.subr.bf16.mxu0 0
      %6866 = vmatpush2.bf16.msra.mxu0 0
      %6867 = vmatprep.subr.bf16.mxu0 0
      %6868 = vmatpush2.bf16.msra.mxu0 0
      %6869 = vmatprep.mubr.bf16.mxu0 0
      %6870 = vmatmul.mubr.bf16.gmra.mxu0 %v6808
      %v6871 = vpop.f32.mrf.mxu0
      %v6872 = vadd.f32 %v6517, %v6871
      %v6873 = vpop.f32.mrf.mxu0
      %v6874 = vadd.f32 %v6529, %v6873
      %v6875 = vpop.f32.mrf.mxu0
      %v6876 = vadd.f32 %v6518, %v6875
      %v6877 = vpop.f32.mrf.mxu0
      %v6878 = vadd.f32 %v6530, %v6877
      %6879 = vmatprep.mubr.bf16.mxu0 0
      %6880 = vmatmul.mubr.bf16.gmra.mxu0 %v6811
      %v6881 = vpop.f32.mrf.mxu0
      %v6882 = vadd.f32 %v6519, %v6881
      %v6883 = vpop.f32.mrf.mxu0
      %v6884 = vadd.f32 %v6531, %v6883
      %v6885 = vpop.f32.mrf.mxu0
      %v6886 = vadd.f32 %v6520, %v6885
      %v6887 = vpop.f32.mrf.mxu0
      %v6888 = vadd.f32 %v6532, %v6887
      %6889 = vdwg.mxu0
      %6890 = vmatprep.subr.bf16.mxu0 0
      %6891 = vmatpush1.bf16.msra.mxu0 0
      %6892 = vmatprep.subr.bf16.mxu0 0
      %6893 = vmatpush1.bf16.msra.mxu0 0
      %6894 = vmatprep.subr.bf16.mxu0 0
      %6895 = vmatpush1.bf16.msra.mxu0 0
      %6896 = vmatprep.subr.bf16.mxu0 0
      %6897 = vmatpush1.bf16.msra.mxu0 0
      %6898 = vmatprep.subr.bf16.mxu0 0
      %6899 = vmatpush1.bf16.msra.mxu0 0
      %6900 = vmatprep.subr.bf16.mxu0 0
      %6901 = vmatpush1.bf16.msra.mxu0 0
      %6902 = vmatprep.subr.bf16.mxu0 0
      %6903 = vmatpush1.bf16.msra.mxu0 0
      %6904 = vmatprep.subr.bf16.mxu0 %v6823
      %6905 = vmatpush1.bf16.msra.mxu0 %v6820
      %6906 = vmatprep.subr.bf16.mxu0 0
      %6907 = vmatpush2.bf16.msra.mxu0 0
      %6908 = vmatprep.subr.bf16.mxu0 0
      %6909 = vmatpush2.bf16.msra.mxu0 0
      %6910 = vmatprep.subr.bf16.mxu0 0
      %6911 = vmatpush2.bf16.msra.mxu0 0
      %6912 = vmatprep.subr.bf16.mxu0 0
      %6913 = vmatpush2.bf16.msra.mxu0 0
      %6914 = vmatprep.subr.bf16.mxu0 0
      %6915 = vmatpush2.bf16.msra.mxu0 0
      %6916 = vmatprep.subr.bf16.mxu0 0
      %6917 = vmatpush2.bf16.msra.mxu0 0
      %6918 = vmatprep.subr.bf16.mxu0 0
      %6919 = vmatpush2.bf16.msra.mxu0 0
      %6920 = vmatprep.subr.bf16.mxu0 0
      %6921 = vmatpush2.bf16.msra.mxu0 0
      %6922 = vmatprep.mubr.bf16.mxu0 0
      %6923 = vmatmul.mubr.bf16.gmra.mxu0 %v6808
      %v6924 = vpop.f32.mrf.mxu0
      %v6925 = vadd.f32 %v6541, %v6924
      %v6926 = vpop.f32.mrf.mxu0
      %v6927 = vadd.f32 %v6553, %v6926
      %v6928 = vpop.f32.mrf.mxu0
      %v6929 = vadd.f32 %v6542, %v6928
      %v6930 = vpop.f32.mrf.mxu0
      %v6931 = vadd.f32 %v6554, %v6930
      %6932 = vmatprep.mubr.bf16.mxu0 0
      %6933 = vmatmul.mubr.bf16.gmra.mxu0 %v6811
      %v6934 = vpop.f32.mrf.mxu0
      %v6935 = vadd.f32 %v6543, %v6934
      %v6936 = vpop.f32.mrf.mxu0
      %v6937 = vadd.f32 %v6555, %v6936
      %v6938 = vpop.f32.mrf.mxu0
      %v6939 = vadd.f32 %v6544, %v6938
      %v6940 = vpop.f32.mrf.mxu0
      %v6941 = vadd.f32 %v6556, %v6940
      %6942 = vdwg.mxu0
      %6943 = vmatprep.subr.bf16.mxu0 0
      %6944 = vmatpush1.bf16.msra.mxu0 0
      %6945 = vmatprep.subr.bf16.mxu0 0
      %6946 = vmatpush1.bf16.msra.mxu0 0
      %6947 = vmatprep.subr.bf16.mxu0 0
      %6948 = vmatpush1.bf16.msra.mxu0 0
      %6949 = vmatprep.subr.bf16.mxu0 0
      %6950 = vmatpush1.bf16.msra.mxu0 0
      %6951 = vmatprep.subr.bf16.mxu0 0
      %6952 = vmatpush1.bf16.msra.mxu0 0
      %6953 = vmatprep.subr.bf16.mxu0 0
      %6954 = vmatpush1.bf16.msra.mxu0 0
      %6955 = vmatprep.subr.bf16.mxu0 0
      %6956 = vmatpush1.bf16.msra.mxu0 0
      %6957 = vmatprep.subr.bf16.mxu0 %v6829
      %6958 = vmatpush1.bf16.msra.mxu0 %v6826
      %6959 = vmatprep.subr.bf16.mxu0 0
      %6960 = vmatpush2.bf16.msra.mxu0 0
      %6961 = vmatprep.subr.bf16.mxu0 0
      %6962 = vmatpush2.bf16.msra.mxu0 0
      %6963 = vmatprep.subr.bf16.mxu0 0
      %6964 = vmatpush2.bf16.msra.mxu0 0
      %6965 = vmatprep.subr.bf16.mxu0 0
      %6966 = vmatpush2.bf16.msra.mxu0 0
      %6967 = vmatprep.subr.bf16.mxu0 0
      %6968 = vmatpush2.bf16.msra.mxu0 0
      %6969 = vmatprep.subr.bf16.mxu0 0
      %6970 = vmatpush2.bf16.msra.mxu0 0
      %6971 = vmatprep.subr.bf16.mxu0 0
      %6972 = vmatpush2.bf16.msra.mxu0 0
      %6973 = vmatprep.subr.bf16.mxu0 0
      %6974 = vmatpush2.bf16.msra.mxu0 0
      %6975 = vmatprep.mubr.bf16.mxu0 0
      %6976 = vmatmul.mubr.bf16.gmra.mxu0 %v6808
      %v6977 = vpop.f32.mrf.mxu0
      %v6978 = vadd.f32 %v6757, %v6977
      %v6979 = vpop.f32.mrf.mxu0
      %v6980 = vadd.f32 %v6769, %v6979
      %v6981 = vpop.f32.mrf.mxu0
      %v6982 = vadd.f32 %v6758, %v6981
      %v6983 = vpop.f32.mrf.mxu0
      %v6984 = vadd.f32 %v6770, %v6983
      %6985 = vmatprep.mubr.bf16.mxu0 0
      %6986 = vmatmul.mubr.bf16.gmra.mxu0 %v6811
      %v6987 = vpop.f32.mrf.mxu0
      %v6988 = vadd.f32 %v6759, %v6987
      %v6989 = vpop.f32.mrf.mxu0
      %v6990 = vadd.f32 %v6771, %v6989
      %v6991 = vpop.f32.mrf.mxu0
      %v6992 = vadd.f32 %v6760, %v6991
      %v6993 = vpop.f32.mrf.mxu0
      %v6994 = vadd.f32 %v6772, %v6993
      %6995 = vdwg.mxu0
      %6996 = vmatprep.subr.bf16.mxu0 0
      %6997 = vmatpush1.bf16.msra.mxu0 0
      %6998 = vmatprep.subr.bf16.mxu0 0
      %6999 = vmatpush1.bf16.msra.mxu0 0
      %7000 = vmatprep.subr.bf16.mxu0 0
      %7001 = vmatpush1.bf16.msra.mxu0 0
      %7002 = vmatprep.subr.bf16.mxu0 0
      %7003 = vmatpush1.bf16.msra.mxu0 0
      %7004 = vmatprep.subr.bf16.mxu0 0
      %7005 = vmatpush1.bf16.msra.mxu0 0
      %7006 = vmatprep.subr.bf16.mxu0 0
      %7007 = vmatpush1.bf16.msra.mxu0 0
      %7008 = vmatprep.subr.bf16.mxu0 0
      %7009 = vmatpush1.bf16.msra.mxu0 0
      %7010 = vmatprep.subr.bf16.mxu0 %v6835
      %7011 = vmatpush1.bf16.msra.mxu0 %v6832
      %7012 = vmatprep.subr.bf16.mxu0 0
      %7013 = vmatpush2.bf16.msra.mxu0 0
      %7014 = vmatprep.subr.bf16.mxu0 0
      %7015 = vmatpush2.bf16.msra.mxu0 0
      %7016 = vmatprep.subr.bf16.mxu0 0
      %7017 = vmatpush2.bf16.msra.mxu0 0
      %7018 = vmatprep.subr.bf16.mxu0 0
      %7019 = vmatpush2.bf16.msra.mxu0 0
      %7020 = vmatprep.subr.bf16.mxu0 0
      %7021 = vmatpush2.bf16.msra.mxu0 0
      %7022 = vmatprep.subr.bf16.mxu0 0
      %7023 = vmatpush2.bf16.msra.mxu0 0
      %7024 = vmatprep.subr.bf16.mxu0 0
      %7025 = vmatpush2.bf16.msra.mxu0 0
      %7026 = vmatprep.subr.bf16.mxu0 0
      %7027 = vmatpush2.bf16.msra.mxu0 0
      %7028 = vmatprep.mubr.bf16.mxu0 0
      %7029 = vmatmul.mubr.bf16.gmra.mxu0 %v6808
      %v7030 = vpop.f32.mrf.mxu0
      %v7031 = vadd.f32 %v6781, %v7030
      %v7032 = vpop.f32.mrf.mxu0
      %v7033 = vadd.f32 %v6793, %v7032
      %v7034 = vpop.f32.mrf.mxu0
      %v7035 = vadd.f32 %v6782, %v7034
      %v7036 = vpop.f32.mrf.mxu0
      %v7037 = vadd.f32 %v6794, %v7036
      %7038 = vmatprep.mubr.bf16.mxu0 0
      %7039 = vmatmul.mubr.bf16.gmra.mxu0 %v6811
      %v7040 = vpop.f32.mrf.mxu0
      %v7041 = vadd.f32 %v6783, %v7040
      %v7042 = vpop.f32.mrf.mxu0
      %v7043 = vadd.f32 %v6795, %v7042
      %v7044 = vpop.f32.mrf.mxu0
      %v7045 = vadd.f32 %v6784, %v7044
      %v7046 = vpop.f32.mrf.mxu0
      %v7047 = vadd.f32 %v6796, %v7046
      %7048 = vdwg.mxu0
      %v7049 = vpack.c.bf16 %v6876, %v6872
      %v7050 = vpack.c.bf16 %v6878, %v6874
      %v7051 = vpack.c.bf16 %v6929, %v6925
      %v7052 = vpack.c.bf16 %v6931, %v6927
      %v7053 = vpack.c.bf16 %v6982, %v6978
      %v7054 = vpack.c.bf16 %v6984, %v6980
      %v7055 = vpack.c.bf16 %v7035, %v7031
      %v7056 = vpack.c.bf16 %v7037, %v7033
      %v7057 = vpack.c.bf16 %v6886, %v6882
      %v7058 = vpack.c.bf16 %v6888, %v6884
      %v7059 = vpack.c.bf16 %v6939, %v6935
      %v7060 = vpack.c.bf16 %v6941, %v6937
      %v7061 = vpack.c.bf16 %v6992, %v6988
      %v7062 = vpack.c.bf16 %v6994, %v6990
      %v7063 = vpack.c.bf16 %v7045, %v7041
      %v7064 = vpack.c.bf16 %v7047, %v7043
      %7081 = vrot.lane.b32.xlu0 %v7049, 33
      %v7082 = vpop.permute.xlu0 %7081
      %7083 = vrot.lane.b32.xlu0 %v7050, 33
      %v7084 = vpop.permute.xlu0 %7083
      %7085 = vrot.lane.b32.xlu0 %v7051, 33
      %v7086 = vpop.permute.xlu0 %7085
      %7087 = vrot.lane.b32.xlu0 %v7052, 33
      %v7088 = vpop.permute.xlu0 %7087
      %7089 = vrot.lane.b32.xlu0 %v7053, 33
      %v7090 = vpop.permute.xlu0 %7089
      %7091 = vrot.lane.b32.xlu0 %v7054, 33
      %v7092 = vpop.permute.xlu0 %7091
      %7093 = vrot.lane.b32.xlu0 %v7055, 33
      %v7094 = vpop.permute.xlu0 %7093
      %7095 = vrot.lane.b32.xlu0 %v7056, 33
      %v7096 = vpop.permute.xlu0 %7095
      %7097 = vrot.lane.b32.xlu0 %v7057, 33
      %v7098 = vpop.permute.xlu0 %7097
      %7099 = vrot.lane.b32.xlu0 %v7058, 33
      %v7100 = vpop.permute.xlu0 %7099
      %7101 = vrot.lane.b32.xlu0 %v7059, 33
      %v7102 = vpop.permute.xlu0 %7101
      %7103 = vrot.lane.b32.xlu0 %v7060, 33
      %v7104 = vpop.permute.xlu0 %7103
      %7105 = vrot.lane.b32.xlu0 %v7061, 33
      %v7106 = vpop.permute.xlu0 %7105
      %7107 = vrot.lane.b32.xlu0 %v7062, 33
      %v7108 = vpop.permute.xlu0 %7107
      %7109 = vrot.lane.b32.xlu0 %v7063, 33
      %v7110 = vpop.permute.xlu0 %7109
      %7111 = vrot.lane.b32.xlu0 %v7064, 33
      %v7112 = vpop.permute.xlu0 %7111
      %vm7113 = vcmask 269312
      %v7114 = vsel %vm7113, %v7082, %v7084
      %v7115 = vsel %vm7113, %v7084, %v7086
      %v7116 = vsel %vm7113, %v7086, %v7088
      %v7117 = vsel %vm7113, %v7088, %v7090
      %v7118 = vsel %vm7113, %v7090, %v7092
      %v7119 = vsel %vm7113, %v7092, %v7094
      %v7120 = vsel %vm7113, %v7094, %v7096
      %v7121 = vsel %vm7113, %v7098, %v7100
      %v7122 = vsel %vm7113, %v7100, %v7102
      %v7123 = vsel %vm7113, %v7102, %v7104
      %v7124 = vsel %vm7113, %v7104, %v7106
      %v7125 = vsel %vm7113, %v7106, %v7108
      %v7126 = vsel %vm7113, %v7108, %v7110
      %v7127 = vsel %vm7113, %v7110, %v7112
      %vm7142 = vcmask 269312
      %v7144 = vsel %vm7142, 0, %v7082
      %v7147 = vsel %vm7142, 0, %v7098
      %v7150 = vsel %vm7142, %v7096, 0
      %v7153 = vsel %vm7142, %v7112, 0
      %v7155 = vadd.s32 %v778, 256
      %v7156 = vadd.s32 %v778, 384
      %v7157 = vadd.s32 %v778, 512
      %v7158 = vadd.s32 %v778, 640
      %v7159 = vadd.s32 %v778, 768
      %v7160 = vadd.s32 %v778, 896
      %vm7161 = vcmp.lt.s32.totalorder %v778, 0
      %v7162 = vsub.s32 0, %v778
      %v7163 = vsel %vm7161, %v7162, %v778
      %v7164 = vshrl.u32 %v7163, 5
      %v7165 = vand.u32 %v7163, 31
      %v7166 = vsub.s32 0, %v7165
      %v7167 = vsel %vm7161, %v7166, %v7165
      %vm7168 = vcmp.lt.s32.totalorder %v3924, 0
      %v7169 = vsub.s32 0, %v3924
      %v7170 = vsel %vm7168, %v7169, %v3924
      %v7171 = vshrl.u32 %v7170, 5
      %v7172 = vand.u32 %v7170, 31
      %v7173 = vsub.s32 0, %v7172
      %v7174 = vsel %vm7168, %v7173, %v7172
      %vm7175 = vcmp.lt.s32.totalorder %v7155, 0
      %v7176 = vsub.s32 0, %v7155
      %v7177 = vsel %vm7175, %v7176, %v7155
      %v7178 = vshrl.u32 %v7177, 5
      %v7179 = vand.u32 %v7177, 31
      %v7180 = vsub.s32 0, %v7179
      %v7181 = vsel %vm7175, %v7180, %v7179
      %vm7182 = vcmp.lt.s32.totalorder %v7156, 0
      %v7183 = vsub.s32 0, %v7156
      %v7184 = vsel %vm7182, %v7183, %v7156
      %v7185 = vshrl.u32 %v7184, 5
      %v7186 = vand.u32 %v7184, 31
      %v7187 = vsub.s32 0, %v7186
      %v7188 = vsel %vm7182, %v7187, %v7186
      %vm7189 = vcmp.lt.s32.totalorder %v7157, 0
      %v7190 = vsub.s32 0, %v7157
      %v7191 = vsel %vm7189, %v7190, %v7157
      %v7192 = vshrl.u32 %v7191, 5
      %v7193 = vand.u32 %v7191, 31
      %v7194 = vsub.s32 0, %v7193
      %v7195 = vsel %vm7189, %v7194, %v7193
      %vm7196 = vcmp.lt.s32.totalorder %v7158, 0
      %v7197 = vsub.s32 0, %v7158
      %v7198 = vsel %vm7196, %v7197, %v7158
      %v7199 = vshrl.u32 %v7198, 5
      %v7200 = vand.u32 %v7198, 31
      %v7201 = vsub.s32 0, %v7200
      %v7202 = vsel %vm7196, %v7201, %v7200
      %vm7203 = vcmp.lt.s32.totalorder %v7159, 0
      %v7204 = vsub.s32 0, %v7159
      %v7205 = vsel %vm7203, %v7204, %v7159
      %v7206 = vshrl.u32 %v7205, 5
      %v7207 = vand.u32 %v7205, 31
      %v7208 = vsub.s32 0, %v7207
      %v7209 = vsel %vm7203, %v7208, %v7207
      %vm7210 = vcmp.lt.s32.totalorder %v7160, 0
      %v7211 = vsub.s32 0, %v7160
      %v7212 = vsel %vm7210, %v7211, %v7160
      %v7213 = vshrl.u32 %v7212, 5
      %v7214 = vand.u32 %v7212, 31
      %v7215 = vsub.s32 0, %v7214
      %v7216 = vsel %vm7210, %v7215, %v7214
      %vm7217 = vcmp.ne.s32.totalorder %v7167, 0
      %vm7218 = vcmp.ne.s32.totalorder %v7174, 0
      %vm7219 = vcmp.ne.s32.totalorder %v7181, 0
      %vm7220 = vcmp.ne.s32.totalorder %v7188, 0
      %vm7221 = vcmp.ne.s32.totalorder %v7195, 0
      %vm7222 = vcmp.ne.s32.totalorder %v7202, 0
      %vm7223 = vcmp.ne.s32.totalorder %v7209, 0
      %vm7224 = vcmp.ne.s32.totalorder %v7216, 0
      %vm7225 = vcmp.lt.s32.totalorder %v7167, 0
      %vm7226 = vcmp.lt.s32.totalorder %v7174, 0
      %vm7227 = vcmp.lt.s32.totalorder %v7181, 0
      %vm7228 = vcmp.lt.s32.totalorder %v7188, 0
      %vm7229 = vcmp.lt.s32.totalorder %v7195, 0
      %vm7230 = vcmp.lt.s32.totalorder %v7202, 0
      %vm7231 = vcmp.lt.s32.totalorder %v7209, 0
      %vm7232 = vcmp.lt.s32.totalorder %v7216, 0
      %vm7233 = vmand %vm7225, %vm7217
      %vm7234 = vmand %vm7226, %vm7218
      %vm7235 = vmand %vm7227, %vm7219
      %vm7236 = vmand %vm7228, %vm7220
      %vm7237 = vmand %vm7229, %vm7221
      %vm7238 = vmand %vm7230, %vm7222
      %vm7239 = vmand %vm7231, %vm7223
      %vm7240 = vmand %vm7232, %vm7224
      %v7241 = vadd.s32 %v7167, 32
      %v7242 = vadd.s32 %v7174, 32
      %v7243 = vadd.s32 %v7181, 32
      %v7244 = vadd.s32 %v7188, 32
      %v7245 = vadd.s32 %v7195, 32
      %v7246 = vadd.s32 %v7202, 32
      %v7247 = vadd.s32 %v7209, 32
      %v7248 = vadd.s32 %v7216, 32
      %v7249 = vsel %vm7233, %v7241, %v7167
      %v7250 = vsel %vm7234, %v7242, %v7174
      %v7251 = vsel %vm7235, %v7243, %v7181
      %v7252 = vsel %vm7236, %v7244, %v7188
      %v7253 = vsel %vm7237, %v7245, %v7195
      %v7254 = vsel %vm7238, %v7246, %v7202
      %v7255 = vsel %vm7239, %v7247, %v7209
      %v7256 = vsel %vm7240, %v7248, %v7216
      %vm7257 = vcmp.ge.s32.totalorder %v7249, 1
      %vm7258 = vcmp.ge.s32.totalorder %v7250, 1
      %vm7259 = vcmp.ge.s32.totalorder %v7251, 1
      %vm7260 = vcmp.ge.s32.totalorder %v7252, 1
      %vm7261 = vcmp.ge.s32.totalorder %v7253, 1
      %vm7262 = vcmp.ge.s32.totalorder %v7254, 1
      %vm7263 = vcmp.ge.s32.totalorder %v7255, 1
      %vm7264 = vcmp.ge.s32.totalorder %v7256, 1
      %vm7265 = vcmp.le.s32.totalorder %v7249, 30
      %vm7266 = vcmp.le.s32.totalorder %v7250, 30
      %vm7267 = vcmp.le.s32.totalorder %v7251, 30
      %vm7268 = vcmp.le.s32.totalorder %v7252, 30
      %vm7269 = vcmp.le.s32.totalorder %v7253, 30
      %vm7270 = vcmp.le.s32.totalorder %v7254, 30
      %vm7271 = vcmp.le.s32.totalorder %v7255, 30
      %vm7272 = vcmp.le.s32.totalorder %v7256, 30
      %v7273 = vsel %vm7257, 1, 0
      %v7274 = vsel %vm7258, 1, 0
      %v7275 = vsel %vm7259, 1, 0
      %v7276 = vsel %vm7260, 1, 0
      %v7277 = vsel %vm7261, 1, 0
      %v7278 = vsel %vm7262, 1, 0
      %v7279 = vsel %vm7263, 1, 0
      %v7280 = vsel %vm7264, 1, 0
      %vm7281 = vcmp.eq.s32.totalorder %v7273, 1
      %vm7282 = vcmp.eq.s32.totalorder %v7274, 1
      %vm7283 = vcmp.eq.s32.totalorder %v7275, 1
      %vm7284 = vcmp.eq.s32.totalorder %v7276, 1
      %vm7285 = vcmp.eq.s32.totalorder %v7277, 1
      %vm7286 = vcmp.eq.s32.totalorder %v7278, 1
      %vm7287 = vcmp.eq.s32.totalorder %v7279, 1
      %vm7288 = vcmp.eq.s32.totalorder %v7280, 1
      %vm7289 = vmpackc.low %vm7282, %vm7281
      %vm7290 = vmpackc.low %vm7284, %vm7283
      %vm7291 = vmpackc.low %vm7286, %vm7285
      %vm7292 = vmpackc.low %vm7288, %vm7287
      %v7293 = vsel %vm7289, 65537, 0
      %v7294 = vsel %vm7290, 65537, 0
      %v7295 = vsel %vm7291, 65537, 0
      %v7296 = vsel %vm7292, 65537, 0
      %v7297 = vlaneseq
      %v7298 = vshrl.u32 %v7297, 7
      %v7299 = vsub.s32 0, %v7298
      %v7300 = vrot.slane %v7293, %v7299
      %v7301 = vlaneseq
      %v7302 = vshrl.u32 %v7301, 7
      %v7303 = vsub.s32 4, %v7302
      %v7304 = vrot.slane %v7293, %v7303
      %v7305 = vlaneseq
      %v7306 = vshrl.u32 %v7305, 7
      %v7307 = vsub.s32 0, %v7306
      %v7308 = vrot.slane %v7294, %v7307
      %v7309 = vlaneseq
      %v7310 = vshrl.u32 %v7309, 7
      %v7311 = vsub.s32 4, %v7310
      %v7312 = vrot.slane %v7294, %v7311
      %v7313 = vlaneseq
      %v7314 = vshrl.u32 %v7313, 7
      %v7315 = vsub.s32 0, %v7314
      %v7316 = vrot.slane %v7295, %v7315
      %v7317 = vlaneseq
      %v7318 = vshrl.u32 %v7317, 7
      %v7319 = vsub.s32 4, %v7318
      %v7320 = vrot.slane %v7295, %v7319
      %v7321 = vlaneseq
      %v7322 = vshrl.u32 %v7321, 7
      %v7323 = vsub.s32 0, %v7322
      %v7324 = vrot.slane %v7296, %v7323
      %v7325 = vlaneseq
      %v7326 = vshrl.u32 %v7325, 7
      %v7327 = vsub.s32 4, %v7326
      %v7328 = vrot.slane %v7296, %v7327
      %vm7329 = vcmp.ne.s16.totalorder %v7300, 0
      %vm7330 = vcmp.ne.s16.totalorder %v7304, 0
      %vm7331 = vcmp.ne.s16.totalorder %v7308, 0
      %vm7332 = vcmp.ne.s16.totalorder %v7312, 0
      %vm7333 = vcmp.ne.s16.totalorder %v7316, 0
      %vm7334 = vcmp.ne.s16.totalorder %v7320, 0
      %vm7335 = vcmp.ne.s16.totalorder %v7324, 0
      %vm7336 = vcmp.ne.s16.totalorder %v7328, 0
      %v7337 = vsel %vm7329, %v7144, 0
      %v7338 = vsel %vm7330, %v7114, 0
      %v7339 = vsel %vm7331, %v7115, 0
      %v7340 = vsel %vm7332, %v7116, 0
      %v7341 = vsel %vm7333, %v7117, 0
      %v7342 = vsel %vm7334, %v7118, 0
      %v7343 = vsel %vm7335, %v7119, 0
      %v7344 = vsel %vm7336, %v7120, 0
      %v7345 = vsel %vm7329, %v7147, 0
      %v7346 = vsel %vm7330, %v7121, 0
      %v7347 = vsel %vm7331, %v7122, 0
      %v7348 = vsel %vm7332, %v7123, 0
      %v7349 = vsel %vm7333, %v7124, 0
      %v7350 = vsel %vm7334, %v7125, 0
      %v7351 = vsel %vm7335, %v7126, 0
      %v7352 = vsel %vm7336, %v7127, 0
      %v7353 = vld [vmem:[%s8] sm:$0xf]
      %v7354 = vld [vmem:[%s8 + $0x4] sm:$0xf]
      %v7355 = vld [vmem:[%s8 + $0x8] sm:$0xf]
      %v7356 = vld [vmem:[%s8 + $0xc] sm:$0xf]
      %s7357 = scalar_lea.vmem %s8, 16
      %v7358 = vld [vmem:[%s7357] sm:$0xf]
      %v7359 = vld [vmem:[%s7357 + $0x4] sm:$0xf]
      %v7360 = vld [vmem:[%s7357 + $0x8] sm:$0xf]
      %v7361 = vld [vmem:[%s7357 + $0xc] sm:$0xf]
      %v7366 = vunpack.c.l.b16 %v7358
      %v7367 = vunpack.c.l.b16 %v7359
      %v7368 = vunpack.c.l.b16 %v7360
      %v7369 = vunpack.c.l.b16 %v7361
      %v7370 = vpack.c.b16 %v7367, %v7366
      %v7371 = vpack.c.b16 %v7369, %v7368
      %7376 = vrot.lane.b32.xlu0 %v7144, 127
      %v7377 = vpop.permute.xlu0 %7376
      %7378 = vrot.lane.b32.xlu0 %v7114, 127
      %v7379 = vpop.permute.xlu0 %7378
      %7380 = vrot.lane.b32.xlu0 %v7115, 127
      %v7381 = vpop.permute.xlu0 %7380
      %7382 = vrot.lane.b32.xlu0 %v7116, 127
      %v7383 = vpop.permute.xlu0 %7382
      %7384 = vrot.lane.b32.xlu0 %v7117, 127
      %v7385 = vpop.permute.xlu0 %7384
      %7386 = vrot.lane.b32.xlu0 %v7118, 127
      %v7387 = vpop.permute.xlu0 %7386
      %7388 = vrot.lane.b32.xlu0 %v7119, 127
      %v7389 = vpop.permute.xlu0 %7388
      %7390 = vrot.lane.b32.xlu0 %v7120, 127
      %v7391 = vpop.permute.xlu0 %7390
      %7392 = vrot.lane.b32.xlu0 %v7150, 127
      %v7393 = vpop.permute.xlu0 %7392
      %7394 = vrot.lane.b32.xlu0 %v7147, 127
      %v7395 = vpop.permute.xlu0 %7394
      %7396 = vrot.lane.b32.xlu0 %v7121, 127
      %v7397 = vpop.permute.xlu0 %7396
      %7398 = vrot.lane.b32.xlu0 %v7122, 127
      %v7399 = vpop.permute.xlu0 %7398
      %7400 = vrot.lane.b32.xlu0 %v7123, 127
      %v7401 = vpop.permute.xlu0 %7400
      %7402 = vrot.lane.b32.xlu0 %v7124, 127
      %v7403 = vpop.permute.xlu0 %7402
      %7404 = vrot.lane.b32.xlu0 %v7125, 127
      %v7405 = vpop.permute.xlu0 %7404
      %7406 = vrot.lane.b32.xlu0 %v7126, 127
      %v7407 = vpop.permute.xlu0 %7406
      %7408 = vrot.lane.b32.xlu0 %v7127, 127
      %v7409 = vpop.permute.xlu0 %7408
      %7410 = vrot.lane.b32.xlu0 %v7153, 127
      %v7411 = vpop.permute.xlu0 %7410
      %v7412 = vsel %vm4008, %v7377, %v7379
      %v7413 = vsel %vm4008, %v7379, %v7381
      %v7414 = vsel %vm4008, %v7381, %v7383
      %v7415 = vsel %vm4008, %v7383, %v7385
      %v7416 = vsel %vm4008, %v7385, %v7387
      %v7417 = vsel %vm4008, %v7387, %v7389
      %v7418 = vsel %vm4008, %v7389, %v7391
      %v7419 = vsel %vm4008, %v7391, %v7393
      %v7420 = vsel %vm4008, %v7395, %v7397
      %v7421 = vsel %vm4008, %v7397, %v7399
      %v7422 = vsel %vm4008, %v7399, %v7401
      %v7423 = vsel %vm4008, %v7401, %v7403
      %v7424 = vsel %vm4008, %v7403, %v7405
      %v7425 = vsel %vm4008, %v7405, %v7407
      %v7426 = vsel %vm4008, %v7407, %v7409
      %v7427 = vsel %vm4008, %v7409, %v7411
      %v7445 = vsel %vm831, %v7370, 0
      %v7448 = vsel %vm831, %v7371, 0
      %7450 = vmatprep.subr.bf16.mxu0 0
      %7451 = vmatpush1.bf16.msra.mxu0 0
      %7452 = vmatprep.subr.bf16.mxu0 0
      %7453 = vmatpush1.bf16.msra.mxu0 0
      %7454 = vmatprep.subr.bf16.mxu0 0
      %7455 = vmatpush1.bf16.msra.mxu0 0
      %7456 = vmatprep.subr.bf16.mxu0 0
      %7457 = vmatpush1.bf16.msra.mxu0 0
      %7458 = vmatprep.subr.bf16.mxu0 0
      %7459 = vmatpush1.bf16.msra.mxu0 0
      %7460 = vmatprep.subr.bf16.mxu0 0
      %7461 = vmatpush1.bf16.msra.mxu0 0
      %7462 = vmatprep.subr.bf16.mxu0 %v7421
      %7463 = vmatpush1.bf16.msra.mxu0 %v7420
      %7464 = vmatprep.subr.bf16.mxu0 %v7413
      %7465 = vmatpush1.bf16.msra.mxu0 %v7412
      %7466 = vmatprep.subr.bf16.mxu0 0
      %7467 = vmatpush2.bf16.msra.mxu0 0
      %7468 = vmatprep.subr.bf16.mxu0 0
      %7469 = vmatpush2.bf16.msra.mxu0 0
      %7470 = vmatprep.subr.bf16.mxu0 0
      %7471 = vmatpush2.bf16.msra.mxu0 0
      %7472 = vmatprep.subr.bf16.mxu0 0
      %7473 = vmatpush2.bf16.msra.mxu0 0
      %7474 = vmatprep.subr.bf16.mxu0 0
      %7475 = vmatpush2.bf16.msra.mxu0 0
      %7476 = vmatprep.subr.bf16.mxu0 0
      %7477 = vmatpush2.bf16.msra.mxu0 0
      %7478 = vmatprep.subr.bf16.mxu0 0
      %7479 = vmatpush2.bf16.msra.mxu0 0
      %7480 = vmatprep.subr.bf16.mxu0 0
      %7481 = vmatpush2.bf16.msra.mxu0 0
      %7482 = vmatprep.mubr.bf16.mxu0 0
      %7483 = vmatmul.mubr.bf16.gmra.mxu0 %v7445
      %v7484 = vpop.f32.mrf.mxu0
      %v7485 = vadd.f32 0.0, %v7484
      %v7486 = vpop.f32.mrf.mxu0
      %v7487 = vadd.f32 0.0, %v7486
      %v7488 = vpop.f32.mrf.mxu0
      %v7489 = vadd.f32 0.0, %v7488
      %v7490 = vpop.f32.mrf.mxu0
      %v7491 = vadd.f32 0.0, %v7490
      %7492 = vmatprep.mubr.bf16.mxu0 0
      %7493 = vmatmul.mubr.bf16.gmra.mxu0 %v7448
      %v7494 = vpop.f32.mrf.mxu0
      %v7495 = vadd.f32 0.0, %v7494
      %v7496 = vpop.f32.mrf.mxu0
      %v7497 = vadd.f32 0.0, %v7496
      %v7498 = vpop.f32.mrf.mxu0
      %v7499 = vadd.f32 0.0, %v7498
      %v7500 = vpop.f32.mrf.mxu0
      %v7501 = vadd.f32 0.0, %v7500
      %7502 = vdwg.mxu0
      %7503 = vmatprep.subr.bf16.mxu0 0
      %7504 = vmatpush1.bf16.msra.mxu0 0
      %7505 = vmatprep.subr.bf16.mxu0 0
      %7506 = vmatpush1.bf16.msra.mxu0 0
      %7507 = vmatprep.subr.bf16.mxu0 0
      %7508 = vmatpush1.bf16.msra.mxu0 0
      %7509 = vmatprep.subr.bf16.mxu0 0
      %7510 = vmatpush1.bf16.msra.mxu0 0
      %7511 = vmatprep.subr.bf16.mxu0 0
      %7512 = vmatpush1.bf16.msra.mxu0 0
      %7513 = vmatprep.subr.bf16.mxu0 0
      %7514 = vmatpush1.bf16.msra.mxu0 0
      %7515 = vmatprep.subr.bf16.mxu0 %v7423
      %7516 = vmatpush1.bf16.msra.mxu0 %v7422
      %7517 = vmatprep.subr.bf16.mxu0 %v7415
      %7518 = vmatpush1.bf16.msra.mxu0 %v7414
      %7519 = vmatprep.subr.bf16.mxu0 0
      %7520 = vmatpush2.bf16.msra.mxu0 0
      %7521 = vmatprep.subr.bf16.mxu0 0
      %7522 = vmatpush2.bf16.msra.mxu0 0
      %7523 = vmatprep.subr.bf16.mxu0 0
      %7524 = vmatpush2.bf16.msra.mxu0 0
      %7525 = vmatprep.subr.bf16.mxu0 0
      %7526 = vmatpush2.bf16.msra.mxu0 0
      %7527 = vmatprep.subr.bf16.mxu0 0
      %7528 = vmatpush2.bf16.msra.mxu0 0
      %7529 = vmatprep.subr.bf16.mxu0 0
      %7530 = vmatpush2.bf16.msra.mxu0 0
      %7531 = vmatprep.subr.bf16.mxu0 0
      %7532 = vmatpush2.bf16.msra.mxu0 0
      %7533 = vmatprep.subr.bf16.mxu0 0
      %7534 = vmatpush2.bf16.msra.mxu0 0
      %7535 = vmatprep.mubr.bf16.mxu0 0
      %7536 = vmatmul.mubr.bf16.gmra.mxu0 %v7445
      %v7537 = vpop.f32.mrf.mxu0
      %v7538 = vadd.f32 0.0, %v7537
      %v7539 = vpop.f32.mrf.mxu0
      %v7540 = vadd.f32 0.0, %v7539
      %v7541 = vpop.f32.mrf.mxu0
      %v7542 = vadd.f32 0.0, %v7541
      %v7543 = vpop.f32.mrf.mxu0
      %v7544 = vadd.f32 0.0, %v7543
      %7545 = vmatprep.mubr.bf16.mxu0 0
      %7546 = vmatmul.mubr.bf16.gmra.mxu0 %v7448
      %v7547 = vpop.f32.mrf.mxu0
      %v7548 = vadd.f32 0.0, %v7547
      %v7549 = vpop.f32.mrf.mxu0
      %v7550 = vadd.f32 0.0, %v7549
      %v7551 = vpop.f32.mrf.mxu0
      %v7552 = vadd.f32 0.0, %v7551
      %v7553 = vpop.f32.mrf.mxu0
      %v7554 = vadd.f32 0.0, %v7553
      %7555 = vdwg.mxu0
      %7556 = vmatprep.subr.bf16.mxu0 0
      %7557 = vmatpush1.bf16.msra.mxu0 0
      %7558 = vmatprep.subr.bf16.mxu0 0
      %7559 = vmatpush1.bf16.msra.mxu0 0
      %7560 = vmatprep.subr.bf16.mxu0 0
      %7561 = vmatpush1.bf16.msra.mxu0 0
      %7562 = vmatprep.subr.bf16.mxu0 0
      %7563 = vmatpush1.bf16.msra.mxu0 0
      %7564 = vmatprep.subr.bf16.mxu0 0
      %7565 = vmatpush1.bf16.msra.mxu0 0
      %7566 = vmatprep.subr.bf16.mxu0 0
      %7567 = vmatpush1.bf16.msra.mxu0 0
      %7568 = vmatprep.subr.bf16.mxu0 %v7425
      %7569 = vmatpush1.bf16.msra.mxu0 %v7424
      %7570 = vmatprep.subr.bf16.mxu0 %v7417
      %7571 = vmatpush1.bf16.msra.mxu0 %v7416
      %7572 = vmatprep.subr.bf16.mxu0 0
      %7573 = vmatpush2.bf16.msra.mxu0 0
      %7574 = vmatprep.subr.bf16.mxu0 0
      %7575 = vmatpush2.bf16.msra.mxu0 0
      %7576 = vmatprep.subr.bf16.mxu0 0
      %7577 = vmatpush2.bf16.msra.mxu0 0
      %7578 = vmatprep.subr.bf16.mxu0 0
      %7579 = vmatpush2.bf16.msra.mxu0 0
      %7580 = vmatprep.subr.bf16.mxu0 0
      %7581 = vmatpush2.bf16.msra.mxu0 0
      %7582 = vmatprep.subr.bf16.mxu0 0
      %7583 = vmatpush2.bf16.msra.mxu0 0
      %7584 = vmatprep.subr.bf16.mxu0 0
      %7585 = vmatpush2.bf16.msra.mxu0 0
      %7586 = vmatprep.subr.bf16.mxu0 0
      %7587 = vmatpush2.bf16.msra.mxu0 0
      %7588 = vmatprep.mubr.bf16.mxu0 0
      %7589 = vmatmul.mubr.bf16.gmra.mxu0 %v7445
      %v7590 = vpop.f32.mrf.mxu0
      %v7591 = vadd.f32 0.0, %v7590
      %v7592 = vpop.f32.mrf.mxu0
      %v7593 = vadd.f32 0.0, %v7592
      %v7594 = vpop.f32.mrf.mxu0
      %v7595 = vadd.f32 0.0, %v7594
      %v7596 = vpop.f32.mrf.mxu0
      %v7597 = vadd.f32 0.0, %v7596
      %7598 = vmatprep.mubr.bf16.mxu0 0
      %7599 = vmatmul.mubr.bf16.gmra.mxu0 %v7448
      %v7600 = vpop.f32.mrf.mxu0
      %v7601 = vadd.f32 0.0, %v7600
      %v7602 = vpop.f32.mrf.mxu0
      %v7603 = vadd.f32 0.0, %v7602
      %v7604 = vpop.f32.mrf.mxu0
      %v7605 = vadd.f32 0.0, %v7604
      %v7606 = vpop.f32.mrf.mxu0
      %v7607 = vadd.f32 0.0, %v7606
      %7608 = vdwg.mxu0
      %7609 = vmatprep.subr.bf16.mxu0 0
      %7610 = vmatpush1.bf16.msra.mxu0 0
      %7611 = vmatprep.subr.bf16.mxu0 0
      %7612 = vmatpush1.bf16.msra.mxu0 0
      %7613 = vmatprep.subr.bf16.mxu0 0
      %7614 = vmatpush1.bf16.msra.mxu0 0
      %7615 = vmatprep.subr.bf16.mxu0 0
      %7616 = vmatpush1.bf16.msra.mxu0 0
      %7617 = vmatprep.subr.bf16.mxu0 0
      %7618 = vmatpush1.bf16.msra.mxu0 0
      %7619 = vmatprep.subr.bf16.mxu0 0
      %7620 = vmatpush1.bf16.msra.mxu0 0
      %7621 = vmatprep.subr.bf16.mxu0 %v7427
      %7622 = vmatpush1.bf16.msra.mxu0 %v7426
      %7623 = vmatprep.subr.bf16.mxu0 %v7419
      %7624 = vmatpush1.bf16.msra.mxu0 %v7418
      %7625 = vmatprep.subr.bf16.mxu0 0
      %7626 = vmatpush2.bf16.msra.mxu0 0
      %7627 = vmatprep.subr.bf16.mxu0 0
      %7628 = vmatpush2.bf16.msra.mxu0 0
      %7629 = vmatprep.subr.bf16.mxu0 0
      %7630 = vmatpush2.bf16.msra.mxu0 0
      %7631 = vmatprep.subr.bf16.mxu0 0
      %7632 = vmatpush2.bf16.msra.mxu0 0
      %7633 = vmatprep.subr.bf16.mxu0 0
      %7634 = vmatpush2.bf16.msra.mxu0 0
      %7635 = vmatprep.subr.bf16.mxu0 0
      %7636 = vmatpush2.bf16.msra.mxu0 0
      %7637 = vmatprep.subr.bf16.mxu0 0
      %7638 = vmatpush2.bf16.msra.mxu0 0
      %7639 = vmatprep.subr.bf16.mxu0 0
      %7640 = vmatpush2.bf16.msra.mxu0 0
      %7641 = vmatprep.mubr.bf16.mxu0 0
      %7642 = vmatmul.mubr.bf16.gmra.mxu0 %v7445
      %v7643 = vpop.f32.mrf.mxu0
      %v7644 = vadd.f32 0.0, %v7643
      %v7645 = vpop.f32.mrf.mxu0
      %v7646 = vadd.f32 0.0, %v7645
      %v7647 = vpop.f32.mrf.mxu0
      %v7648 = vadd.f32 0.0, %v7647
      %v7649 = vpop.f32.mrf.mxu0
      %v7650 = vadd.f32 0.0, %v7649
      %7651 = vmatprep.mubr.bf16.mxu0 0
      %7652 = vmatmul.mubr.bf16.gmra.mxu0 %v7448
      %v7653 = vpop.f32.mrf.mxu0
      %v7654 = vadd.f32 0.0, %v7653
      %v7655 = vpop.f32.mrf.mxu0
      %v7656 = vadd.f32 0.0, %v7655
      %v7657 = vpop.f32.mrf.mxu0
      %v7658 = vadd.f32 0.0, %v7657
      %v7659 = vpop.f32.mrf.mxu0
      %v7660 = vadd.f32 0.0, %v7659
      %7661 = vdwg.mxu0
      %v7666 = vunpack.c.l.b16 %v7353
      %v7667 = vunpack.c.l.b16 %v7354
      %v7668 = vunpack.c.l.b16 %v7355
      %v7669 = vunpack.c.l.b16 %v7356
      %v7670 = vpack.c.b16 %v7667, %v7666
      %v7671 = vpack.c.b16 %v7669, %v7668
      %v7673 = vsel %vm831, %v7670, 0
      %v7676 = vsel %vm831, %v7671, 0
      %7678 = vmatprep.subr.bf16.mxu0 0
      %7679 = vmatpush1.bf16.msra.mxu0 0
      %7680 = vmatprep.subr.bf16.mxu0 0
      %7681 = vmatpush1.bf16.msra.mxu0 0
      %7682 = vmatprep.subr.bf16.mxu0 0
      %7683 = vmatpush1.bf16.msra.mxu0 0
      %7684 = vmatprep.subr.bf16.mxu0 0
      %7685 = vmatpush1.bf16.msra.mxu0 0
      %7686 = vmatprep.subr.bf16.mxu0 0
      %7687 = vmatpush1.bf16.msra.mxu0 0
      %7688 = vmatprep.subr.bf16.mxu0 0
      %7689 = vmatpush1.bf16.msra.mxu0 0
      %7690 = vmatprep.subr.bf16.mxu0 %v7346
      %7691 = vmatpush1.bf16.msra.mxu0 %v7345
      %7692 = vmatprep.subr.bf16.mxu0 %v7338
      %7693 = vmatpush1.bf16.msra.mxu0 %v7337
      %7694 = vmatprep.subr.bf16.mxu0 0
      %7695 = vmatpush2.bf16.msra.mxu0 0
      %7696 = vmatprep.subr.bf16.mxu0 0
      %7697 = vmatpush2.bf16.msra.mxu0 0
      %7698 = vmatprep.subr.bf16.mxu0 0
      %7699 = vmatpush2.bf16.msra.mxu0 0
      %7700 = vmatprep.subr.bf16.mxu0 0
      %7701 = vmatpush2.bf16.msra.mxu0 0
      %7702 = vmatprep.subr.bf16.mxu0 0
      %7703 = vmatpush2.bf16.msra.mxu0 0
      %7704 = vmatprep.subr.bf16.mxu0 0
      %7705 = vmatpush2.bf16.msra.mxu0 0
      %7706 = vmatprep.subr.bf16.mxu0 0
      %7707 = vmatpush2.bf16.msra.mxu0 0
      %7708 = vmatprep.subr.bf16.mxu0 0
      %7709 = vmatpush2.bf16.msra.mxu0 0
      %7710 = vmatprep.mubr.bf16.mxu0 0
      %7711 = vmatmul.mubr.bf16.gmra.mxu0 %v7673
      %v7712 = vpop.f32.mrf.mxu0
      %v7713 = vadd.f32 %v7485, %v7712
      %v7714 = vpop.f32.mrf.mxu0
      %v7715 = vadd.f32 %v7487, %v7714
      %v7716 = vpop.f32.mrf.mxu0
      %v7717 = vadd.f32 %v7489, %v7716
      %v7718 = vpop.f32.mrf.mxu0
      %v7719 = vadd.f32 %v7491, %v7718
      %7720 = vmatprep.mubr.bf16.mxu0 0
      %7721 = vmatmul.mubr.bf16.gmra.mxu0 %v7676
      %v7722 = vpop.f32.mrf.mxu0
      %v7723 = vadd.f32 %v7495, %v7722
      %v7724 = vpop.f32.mrf.mxu0
      %v7725 = vadd.f32 %v7497, %v7724
      %v7726 = vpop.f32.mrf.mxu0
      %v7727 = vadd.f32 %v7499, %v7726
      %v7728 = vpop.f32.mrf.mxu0
      %v7729 = vadd.f32 %v7501, %v7728
      %7730 = vdwg.mxu0
      %7731 = vmatprep.subr.bf16.mxu0 0
      %7732 = vmatpush1.bf16.msra.mxu0 0
      %7733 = vmatprep.subr.bf16.mxu0 0
      %7734 = vmatpush1.bf16.msra.mxu0 0
      %7735 = vmatprep.subr.bf16.mxu0 0
      %7736 = vmatpush1.bf16.msra.mxu0 0
      %7737 = vmatprep.subr.bf16.mxu0 0
      %7738 = vmatpush1.bf16.msra.mxu0 0
      %7739 = vmatprep.subr.bf16.mxu0 0
      %7740 = vmatpush1.bf16.msra.mxu0 0
      %7741 = vmatprep.subr.bf16.mxu0 0
      %7742 = vmatpush1.bf16.msra.mxu0 0
      %7743 = vmatprep.subr.bf16.mxu0 %v7348
      %7744 = vmatpush1.bf16.msra.mxu0 %v7347
      %7745 = vmatprep.subr.bf16.mxu0 %v7340
      %7746 = vmatpush1.bf16.msra.mxu0 %v7339
      %7747 = vmatprep.subr.bf16.mxu0 0
      %7748 = vmatpush2.bf16.msra.mxu0 0
      %7749 = vmatprep.subr.bf16.mxu0 0
      %7750 = vmatpush2.bf16.msra.mxu0 0
      %7751 = vmatprep.subr.bf16.mxu0 0
      %7752 = vmatpush2.bf16.msra.mxu0 0
      %7753 = vmatprep.subr.bf16.mxu0 0
      %7754 = vmatpush2.bf16.msra.mxu0 0
      %7755 = vmatprep.subr.bf16.mxu0 0
      %7756 = vmatpush2.bf16.msra.mxu0 0
      %7757 = vmatprep.subr.bf16.mxu0 0
      %7758 = vmatpush2.bf16.msra.mxu0 0
      %7759 = vmatprep.subr.bf16.mxu0 0
      %7760 = vmatpush2.bf16.msra.mxu0 0
      %7761 = vmatprep.subr.bf16.mxu0 0
      %7762 = vmatpush2.bf16.msra.mxu0 0
      %7763 = vmatprep.mubr.bf16.mxu0 0
      %7764 = vmatmul.mubr.bf16.gmra.mxu0 %v7673
      %v7765 = vpop.f32.mrf.mxu0
      %v7766 = vadd.f32 %v7538, %v7765
      %v7767 = vpop.f32.mrf.mxu0
      %v7768 = vadd.f32 %v7540, %v7767
      %v7769 = vpop.f32.mrf.mxu0
      %v7770 = vadd.f32 %v7542, %v7769
      %v7771 = vpop.f32.mrf.mxu0
      %v7772 = vadd.f32 %v7544, %v7771
      %7773 = vmatprep.mubr.bf16.mxu0 0
      %7774 = vmatmul.mubr.bf16.gmra.mxu0 %v7676
      %v7775 = vpop.f32.mrf.mxu0
      %v7776 = vadd.f32 %v7548, %v7775
      %v7777 = vpop.f32.mrf.mxu0
      %v7778 = vadd.f32 %v7550, %v7777
      %v7779 = vpop.f32.mrf.mxu0
      %v7780 = vadd.f32 %v7552, %v7779
      %v7781 = vpop.f32.mrf.mxu0
      %v7782 = vadd.f32 %v7554, %v7781
      %7783 = vdwg.mxu0
      %7784 = vmatprep.subr.bf16.mxu0 0
      %7785 = vmatpush1.bf16.msra.mxu0 0
      %7786 = vmatprep.subr.bf16.mxu0 0
      %7787 = vmatpush1.bf16.msra.mxu0 0
      %7788 = vmatprep.subr.bf16.mxu0 0
      %7789 = vmatpush1.bf16.msra.mxu0 0
      %7790 = vmatprep.subr.bf16.mxu0 0
      %7791 = vmatpush1.bf16.msra.mxu0 0
      %7792 = vmatprep.subr.bf16.mxu0 0
      %7793 = vmatpush1.bf16.msra.mxu0 0
      %7794 = vmatprep.subr.bf16.mxu0 0
      %7795 = vmatpush1.bf16.msra.mxu0 0
      %7796 = vmatprep.subr.bf16.mxu0 %v7350
      %7797 = vmatpush1.bf16.msra.mxu0 %v7349
      %7798 = vmatprep.subr.bf16.mxu0 %v7342
      %7799 = vmatpush1.bf16.msra.mxu0 %v7341
      %7800 = vmatprep.subr.bf16.mxu0 0
      %7801 = vmatpush2.bf16.msra.mxu0 0
      %7802 = vmatprep.subr.bf16.mxu0 0
      %7803 = vmatpush2.bf16.msra.mxu0 0
      %7804 = vmatprep.subr.bf16.mxu0 0
      %7805 = vmatpush2.bf16.msra.mxu0 0
      %7806 = vmatprep.subr.bf16.mxu0 0
      %7807 = vmatpush2.bf16.msra.mxu0 0
      %7808 = vmatprep.subr.bf16.mxu0 0
      %7809 = vmatpush2.bf16.msra.mxu0 0
      %7810 = vmatprep.subr.bf16.mxu0 0
      %7811 = vmatpush2.bf16.msra.mxu0 0
      %7812 = vmatprep.subr.bf16.mxu0 0
      %7813 = vmatpush2.bf16.msra.mxu0 0
      %7814 = vmatprep.subr.bf16.mxu0 0
      %7815 = vmatpush2.bf16.msra.mxu0 0
      %7816 = vmatprep.mubr.bf16.mxu0 0
      %7817 = vmatmul.mubr.bf16.gmra.mxu0 %v7673
      %v7818 = vpop.f32.mrf.mxu0
      %v7819 = vadd.f32 %v7591, %v7818
      %v7820 = vpop.f32.mrf.mxu0
      %v7821 = vadd.f32 %v7593, %v7820
      %v7822 = vpop.f32.mrf.mxu0
      %v7823 = vadd.f32 %v7595, %v7822
      %v7824 = vpop.f32.mrf.mxu0
      %v7825 = vadd.f32 %v7597, %v7824
      %7826 = vmatprep.mubr.bf16.mxu0 0
      %7827 = vmatmul.mubr.bf16.gmra.mxu0 %v7676
      %v7828 = vpop.f32.mrf.mxu0
      %v7829 = vadd.f32 %v7601, %v7828
      %v7830 = vpop.f32.mrf.mxu0
      %v7831 = vadd.f32 %v7603, %v7830
      %v7832 = vpop.f32.mrf.mxu0
      %v7833 = vadd.f32 %v7605, %v7832
      %v7834 = vpop.f32.mrf.mxu0
      %v7835 = vadd.f32 %v7607, %v7834
      %7836 = vdwg.mxu0
      %7837 = vmatprep.subr.bf16.mxu0 0
      %7838 = vmatpush1.bf16.msra.mxu0 0
      %7839 = vmatprep.subr.bf16.mxu0 0
      %7840 = vmatpush1.bf16.msra.mxu0 0
      %7841 = vmatprep.subr.bf16.mxu0 0
      %7842 = vmatpush1.bf16.msra.mxu0 0
      %7843 = vmatprep.subr.bf16.mxu0 0
      %7844 = vmatpush1.bf16.msra.mxu0 0
      %7845 = vmatprep.subr.bf16.mxu0 0
      %7846 = vmatpush1.bf16.msra.mxu0 0
      %7847 = vmatprep.subr.bf16.mxu0 0
      %7848 = vmatpush1.bf16.msra.mxu0 0
      %7849 = vmatprep.subr.bf16.mxu0 %v7352
      %7850 = vmatpush1.bf16.msra.mxu0 %v7351
      %7851 = vmatprep.subr.bf16.mxu0 %v7344
      %7852 = vmatpush1.bf16.msra.mxu0 %v7343
      %7853 = vmatprep.subr.bf16.mxu0 0
      %7854 = vmatpush2.bf16.msra.mxu0 0
      %7855 = vmatprep.subr.bf16.mxu0 0
      %7856 = vmatpush2.bf16.msra.mxu0 0
      %7857 = vmatprep.subr.bf16.mxu0 0
      %7858 = vmatpush2.bf16.msra.mxu0 0
      %7859 = vmatprep.subr.bf16.mxu0 0
      %7860 = vmatpush2.bf16.msra.mxu0 0
      %7861 = vmatprep.subr.bf16.mxu0 0
      %7862 = vmatpush2.bf16.msra.mxu0 0
      %7863 = vmatprep.subr.bf16.mxu0 0
      %7864 = vmatpush2.bf16.msra.mxu0 0
      %7865 = vmatprep.subr.bf16.mxu0 0
      %7866 = vmatpush2.bf16.msra.mxu0 0
      %7867 = vmatprep.subr.bf16.mxu0 0
      %7868 = vmatpush2.bf16.msra.mxu0 0
      %7869 = vmatprep.mubr.bf16.mxu0 0
      %7870 = vmatmul.mubr.bf16.gmra.mxu0 %v7673
      %v7871 = vpop.f32.mrf.mxu0
      %v7872 = vadd.f32 %v7644, %v7871
      %v7873 = vpop.f32.mrf.mxu0
      %v7874 = vadd.f32 %v7646, %v7873
      %v7875 = vpop.f32.mrf.mxu0
      %v7876 = vadd.f32 %v7648, %v7875
      %v7877 = vpop.f32.mrf.mxu0
      %v7878 = vadd.f32 %v7650, %v7877
      %7879 = vmatprep.mubr.bf16.mxu0 0
      %7880 = vmatmul.mubr.bf16.gmra.mxu0 %v7676
      %v7881 = vpop.f32.mrf.mxu0
      %v7882 = vadd.f32 %v7654, %v7881
      %v7883 = vpop.f32.mrf.mxu0
      %v7884 = vadd.f32 %v7656, %v7883
      %v7885 = vpop.f32.mrf.mxu0
      %v7886 = vadd.f32 %v7658, %v7885
      %v7887 = vpop.f32.mrf.mxu0
      %v7888 = vadd.f32 %v7660, %v7887
      %7889 = vdwg.mxu0
      %v7890 = vsel %vm7265, 1, 0
      %v7891 = vsel %vm7266, 1, 0
      %v7892 = vsel %vm7267, 1, 0
      %v7893 = vsel %vm7268, 1, 0
      %v7894 = vsel %vm7269, 1, 0
      %v7895 = vsel %vm7270, 1, 0
      %v7896 = vsel %vm7271, 1, 0
      %v7897 = vsel %vm7272, 1, 0
      %vm7898 = vcmp.eq.s32.totalorder %v7890, 1
      %vm7899 = vcmp.eq.s32.totalorder %v7891, 1
      %vm7900 = vcmp.eq.s32.totalorder %v7892, 1
      %vm7901 = vcmp.eq.s32.totalorder %v7893, 1
      %vm7902 = vcmp.eq.s32.totalorder %v7894, 1
      %vm7903 = vcmp.eq.s32.totalorder %v7895, 1
      %vm7904 = vcmp.eq.s32.totalorder %v7896, 1
      %vm7905 = vcmp.eq.s32.totalorder %v7897, 1
      %vm7906 = vmpackc.low %vm7899, %vm7898
      %vm7907 = vmpackc.low %vm7901, %vm7900
      %vm7908 = vmpackc.low %vm7903, %vm7902
      %vm7909 = vmpackc.low %vm7905, %vm7904
      %v7910 = vsel %vm7906, 65537, 0
      %v7911 = vsel %vm7907, 65537, 0
      %v7912 = vsel %vm7908, 65537, 0
      %v7913 = vsel %vm7909, 65537, 0
      %v7914 = vlaneseq
      %v7915 = vshrl.u32 %v7914, 7
      %v7916 = vsub.s32 0, %v7915
      %v7917 = vrot.slane %v7910, %v7916
      %v7918 = vlaneseq
      %v7919 = vshrl.u32 %v7918, 7
      %v7920 = vsub.s32 4, %v7919
      %v7921 = vrot.slane %v7910, %v7920
      %v7922 = vlaneseq
      %v7923 = vshrl.u32 %v7922, 7
      %v7924 = vsub.s32 0, %v7923
      %v7925 = vrot.slane %v7911, %v7924
      %v7926 = vlaneseq
      %v7927 = vshrl.u32 %v7926, 7
      %v7928 = vsub.s32 4, %v7927
      %v7929 = vrot.slane %v7911, %v7928
      %v7930 = vlaneseq
      %v7931 = vshrl.u32 %v7930, 7
      %v7932 = vsub.s32 0, %v7931
      %v7933 = vrot.slane %v7912, %v7932
      %v7934 = vlaneseq
      %v7935 = vshrl.u32 %v7934, 7
      %v7936 = vsub.s32 4, %v7935
      %v7937 = vrot.slane %v7912, %v7936
      %v7938 = vlaneseq
      %v7939 = vshrl.u32 %v7938, 7
      %v7940 = vsub.s32 0, %v7939
      %v7941 = vrot.slane %v7913, %v7940
      %v7942 = vlaneseq
      %v7943 = vshrl.u32 %v7942, 7
      %v7944 = vsub.s32 4, %v7943
      %v7945 = vrot.slane %v7913, %v7944
      %7946 = vrot.lane.b32.xlu0 %v7917, 2
      %v7947 = vpop.permute.xlu0 %7946
      %7948 = vrot.lane.b32.xlu0 %v7921, 2
      %v7949 = vpop.permute.xlu0 %7948
      %7950 = vrot.lane.b32.xlu0 %v7925, 2
      %v7951 = vpop.permute.xlu0 %7950
      %7952 = vrot.lane.b32.xlu0 %v7929, 2
      %v7953 = vpop.permute.xlu0 %7952
      %7954 = vrot.lane.b32.xlu0 %v7933, 2
      %v7955 = vpop.permute.xlu0 %7954
      %7956 = vrot.lane.b32.xlu0 %v7937, 2
      %v7957 = vpop.permute.xlu0 %7956
      %7958 = vrot.lane.b32.xlu0 %v7941, 2
      %v7959 = vpop.permute.xlu0 %7958
      %7960 = vrot.lane.b32.xlu0 %v7945, 2
      %v7961 = vpop.permute.xlu0 %7960
      %v7962 = vsel %vm4163, %v7947, %v7949
      %v7963 = vsel %vm4163, %v7949, %v7951
      %v7964 = vsel %vm4163, %v7951, %v7953
      %v7965 = vsel %vm4163, %v7953, %v7955
      %v7966 = vsel %vm4163, %v7955, %v7957
      %v7967 = vsel %vm4163, %v7957, %v7959
      %v7968 = vsel %vm4163, %v7959, %v7961
      %vm7969 = vcmp.ne.s16.totalorder %v7947, 0
      %vm7970 = vcmp.ne.s16.totalorder %v7962, 0
      %vm7971 = vcmp.ne.s16.totalorder %v7963, 0
      %vm7972 = vcmp.ne.s16.totalorder %v7964, 0
      %vm7973 = vcmp.ne.s16.totalorder %v7965, 0
      %vm7974 = vcmp.ne.s16.totalorder %v7966, 0
      %vm7975 = vcmp.ne.s16.totalorder %v7967, 0
      %vm7976 = vcmp.ne.s16.totalorder %v7968, 0
      %vm7977 = vcmp.ne.s16.totalorder %v7961, 0
      %v7978 = vsel %vm7969, %v7144, 0
      %v7979 = vsel %vm7970, %v7114, 0
      %v7980 = vsel %vm7971, %v7115, 0
      %v7981 = vsel %vm7972, %v7116, 0
      %v7982 = vsel %vm7973, %v7117, 0
      %v7983 = vsel %vm7974, %v7118, 0
      %v7984 = vsel %vm7975, %v7119, 0
      %v7985 = vsel %vm7976, %v7120, 0
      %v7986 = vsel %vm7977, %v7150, 0
      %v7987 = vsel %vm7969, %v7147, 0
      %v7988 = vsel %vm7970, %v7121, 0
      %v7989 = vsel %vm7971, %v7122, 0
      %v7990 = vsel %vm7972, %v7123, 0
      %v7991 = vsel %vm7973, %v7124, 0
      %v7992 = vsel %vm7974, %v7125, 0
      %v7993 = vsel %vm7975, %v7126, 0
      %v7994 = vsel %vm7976, %v7127, 0
      %v7995 = vsel %vm7977, %v7153, 0
      %s7996 = scalar_lea.vmem %s8, 32
      %v7997 = vld [vmem:[%s7996] sm:$0xf]
      %v7998 = vld [vmem:[%s7996 + $0x4] sm:$0xf]
      %v7999 = vld [vmem:[%s7996 + $0x8] sm:$0xf]
      %v8000 = vld [vmem:[%s7996 + $0xc] sm:$0xf]
      %v8005 = vunpack.c.l.b16 %v7997
      %v8006 = vunpack.c.l.b16 %v7998
      %v8007 = vunpack.c.l.b16 %v7999
      %v8008 = vunpack.c.l.b16 %v8000
      %v8009 = vpack.c.b16 %v8006, %v8005
      %v8010 = vpack.c.b16 %v8008, %v8007
      %8029 = vrot.lane.b32.xlu0 %v7978, 126
      %v8030 = vpop.permute.xlu0 %8029
      %8031 = vrot.lane.b32.xlu0 %v7979, 126
      %v8032 = vpop.permute.xlu0 %8031
      %8033 = vrot.lane.b32.xlu0 %v7980, 126
      %v8034 = vpop.permute.xlu0 %8033
      %8035 = vrot.lane.b32.xlu0 %v7981, 126
      %v8036 = vpop.permute.xlu0 %8035
      %8037 = vrot.lane.b32.xlu0 %v7982, 126
      %v8038 = vpop.permute.xlu0 %8037
      %8039 = vrot.lane.b32.xlu0 %v7983, 126
      %v8040 = vpop.permute.xlu0 %8039
      %8041 = vrot.lane.b32.xlu0 %v7984, 126
      %v8042 = vpop.permute.xlu0 %8041
      %8043 = vrot.lane.b32.xlu0 %v7985, 126
      %v8044 = vpop.permute.xlu0 %8043
      %8045 = vrot.lane.b32.xlu0 %v7986, 126
      %v8046 = vpop.permute.xlu0 %8045
      %8047 = vrot.lane.b32.xlu0 %v7987, 126
      %v8048 = vpop.permute.xlu0 %8047
      %8049 = vrot.lane.b32.xlu0 %v7988, 126
      %v8050 = vpop.permute.xlu0 %8049
      %8051 = vrot.lane.b32.xlu0 %v7989, 126
      %v8052 = vpop.permute.xlu0 %8051
      %8053 = vrot.lane.b32.xlu0 %v7990, 126
      %v8054 = vpop.permute.xlu0 %8053
      %8055 = vrot.lane.b32.xlu0 %v7991, 126
      %v8056 = vpop.permute.xlu0 %8055
      %8057 = vrot.lane.b32.xlu0 %v7992, 126
      %v8058 = vpop.permute.xlu0 %8057
      %8059 = vrot.lane.b32.xlu0 %v7993, 126
      %v8060 = vpop.permute.xlu0 %8059
      %8061 = vrot.lane.b32.xlu0 %v7994, 126
      %v8062 = vpop.permute.xlu0 %8061
      %8063 = vrot.lane.b32.xlu0 %v7995, 126
      %v8064 = vpop.permute.xlu0 %8063
      %v8065 = vsel %vm4207, %v8030, %v8032
      %v8066 = vsel %vm4207, %v8032, %v8034
      %v8067 = vsel %vm4207, %v8034, %v8036
      %v8068 = vsel %vm4207, %v8036, %v8038
      %v8069 = vsel %vm4207, %v8038, %v8040
      %v8070 = vsel %vm4207, %v8040, %v8042
      %v8071 = vsel %vm4207, %v8042, %v8044
      %v8072 = vsel %vm4207, %v8044, %v8046
      %v8073 = vsel %vm4207, %v8048, %v8050
      %v8074 = vsel %vm4207, %v8050, %v8052
      %v8075 = vsel %vm4207, %v8052, %v8054
      %v8076 = vsel %vm4207, %v8054, %v8056
      %v8077 = vsel %vm4207, %v8056, %v8058
      %v8078 = vsel %vm4207, %v8058, %v8060
      %v8079 = vsel %vm4207, %v8060, %v8062
      %v8080 = vsel %vm4207, %v8062, %v8064
      %v8098 = vsel %vm831, %v8009, 0
      %v8101 = vsel %vm831, %v8010, 0
      %8103 = vmatprep.subr.bf16.mxu0 0
      %8104 = vmatpush1.bf16.msra.mxu0 0
      %8105 = vmatprep.subr.bf16.mxu0 0
      %8106 = vmatpush1.bf16.msra.mxu0 0
      %8107 = vmatprep.subr.bf16.mxu0 0
      %8108 = vmatpush1.bf16.msra.mxu0 0
      %8109 = vmatprep.subr.bf16.mxu0 0
      %8110 = vmatpush1.bf16.msra.mxu0 0
      %8111 = vmatprep.subr.bf16.mxu0 0
      %8112 = vmatpush1.bf16.msra.mxu0 0
      %8113 = vmatprep.subr.bf16.mxu0 0
      %8114 = vmatpush1.bf16.msra.mxu0 0
      %8115 = vmatprep.subr.bf16.mxu0 %v8074
      %8116 = vmatpush1.bf16.msra.mxu0 %v8073
      %8117 = vmatprep.subr.bf16.mxu0 %v8066
      %8118 = vmatpush1.bf16.msra.mxu0 %v8065
      %8119 = vmatprep.subr.bf16.mxu0 0
      %8120 = vmatpush2.bf16.msra.mxu0 0
      %8121 = vmatprep.subr.bf16.mxu0 0
      %8122 = vmatpush2.bf16.msra.mxu0 0
      %8123 = vmatprep.subr.bf16.mxu0 0
      %8124 = vmatpush2.bf16.msra.mxu0 0
      %8125 = vmatprep.subr.bf16.mxu0 0
      %8126 = vmatpush2.bf16.msra.mxu0 0
      %8127 = vmatprep.subr.bf16.mxu0 0
      %8128 = vmatpush2.bf16.msra.mxu0 0
      %8129 = vmatprep.subr.bf16.mxu0 0
      %8130 = vmatpush2.bf16.msra.mxu0 0
      %8131 = vmatprep.subr.bf16.mxu0 0
      %8132 = vmatpush2.bf16.msra.mxu0 0
      %8133 = vmatprep.subr.bf16.mxu0 0
      %8134 = vmatpush2.bf16.msra.mxu0 0
      %8135 = vmatprep.mubr.bf16.mxu0 0
      %8136 = vmatmul.mubr.bf16.gmra.mxu0 %v8098
      %v8137 = vpop.f32.mrf.mxu0
      %v8138 = vadd.f32 0.0, %v8137
      %v8139 = vpop.f32.mrf.mxu0
      %v8140 = vadd.f32 0.0, %v8139
      %v8141 = vpop.f32.mrf.mxu0
      %v8142 = vadd.f32 0.0, %v8141
      %v8143 = vpop.f32.mrf.mxu0
      %v8144 = vadd.f32 0.0, %v8143
      %8145 = vmatprep.mubr.bf16.mxu0 0
      %8146 = vmatmul.mubr.bf16.gmra.mxu0 %v8101
      %v8147 = vpop.f32.mrf.mxu0
      %v8148 = vadd.f32 0.0, %v8147
      %v8149 = vpop.f32.mrf.mxu0
      %v8150 = vadd.f32 0.0, %v8149
      %v8151 = vpop.f32.mrf.mxu0
      %v8152 = vadd.f32 0.0, %v8151
      %v8153 = vpop.f32.mrf.mxu0
      %v8154 = vadd.f32 0.0, %v8153
      %8155 = vdwg.mxu0
      %8156 = vmatprep.subr.bf16.mxu0 0
      %8157 = vmatpush1.bf16.msra.mxu0 0
      %8158 = vmatprep.subr.bf16.mxu0 0
      %8159 = vmatpush1.bf16.msra.mxu0 0
      %8160 = vmatprep.subr.bf16.mxu0 0
      %8161 = vmatpush1.bf16.msra.mxu0 0
      %8162 = vmatprep.subr.bf16.mxu0 0
      %8163 = vmatpush1.bf16.msra.mxu0 0
      %8164 = vmatprep.subr.bf16.mxu0 0
      %8165 = vmatpush1.bf16.msra.mxu0 0
      %8166 = vmatprep.subr.bf16.mxu0 0
      %8167 = vmatpush1.bf16.msra.mxu0 0
      %8168 = vmatprep.subr.bf16.mxu0 %v8076
      %8169 = vmatpush1.bf16.msra.mxu0 %v8075
      %8170 = vmatprep.subr.bf16.mxu0 %v8068
      %8171 = vmatpush1.bf16.msra.mxu0 %v8067
      %8172 = vmatprep.subr.bf16.mxu0 0
      %8173 = vmatpush2.bf16.msra.mxu0 0
      %8174 = vmatprep.subr.bf16.mxu0 0
      %8175 = vmatpush2.bf16.msra.mxu0 0
      %8176 = vmatprep.subr.bf16.mxu0 0
      %8177 = vmatpush2.bf16.msra.mxu0 0
      %8178 = vmatprep.subr.bf16.mxu0 0
      %8179 = vmatpush2.bf16.msra.mxu0 0
      %8180 = vmatprep.subr.bf16.mxu0 0
      %8181 = vmatpush2.bf16.msra.mxu0 0
      %8182 = vmatprep.subr.bf16.mxu0 0
      %8183 = vmatpush2.bf16.msra.mxu0 0
      %8184 = vmatprep.subr.bf16.mxu0 0
      %8185 = vmatpush2.bf16.msra.mxu0 0
      %8186 = vmatprep.subr.bf16.mxu0 0
      %8187 = vmatpush2.bf16.msra.mxu0 0
      %8188 = vmatprep.mubr.bf16.mxu0 0
      %8189 = vmatmul.mubr.bf16.gmra.mxu0 %v8098
      %v8190 = vpop.f32.mrf.mxu0
      %v8191 = vadd.f32 0.0, %v8190
      %v8192 = vpop.f32.mrf.mxu0
      %v8193 = vadd.f32 0.0, %v8192
      %v8194 = vpop.f32.mrf.mxu0
      %v8195 = vadd.f32 0.0, %v8194
      %v8196 = vpop.f32.mrf.mxu0
      %v8197 = vadd.f32 0.0, %v8196
      %8198 = vmatprep.mubr.bf16.mxu0 0
      %8199 = vmatmul.mubr.bf16.gmra.mxu0 %v8101
      %v8200 = vpop.f32.mrf.mxu0
      %v8201 = vadd.f32 0.0, %v8200
      %v8202 = vpop.f32.mrf.mxu0
      %v8203 = vadd.f32 0.0, %v8202
      %v8204 = vpop.f32.mrf.mxu0
      %v8205 = vadd.f32 0.0, %v8204
      %v8206 = vpop.f32.mrf.mxu0
      %v8207 = vadd.f32 0.0, %v8206
      %8208 = vdwg.mxu0
      %8209 = vmatprep.subr.bf16.mxu0 0
      %8210 = vmatpush1.bf16.msra.mxu0 0
      %8211 = vmatprep.subr.bf16.mxu0 0
      %8212 = vmatpush1.bf16.msra.mxu0 0
      %8213 = vmatprep.subr.bf16.mxu0 0
      %8214 = vmatpush1.bf16.msra.mxu0 0
      %8215 = vmatprep.subr.bf16.mxu0 0
      %8216 = vmatpush1.bf16.msra.mxu0 0
      %8217 = vmatprep.subr.bf16.mxu0 0
      %8218 = vmatpush1.bf16.msra.mxu0 0
      %8219 = vmatprep.subr.bf16.mxu0 0
      %8220 = vmatpush1.bf16.msra.mxu0 0
      %8221 = vmatprep.subr.bf16.mxu0 %v8078
      %8222 = vmatpush1.bf16.msra.mxu0 %v8077
      %8223 = vmatprep.subr.bf16.mxu0 %v8070
      %8224 = vmatpush1.bf16.msra.mxu0 %v8069
      %8225 = vmatprep.subr.bf16.mxu0 0
      %8226 = vmatpush2.bf16.msra.mxu0 0
      %8227 = vmatprep.subr.bf16.mxu0 0
      %8228 = vmatpush2.bf16.msra.mxu0 0
      %8229 = vmatprep.subr.bf16.mxu0 0
      %8230 = vmatpush2.bf16.msra.mxu0 0
      %8231 = vmatprep.subr.bf16.mxu0 0
      %8232 = vmatpush2.bf16.msra.mxu0 0
      %8233 = vmatprep.subr.bf16.mxu0 0
      %8234 = vmatpush2.bf16.msra.mxu0 0
      %8235 = vmatprep.subr.bf16.mxu0 0
      %8236 = vmatpush2.bf16.msra.mxu0 0
      %8237 = vmatprep.subr.bf16.mxu0 0
      %8238 = vmatpush2.bf16.msra.mxu0 0
      %8239 = vmatprep.subr.bf16.mxu0 0
      %8240 = vmatpush2.bf16.msra.mxu0 0
      %8241 = vmatprep.mubr.bf16.mxu0 0
      %8242 = vmatmul.mubr.bf16.gmra.mxu0 %v8098
      %v8243 = vpop.f32.mrf.mxu0
      %v8244 = vadd.f32 0.0, %v8243
      %v8245 = vpop.f32.mrf.mxu0
      %v8246 = vadd.f32 0.0, %v8245
      %v8247 = vpop.f32.mrf.mxu0
      %v8248 = vadd.f32 0.0, %v8247
      %v8249 = vpop.f32.mrf.mxu0
      %v8250 = vadd.f32 0.0, %v8249
      %8251 = vmatprep.mubr.bf16.mxu0 0
      %8252 = vmatmul.mubr.bf16.gmra.mxu0 %v8101
      %v8253 = vpop.f32.mrf.mxu0
      %v8254 = vadd.f32 0.0, %v8253
      %v8255 = vpop.f32.mrf.mxu0
      %v8256 = vadd.f32 0.0, %v8255
      %v8257 = vpop.f32.mrf.mxu0
      %v8258 = vadd.f32 0.0, %v8257
      %v8259 = vpop.f32.mrf.mxu0
      %v8260 = vadd.f32 0.0, %v8259
      %8261 = vdwg.mxu0
      %8262 = vmatprep.subr.bf16.mxu0 0
      %8263 = vmatpush1.bf16.msra.mxu0 0
      %8264 = vmatprep.subr.bf16.mxu0 0
      %8265 = vmatpush1.bf16.msra.mxu0 0
      %8266 = vmatprep.subr.bf16.mxu0 0
      %8267 = vmatpush1.bf16.msra.mxu0 0
      %8268 = vmatprep.subr.bf16.mxu0 0
      %8269 = vmatpush1.bf16.msra.mxu0 0
      %8270 = vmatprep.subr.bf16.mxu0 0
      %8271 = vmatpush1.bf16.msra.mxu0 0
      %8272 = vmatprep.subr.bf16.mxu0 0
      %8273 = vmatpush1.bf16.msra.mxu0 0
      %8274 = vmatprep.subr.bf16.mxu0 %v8080
      %8275 = vmatpush1.bf16.msra.mxu0 %v8079
      %8276 = vmatprep.subr.bf16.mxu0 %v8072
      %8277 = vmatpush1.bf16.msra.mxu0 %v8071
      %8278 = vmatprep.subr.bf16.mxu0 0
      %8279 = vmatpush2.bf16.msra.mxu0 0
      %8280 = vmatprep.subr.bf16.mxu0 0
      %8281 = vmatpush2.bf16.msra.mxu0 0
      %8282 = vmatprep.subr.bf16.mxu0 0
      %8283 = vmatpush2.bf16.msra.mxu0 0
      %8284 = vmatprep.subr.bf16.mxu0 0
      %8285 = vmatpush2.bf16.msra.mxu0 0
      %8286 = vmatprep.subr.bf16.mxu0 0
      %8287 = vmatpush2.bf16.msra.mxu0 0
      %8288 = vmatprep.subr.bf16.mxu0 0
      %8289 = vmatpush2.bf16.msra.mxu0 0
      %8290 = vmatprep.subr.bf16.mxu0 0
      %8291 = vmatpush2.bf16.msra.mxu0 0
      %8292 = vmatprep.subr.bf16.mxu0 0
      %8293 = vmatpush2.bf16.msra.mxu0 0
      %8294 = vmatprep.mubr.bf16.mxu0 0
      %8295 = vmatmul.mubr.bf16.gmra.mxu0 %v8098
      %v8296 = vpop.f32.mrf.mxu0
      %v8297 = vadd.f32 0.0, %v8296
      %v8298 = vpop.f32.mrf.mxu0
      %v8299 = vadd.f32 0.0, %v8298
      %v8300 = vpop.f32.mrf.mxu0
      %v8301 = vadd.f32 0.0, %v8300
      %v8302 = vpop.f32.mrf.mxu0
      %v8303 = vadd.f32 0.0, %v8302
      %8304 = vmatprep.mubr.bf16.mxu0 0
      %8305 = vmatmul.mubr.bf16.gmra.mxu0 %v8101
      %v8306 = vpop.f32.mrf.mxu0
      %v8307 = vadd.f32 0.0, %v8306
      %v8308 = vpop.f32.mrf.mxu0
      %v8309 = vadd.f32 0.0, %v8308
      %v8310 = vpop.f32.mrf.mxu0
      %v8311 = vadd.f32 0.0, %v8310
      %v8312 = vpop.f32.mrf.mxu0
      %v8313 = vadd.f32 0.0, %v8312
      %8314 = vdwg.mxu0
      %v8315 = vadd.f32 %v7713, %v8138
      %v8316 = vadd.f32 %v7715, %v8140
      %v8317 = vadd.f32 %v7766, %v8191
      %v8318 = vadd.f32 %v7768, %v8193
      %v8319 = vadd.f32 %v7819, %v8244
      %v8320 = vadd.f32 %v7821, %v8246
      %v8321 = vadd.f32 %v7872, %v8297
      %v8322 = vadd.f32 %v7874, %v8299
      %v8323 = vadd.f32 %v7717, %v8142
      %v8324 = vadd.f32 %v7719, %v8144
      %v8325 = vadd.f32 %v7770, %v8195
      %v8326 = vadd.f32 %v7772, %v8197
      %v8327 = vadd.f32 %v7823, %v8248
      %v8328 = vadd.f32 %v7825, %v8250
      %v8329 = vadd.f32 %v7876, %v8301
      %v8330 = vadd.f32 %v7878, %v8303
      %v8331 = vadd.f32 %v7723, %v8148
      %v8332 = vadd.f32 %v7725, %v8150
      %v8333 = vadd.f32 %v7776, %v8201
      %v8334 = vadd.f32 %v7778, %v8203
      %v8335 = vadd.f32 %v7829, %v8254
      %v8336 = vadd.f32 %v7831, %v8256
      %v8337 = vadd.f32 %v7882, %v8307
      %v8338 = vadd.f32 %v7884, %v8309
      %v8339 = vadd.f32 %v7727, %v8152
      %v8340 = vadd.f32 %v7729, %v8154
      %v8341 = vadd.f32 %v7780, %v8205
      %v8342 = vadd.f32 %v7782, %v8207
      %v8343 = vadd.f32 %v7833, %v8258
      %v8344 = vadd.f32 %v7835, %v8260
      %v8345 = vadd.f32 %v7886, %v8311
      %v8346 = vadd.f32 %v7888, %v8313
      %8347 = vrot.lane.b32.xlu0 %v7300, 32
      %v8348 = vpop.permute.xlu0 %8347
      %8349 = vrot.lane.b32.xlu0 %v7304, 32
      %v8350 = vpop.permute.xlu0 %8349
      %8351 = vrot.lane.b32.xlu0 %v7308, 32
      %v8352 = vpop.permute.xlu0 %8351
      %8353 = vrot.lane.b32.xlu0 %v7312, 32
      %v8354 = vpop.permute.xlu0 %8353
      %8355 = vrot.lane.b32.xlu0 %v7316, 32
      %v8356 = vpop.permute.xlu0 %8355
      %8357 = vrot.lane.b32.xlu0 %v7320, 32
      %v8358 = vpop.permute.xlu0 %8357
      %8359 = vrot.lane.b32.xlu0 %v7324, 32
      %v8360 = vpop.permute.xlu0 %8359
      %8361 = vrot.lane.b32.xlu0 %v7328, 32
      %v8362 = vpop.permute.xlu0 %8361
      %v8363 = vsel %vm4638, %v8348, %v8350
      %v8364 = vsel %vm4638, %v8350, %v8352
      %v8365 = vsel %vm4638, %v8352, %v8354
      %v8366 = vsel %vm4638, %v8354, %v8356
      %v8367 = vsel %vm4638, %v8356, %v8358
      %v8368 = vsel %vm4638, %v8358, %v8360
      %v8369 = vsel %vm4638, %v8360, %v8362
      %vm8370 = vcmp.ne.s16.totalorder %v8348, 0
      %vm8371 = vcmp.ne.s16.totalorder %v8363, 0
      %vm8372 = vcmp.ne.s16.totalorder %v8364, 0
      %vm8373 = vcmp.ne.s16.totalorder %v8365, 0
      %vm8374 = vcmp.ne.s16.totalorder %v8366, 0
      %vm8375 = vcmp.ne.s16.totalorder %v8367, 0
      %vm8376 = vcmp.ne.s16.totalorder %v8368, 0
      %vm8377 = vcmp.ne.s16.totalorder %v8369, 0
      %vm8378 = vcmp.ne.s16.totalorder %v8362, 0
      %v8379 = vsel %vm8370, %v7144, 0
      %v8380 = vsel %vm8371, %v7114, 0
      %v8381 = vsel %vm8372, %v7115, 0
      %v8382 = vsel %vm8373, %v7116, 0
      %v8383 = vsel %vm8374, %v7117, 0
      %v8384 = vsel %vm8375, %v7118, 0
      %v8385 = vsel %vm8376, %v7119, 0
      %v8386 = vsel %vm8377, %v7120, 0
      %v8387 = vsel %vm8378, %v7150, 0
      %v8388 = vsel %vm8370, %v7147, 0
      %v8389 = vsel %vm8371, %v7121, 0
      %v8390 = vsel %vm8372, %v7122, 0
      %v8391 = vsel %vm8373, %v7123, 0
      %v8392 = vsel %vm8374, %v7124, 0
      %v8393 = vsel %vm8375, %v7125, 0
      %v8394 = vsel %vm8376, %v7126, 0
      %v8395 = vsel %vm8377, %v7127, 0
      %v8396 = vsel %vm8378, %v7153, 0
      %s8397 = scalar_lea.vmem %s8, 48
      %v8398 = vld [vmem:[%s8397] sm:$0xf]
      %v8399 = vld [vmem:[%s8397 + $0x4] sm:$0xf]
      %v8400 = vld [vmem:[%s8397 + $0x8] sm:$0xf]
      %v8401 = vld [vmem:[%s8397 + $0xc] sm:$0xf]
      %v8406 = vunpack.c.l.b16 %v8398
      %v8407 = vunpack.c.l.b16 %v8399
      %v8408 = vunpack.c.l.b16 %v8400
      %v8409 = vunpack.c.l.b16 %v8401
      %v8410 = vpack.c.b16 %v8407, %v8406
      %v8411 = vpack.c.b16 %v8409, %v8408
      %8430 = vrot.lane.b32.xlu0 %v8379, 96
      %v8431 = vpop.permute.xlu0 %8430
      %8432 = vrot.lane.b32.xlu0 %v8380, 96
      %v8433 = vpop.permute.xlu0 %8432
      %8434 = vrot.lane.b32.xlu0 %v8381, 96
      %v8435 = vpop.permute.xlu0 %8434
      %8436 = vrot.lane.b32.xlu0 %v8382, 96
      %v8437 = vpop.permute.xlu0 %8436
      %8438 = vrot.lane.b32.xlu0 %v8383, 96
      %v8439 = vpop.permute.xlu0 %8438
      %8440 = vrot.lane.b32.xlu0 %v8384, 96
      %v8441 = vpop.permute.xlu0 %8440
      %8442 = vrot.lane.b32.xlu0 %v8385, 96
      %v8443 = vpop.permute.xlu0 %8442
      %8444 = vrot.lane.b32.xlu0 %v8386, 96
      %v8445 = vpop.permute.xlu0 %8444
      %8446 = vrot.lane.b32.xlu0 %v8387, 96
      %v8447 = vpop.permute.xlu0 %8446
      %8448 = vrot.lane.b32.xlu0 %v8388, 96
      %v8449 = vpop.permute.xlu0 %8448
      %8450 = vrot.lane.b32.xlu0 %v8389, 96
      %v8451 = vpop.permute.xlu0 %8450
      %8452 = vrot.lane.b32.xlu0 %v8390, 96
      %v8453 = vpop.permute.xlu0 %8452
      %8454 = vrot.lane.b32.xlu0 %v8391, 96
      %v8455 = vpop.permute.xlu0 %8454
      %8456 = vrot.lane.b32.xlu0 %v8392, 96
      %v8457 = vpop.permute.xlu0 %8456
      %8458 = vrot.lane.b32.xlu0 %v8393, 96
      %v8459 = vpop.permute.xlu0 %8458
      %8460 = vrot.lane.b32.xlu0 %v8394, 96
      %v8461 = vpop.permute.xlu0 %8460
      %8462 = vrot.lane.b32.xlu0 %v8395, 96
      %v8463 = vpop.permute.xlu0 %8462
      %8464 = vrot.lane.b32.xlu0 %v8396, 96
      %v8465 = vpop.permute.xlu0 %8464
      %v8466 = vsel %vm4682, %v8431, %v8433
      %v8467 = vsel %vm4682, %v8433, %v8435
      %v8468 = vsel %vm4682, %v8435, %v8437
      %v8469 = vsel %vm4682, %v8437, %v8439
      %v8470 = vsel %vm4682, %v8439, %v8441
      %v8471 = vsel %vm4682, %v8441, %v8443
      %v8472 = vsel %vm4682, %v8443, %v8445
      %v8473 = vsel %vm4682, %v8445, %v8447
      %v8474 = vsel %vm4682, %v8449, %v8451
      %v8475 = vsel %vm4682, %v8451, %v8453
      %v8476 = vsel %vm4682, %v8453, %v8455
      %v8477 = vsel %vm4682, %v8455, %v8457
      %v8478 = vsel %vm4682, %v8457, %v8459
      %v8479 = vsel %vm4682, %v8459, %v8461
      %v8480 = vsel %vm4682, %v8461, %v8463
      %v8481 = vsel %vm4682, %v8463, %v8465
      %v8499 = vsel %vm831, %v8410, 0
      %v8502 = vsel %vm831, %v8411, 0
      %8504 = vmatprep.subr.bf16.mxu0 0
      %8505 = vmatpush1.bf16.msra.mxu0 0
      %8506 = vmatprep.subr.bf16.mxu0 0
      %8507 = vmatpush1.bf16.msra.mxu0 0
      %8508 = vmatprep.subr.bf16.mxu0 0
      %8509 = vmatpush1.bf16.msra.mxu0 0
      %8510 = vmatprep.subr.bf16.mxu0 0
      %8511 = vmatpush1.bf16.msra.mxu0 0
      %8512 = vmatprep.subr.bf16.mxu0 0
      %8513 = vmatpush1.bf16.msra.mxu0 0
      %8514 = vmatprep.subr.bf16.mxu0 0
      %8515 = vmatpush1.bf16.msra.mxu0 0
      %8516 = vmatprep.subr.bf16.mxu0 %v8475
      %8517 = vmatpush1.bf16.msra.mxu0 %v8474
      %8518 = vmatprep.subr.bf16.mxu0 %v8467
      %8519 = vmatpush1.bf16.msra.mxu0 %v8466
      %8520 = vmatprep.subr.bf16.mxu0 0
      %8521 = vmatpush2.bf16.msra.mxu0 0
      %8522 = vmatprep.subr.bf16.mxu0 0
      %8523 = vmatpush2.bf16.msra.mxu0 0
      %8524 = vmatprep.subr.bf16.mxu0 0
      %8525 = vmatpush2.bf16.msra.mxu0 0
      %8526 = vmatprep.subr.bf16.mxu0 0
      %8527 = vmatpush2.bf16.msra.mxu0 0
      %8528 = vmatprep.subr.bf16.mxu0 0
      %8529 = vmatpush2.bf16.msra.mxu0 0
      %8530 = vmatprep.subr.bf16.mxu0 0
      %8531 = vmatpush2.bf16.msra.mxu0 0
      %8532 = vmatprep.subr.bf16.mxu0 0
      %8533 = vmatpush2.bf16.msra.mxu0 0
      %8534 = vmatprep.subr.bf16.mxu0 0
      %8535 = vmatpush2.bf16.msra.mxu0 0
      %8536 = vmatprep.mubr.bf16.mxu0 0
      %8537 = vmatmul.mubr.bf16.gmra.mxu0 %v8499
      %v8538 = vpop.f32.mrf.mxu0
      %v8539 = vadd.f32 0.0, %v8538
      %v8540 = vpop.f32.mrf.mxu0
      %v8541 = vadd.f32 0.0, %v8540
      %v8542 = vpop.f32.mrf.mxu0
      %v8543 = vadd.f32 0.0, %v8542
      %v8544 = vpop.f32.mrf.mxu0
      %v8545 = vadd.f32 0.0, %v8544
      %8546 = vmatprep.mubr.bf16.mxu0 0
      %8547 = vmatmul.mubr.bf16.gmra.mxu0 %v8502
      %v8548 = vpop.f32.mrf.mxu0
      %v8549 = vadd.f32 0.0, %v8548
      %v8550 = vpop.f32.mrf.mxu0
      %v8551 = vadd.f32 0.0, %v8550
      %v8552 = vpop.f32.mrf.mxu0
      %v8553 = vadd.f32 0.0, %v8552
      %v8554 = vpop.f32.mrf.mxu0
      %v8555 = vadd.f32 0.0, %v8554
      %8556 = vdwg.mxu0
      %8557 = vmatprep.subr.bf16.mxu0 0
      %8558 = vmatpush1.bf16.msra.mxu0 0
      %8559 = vmatprep.subr.bf16.mxu0 0
      %8560 = vmatpush1.bf16.msra.mxu0 0
      %8561 = vmatprep.subr.bf16.mxu0 0
      %8562 = vmatpush1.bf16.msra.mxu0 0
      %8563 = vmatprep.subr.bf16.mxu0 0
      %8564 = vmatpush1.bf16.msra.mxu0 0
      %8565 = vmatprep.subr.bf16.mxu0 0
      %8566 = vmatpush1.bf16.msra.mxu0 0
      %8567 = vmatprep.subr.bf16.mxu0 0
      %8568 = vmatpush1.bf16.msra.mxu0 0
      %8569 = vmatprep.subr.bf16.mxu0 %v8477
      %8570 = vmatpush1.bf16.msra.mxu0 %v8476
      %8571 = vmatprep.subr.bf16.mxu0 %v8469
      %8572 = vmatpush1.bf16.msra.mxu0 %v8468
      %8573 = vmatprep.subr.bf16.mxu0 0
      %8574 = vmatpush2.bf16.msra.mxu0 0
      %8575 = vmatprep.subr.bf16.mxu0 0
      %8576 = vmatpush2.bf16.msra.mxu0 0
      %8577 = vmatprep.subr.bf16.mxu0 0
      %8578 = vmatpush2.bf16.msra.mxu0 0
      %8579 = vmatprep.subr.bf16.mxu0 0
      %8580 = vmatpush2.bf16.msra.mxu0 0
      %8581 = vmatprep.subr.bf16.mxu0 0
      %8582 = vmatpush2.bf16.msra.mxu0 0
      %8583 = vmatprep.subr.bf16.mxu0 0
      %8584 = vmatpush2.bf16.msra.mxu0 0
      %8585 = vmatprep.subr.bf16.mxu0 0
      %8586 = vmatpush2.bf16.msra.mxu0 0
      %8587 = vmatprep.subr.bf16.mxu0 0
      %8588 = vmatpush2.bf16.msra.mxu0 0
      %8589 = vmatprep.mubr.bf16.mxu0 0
      %8590 = vmatmul.mubr.bf16.gmra.mxu0 %v8499
      %v8591 = vpop.f32.mrf.mxu0
      %v8592 = vadd.f32 0.0, %v8591
      %v8593 = vpop.f32.mrf.mxu0
      %v8594 = vadd.f32 0.0, %v8593
      %v8595 = vpop.f32.mrf.mxu0
      %v8596 = vadd.f32 0.0, %v8595
      %v8597 = vpop.f32.mrf.mxu0
      %v8598 = vadd.f32 0.0, %v8597
      %8599 = vmatprep.mubr.bf16.mxu0 0
      %8600 = vmatmul.mubr.bf16.gmra.mxu0 %v8502
      %v8601 = vpop.f32.mrf.mxu0
      %v8602 = vadd.f32 0.0, %v8601
      %v8603 = vpop.f32.mrf.mxu0
      %v8604 = vadd.f32 0.0, %v8603
      %v8605 = vpop.f32.mrf.mxu0
      %v8606 = vadd.f32 0.0, %v8605
      %v8607 = vpop.f32.mrf.mxu0
      %v8608 = vadd.f32 0.0, %v8607
      %8609 = vdwg.mxu0
      %8610 = vmatprep.subr.bf16.mxu0 0
      %8611 = vmatpush1.bf16.msra.mxu0 0
      %8612 = vmatprep.subr.bf16.mxu0 0
      %8613 = vmatpush1.bf16.msra.mxu0 0
      %8614 = vmatprep.subr.bf16.mxu0 0
      %8615 = vmatpush1.bf16.msra.mxu0 0
      %8616 = vmatprep.subr.bf16.mxu0 0
      %8617 = vmatpush1.bf16.msra.mxu0 0
      %8618 = vmatprep.subr.bf16.mxu0 0
      %8619 = vmatpush1.bf16.msra.mxu0 0
      %8620 = vmatprep.subr.bf16.mxu0 0
      %8621 = vmatpush1.bf16.msra.mxu0 0
      %8622 = vmatprep.subr.bf16.mxu0 %v8479
      %8623 = vmatpush1.bf16.msra.mxu0 %v8478
      %8624 = vmatprep.subr.bf16.mxu0 %v8471
      %8625 = vmatpush1.bf16.msra.mxu0 %v8470
      %8626 = vmatprep.subr.bf16.mxu0 0
      %8627 = vmatpush2.bf16.msra.mxu0 0
      %8628 = vmatprep.subr.bf16.mxu0 0
      %8629 = vmatpush2.bf16.msra.mxu0 0
      %8630 = vmatprep.subr.bf16.mxu0 0
      %8631 = vmatpush2.bf16.msra.mxu0 0
      %8632 = vmatprep.subr.bf16.mxu0 0
      %8633 = vmatpush2.bf16.msra.mxu0 0
      %8634 = vmatprep.subr.bf16.mxu0 0
      %8635 = vmatpush2.bf16.msra.mxu0 0
      %8636 = vmatprep.subr.bf16.mxu0 0
      %8637 = vmatpush2.bf16.msra.mxu0 0
      %8638 = vmatprep.subr.bf16.mxu0 0
      %8639 = vmatpush2.bf16.msra.mxu0 0
      %8640 = vmatprep.subr.bf16.mxu0 0
      %8641 = vmatpush2.bf16.msra.mxu0 0
      %8642 = vmatprep.mubr.bf16.mxu0 0
      %8643 = vmatmul.mubr.bf16.gmra.mxu0 %v8499
      %v8644 = vpop.f32.mrf.mxu0
      %v8645 = vadd.f32 0.0, %v8644
      %v8646 = vpop.f32.mrf.mxu0
      %v8647 = vadd.f32 0.0, %v8646
      %v8648 = vpop.f32.mrf.mxu0
      %v8649 = vadd.f32 0.0, %v8648
      %v8650 = vpop.f32.mrf.mxu0
      %v8651 = vadd.f32 0.0, %v8650
      %8652 = vmatprep.mubr.bf16.mxu0 0
      %8653 = vmatmul.mubr.bf16.gmra.mxu0 %v8502
      %v8654 = vpop.f32.mrf.mxu0
      %v8655 = vadd.f32 0.0, %v8654
      %v8656 = vpop.f32.mrf.mxu0
      %v8657 = vadd.f32 0.0, %v8656
      %v8658 = vpop.f32.mrf.mxu0
      %v8659 = vadd.f32 0.0, %v8658
      %v8660 = vpop.f32.mrf.mxu0
      %v8661 = vadd.f32 0.0, %v8660
      %8662 = vdwg.mxu0
      %8663 = vmatprep.subr.bf16.mxu0 0
      %8664 = vmatpush1.bf16.msra.mxu0 0
      %8665 = vmatprep.subr.bf16.mxu0 0
      %8666 = vmatpush1.bf16.msra.mxu0 0
      %8667 = vmatprep.subr.bf16.mxu0 0
      %8668 = vmatpush1.bf16.msra.mxu0 0
      %8669 = vmatprep.subr.bf16.mxu0 0
      %8670 = vmatpush1.bf16.msra.mxu0 0
      %8671 = vmatprep.subr.bf16.mxu0 0
      %8672 = vmatpush1.bf16.msra.mxu0 0
      %8673 = vmatprep.subr.bf16.mxu0 0
      %8674 = vmatpush1.bf16.msra.mxu0 0
      %8675 = vmatprep.subr.bf16.mxu0 %v8481
      %8676 = vmatpush1.bf16.msra.mxu0 %v8480
      %8677 = vmatprep.subr.bf16.mxu0 %v8473
      %8678 = vmatpush1.bf16.msra.mxu0 %v8472
      %8679 = vmatprep.subr.bf16.mxu0 0
      %8680 = vmatpush2.bf16.msra.mxu0 0
      %8681 = vmatprep.subr.bf16.mxu0 0
      %8682 = vmatpush2.bf16.msra.mxu0 0
      %8683 = vmatprep.subr.bf16.mxu0 0
      %8684 = vmatpush2.bf16.msra.mxu0 0
      %8685 = vmatprep.subr.bf16.mxu0 0
      %8686 = vmatpush2.bf16.msra.mxu0 0
      %8687 = vmatprep.subr.bf16.mxu0 0
      %8688 = vmatpush2.bf16.msra.mxu0 0
      %8689 = vmatprep.subr.bf16.mxu0 0
      %8690 = vmatpush2.bf16.msra.mxu0 0
      %8691 = vmatprep.subr.bf16.mxu0 0
      %8692 = vmatpush2.bf16.msra.mxu0 0
      %8693 = vmatprep.subr.bf16.mxu0 0
      %8694 = vmatpush2.bf16.msra.mxu0 0
      %8695 = vmatprep.mubr.bf16.mxu0 0
      %8696 = vmatmul.mubr.bf16.gmra.mxu0 %v8499
      %v8697 = vpop.f32.mrf.mxu0
      %v8698 = vadd.f32 0.0, %v8697
      %v8699 = vpop.f32.mrf.mxu0
      %v8700 = vadd.f32 0.0, %v8699
      %v8701 = vpop.f32.mrf.mxu0
      %v8702 = vadd.f32 0.0, %v8701
      %v8703 = vpop.f32.mrf.mxu0
      %v8704 = vadd.f32 0.0, %v8703
      %8705 = vmatprep.mubr.bf16.mxu0 0
      %8706 = vmatmul.mubr.bf16.gmra.mxu0 %v8502
      %v8707 = vpop.f32.mrf.mxu0
      %v8708 = vadd.f32 0.0, %v8707
      %v8709 = vpop.f32.mrf.mxu0
      %v8710 = vadd.f32 0.0, %v8709
      %v8711 = vpop.f32.mrf.mxu0
      %v8712 = vadd.f32 0.0, %v8711
      %v8713 = vpop.f32.mrf.mxu0
      %v8714 = vadd.f32 0.0, %v8713
      %8715 = vdwg.mxu0
      %v8716 = vadd.f32 %v8315, %v8539
      %v8717 = vadd.f32 %v8316, %v8541
      %v8718 = vadd.f32 %v8317, %v8592
      %v8719 = vadd.f32 %v8318, %v8594
      %v8720 = vadd.f32 %v8319, %v8645
      %v8721 = vadd.f32 %v8320, %v8647
      %v8722 = vadd.f32 %v8321, %v8698
      %v8723 = vadd.f32 %v8322, %v8700
      %v8724 = vadd.f32 %v8323, %v8543
      %v8725 = vadd.f32 %v8324, %v8545
      %v8726 = vadd.f32 %v8325, %v8596
      %v8727 = vadd.f32 %v8326, %v8598
      %v8728 = vadd.f32 %v8327, %v8649
      %v8729 = vadd.f32 %v8328, %v8651
      %v8730 = vadd.f32 %v8329, %v8702
      %v8731 = vadd.f32 %v8330, %v8704
      %v8732 = vadd.f32 %v8331, %v8549
      %v8733 = vadd.f32 %v8332, %v8551
      %v8734 = vadd.f32 %v8333, %v8602
      %v8735 = vadd.f32 %v8334, %v8604
      %v8736 = vadd.f32 %v8335, %v8655
      %v8737 = vadd.f32 %v8336, %v8657
      %v8738 = vadd.f32 %v8337, %v8708
      %v8739 = vadd.f32 %v8338, %v8710
      %v8740 = vadd.f32 %v8339, %v8553
      %v8741 = vadd.f32 %v8340, %v8555
      %v8742 = vadd.f32 %v8341, %v8606
      %v8743 = vadd.f32 %v8342, %v8608
      %v8744 = vadd.f32 %v8343, %v8659
      %v8745 = vadd.f32 %v8344, %v8661
      %v8746 = vadd.f32 %v8345, %v8712
      %v8747 = vadd.f32 %v8346, %v8714
      %s8748 = scalar_lea.vmem %s8, 64
      %v8749 = vld [vmem:[%s8748] sm:$0xf]
      %v8750 = vld [vmem:[%s8748 + $0x4] sm:$0xf]
      %v8751 = vld [vmem:[%s8748 + $0x8] sm:$0xf]
      %v8752 = vld [vmem:[%s8748 + $0xc] sm:$0xf]
      %v8757 = vunpack.c.l.b16 %v8749
      %v8758 = vunpack.c.l.b16 %v8750
      %v8759 = vunpack.c.l.b16 %v8751
      %v8760 = vunpack.c.l.b16 %v8752
      %v8761 = vpack.c.b16 %v8758, %v8757
      %v8762 = vpack.c.b16 %v8760, %v8759
      %8763 = vrot.lane.b32.xlu0 %v7144, 95
      %v8764 = vpop.permute.xlu0 %8763
      %8765 = vrot.lane.b32.xlu0 %v7114, 95
      %v8766 = vpop.permute.xlu0 %8765
      %8767 = vrot.lane.b32.xlu0 %v7115, 95
      %v8768 = vpop.permute.xlu0 %8767
      %8769 = vrot.lane.b32.xlu0 %v7116, 95
      %v8770 = vpop.permute.xlu0 %8769
      %8771 = vrot.lane.b32.xlu0 %v7117, 95
      %v8772 = vpop.permute.xlu0 %8771
      %8773 = vrot.lane.b32.xlu0 %v7118, 95
      %v8774 = vpop.permute.xlu0 %8773
      %8775 = vrot.lane.b32.xlu0 %v7119, 95
      %v8776 = vpop.permute.xlu0 %8775
      %8777 = vrot.lane.b32.xlu0 %v7120, 95
      %v8778 = vpop.permute.xlu0 %8777
      %8779 = vrot.lane.b32.xlu0 %v7150, 95
      %v8780 = vpop.permute.xlu0 %8779
      %8781 = vrot.lane.b32.xlu0 %v7147, 95
      %v8782 = vpop.permute.xlu0 %8781
      %8783 = vrot.lane.b32.xlu0 %v7121, 95
      %v8784 = vpop.permute.xlu0 %8783
      %8785 = vrot.lane.b32.xlu0 %v7122, 95
      %v8786 = vpop.permute.xlu0 %8785
      %8787 = vrot.lane.b32.xlu0 %v7123, 95
      %v8788 = vpop.permute.xlu0 %8787
      %8789 = vrot.lane.b32.xlu0 %v7124, 95
      %v8790 = vpop.permute.xlu0 %8789
      %8791 = vrot.lane.b32.xlu0 %v7125, 95
      %v8792 = vpop.permute.xlu0 %8791
      %8793 = vrot.lane.b32.xlu0 %v7126, 95
      %v8794 = vpop.permute.xlu0 %8793
      %8795 = vrot.lane.b32.xlu0 %v7127, 95
      %v8796 = vpop.permute.xlu0 %8795
      %8797 = vrot.lane.b32.xlu0 %v7153, 95
      %v8798 = vpop.permute.xlu0 %8797
      %v8799 = vsel %vm4785, %v8764, %v8766
      %v8800 = vsel %vm4785, %v8766, %v8768
      %v8801 = vsel %vm4785, %v8768, %v8770
      %v8802 = vsel %vm4785, %v8770, %v8772
      %v8803 = vsel %vm4785, %v8772, %v8774
      %v8804 = vsel %vm4785, %v8774, %v8776
      %v8805 = vsel %vm4785, %v8776, %v8778
      %v8806 = vsel %vm4785, %v8778, %v8780
      %v8807 = vsel %vm4785, %v8782, %v8784
      %v8808 = vsel %vm4785, %v8784, %v8786
      %v8809 = vsel %vm4785, %v8786, %v8788
      %v8810 = vsel %vm4785, %v8788, %v8790
      %v8811 = vsel %vm4785, %v8790, %v8792
      %v8812 = vsel %vm4785, %v8792, %v8794
      %v8813 = vsel %vm4785, %v8794, %v8796
      %v8814 = vsel %vm4785, %v8796, %v8798
      %v8832 = vsel %vm831, %v8761, 0
      %v8835 = vsel %vm831, %v8762, 0
      %8837 = vmatprep.subr.bf16.mxu0 0
      %8838 = vmatpush1.bf16.msra.mxu0 0
      %8839 = vmatprep.subr.bf16.mxu0 0
      %8840 = vmatpush1.bf16.msra.mxu0 0
      %8841 = vmatprep.subr.bf16.mxu0 0
      %8842 = vmatpush1.bf16.msra.mxu0 0
      %8843 = vmatprep.subr.bf16.mxu0 0
      %8844 = vmatpush1.bf16.msra.mxu0 0
      %8845 = vmatprep.subr.bf16.mxu0 0
      %8846 = vmatpush1.bf16.msra.mxu0 0
      %8847 = vmatprep.subr.bf16.mxu0 0
      %8848 = vmatpush1.bf16.msra.mxu0 0
      %8849 = vmatprep.subr.bf16.mxu0 %v8808
      %8850 = vmatpush1.bf16.msra.mxu0 %v8807
      %8851 = vmatprep.subr.bf16.mxu0 %v8800
      %8852 = vmatpush1.bf16.msra.mxu0 %v8799
      %8853 = vmatprep.subr.bf16.mxu0 0
      %8854 = vmatpush2.bf16.msra.mxu0 0
      %8855 = vmatprep.subr.bf16.mxu0 0
      %8856 = vmatpush2.bf16.msra.mxu0 0
      %8857 = vmatprep.subr.bf16.mxu0 0
      %8858 = vmatpush2.bf16.msra.mxu0 0
      %8859 = vmatprep.subr.bf16.mxu0 0
      %8860 = vmatpush2.bf16.msra.mxu0 0
      %8861 = vmatprep.subr.bf16.mxu0 0
      %8862 = vmatpush2.bf16.msra.mxu0 0
      %8863 = vmatprep.subr.bf16.mxu0 0
      %8864 = vmatpush2.bf16.msra.mxu0 0
      %8865 = vmatprep.subr.bf16.mxu0 0
      %8866 = vmatpush2.bf16.msra.mxu0 0
      %8867 = vmatprep.subr.bf16.mxu0 0
      %8868 = vmatpush2.bf16.msra.mxu0 0
      %8869 = vmatprep.mubr.bf16.mxu0 0
      %8870 = vmatmul.mubr.bf16.gmra.mxu0 %v8832
      %v8871 = vpop.f32.mrf.mxu0
      %v8872 = vadd.f32 0.0, %v8871
      %v8873 = vpop.f32.mrf.mxu0
      %v8874 = vadd.f32 0.0, %v8873
      %v8875 = vpop.f32.mrf.mxu0
      %v8876 = vadd.f32 0.0, %v8875
      %v8877 = vpop.f32.mrf.mxu0
      %v8878 = vadd.f32 0.0, %v8877
      %8879 = vmatprep.mubr.bf16.mxu0 0
      %8880 = vmatmul.mubr.bf16.gmra.mxu0 %v8835
      %v8881 = vpop.f32.mrf.mxu0
      %v8882 = vadd.f32 0.0, %v8881
      %v8883 = vpop.f32.mrf.mxu0
      %v8884 = vadd.f32 0.0, %v8883
      %v8885 = vpop.f32.mrf.mxu0
      %v8886 = vadd.f32 0.0, %v8885
      %v8887 = vpop.f32.mrf.mxu0
      %v8888 = vadd.f32 0.0, %v8887
      %8889 = vdwg.mxu0
      %8890 = vmatprep.subr.bf16.mxu0 0
      %8891 = vmatpush1.bf16.msra.mxu0 0
      %8892 = vmatprep.subr.bf16.mxu0 0
      %8893 = vmatpush1.bf16.msra.mxu0 0
      %8894 = vmatprep.subr.bf16.mxu0 0
      %8895 = vmatpush1.bf16.msra.mxu0 0
      %8896 = vmatprep.subr.bf16.mxu0 0
      %8897 = vmatpush1.bf16.msra.mxu0 0
      %8898 = vmatprep.subr.bf16.mxu0 0
      %8899 = vmatpush1.bf16.msra.mxu0 0
      %8900 = vmatprep.subr.bf16.mxu0 0
      %8901 = vmatpush1.bf16.msra.mxu0 0
      %8902 = vmatprep.subr.bf16.mxu0 %v8810
      %8903 = vmatpush1.bf16.msra.mxu0 %v8809
      %8904 = vmatprep.subr.bf16.mxu0 %v8802
      %8905 = vmatpush1.bf16.msra.mxu0 %v8801
      %8906 = vmatprep.subr.bf16.mxu0 0
      %8907 = vmatpush2.bf16.msra.mxu0 0
      %8908 = vmatprep.subr.bf16.mxu0 0
      %8909 = vmatpush2.bf16.msra.mxu0 0
      %8910 = vmatprep.subr.bf16.mxu0 0
      %8911 = vmatpush2.bf16.msra.mxu0 0
      %8912 = vmatprep.subr.bf16.mxu0 0
      %8913 = vmatpush2.bf16.msra.mxu0 0
      %8914 = vmatprep.subr.bf16.mxu0 0
      %8915 = vmatpush2.bf16.msra.mxu0 0
      %8916 = vmatprep.subr.bf16.mxu0 0
      %8917 = vmatpush2.bf16.msra.mxu0 0
      %8918 = vmatprep.subr.bf16.mxu0 0
      %8919 = vmatpush2.bf16.msra.mxu0 0
      %8920 = vmatprep.subr.bf16.mxu0 0
      %8921 = vmatpush2.bf16.msra.mxu0 0
      %8922 = vmatprep.mubr.bf16.mxu0 0
      %8923 = vmatmul.mubr.bf16.gmra.mxu0 %v8832
      %v8924 = vpop.f32.mrf.mxu0
      %v8925 = vadd.f32 0.0, %v8924
      %v8926 = vpop.f32.mrf.mxu0
      %v8927 = vadd.f32 0.0, %v8926
      %v8928 = vpop.f32.mrf.mxu0
      %v8929 = vadd.f32 0.0, %v8928
      %v8930 = vpop.f32.mrf.mxu0
      %v8931 = vadd.f32 0.0, %v8930
      %8932 = vmatprep.mubr.bf16.mxu0 0
      %8933 = vmatmul.mubr.bf16.gmra.mxu0 %v8835
      %v8934 = vpop.f32.mrf.mxu0
      %v8935 = vadd.f32 0.0, %v8934
      %v8936 = vpop.f32.mrf.mxu0
      %v8937 = vadd.f32 0.0, %v8936
      %v8938 = vpop.f32.mrf.mxu0
      %v8939 = vadd.f32 0.0, %v8938
      %v8940 = vpop.f32.mrf.mxu0
      %v8941 = vadd.f32 0.0, %v8940
      %8942 = vdwg.mxu0
      %8943 = vmatprep.subr.bf16.mxu0 0
      %8944 = vmatpush1.bf16.msra.mxu0 0
      %8945 = vmatprep.subr.bf16.mxu0 0
      %8946 = vmatpush1.bf16.msra.mxu0 0
      %8947 = vmatprep.subr.bf16.mxu0 0
      %8948 = vmatpush1.bf16.msra.mxu0 0
      %8949 = vmatprep.subr.bf16.mxu0 0
      %8950 = vmatpush1.bf16.msra.mxu0 0
      %8951 = vmatprep.subr.bf16.mxu0 0
      %8952 = vmatpush1.bf16.msra.mxu0 0
      %8953 = vmatprep.subr.bf16.mxu0 0
      %8954 = vmatpush1.bf16.msra.mxu0 0
      %8955 = vmatprep.subr.bf16.mxu0 %v8812
      %8956 = vmatpush1.bf16.msra.mxu0 %v8811
      %8957 = vmatprep.subr.bf16.mxu0 %v8804
      %8958 = vmatpush1.bf16.msra.mxu0 %v8803
      %8959 = vmatprep.subr.bf16.mxu0 0
      %8960 = vmatpush2.bf16.msra.mxu0 0
      %8961 = vmatprep.subr.bf16.mxu0 0
      %8962 = vmatpush2.bf16.msra.mxu0 0
      %8963 = vmatprep.subr.bf16.mxu0 0
      %8964 = vmatpush2.bf16.msra.mxu0 0
      %8965 = vmatprep.subr.bf16.mxu0 0
      %8966 = vmatpush2.bf16.msra.mxu0 0
      %8967 = vmatprep.subr.bf16.mxu0 0
      %8968 = vmatpush2.bf16.msra.mxu0 0
      %8969 = vmatprep.subr.bf16.mxu0 0
      %8970 = vmatpush2.bf16.msra.mxu0 0
      %8971 = vmatprep.subr.bf16.mxu0 0
      %8972 = vmatpush2.bf16.msra.mxu0 0
      %8973 = vmatprep.subr.bf16.mxu0 0
      %8974 = vmatpush2.bf16.msra.mxu0 0
      %8975 = vmatprep.mubr.bf16.mxu0 0
      %8976 = vmatmul.mubr.bf16.gmra.mxu0 %v8832
      %v8977 = vpop.f32.mrf.mxu0
      %v8978 = vadd.f32 0.0, %v8977
      %v8979 = vpop.f32.mrf.mxu0
      %v8980 = vadd.f32 0.0, %v8979
      %v8981 = vpop.f32.mrf.mxu0
      %v8982 = vadd.f32 0.0, %v8981
      %v8983 = vpop.f32.mrf.mxu0
      %v8984 = vadd.f32 0.0, %v8983
      %8985 = vmatprep.mubr.bf16.mxu0 0
      %8986 = vmatmul.mubr.bf16.gmra.mxu0 %v8835
      %v8987 = vpop.f32.mrf.mxu0
      %v8988 = vadd.f32 0.0, %v8987
      %v8989 = vpop.f32.mrf.mxu0
      %v8990 = vadd.f32 0.0, %v8989
      %v8991 = vpop.f32.mrf.mxu0
      %v8992 = vadd.f32 0.0, %v8991
      %v8993 = vpop.f32.mrf.mxu0
      %v8994 = vadd.f32 0.0, %v8993
      %8995 = vdwg.mxu0
      %8996 = vmatprep.subr.bf16.mxu0 0
      %8997 = vmatpush1.bf16.msra.mxu0 0
      %8998 = vmatprep.subr.bf16.mxu0 0
      %8999 = vmatpush1.bf16.msra.mxu0 0
      %9000 = vmatprep.subr.bf16.mxu0 0
      %9001 = vmatpush1.bf16.msra.mxu0 0
      %9002 = vmatprep.subr.bf16.mxu0 0
      %9003 = vmatpush1.bf16.msra.mxu0 0
      %9004 = vmatprep.subr.bf16.mxu0 0
      %9005 = vmatpush1.bf16.msra.mxu0 0
      %9006 = vmatprep.subr.bf16.mxu0 0
      %9007 = vmatpush1.bf16.msra.mxu0 0
      %9008 = vmatprep.subr.bf16.mxu0 %v8814
      %9009 = vmatpush1.bf16.msra.mxu0 %v8813
      %9010 = vmatprep.subr.bf16.mxu0 %v8806
      %9011 = vmatpush1.bf16.msra.mxu0 %v8805
      %9012 = vmatprep.subr.bf16.mxu0 0
      %9013 = vmatpush2.bf16.msra.mxu0 0
      %9014 = vmatprep.subr.bf16.mxu0 0
      %9015 = vmatpush2.bf16.msra.mxu0 0
      %9016 = vmatprep.subr.bf16.mxu0 0
      %9017 = vmatpush2.bf16.msra.mxu0 0
      %9018 = vmatprep.subr.bf16.mxu0 0
      %9019 = vmatpush2.bf16.msra.mxu0 0
      %9020 = vmatprep.subr.bf16.mxu0 0
      %9021 = vmatpush2.bf16.msra.mxu0 0
      %9022 = vmatprep.subr.bf16.mxu0 0
      %9023 = vmatpush2.bf16.msra.mxu0 0
      %9024 = vmatprep.subr.bf16.mxu0 0
      %9025 = vmatpush2.bf16.msra.mxu0 0
      %9026 = vmatprep.subr.bf16.mxu0 0
      %9027 = vmatpush2.bf16.msra.mxu0 0
      %9028 = vmatprep.mubr.bf16.mxu0 0
      %9029 = vmatmul.mubr.bf16.gmra.mxu0 %v8832
      %v9030 = vpop.f32.mrf.mxu0
      %v9031 = vadd.f32 0.0, %v9030
      %v9032 = vpop.f32.mrf.mxu0
      %v9033 = vadd.f32 0.0, %v9032
      %v9034 = vpop.f32.mrf.mxu0
      %v9035 = vadd.f32 0.0, %v9034
      %v9036 = vpop.f32.mrf.mxu0
      %v9037 = vadd.f32 0.0, %v9036
      %9038 = vmatprep.mubr.bf16.mxu0 0
      %9039 = vmatmul.mubr.bf16.gmra.mxu0 %v8835
      %v9040 = vpop.f32.mrf.mxu0
      %v9041 = vadd.f32 0.0, %v9040
      %v9042 = vpop.f32.mrf.mxu0
      %v9043 = vadd.f32 0.0, %v9042
      %v9044 = vpop.f32.mrf.mxu0
      %v9045 = vadd.f32 0.0, %v9044
      %v9046 = vpop.f32.mrf.mxu0
      %v9047 = vadd.f32 0.0, %v9046
      %9048 = vdwg.mxu0
      %v9049 = vadd.f32 %v8716, %v8872
      %v9050 = vadd.f32 %v8717, %v8874
      %v9051 = vadd.f32 %v8718, %v8925
      %v9052 = vadd.f32 %v8719, %v8927
      %v9053 = vadd.f32 %v8720, %v8978
      %v9054 = vadd.f32 %v8721, %v8980
      %v9055 = vadd.f32 %v8722, %v9031
      %v9056 = vadd.f32 %v8723, %v9033
      %v9057 = vadd.f32 %v8724, %v8876
      %v9058 = vadd.f32 %v8725, %v8878
      %v9059 = vadd.f32 %v8726, %v8929
      %v9060 = vadd.f32 %v8727, %v8931
      %v9061 = vadd.f32 %v8728, %v8982
      %v9062 = vadd.f32 %v8729, %v8984
      %v9063 = vadd.f32 %v8730, %v9035
      %v9064 = vadd.f32 %v8731, %v9037
      %v9065 = vadd.f32 %v8732, %v8882
      %v9066 = vadd.f32 %v8733, %v8884
      %v9067 = vadd.f32 %v8734, %v8935
      %v9068 = vadd.f32 %v8735, %v8937
      %v9069 = vadd.f32 %v8736, %v8988
      %v9070 = vadd.f32 %v8737, %v8990
      %v9071 = vadd.f32 %v8738, %v9041
      %v9072 = vadd.f32 %v8739, %v9043
      %v9073 = vadd.f32 %v8740, %v8886
      %v9074 = vadd.f32 %v8741, %v8888
      %v9075 = vadd.f32 %v8742, %v8939
      %v9076 = vadd.f32 %v8743, %v8941
      %v9077 = vadd.f32 %v8744, %v8992
      %v9078 = vadd.f32 %v8745, %v8994
      %v9079 = vadd.f32 %v8746, %v9045
      %v9080 = vadd.f32 %v8747, %v9047
      %9081 = vrot.lane.b32.xlu0 %v7917, 34
      %v9082 = vpop.permute.xlu0 %9081
      %9083 = vrot.lane.b32.xlu0 %v7921, 34
      %v9084 = vpop.permute.xlu0 %9083
      %9085 = vrot.lane.b32.xlu0 %v7925, 34
      %v9086 = vpop.permute.xlu0 %9085
      %9087 = vrot.lane.b32.xlu0 %v7929, 34
      %v9088 = vpop.permute.xlu0 %9087
      %9089 = vrot.lane.b32.xlu0 %v7933, 34
      %v9090 = vpop.permute.xlu0 %9089
      %9091 = vrot.lane.b32.xlu0 %v7937, 34
      %v9092 = vpop.permute.xlu0 %9091
      %9093 = vrot.lane.b32.xlu0 %v7941, 34
      %v9094 = vpop.permute.xlu0 %9093
      %9095 = vrot.lane.b32.xlu0 %v7945, 34
      %v9096 = vpop.permute.xlu0 %9095
      %v9097 = vsel %vm4865, %v9082, %v9084
      %v9098 = vsel %vm4865, %v9084, %v9086
      %v9099 = vsel %vm4865, %v9086, %v9088
      %v9100 = vsel %vm4865, %v9088, %v9090
      %v9101 = vsel %vm4865, %v9090, %v9092
      %v9102 = vsel %vm4865, %v9092, %v9094
      %v9103 = vsel %vm4865, %v9094, %v9096
      %vm9104 = vcmp.ne.s16.totalorder %v9082, 0
      %vm9105 = vcmp.ne.s16.totalorder %v9097, 0
      %vm9106 = vcmp.ne.s16.totalorder %v9098, 0
      %vm9107 = vcmp.ne.s16.totalorder %v9099, 0
      %vm9108 = vcmp.ne.s16.totalorder %v9100, 0
      %vm9109 = vcmp.ne.s16.totalorder %v9101, 0
      %vm9110 = vcmp.ne.s16.totalorder %v9102, 0
      %vm9111 = vcmp.ne.s16.totalorder %v9103, 0
      %vm9112 = vcmp.ne.s16.totalorder %v9096, 0
      %v9113 = vsel %vm9104, %v7144, 0
      %v9114 = vsel %vm9105, %v7114, 0
      %v9115 = vsel %vm9106, %v7115, 0
      %v9116 = vsel %vm9107, %v7116, 0
      %v9117 = vsel %vm9108, %v7117, 0
      %v9118 = vsel %vm9109, %v7118, 0
      %v9119 = vsel %vm9110, %v7119, 0
      %v9120 = vsel %vm9111, %v7120, 0
      %v9121 = vsel %vm9112, %v7150, 0
      %v9122 = vsel %vm9104, %v7147, 0
      %v9123 = vsel %vm9105, %v7121, 0
      %v9124 = vsel %vm9106, %v7122, 0
      %v9125 = vsel %vm9107, %v7123, 0
      %v9126 = vsel %vm9108, %v7124, 0
      %v9127 = vsel %vm9109, %v7125, 0
      %v9128 = vsel %vm9110, %v7126, 0
      %v9129 = vsel %vm9111, %v7127, 0
      %v9130 = vsel %vm9112, %v7153, 0
      %s9131 = scalar_lea.vmem %s8, 80
      %v9132 = vld [vmem:[%s9131] sm:$0xf]
      %v9133 = vld [vmem:[%s9131 + $0x4] sm:$0xf]
      %v9134 = vld [vmem:[%s9131 + $0x8] sm:$0xf]
      %v9135 = vld [vmem:[%s9131 + $0xc] sm:$0xf]
      %v9140 = vunpack.c.l.b16 %v9132
      %v9141 = vunpack.c.l.b16 %v9133
      %v9142 = vunpack.c.l.b16 %v9134
      %v9143 = vunpack.c.l.b16 %v9135
      %v9144 = vpack.c.b16 %v9141, %v9140
      %v9145 = vpack.c.b16 %v9143, %v9142
      %9164 = vrot.lane.b32.xlu0 %v9113, 94
      %v9165 = vpop.permute.xlu0 %9164
      %9166 = vrot.lane.b32.xlu0 %v9114, 94
      %v9167 = vpop.permute.xlu0 %9166
      %9168 = vrot.lane.b32.xlu0 %v9115, 94
      %v9169 = vpop.permute.xlu0 %9168
      %9170 = vrot.lane.b32.xlu0 %v9116, 94
      %v9171 = vpop.permute.xlu0 %9170
      %9172 = vrot.lane.b32.xlu0 %v9117, 94
      %v9173 = vpop.permute.xlu0 %9172
      %9174 = vrot.lane.b32.xlu0 %v9118, 94
      %v9175 = vpop.permute.xlu0 %9174
      %9176 = vrot.lane.b32.xlu0 %v9119, 94
      %v9177 = vpop.permute.xlu0 %9176
      %9178 = vrot.lane.b32.xlu0 %v9120, 94
      %v9179 = vpop.permute.xlu0 %9178
      %9180 = vrot.lane.b32.xlu0 %v9121, 94
      %v9181 = vpop.permute.xlu0 %9180
      %9182 = vrot.lane.b32.xlu0 %v9122, 94
      %v9183 = vpop.permute.xlu0 %9182
      %9184 = vrot.lane.b32.xlu0 %v9123, 94
      %v9185 = vpop.permute.xlu0 %9184
      %9186 = vrot.lane.b32.xlu0 %v9124, 94
      %v9187 = vpop.permute.xlu0 %9186
      %9188 = vrot.lane.b32.xlu0 %v9125, 94
      %v9189 = vpop.permute.xlu0 %9188
      %9190 = vrot.lane.b32.xlu0 %v9126, 94
      %v9191 = vpop.permute.xlu0 %9190
      %9192 = vrot.lane.b32.xlu0 %v9127, 94
      %v9193 = vpop.permute.xlu0 %9192
      %9194 = vrot.lane.b32.xlu0 %v9128, 94
      %v9195 = vpop.permute.xlu0 %9194
      %9196 = vrot.lane.b32.xlu0 %v9129, 94
      %v9197 = vpop.permute.xlu0 %9196
      %9198 = vrot.lane.b32.xlu0 %v9130, 94
      %v9199 = vpop.permute.xlu0 %9198
      %v9200 = vsel %vm4909, %v9165, %v9167
      %v9201 = vsel %vm4909, %v9167, %v9169
      %v9202 = vsel %vm4909, %v9169, %v9171
      %v9203 = vsel %vm4909, %v9171, %v9173
      %v9204 = vsel %vm4909, %v9173, %v9175
      %v9205 = vsel %vm4909, %v9175, %v9177
      %v9206 = vsel %vm4909, %v9177, %v9179
      %v9207 = vsel %vm4909, %v9179, %v9181
      %v9208 = vsel %vm4909, %v9183, %v9185
      %v9209 = vsel %vm4909, %v9185, %v9187
      %v9210 = vsel %vm4909, %v9187, %v9189
      %v9211 = vsel %vm4909, %v9189, %v9191
      %v9212 = vsel %vm4909, %v9191, %v9193
      %v9213 = vsel %vm4909, %v9193, %v9195
      %v9214 = vsel %vm4909, %v9195, %v9197
      %v9215 = vsel %vm4909, %v9197, %v9199
      %v9233 = vsel %vm831, %v9144, 0
      %v9236 = vsel %vm831, %v9145, 0
      %9238 = vmatprep.subr.bf16.mxu0 0
      %9239 = vmatpush1.bf16.msra.mxu0 0
      %9240 = vmatprep.subr.bf16.mxu0 0
      %9241 = vmatpush1.bf16.msra.mxu0 0
      %9242 = vmatprep.subr.bf16.mxu0 0
      %9243 = vmatpush1.bf16.msra.mxu0 0
      %9244 = vmatprep.subr.bf16.mxu0 0
      %9245 = vmatpush1.bf16.msra.mxu0 0
      %9246 = vmatprep.subr.bf16.mxu0 0
      %9247 = vmatpush1.bf16.msra.mxu0 0
      %9248 = vmatprep.subr.bf16.mxu0 0
      %9249 = vmatpush1.bf16.msra.mxu0 0
      %9250 = vmatprep.subr.bf16.mxu0 %v9209
      %9251 = vmatpush1.bf16.msra.mxu0 %v9208
      %9252 = vmatprep.subr.bf16.mxu0 %v9201
      %9253 = vmatpush1.bf16.msra.mxu0 %v9200
      %9254 = vmatprep.subr.bf16.mxu0 0
      %9255 = vmatpush2.bf16.msra.mxu0 0
      %9256 = vmatprep.subr.bf16.mxu0 0
      %9257 = vmatpush2.bf16.msra.mxu0 0
      %9258 = vmatprep.subr.bf16.mxu0 0
      %9259 = vmatpush2.bf16.msra.mxu0 0
      %9260 = vmatprep.subr.bf16.mxu0 0
      %9261 = vmatpush2.bf16.msra.mxu0 0
      %9262 = vmatprep.subr.bf16.mxu0 0
      %9263 = vmatpush2.bf16.msra.mxu0 0
      %9264 = vmatprep.subr.bf16.mxu0 0
      %9265 = vmatpush2.bf16.msra.mxu0 0
      %9266 = vmatprep.subr.bf16.mxu0 0
      %9267 = vmatpush2.bf16.msra.mxu0 0
      %9268 = vmatprep.subr.bf16.mxu0 0
      %9269 = vmatpush2.bf16.msra.mxu0 0
      %9270 = vmatprep.mubr.bf16.mxu0 0
      %9271 = vmatmul.mubr.bf16.gmra.mxu0 %v9233
      %v9272 = vpop.f32.mrf.mxu0
      %v9273 = vadd.f32 0.0, %v9272
      %v9274 = vpop.f32.mrf.mxu0
      %v9275 = vadd.f32 0.0, %v9274
      %v9276 = vpop.f32.mrf.mxu0
      %v9277 = vadd.f32 0.0, %v9276
      %v9278 = vpop.f32.mrf.mxu0
      %v9279 = vadd.f32 0.0, %v9278
      %9280 = vmatprep.mubr.bf16.mxu0 0
      %9281 = vmatmul.mubr.bf16.gmra.mxu0 %v9236
      %v9282 = vpop.f32.mrf.mxu0
      %v9283 = vadd.f32 0.0, %v9282
      %v9284 = vpop.f32.mrf.mxu0
      %v9285 = vadd.f32 0.0, %v9284
      %v9286 = vpop.f32.mrf.mxu0
      %v9287 = vadd.f32 0.0, %v9286
      %v9288 = vpop.f32.mrf.mxu0
      %v9289 = vadd.f32 0.0, %v9288
      %9290 = vdwg.mxu0
      %9291 = vmatprep.subr.bf16.mxu0 0
      %9292 = vmatpush1.bf16.msra.mxu0 0
      %9293 = vmatprep.subr.bf16.mxu0 0
      %9294 = vmatpush1.bf16.msra.mxu0 0
      %9295 = vmatprep.subr.bf16.mxu0 0
      %9296 = vmatpush1.bf16.msra.mxu0 0
      %9297 = vmatprep.subr.bf16.mxu0 0
      %9298 = vmatpush1.bf16.msra.mxu0 0
      %9299 = vmatprep.subr.bf16.mxu0 0
      %9300 = vmatpush1.bf16.msra.mxu0 0
      %9301 = vmatprep.subr.bf16.mxu0 0
      %9302 = vmatpush1.bf16.msra.mxu0 0
      %9303 = vmatprep.subr.bf16.mxu0 %v9211
      %9304 = vmatpush1.bf16.msra.mxu0 %v9210
      %9305 = vmatprep.subr.bf16.mxu0 %v9203
      %9306 = vmatpush1.bf16.msra.mxu0 %v9202
      %9307 = vmatprep.subr.bf16.mxu0 0
      %9308 = vmatpush2.bf16.msra.mxu0 0
      %9309 = vmatprep.subr.bf16.mxu0 0
      %9310 = vmatpush2.bf16.msra.mxu0 0
      %9311 = vmatprep.subr.bf16.mxu0 0
      %9312 = vmatpush2.bf16.msra.mxu0 0
      %9313 = vmatprep.subr.bf16.mxu0 0
      %9314 = vmatpush2.bf16.msra.mxu0 0
      %9315 = vmatprep.subr.bf16.mxu0 0
      %9316 = vmatpush2.bf16.msra.mxu0 0
      %9317 = vmatprep.subr.bf16.mxu0 0
      %9318 = vmatpush2.bf16.msra.mxu0 0
      %9319 = vmatprep.subr.bf16.mxu0 0
      %9320 = vmatpush2.bf16.msra.mxu0 0
      %9321 = vmatprep.subr.bf16.mxu0 0
      %9322 = vmatpush2.bf16.msra.mxu0 0
      %9323 = vmatprep.mubr.bf16.mxu0 0
      %9324 = vmatmul.mubr.bf16.gmra.mxu0 %v9233
      %v9325 = vpop.f32.mrf.mxu0
      %v9326 = vadd.f32 0.0, %v9325
      %v9327 = vpop.f32.mrf.mxu0
      %v9328 = vadd.f32 0.0, %v9327
      %v9329 = vpop.f32.mrf.mxu0
      %v9330 = vadd.f32 0.0, %v9329
      %v9331 = vpop.f32.mrf.mxu0
      %v9332 = vadd.f32 0.0, %v9331
      %9333 = vmatprep.mubr.bf16.mxu0 0
      %9334 = vmatmul.mubr.bf16.gmra.mxu0 %v9236
      %v9335 = vpop.f32.mrf.mxu0
      %v9336 = vadd.f32 0.0, %v9335
      %v9337 = vpop.f32.mrf.mxu0
      %v9338 = vadd.f32 0.0, %v9337
      %v9339 = vpop.f32.mrf.mxu0
      %v9340 = vadd.f32 0.0, %v9339
      %v9341 = vpop.f32.mrf.mxu0
      %v9342 = vadd.f32 0.0, %v9341
      %9343 = vdwg.mxu0
      %9344 = vmatprep.subr.bf16.mxu0 0
      %9345 = vmatpush1.bf16.msra.mxu0 0
      %9346 = vmatprep.subr.bf16.mxu0 0
      %9347 = vmatpush1.bf16.msra.mxu0 0
      %9348 = vmatprep.subr.bf16.mxu0 0
      %9349 = vmatpush1.bf16.msra.mxu0 0
      %9350 = vmatprep.subr.bf16.mxu0 0
      %9351 = vmatpush1.bf16.msra.mxu0 0
      %9352 = vmatprep.subr.bf16.mxu0 0
      %9353 = vmatpush1.bf16.msra.mxu0 0
      %9354 = vmatprep.subr.bf16.mxu0 0
      %9355 = vmatpush1.bf16.msra.mxu0 0
      %9356 = vmatprep.subr.bf16.mxu0 %v9213
      %9357 = vmatpush1.bf16.msra.mxu0 %v9212
      %9358 = vmatprep.subr.bf16.mxu0 %v9205
      %9359 = vmatpush1.bf16.msra.mxu0 %v9204
      %9360 = vmatprep.subr.bf16.mxu0 0
      %9361 = vmatpush2.bf16.msra.mxu0 0
      %9362 = vmatprep.subr.bf16.mxu0 0
      %9363 = vmatpush2.bf16.msra.mxu0 0
      %9364 = vmatprep.subr.bf16.mxu0 0
      %9365 = vmatpush2.bf16.msra.mxu0 0
      %9366 = vmatprep.subr.bf16.mxu0 0
      %9367 = vmatpush2.bf16.msra.mxu0 0
      %9368 = vmatprep.subr.bf16.mxu0 0
      %9369 = vmatpush2.bf16.msra.mxu0 0
      %9370 = vmatprep.subr.bf16.mxu0 0
      %9371 = vmatpush2.bf16.msra.mxu0 0
      %9372 = vmatprep.subr.bf16.mxu0 0
      %9373 = vmatpush2.bf16.msra.mxu0 0
      %9374 = vmatprep.subr.bf16.mxu0 0
      %9375 = vmatpush2.bf16.msra.mxu0 0
      %9376 = vmatprep.mubr.bf16.mxu0 0
      %9377 = vmatmul.mubr.bf16.gmra.mxu0 %v9233
      %v9378 = vpop.f32.mrf.mxu0
      %v9379 = vadd.f32 0.0, %v9378
      %v9380 = vpop.f32.mrf.mxu0
      %v9381 = vadd.f32 0.0, %v9380
      %v9382 = vpop.f32.mrf.mxu0
      %v9383 = vadd.f32 0.0, %v9382
      %v9384 = vpop.f32.mrf.mxu0
      %v9385 = vadd.f32 0.0, %v9384
      %9386 = vmatprep.mubr.bf16.mxu0 0
      %9387 = vmatmul.mubr.bf16.gmra.mxu0 %v9236
      %v9388 = vpop.f32.mrf.mxu0
      %v9389 = vadd.f32 0.0, %v9388
      %v9390 = vpop.f32.mrf.mxu0
      %v9391 = vadd.f32 0.0, %v9390
      %v9392 = vpop.f32.mrf.mxu0
      %v9393 = vadd.f32 0.0, %v9392
      %v9394 = vpop.f32.mrf.mxu0
      %v9395 = vadd.f32 0.0, %v9394
      %9396 = vdwg.mxu0
      %9397 = vmatprep.subr.bf16.mxu0 0
      %9398 = vmatpush1.bf16.msra.mxu0 0
      %9399 = vmatprep.subr.bf16.mxu0 0
      %9400 = vmatpush1.bf16.msra.mxu0 0
      %9401 = vmatprep.subr.bf16.mxu0 0
      %9402 = vmatpush1.bf16.msra.mxu0 0
      %9403 = vmatprep.subr.bf16.mxu0 0
      %9404 = vmatpush1.bf16.msra.mxu0 0
      %9405 = vmatprep.subr.bf16.mxu0 0
      %9406 = vmatpush1.bf16.msra.mxu0 0
      %9407 = vmatprep.subr.bf16.mxu0 0
      %9408 = vmatpush1.bf16.msra.mxu0 0
      %9409 = vmatprep.subr.bf16.mxu0 %v9215
      %9410 = vmatpush1.bf16.msra.mxu0 %v9214
      %9411 = vmatprep.subr.bf16.mxu0 %v9207
      %9412 = vmatpush1.bf16.msra.mxu0 %v9206
      %9413 = vmatprep.subr.bf16.mxu0 0
      %9414 = vmatpush2.bf16.msra.mxu0 0
      %9415 = vmatprep.subr.bf16.mxu0 0
      %9416 = vmatpush2.bf16.msra.mxu0 0
      %9417 = vmatprep.subr.bf16.mxu0 0
      %9418 = vmatpush2.bf16.msra.mxu0 0
      %9419 = vmatprep.subr.bf16.mxu0 0
      %9420 = vmatpush2.bf16.msra.mxu0 0
      %9421 = vmatprep.subr.bf16.mxu0 0
      %9422 = vmatpush2.bf16.msra.mxu0 0
      %9423 = vmatprep.subr.bf16.mxu0 0
      %9424 = vmatpush2.bf16.msra.mxu0 0
      %9425 = vmatprep.subr.bf16.mxu0 0
      %9426 = vmatpush2.bf16.msra.mxu0 0
      %9427 = vmatprep.subr.bf16.mxu0 0
      %9428 = vmatpush2.bf16.msra.mxu0 0
      %9429 = vmatprep.mubr.bf16.mxu0 0
      %9430 = vmatmul.mubr.bf16.gmra.mxu0 %v9233
      %v9431 = vpop.f32.mrf.mxu0
      %v9432 = vadd.f32 0.0, %v9431
      %v9433 = vpop.f32.mrf.mxu0
      %v9434 = vadd.f32 0.0, %v9433
      %v9435 = vpop.f32.mrf.mxu0
      %v9436 = vadd.f32 0.0, %v9435
      %v9437 = vpop.f32.mrf.mxu0
      %v9438 = vadd.f32 0.0, %v9437
      %9439 = vmatprep.mubr.bf16.mxu0 0
      %9440 = vmatmul.mubr.bf16.gmra.mxu0 %v9236
      %v9441 = vpop.f32.mrf.mxu0
      %v9442 = vadd.f32 0.0, %v9441
      %v9443 = vpop.f32.mrf.mxu0
      %v9444 = vadd.f32 0.0, %v9443
      %v9445 = vpop.f32.mrf.mxu0
      %v9446 = vadd.f32 0.0, %v9445
      %v9447 = vpop.f32.mrf.mxu0
      %v9448 = vadd.f32 0.0, %v9447
      %9449 = vdwg.mxu0
      %v9450 = vadd.f32 %v9049, %v9273
      %v9451 = vadd.f32 %v9050, %v9275
      %v9452 = vadd.f32 %v9051, %v9326
      %v9453 = vadd.f32 %v9052, %v9328
      %v9454 = vadd.f32 %v9053, %v9379
      %v9455 = vadd.f32 %v9054, %v9381
      %v9456 = vadd.f32 %v9055, %v9432
      %v9457 = vadd.f32 %v9056, %v9434
      %v9458 = vadd.f32 %v9057, %v9277
      %v9459 = vadd.f32 %v9058, %v9279
      %v9460 = vadd.f32 %v9059, %v9330
      %v9461 = vadd.f32 %v9060, %v9332
      %v9462 = vadd.f32 %v9061, %v9383
      %v9463 = vadd.f32 %v9062, %v9385
      %v9464 = vadd.f32 %v9063, %v9436
      %v9465 = vadd.f32 %v9064, %v9438
      %v9466 = vadd.f32 %v9065, %v9283
      %v9467 = vadd.f32 %v9066, %v9285
      %v9468 = vadd.f32 %v9067, %v9336
      %v9469 = vadd.f32 %v9068, %v9338
      %v9470 = vadd.f32 %v9069, %v9389
      %v9471 = vadd.f32 %v9070, %v9391
      %v9472 = vadd.f32 %v9071, %v9442
      %v9473 = vadd.f32 %v9072, %v9444
      %v9474 = vadd.f32 %v9073, %v9287
      %v9475 = vadd.f32 %v9074, %v9289
      %v9476 = vadd.f32 %v9075, %v9340
      %v9477 = vadd.f32 %v9076, %v9342
      %v9478 = vadd.f32 %v9077, %v9393
      %v9479 = vadd.f32 %v9078, %v9395
      %v9480 = vadd.f32 %v9079, %v9446
      %v9481 = vadd.f32 %v9080, %v9448
      %9482 = vrot.lane.b32.xlu0 %v7300, 64
      %v9483 = vpop.permute.xlu0 %9482
      %9484 = vrot.lane.b32.xlu0 %v7304, 64
      %v9485 = vpop.permute.xlu0 %9484
      %9486 = vrot.lane.b32.xlu0 %v7308, 64
      %v9487 = vpop.permute.xlu0 %9486
      %9488 = vrot.lane.b32.xlu0 %v7312, 64
      %v9489 = vpop.permute.xlu0 %9488
      %9490 = vrot.lane.b32.xlu0 %v7316, 64
      %v9491 = vpop.permute.xlu0 %9490
      %9492 = vrot.lane.b32.xlu0 %v7320, 64
      %v9493 = vpop.permute.xlu0 %9492
      %9494 = vrot.lane.b32.xlu0 %v7324, 64
      %v9495 = vpop.permute.xlu0 %9494
      %9496 = vrot.lane.b32.xlu0 %v7328, 64
      %v9497 = vpop.permute.xlu0 %9496
      %vm9498 = vcmask 523264
      %v9499 = vsel %vm9498, %v9483, %v9485
      %v9500 = vsel %vm9498, %v9485, %v9487
      %v9501 = vsel %vm9498, %v9487, %v9489
      %v9502 = vsel %vm9498, %v9489, %v9491
      %v9503 = vsel %vm9498, %v9491, %v9493
      %v9504 = vsel %vm9498, %v9493, %v9495
      %v9505 = vsel %vm9498, %v9495, %v9497
      %vm9506 = vcmp.ne.s16.totalorder %v9483, 0
      %vm9507 = vcmp.ne.s16.totalorder %v9499, 0
      %vm9508 = vcmp.ne.s16.totalorder %v9500, 0
      %vm9509 = vcmp.ne.s16.totalorder %v9501, 0
      %vm9510 = vcmp.ne.s16.totalorder %v9502, 0
      %vm9511 = vcmp.ne.s16.totalorder %v9503, 0
      %vm9512 = vcmp.ne.s16.totalorder %v9504, 0
      %vm9513 = vcmp.ne.s16.totalorder %v9505, 0
      %vm9514 = vcmp.ne.s16.totalorder %v9497, 0
      %v9515 = vsel %vm9506, %v7144, 0
      %v9516 = vsel %vm9507, %v7114, 0
      %v9517 = vsel %vm9508, %v7115, 0
      %v9518 = vsel %vm9509, %v7116, 0
      %v9519 = vsel %vm9510, %v7117, 0
      %v9520 = vsel %vm9511, %v7118, 0
      %v9521 = vsel %vm9512, %v7119, 0
      %v9522 = vsel %vm9513, %v7120, 0
      %v9523 = vsel %vm9514, %v7150, 0
      %v9524 = vsel %vm9506, %v7147, 0
      %v9525 = vsel %vm9507, %v7121, 0
      %v9526 = vsel %vm9508, %v7122, 0
      %v9527 = vsel %vm9509, %v7123, 0
      %v9528 = vsel %vm9510, %v7124, 0
      %v9529 = vsel %vm9511, %v7125, 0
      %v9530 = vsel %vm9512, %v7126, 0
      %v9531 = vsel %vm9513, %v7127, 0
      %v9532 = vsel %vm9514, %v7153, 0
      %s9533 = scalar_lea.vmem %s8, 96
      %v9534 = vld [vmem:[%s9533] sm:$0xf]
      %v9535 = vld [vmem:[%s9533 + $0x4] sm:$0xf]
      %v9536 = vld [vmem:[%s9533 + $0x8] sm:$0xf]
      %v9537 = vld [vmem:[%s9533 + $0xc] sm:$0xf]
      %v9542 = vunpack.c.l.b16 %v9534
      %v9543 = vunpack.c.l.b16 %v9535
      %v9544 = vunpack.c.l.b16 %v9536
      %v9545 = vunpack.c.l.b16 %v9537
      %v9546 = vpack.c.b16 %v9543, %v9542
      %v9547 = vpack.c.b16 %v9545, %v9544
      %9566 = vrot.lane.b32.xlu0 %v9515, 64
      %v9567 = vpop.permute.xlu0 %9566
      %9568 = vrot.lane.b32.xlu0 %v9516, 64
      %v9569 = vpop.permute.xlu0 %9568
      %9570 = vrot.lane.b32.xlu0 %v9517, 64
      %v9571 = vpop.permute.xlu0 %9570
      %9572 = vrot.lane.b32.xlu0 %v9518, 64
      %v9573 = vpop.permute.xlu0 %9572
      %9574 = vrot.lane.b32.xlu0 %v9519, 64
      %v9575 = vpop.permute.xlu0 %9574
      %9576 = vrot.lane.b32.xlu0 %v9520, 64
      %v9577 = vpop.permute.xlu0 %9576
      %9578 = vrot.lane.b32.xlu0 %v9521, 64
      %v9579 = vpop.permute.xlu0 %9578
      %9580 = vrot.lane.b32.xlu0 %v9522, 64
      %v9581 = vpop.permute.xlu0 %9580
      %9582 = vrot.lane.b32.xlu0 %v9523, 64
      %v9583 = vpop.permute.xlu0 %9582
      %9584 = vrot.lane.b32.xlu0 %v9524, 64
      %v9585 = vpop.permute.xlu0 %9584
      %9586 = vrot.lane.b32.xlu0 %v9525, 64
      %v9587 = vpop.permute.xlu0 %9586
      %9588 = vrot.lane.b32.xlu0 %v9526, 64
      %v9589 = vpop.permute.xlu0 %9588
      %9590 = vrot.lane.b32.xlu0 %v9527, 64
      %v9591 = vpop.permute.xlu0 %9590
      %9592 = vrot.lane.b32.xlu0 %v9528, 64
      %v9593 = vpop.permute.xlu0 %9592
      %9594 = vrot.lane.b32.xlu0 %v9529, 64
      %v9595 = vpop.permute.xlu0 %9594
      %9596 = vrot.lane.b32.xlu0 %v9530, 64
      %v9597 = vpop.permute.xlu0 %9596
      %9598 = vrot.lane.b32.xlu0 %v9531, 64
      %v9599 = vpop.permute.xlu0 %9598
      %9600 = vrot.lane.b32.xlu0 %v9532, 64
      %v9601 = vpop.permute.xlu0 %9600
      %v9602 = vsel %vm9498, %v9567, %v9569
      %v9603 = vsel %vm9498, %v9569, %v9571
      %v9604 = vsel %vm9498, %v9571, %v9573
      %v9605 = vsel %vm9498, %v9573, %v9575
      %v9606 = vsel %vm9498, %v9575, %v9577
      %v9607 = vsel %vm9498, %v9577, %v9579
      %v9608 = vsel %vm9498, %v9579, %v9581
      %v9609 = vsel %vm9498, %v9581, %v9583
      %v9610 = vsel %vm9498, %v9585, %v9587
      %v9611 = vsel %vm9498, %v9587, %v9589
      %v9612 = vsel %vm9498, %v9589, %v9591
      %v9613 = vsel %vm9498, %v9591, %v9593
      %v9614 = vsel %vm9498, %v9593, %v9595
      %v9615 = vsel %vm9498, %v9595, %v9597
      %v9616 = vsel %vm9498, %v9597, %v9599
      %v9617 = vsel %vm9498, %v9599, %v9601
      %v9635 = vsel %vm831, %v9546, 0
      %v9638 = vsel %vm831, %v9547, 0
      %9640 = vmatprep.subr.bf16.mxu0 0
      %9641 = vmatpush1.bf16.msra.mxu0 0
      %9642 = vmatprep.subr.bf16.mxu0 0
      %9643 = vmatpush1.bf16.msra.mxu0 0
      %9644 = vmatprep.subr.bf16.mxu0 0
      %9645 = vmatpush1.bf16.msra.mxu0 0
      %9646 = vmatprep.subr.bf16.mxu0 0
      %9647 = vmatpush1.bf16.msra.mxu0 0
      %9648 = vmatprep.subr.bf16.mxu0 0
      %9649 = vmatpush1.bf16.msra.mxu0 0
      %9650 = vmatprep.subr.bf16.mxu0 0
      %9651 = vmatpush1.bf16.msra.mxu0 0
      %9652 = vmatprep.subr.bf16.mxu0 %v9611
      %9653 = vmatpush1.bf16.msra.mxu0 %v9610
      %9654 = vmatprep.subr.bf16.mxu0 %v9603
      %9655 = vmatpush1.bf16.msra.mxu0 %v9602
      %9656 = vmatprep.subr.bf16.mxu0 0
      %9657 = vmatpush2.bf16.msra.mxu0 0
      %9658 = vmatprep.subr.bf16.mxu0 0
      %9659 = vmatpush2.bf16.msra.mxu0 0
      %9660 = vmatprep.subr.bf16.mxu0 0
      %9661 = vmatpush2.bf16.msra.mxu0 0
      %9662 = vmatprep.subr.bf16.mxu0 0
      %9663 = vmatpush2.bf16.msra.mxu0 0
      %9664 = vmatprep.subr.bf16.mxu0 0
      %9665 = vmatpush2.bf16.msra.mxu0 0
      %9666 = vmatprep.subr.bf16.mxu0 0
      %9667 = vmatpush2.bf16.msra.mxu0 0
      %9668 = vmatprep.subr.bf16.mxu0 0
      %9669 = vmatpush2.bf16.msra.mxu0 0
      %9670 = vmatprep.subr.bf16.mxu0 0
      %9671 = vmatpush2.bf16.msra.mxu0 0
      %9672 = vmatprep.mubr.bf16.mxu0 0
      %9673 = vmatmul.mubr.bf16.gmra.mxu0 %v9635
      %v9674 = vpop.f32.mrf.mxu0
      %v9675 = vadd.f32 0.0, %v9674
      %v9676 = vpop.f32.mrf.mxu0
      %v9677 = vadd.f32 0.0, %v9676
      %v9678 = vpop.f32.mrf.mxu0
      %v9679 = vadd.f32 0.0, %v9678
      %v9680 = vpop.f32.mrf.mxu0
      %v9681 = vadd.f32 0.0, %v9680
      %9682 = vmatprep.mubr.bf16.mxu0 0
      %9683 = vmatmul.mubr.bf16.gmra.mxu0 %v9638
      %v9684 = vpop.f32.mrf.mxu0
      %v9685 = vadd.f32 0.0, %v9684
      %v9686 = vpop.f32.mrf.mxu0
      %v9687 = vadd.f32 0.0, %v9686
      %v9688 = vpop.f32.mrf.mxu0
      %v9689 = vadd.f32 0.0, %v9688
      %v9690 = vpop.f32.mrf.mxu0
      %v9691 = vadd.f32 0.0, %v9690
      %9692 = vdwg.mxu0
      %9693 = vmatprep.subr.bf16.mxu0 0
      %9694 = vmatpush1.bf16.msra.mxu0 0
      %9695 = vmatprep.subr.bf16.mxu0 0
      %9696 = vmatpush1.bf16.msra.mxu0 0
      %9697 = vmatprep.subr.bf16.mxu0 0
      %9698 = vmatpush1.bf16.msra.mxu0 0
      %9699 = vmatprep.subr.bf16.mxu0 0
      %9700 = vmatpush1.bf16.msra.mxu0 0
      %9701 = vmatprep.subr.bf16.mxu0 0
      %9702 = vmatpush1.bf16.msra.mxu0 0
      %9703 = vmatprep.subr.bf16.mxu0 0
      %9704 = vmatpush1.bf16.msra.mxu0 0
      %9705 = vmatprep.subr.bf16.mxu0 %v9613
      %9706 = vmatpush1.bf16.msra.mxu0 %v9612
      %9707 = vmatprep.subr.bf16.mxu0 %v9605
      %9708 = vmatpush1.bf16.msra.mxu0 %v9604
      %9709 = vmatprep.subr.bf16.mxu0 0
      %9710 = vmatpush2.bf16.msra.mxu0 0
      %9711 = vmatprep.subr.bf16.mxu0 0
      %9712 = vmatpush2.bf16.msra.mxu0 0
      %9713 = vmatprep.subr.bf16.mxu0 0
      %9714 = vmatpush2.bf16.msra.mxu0 0
      %9715 = vmatprep.subr.bf16.mxu0 0
      %9716 = vmatpush2.bf16.msra.mxu0 0
      %9717 = vmatprep.subr.bf16.mxu0 0
      %9718 = vmatpush2.bf16.msra.mxu0 0
      %9719 = vmatprep.subr.bf16.mxu0 0
      %9720 = vmatpush2.bf16.msra.mxu0 0
      %9721 = vmatprep.subr.bf16.mxu0 0
      %9722 = vmatpush2.bf16.msra.mxu0 0
      %9723 = vmatprep.subr.bf16.mxu0 0
      %9724 = vmatpush2.bf16.msra.mxu0 0
      %9725 = vmatprep.mubr.bf16.mxu0 0
      %9726 = vmatmul.mubr.bf16.gmra.mxu0 %v9635
      %v9727 = vpop.f32.mrf.mxu0
      %v9728 = vadd.f32 0.0, %v9727
      %v9729 = vpop.f32.mrf.mxu0
      %v9730 = vadd.f32 0.0, %v9729
      %v9731 = vpop.f32.mrf.mxu0
      %v9732 = vadd.f32 0.0, %v9731
      %v9733 = vpop.f32.mrf.mxu0
      %v9734 = vadd.f32 0.0, %v9733
      %9735 = vmatprep.mubr.bf16.mxu0 0
      %9736 = vmatmul.mubr.bf16.gmra.mxu0 %v9638
      %v9737 = vpop.f32.mrf.mxu0
      %v9738 = vadd.f32 0.0, %v9737
      %v9739 = vpop.f32.mrf.mxu0
      %v9740 = vadd.f32 0.0, %v9739
      %v9741 = vpop.f32.mrf.mxu0
      %v9742 = vadd.f32 0.0, %v9741
      %v9743 = vpop.f32.mrf.mxu0
      %v9744 = vadd.f32 0.0, %v9743
      %9745 = vdwg.mxu0
      %9746 = vmatprep.subr.bf16.mxu0 0
      %9747 = vmatpush1.bf16.msra.mxu0 0
      %9748 = vmatprep.subr.bf16.mxu0 0
      %9749 = vmatpush1.bf16.msra.mxu0 0
      %9750 = vmatprep.subr.bf16.mxu0 0
      %9751 = vmatpush1.bf16.msra.mxu0 0
      %9752 = vmatprep.subr.bf16.mxu0 0
      %9753 = vmatpush1.bf16.msra.mxu0 0
      %9754 = vmatprep.subr.bf16.mxu0 0
      %9755 = vmatpush1.bf16.msra.mxu0 0
      %9756 = vmatprep.subr.bf16.mxu0 0
      %9757 = vmatpush1.bf16.msra.mxu0 0
      %9758 = vmatprep.subr.bf16.mxu0 %v9615
      %9759 = vmatpush1.bf16.msra.mxu0 %v9614
      %9760 = vmatprep.subr.bf16.mxu0 %v9607
      %9761 = vmatpush1.bf16.msra.mxu0 %v9606
      %9762 = vmatprep.subr.bf16.mxu0 0
      %9763 = vmatpush2.bf16.msra.mxu0 0
      %9764 = vmatprep.subr.bf16.mxu0 0
      %9765 = vmatpush2.bf16.msra.mxu0 0
      %9766 = vmatprep.subr.bf16.mxu0 0
      %9767 = vmatpush2.bf16.msra.mxu0 0
      %9768 = vmatprep.subr.bf16.mxu0 0
      %9769 = vmatpush2.bf16.msra.mxu0 0
      %9770 = vmatprep.subr.bf16.mxu0 0
      %9771 = vmatpush2.bf16.msra.mxu0 0
      %9772 = vmatprep.subr.bf16.mxu0 0
      %9773 = vmatpush2.bf16.msra.mxu0 0
      %9774 = vmatprep.subr.bf16.mxu0 0
      %9775 = vmatpush2.bf16.msra.mxu0 0
      %9776 = vmatprep.subr.bf16.mxu0 0
      %9777 = vmatpush2.bf16.msra.mxu0 0
      %9778 = vmatprep.mubr.bf16.mxu0 0
      %9779 = vmatmul.mubr.bf16.gmra.mxu0 %v9635
      %v9780 = vpop.f32.mrf.mxu0
      %v9781 = vadd.f32 0.0, %v9780
      %v9782 = vpop.f32.mrf.mxu0
      %v9783 = vadd.f32 0.0, %v9782
      %v9784 = vpop.f32.mrf.mxu0
      %v9785 = vadd.f32 0.0, %v9784
      %v9786 = vpop.f32.mrf.mxu0
      %v9787 = vadd.f32 0.0, %v9786
      %9788 = vmatprep.mubr.bf16.mxu0 0
      %9789 = vmatmul.mubr.bf16.gmra.mxu0 %v9638
      %v9790 = vpop.f32.mrf.mxu0
      %v9791 = vadd.f32 0.0, %v9790
      %v9792 = vpop.f32.mrf.mxu0
      %v9793 = vadd.f32 0.0, %v9792
      %v9794 = vpop.f32.mrf.mxu0
      %v9795 = vadd.f32 0.0, %v9794
      %v9796 = vpop.f32.mrf.mxu0
      %v9797 = vadd.f32 0.0, %v9796
      %9798 = vdwg.mxu0
      %9799 = vmatprep.subr.bf16.mxu0 0
      %9800 = vmatpush1.bf16.msra.mxu0 0
      %9801 = vmatprep.subr.bf16.mxu0 0
      %9802 = vmatpush1.bf16.msra.mxu0 0
      %9803 = vmatprep.subr.bf16.mxu0 0
      %9804 = vmatpush1.bf16.msra.mxu0 0
      %9805 = vmatprep.subr.bf16.mxu0 0
      %9806 = vmatpush1.bf16.msra.mxu0 0
      %9807 = vmatprep.subr.bf16.mxu0 0
      %9808 = vmatpush1.bf16.msra.mxu0 0
      %9809 = vmatprep.subr.bf16.mxu0 0
      %9810 = vmatpush1.bf16.msra.mxu0 0
      %9811 = vmatprep.subr.bf16.mxu0 %v9617
      %9812 = vmatpush1.bf16.msra.mxu0 %v9616
      %9813 = vmatprep.subr.bf16.mxu0 %v9609
      %9814 = vmatpush1.bf16.msra.mxu0 %v9608
      %9815 = vmatprep.subr.bf16.mxu0 0
      %9816 = vmatpush2.bf16.msra.mxu0 0
      %9817 = vmatprep.subr.bf16.mxu0 0
      %9818 = vmatpush2.bf16.msra.mxu0 0
      %9819 = vmatprep.subr.bf16.mxu0 0
      %9820 = vmatpush2.bf16.msra.mxu0 0
      %9821 = vmatprep.subr.bf16.mxu0 0
      %9822 = vmatpush2.bf16.msra.mxu0 0
      %9823 = vmatprep.subr.bf16.mxu0 0
      %9824 = vmatpush2.bf16.msra.mxu0 0
      %9825 = vmatprep.subr.bf16.mxu0 0
      %9826 = vmatpush2.bf16.msra.mxu0 0
      %9827 = vmatprep.subr.bf16.mxu0 0
      %9828 = vmatpush2.bf16.msra.mxu0 0
      %9829 = vmatprep.subr.bf16.mxu0 0
      %9830 = vmatpush2.bf16.msra.mxu0 0
      %9831 = vmatprep.mubr.bf16.mxu0 0
      %9832 = vmatmul.mubr.bf16.gmra.mxu0 %v9635
      %v9833 = vpop.f32.mrf.mxu0
      %v9834 = vadd.f32 0.0, %v9833
      %v9835 = vpop.f32.mrf.mxu0
      %v9836 = vadd.f32 0.0, %v9835
      %v9837 = vpop.f32.mrf.mxu0
      %v9838 = vadd.f32 0.0, %v9837
      %v9839 = vpop.f32.mrf.mxu0
      %v9840 = vadd.f32 0.0, %v9839
      %9841 = vmatprep.mubr.bf16.mxu0 0
      %9842 = vmatmul.mubr.bf16.gmra.mxu0 %v9638
      %v9843 = vpop.f32.mrf.mxu0
      %v9844 = vadd.f32 0.0, %v9843
      %v9845 = vpop.f32.mrf.mxu0
      %v9846 = vadd.f32 0.0, %v9845
      %v9847 = vpop.f32.mrf.mxu0
      %v9848 = vadd.f32 0.0, %v9847
      %v9849 = vpop.f32.mrf.mxu0
      %v9850 = vadd.f32 0.0, %v9849
      %9851 = vdwg.mxu0
      %v9852 = vadd.f32 %v9450, %v9675
      %v9853 = vadd.f32 %v9451, %v9677
      %v9854 = vadd.f32 %v9452, %v9728
      %v9855 = vadd.f32 %v9453, %v9730
      %v9856 = vadd.f32 %v9454, %v9781
      %v9857 = vadd.f32 %v9455, %v9783
      %v9858 = vadd.f32 %v9456, %v9834
      %v9859 = vadd.f32 %v9457, %v9836
      %v9860 = vadd.f32 %v9458, %v9679
      %v9861 = vadd.f32 %v9459, %v9681
      %v9862 = vadd.f32 %v9460, %v9732
      %v9863 = vadd.f32 %v9461, %v9734
      %v9864 = vadd.f32 %v9462, %v9785
      %v9865 = vadd.f32 %v9463, %v9787
      %v9866 = vadd.f32 %v9464, %v9838
      %v9867 = vadd.f32 %v9465, %v9840
      %v9868 = vadd.f32 %v9466, %v9685
      %v9869 = vadd.f32 %v9467, %v9687
      %v9870 = vadd.f32 %v9468, %v9738
      %v9871 = vadd.f32 %v9469, %v9740
      %v9872 = vadd.f32 %v9470, %v9791
      %v9873 = vadd.f32 %v9471, %v9793
      %v9874 = vadd.f32 %v9472, %v9844
      %v9875 = vadd.f32 %v9473, %v9846
      %v9876 = vadd.f32 %v9474, %v9689
      %v9877 = vadd.f32 %v9475, %v9691
      %v9878 = vadd.f32 %v9476, %v9742
      %v9879 = vadd.f32 %v9477, %v9744
      %v9880 = vadd.f32 %v9478, %v9795
      %v9881 = vadd.f32 %v9479, %v9797
      %v9882 = vadd.f32 %v9480, %v9848
      %v9883 = vadd.f32 %v9481, %v9850
      %s9884 = scalar_lea.vmem %s8, 112
      %v9885 = vld [vmem:[%s9884] sm:$0xf]
      %v9886 = vld [vmem:[%s9884 + $0x4] sm:$0xf]
      %v9887 = vld [vmem:[%s9884 + $0x8] sm:$0xf]
      %v9888 = vld [vmem:[%s9884 + $0xc] sm:$0xf]
      %v9893 = vunpack.c.l.b16 %v9885
      %v9894 = vunpack.c.l.b16 %v9886
      %v9895 = vunpack.c.l.b16 %v9887
      %v9896 = vunpack.c.l.b16 %v9888
      %v9897 = vpack.c.b16 %v9894, %v9893
      %v9898 = vpack.c.b16 %v9896, %v9895
      %9899 = vrot.lane.b32.xlu0 %v7144, 63
      %v9900 = vpop.permute.xlu0 %9899
      %9901 = vrot.lane.b32.xlu0 %v7114, 63
      %v9902 = vpop.permute.xlu0 %9901
      %9903 = vrot.lane.b32.xlu0 %v7115, 63
      %v9904 = vpop.permute.xlu0 %9903
      %9905 = vrot.lane.b32.xlu0 %v7116, 63
      %v9906 = vpop.permute.xlu0 %9905
      %9907 = vrot.lane.b32.xlu0 %v7117, 63
      %v9908 = vpop.permute.xlu0 %9907
      %9909 = vrot.lane.b32.xlu0 %v7118, 63
      %v9910 = vpop.permute.xlu0 %9909
      %9911 = vrot.lane.b32.xlu0 %v7119, 63
      %v9912 = vpop.permute.xlu0 %9911
      %9913 = vrot.lane.b32.xlu0 %v7120, 63
      %v9914 = vpop.permute.xlu0 %9913
      %9915 = vrot.lane.b32.xlu0 %v7150, 63
      %v9916 = vpop.permute.xlu0 %9915
      %9917 = vrot.lane.b32.xlu0 %v7147, 63
      %v9918 = vpop.permute.xlu0 %9917
      %9919 = vrot.lane.b32.xlu0 %v7121, 63
      %v9920 = vpop.permute.xlu0 %9919
      %9921 = vrot.lane.b32.xlu0 %v7122, 63
      %v9922 = vpop.permute.xlu0 %9921
      %9923 = vrot.lane.b32.xlu0 %v7123, 63
      %v9924 = vpop.permute.xlu0 %9923
      %9925 = vrot.lane.b32.xlu0 %v7124, 63
      %v9926 = vpop.permute.xlu0 %9925
      %9927 = vrot.lane.b32.xlu0 %v7125, 63
      %v9928 = vpop.permute.xlu0 %9927
      %9929 = vrot.lane.b32.xlu0 %v7126, 63
      %v9930 = vpop.permute.xlu0 %9929
      %9931 = vrot.lane.b32.xlu0 %v7127, 63
      %v9932 = vpop.permute.xlu0 %9931
      %9933 = vrot.lane.b32.xlu0 %v7153, 63
      %v9934 = vpop.permute.xlu0 %9933
      %vm9935 = vcmask 515072
      %v9936 = vsel %vm9935, %v9900, %v9902
      %v9937 = vsel %vm9935, %v9902, %v9904
      %v9938 = vsel %vm9935, %v9904, %v9906
      %v9939 = vsel %vm9935, %v9906, %v9908
      %v9940 = vsel %vm9935, %v9908, %v9910
      %v9941 = vsel %vm9935, %v9910, %v9912
      %v9942 = vsel %vm9935, %v9912, %v9914
      %v9943 = vsel %vm9935, %v9914, %v9916
      %v9944 = vsel %vm9935, %v9918, %v9920
      %v9945 = vsel %vm9935, %v9920, %v9922
      %v9946 = vsel %vm9935, %v9922, %v9924
      %v9947 = vsel %vm9935, %v9924, %v9926
      %v9948 = vsel %vm9935, %v9926, %v9928
      %v9949 = vsel %vm9935, %v9928, %v9930
      %v9950 = vsel %vm9935, %v9930, %v9932
      %v9951 = vsel %vm9935, %v9932, %v9934
      %v9969 = vsel %vm831, %v9897, 0
      %v9972 = vsel %vm831, %v9898, 0
      %9974 = vmatprep.subr.bf16.mxu0 0
      %9975 = vmatpush1.bf16.msra.mxu0 0
      %9976 = vmatprep.subr.bf16.mxu0 0
      %9977 = vmatpush1.bf16.msra.mxu0 0
      %9978 = vmatprep.subr.bf16.mxu0 0
      %9979 = vmatpush1.bf16.msra.mxu0 0
      %9980 = vmatprep.subr.bf16.mxu0 0
      %9981 = vmatpush1.bf16.msra.mxu0 0
      %9982 = vmatprep.subr.bf16.mxu0 0
      %9983 = vmatpush1.bf16.msra.mxu0 0
      %9984 = vmatprep.subr.bf16.mxu0 0
      %9985 = vmatpush1.bf16.msra.mxu0 0
      %9986 = vmatprep.subr.bf16.mxu0 %v9945
      %9987 = vmatpush1.bf16.msra.mxu0 %v9944
      %9988 = vmatprep.subr.bf16.mxu0 %v9937
      %9989 = vmatpush1.bf16.msra.mxu0 %v9936
      %9990 = vmatprep.subr.bf16.mxu0 0
      %9991 = vmatpush2.bf16.msra.mxu0 0
      %9992 = vmatprep.subr.bf16.mxu0 0
      %9993 = vmatpush2.bf16.msra.mxu0 0
      %9994 = vmatprep.subr.bf16.mxu0 0
      %9995 = vmatpush2.bf16.msra.mxu0 0
      %9996 = vmatprep.subr.bf16.mxu0 0
      %9997 = vmatpush2.bf16.msra.mxu0 0
      %9998 = vmatprep.subr.bf16.mxu0 0
      %9999 = vmatpush2.bf16.msra.mxu0 0
      %10000 = vmatprep.subr.bf16.mxu0 0
      %10001 = vmatpush2.bf16.msra.mxu0 0
      %10002 = vmatprep.subr.bf16.mxu0 0
      %10003 = vmatpush2.bf16.msra.mxu0 0
      %10004 = vmatprep.subr.bf16.mxu0 0
      %10005 = vmatpush2.bf16.msra.mxu0 0
      %10006 = vmatprep.mubr.bf16.mxu0 0
      %10007 = vmatmul.mubr.bf16.gmra.mxu0 %v9969
      %v10008 = vpop.f32.mrf.mxu0
      %v10009 = vadd.f32 0.0, %v10008
      %v10010 = vpop.f32.mrf.mxu0
      %v10011 = vadd.f32 0.0, %v10010
      %v10012 = vpop.f32.mrf.mxu0
      %v10013 = vadd.f32 0.0, %v10012
      %v10014 = vpop.f32.mrf.mxu0
      %v10015 = vadd.f32 0.0, %v10014
      %10016 = vmatprep.mubr.bf16.mxu0 0
      %10017 = vmatmul.mubr.bf16.gmra.mxu0 %v9972
      %v10018 = vpop.f32.mrf.mxu0
      %v10019 = vadd.f32 0.0, %v10018
      %v10020 = vpop.f32.mrf.mxu0
      %v10021 = vadd.f32 0.0, %v10020
      %v10022 = vpop.f32.mrf.mxu0
      %v10023 = vadd.f32 0.0, %v10022
      %v10024 = vpop.f32.mrf.mxu0
      %v10025 = vadd.f32 0.0, %v10024
      %10026 = vdwg.mxu0
      %10027 = vmatprep.subr.bf16.mxu0 0
      %10028 = vmatpush1.bf16.msra.mxu0 0
      %10029 = vmatprep.subr.bf16.mxu0 0
      %10030 = vmatpush1.bf16.msra.mxu0 0
      %10031 = vmatprep.subr.bf16.mxu0 0
      %10032 = vmatpush1.bf16.msra.mxu0 0
      %10033 = vmatprep.subr.bf16.mxu0 0
      %10034 = vmatpush1.bf16.msra.mxu0 0
      %10035 = vmatprep.subr.bf16.mxu0 0
      %10036 = vmatpush1.bf16.msra.mxu0 0
      %10037 = vmatprep.subr.bf16.mxu0 0
      %10038 = vmatpush1.bf16.msra.mxu0 0
      %10039 = vmatprep.subr.bf16.mxu0 %v9947
      %10040 = vmatpush1.bf16.msra.mxu0 %v9946
      %10041 = vmatprep.subr.bf16.mxu0 %v9939
      %10042 = vmatpush1.bf16.msra.mxu0 %v9938
      %10043 = vmatprep.subr.bf16.mxu0 0
      %10044 = vmatpush2.bf16.msra.mxu0 0
      %10045 = vmatprep.subr.bf16.mxu0 0
      %10046 = vmatpush2.bf16.msra.mxu0 0
      %10047 = vmatprep.subr.bf16.mxu0 0
      %10048 = vmatpush2.bf16.msra.mxu0 0
      %10049 = vmatprep.subr.bf16.mxu0 0
      %10050 = vmatpush2.bf16.msra.mxu0 0
      %10051 = vmatprep.subr.bf16.mxu0 0
      %10052 = vmatpush2.bf16.msra.mxu0 0
      %10053 = vmatprep.subr.bf16.mxu0 0
      %10054 = vmatpush2.bf16.msra.mxu0 0
      %10055 = vmatprep.subr.bf16.mxu0 0
      %10056 = vmatpush2.bf16.msra.mxu0 0
      %10057 = vmatprep.subr.bf16.mxu0 0
      %10058 = vmatpush2.bf16.msra.mxu0 0
      %10059 = vmatprep.mubr.bf16.mxu0 0
      %10060 = vmatmul.mubr.bf16.gmra.mxu0 %v9969
      %v10061 = vpop.f32.mrf.mxu0
      %v10062 = vadd.f32 0.0, %v10061
      %v10063 = vpop.f32.mrf.mxu0
      %v10064 = vadd.f32 0.0, %v10063
      %v10065 = vpop.f32.mrf.mxu0
      %v10066 = vadd.f32 0.0, %v10065
      %v10067 = vpop.f32.mrf.mxu0
      %v10068 = vadd.f32 0.0, %v10067
      %10069 = vmatprep.mubr.bf16.mxu0 0
      %10070 = vmatmul.mubr.bf16.gmra.mxu0 %v9972
      %v10071 = vpop.f32.mrf.mxu0
      %v10072 = vadd.f32 0.0, %v10071
      %v10073 = vpop.f32.mrf.mxu0
      %v10074 = vadd.f32 0.0, %v10073
      %v10075 = vpop.f32.mrf.mxu0
      %v10076 = vadd.f32 0.0, %v10075
      %v10077 = vpop.f32.mrf.mxu0
      %v10078 = vadd.f32 0.0, %v10077
      %10079 = vdwg.mxu0
      %10080 = vmatprep.subr.bf16.mxu0 0
      %10081 = vmatpush1.bf16.msra.mxu0 0
      %10082 = vmatprep.subr.bf16.mxu0 0
      %10083 = vmatpush1.bf16.msra.mxu0 0
      %10084 = vmatprep.subr.bf16.mxu0 0
      %10085 = vmatpush1.bf16.msra.mxu0 0
      %10086 = vmatprep.subr.bf16.mxu0 0
      %10087 = vmatpush1.bf16.msra.mxu0 0
      %10088 = vmatprep.subr.bf16.mxu0 0
      %10089 = vmatpush1.bf16.msra.mxu0 0
      %10090 = vmatprep.subr.bf16.mxu0 0
      %10091 = vmatpush1.bf16.msra.mxu0 0
      %10092 = vmatprep.subr.bf16.mxu0 %v9949
      %10093 = vmatpush1.bf16.msra.mxu0 %v9948
      %10094 = vmatprep.subr.bf16.mxu0 %v9941
      %10095 = vmatpush1.bf16.msra.mxu0 %v9940
      %10096 = vmatprep.subr.bf16.mxu0 0
      %10097 = vmatpush2.bf16.msra.mxu0 0
      %10098 = vmatprep.subr.bf16.mxu0 0
      %10099 = vmatpush2.bf16.msra.mxu0 0
      %10100 = vmatprep.subr.bf16.mxu0 0
      %10101 = vmatpush2.bf16.msra.mxu0 0
      %10102 = vmatprep.subr.bf16.mxu0 0
      %10103 = vmatpush2.bf16.msra.mxu0 0
      %10104 = vmatprep.subr.bf16.mxu0 0
      %10105 = vmatpush2.bf16.msra.mxu0 0
      %10106 = vmatprep.subr.bf16.mxu0 0
      %10107 = vmatpush2.bf16.msra.mxu0 0
      %10108 = vmatprep.subr.bf16.mxu0 0
      %10109 = vmatpush2.bf16.msra.mxu0 0
      %10110 = vmatprep.subr.bf16.mxu0 0
      %10111 = vmatpush2.bf16.msra.mxu0 0
      %10112 = vmatprep.mubr.bf16.mxu0 0
      %10113 = vmatmul.mubr.bf16.gmra.mxu0 %v9969
      %v10114 = vpop.f32.mrf.mxu0
      %v10115 = vadd.f32 0.0, %v10114
      %v10116 = vpop.f32.mrf.mxu0
      %v10117 = vadd.f32 0.0, %v10116
      %v10118 = vpop.f32.mrf.mxu0
      %v10119 = vadd.f32 0.0, %v10118
      %v10120 = vpop.f32.mrf.mxu0
      %v10121 = vadd.f32 0.0, %v10120
      %10122 = vmatprep.mubr.bf16.mxu0 0
      %10123 = vmatmul.mubr.bf16.gmra.mxu0 %v9972
      %v10124 = vpop.f32.mrf.mxu0
      %v10125 = vadd.f32 0.0, %v10124
      %v10126 = vpop.f32.mrf.mxu0
      %v10127 = vadd.f32 0.0, %v10126
      %v10128 = vpop.f32.mrf.mxu0
      %v10129 = vadd.f32 0.0, %v10128
      %v10130 = vpop.f32.mrf.mxu0
      %v10131 = vadd.f32 0.0, %v10130
      %10132 = vdwg.mxu0
      %10133 = vmatprep.subr.bf16.mxu0 0
      %10134 = vmatpush1.bf16.msra.mxu0 0
      %10135 = vmatprep.subr.bf16.mxu0 0
      %10136 = vmatpush1.bf16.msra.mxu0 0
      %10137 = vmatprep.subr.bf16.mxu0 0
      %10138 = vmatpush1.bf16.msra.mxu0 0
      %10139 = vmatprep.subr.bf16.mxu0 0
      %10140 = vmatpush1.bf16.msra.mxu0 0
      %10141 = vmatprep.subr.bf16.mxu0 0
      %10142 = vmatpush1.bf16.msra.mxu0 0
      %10143 = vmatprep.subr.bf16.mxu0 0
      %10144 = vmatpush1.bf16.msra.mxu0 0
      %10145 = vmatprep.subr.bf16.mxu0 %v9951
      %10146 = vmatpush1.bf16.msra.mxu0 %v9950
      %10147 = vmatprep.subr.bf16.mxu0 %v9943
      %10148 = vmatpush1.bf16.msra.mxu0 %v9942
      %10149 = vmatprep.subr.bf16.mxu0 0
      %10150 = vmatpush2.bf16.msra.mxu0 0
      %10151 = vmatprep.subr.bf16.mxu0 0
      %10152 = vmatpush2.bf16.msra.mxu0 0
      %10153 = vmatprep.subr.bf16.mxu0 0
      %10154 = vmatpush2.bf16.msra.mxu0 0
      %10155 = vmatprep.subr.bf16.mxu0 0
      %10156 = vmatpush2.bf16.msra.mxu0 0
      %10157 = vmatprep.subr.bf16.mxu0 0
      %10158 = vmatpush2.bf16.msra.mxu0 0
      %10159 = vmatprep.subr.bf16.mxu0 0
      %10160 = vmatpush2.bf16.msra.mxu0 0
      %10161 = vmatprep.subr.bf16.mxu0 0
      %10162 = vmatpush2.bf16.msra.mxu0 0
      %10163 = vmatprep.subr.bf16.mxu0 0
      %10164 = vmatpush2.bf16.msra.mxu0 0
      %10165 = vmatprep.mubr.bf16.mxu0 0
      %10166 = vmatmul.mubr.bf16.gmra.mxu0 %v9969
      %v10167 = vpop.f32.mrf.mxu0
      %v10168 = vadd.f32 0.0, %v10167
      %v10169 = vpop.f32.mrf.mxu0
      %v10170 = vadd.f32 0.0, %v10169
      %v10171 = vpop.f32.mrf.mxu0
      %v10172 = vadd.f32 0.0, %v10171
      %v10173 = vpop.f32.mrf.mxu0
      %v10174 = vadd.f32 0.0, %v10173
      %10175 = vmatprep.mubr.bf16.mxu0 0
      %10176 = vmatmul.mubr.bf16.gmra.mxu0 %v9972
      %v10177 = vpop.f32.mrf.mxu0
      %v10178 = vadd.f32 0.0, %v10177
      %v10179 = vpop.f32.mrf.mxu0
      %v10180 = vadd.f32 0.0, %v10179
      %v10181 = vpop.f32.mrf.mxu0
      %v10182 = vadd.f32 0.0, %v10181
      %v10183 = vpop.f32.mrf.mxu0
      %v10184 = vadd.f32 0.0, %v10183
      %10185 = vdwg.mxu0
      %v10186 = vadd.f32 %v9852, %v10009
      %v10187 = vadd.f32 %v9853, %v10011
      %v10188 = vadd.f32 %v9854, %v10062
      %v10189 = vadd.f32 %v9855, %v10064
      %v10190 = vadd.f32 %v9856, %v10115
      %v10191 = vadd.f32 %v9857, %v10117
      %v10192 = vadd.f32 %v9858, %v10168
      %v10193 = vadd.f32 %v9859, %v10170
      %v10194 = vadd.f32 %v9860, %v10013
      %v10195 = vadd.f32 %v9861, %v10015
      %v10196 = vadd.f32 %v9862, %v10066
      %v10197 = vadd.f32 %v9863, %v10068
      %v10198 = vadd.f32 %v9864, %v10119
      %v10199 = vadd.f32 %v9865, %v10121
      %v10200 = vadd.f32 %v9866, %v10172
      %v10201 = vadd.f32 %v9867, %v10174
      %v10202 = vadd.f32 %v9868, %v10019
      %v10203 = vadd.f32 %v9869, %v10021
      %v10204 = vadd.f32 %v9870, %v10072
      %v10205 = vadd.f32 %v9871, %v10074
      %v10206 = vadd.f32 %v9872, %v10125
      %v10207 = vadd.f32 %v9873, %v10127
      %v10208 = vadd.f32 %v9874, %v10178
      %v10209 = vadd.f32 %v9875, %v10180
      %v10210 = vadd.f32 %v9876, %v10023
      %v10211 = vadd.f32 %v9877, %v10025
      %v10212 = vadd.f32 %v9878, %v10076
      %v10213 = vadd.f32 %v9879, %v10078
      %v10214 = vadd.f32 %v9880, %v10129
      %v10215 = vadd.f32 %v9881, %v10131
      %v10216 = vadd.f32 %v9882, %v10182
      %v10217 = vadd.f32 %v9883, %v10184
      %10218 = vrot.lane.b32.xlu0 %v7917, 66
      %v10219 = vpop.permute.xlu0 %10218
      %10220 = vrot.lane.b32.xlu0 %v7921, 66
      %v10221 = vpop.permute.xlu0 %10220
      %10222 = vrot.lane.b32.xlu0 %v7925, 66
      %v10223 = vpop.permute.xlu0 %10222
      %10224 = vrot.lane.b32.xlu0 %v7929, 66
      %v10225 = vpop.permute.xlu0 %10224
      %10226 = vrot.lane.b32.xlu0 %v7933, 66
      %v10227 = vpop.permute.xlu0 %10226
      %10228 = vrot.lane.b32.xlu0 %v7937, 66
      %v10229 = vpop.permute.xlu0 %10228
      %10230 = vrot.lane.b32.xlu0 %v7941, 66
      %v10231 = vpop.permute.xlu0 %10230
      %10232 = vrot.lane.b32.xlu0 %v7945, 66
      %v10233 = vpop.permute.xlu0 %10232
      %vm10234 = vcmask 539648
      %v10235 = vsel %vm10234, %v10219, %v10221
      %v10236 = vsel %vm10234, %v10221, %v10223
      %v10237 = vsel %vm10234, %v10223, %v10225
      %v10238 = vsel %vm10234, %v10225, %v10227
      %v10239 = vsel %vm10234, %v10227, %v10229
      %v10240 = vsel %vm10234, %v10229, %v10231
      %v10241 = vsel %vm10234, %v10231, %v10233
      %vm10242 = vcmp.ne.s16.totalorder %v10219, 0
      %vm10243 = vcmp.ne.s16.totalorder %v10235, 0
      %vm10244 = vcmp.ne.s16.totalorder %v10236, 0
      %vm10245 = vcmp.ne.s16.totalorder %v10237, 0
      %vm10246 = vcmp.ne.s16.totalorder %v10238, 0
      %vm10247 = vcmp.ne.s16.totalorder %v10239, 0
      %vm10248 = vcmp.ne.s16.totalorder %v10240, 0
      %vm10249 = vcmp.ne.s16.totalorder %v10241, 0
      %vm10250 = vcmp.ne.s16.totalorder %v10233, 0
      %v10251 = vsel %vm10242, %v7144, 0
      %v10252 = vsel %vm10243, %v7114, 0
      %v10253 = vsel %vm10244, %v7115, 0
      %v10254 = vsel %vm10245, %v7116, 0
      %v10255 = vsel %vm10246, %v7117, 0
      %v10256 = vsel %vm10247, %v7118, 0
      %v10257 = vsel %vm10248, %v7119, 0
      %v10258 = vsel %vm10249, %v7120, 0
      %v10259 = vsel %vm10250, %v7150, 0
      %v10260 = vsel %vm10242, %v7147, 0
      %v10261 = vsel %vm10243, %v7121, 0
      %v10262 = vsel %vm10244, %v7122, 0
      %v10263 = vsel %vm10245, %v7123, 0
      %v10264 = vsel %vm10246, %v7124, 0
      %v10265 = vsel %vm10247, %v7125, 0
      %v10266 = vsel %vm10248, %v7126, 0
      %v10267 = vsel %vm10249, %v7127, 0
      %v10268 = vsel %vm10250, %v7153, 0
      %s10269 = scalar_lea.vmem %s8, 128
      %v10270 = vld [vmem:[%s10269] sm:$0xf]
      %v10271 = vld [vmem:[%s10269 + $0x4] sm:$0xf]
      %v10272 = vld [vmem:[%s10269 + $0x8] sm:$0xf]
      %v10273 = vld [vmem:[%s10269 + $0xc] sm:$0xf]
      %v10278 = vunpack.c.l.b16 %v10270
      %v10279 = vunpack.c.l.b16 %v10271
      %v10280 = vunpack.c.l.b16 %v10272
      %v10281 = vunpack.c.l.b16 %v10273
      %v10282 = vpack.c.b16 %v10279, %v10278
      %v10283 = vpack.c.b16 %v10281, %v10280
      %10302 = vrot.lane.b32.xlu0 %v10251, 62
      %v10303 = vpop.permute.xlu0 %10302
      %10304 = vrot.lane.b32.xlu0 %v10252, 62
      %v10305 = vpop.permute.xlu0 %10304
      %10306 = vrot.lane.b32.xlu0 %v10253, 62
      %v10307 = vpop.permute.xlu0 %10306
      %10308 = vrot.lane.b32.xlu0 %v10254, 62
      %v10309 = vpop.permute.xlu0 %10308
      %10310 = vrot.lane.b32.xlu0 %v10255, 62
      %v10311 = vpop.permute.xlu0 %10310
      %10312 = vrot.lane.b32.xlu0 %v10256, 62
      %v10313 = vpop.permute.xlu0 %10312
      %10314 = vrot.lane.b32.xlu0 %v10257, 62
      %v10315 = vpop.permute.xlu0 %10314
      %10316 = vrot.lane.b32.xlu0 %v10258, 62
      %v10317 = vpop.permute.xlu0 %10316
      %10318 = vrot.lane.b32.xlu0 %v10259, 62
      %v10319 = vpop.permute.xlu0 %10318
      %10320 = vrot.lane.b32.xlu0 %v10260, 62
      %v10321 = vpop.permute.xlu0 %10320
      %10322 = vrot.lane.b32.xlu0 %v10261, 62
      %v10323 = vpop.permute.xlu0 %10322
      %10324 = vrot.lane.b32.xlu0 %v10262, 62
      %v10325 = vpop.permute.xlu0 %10324
      %10326 = vrot.lane.b32.xlu0 %v10263, 62
      %v10327 = vpop.permute.xlu0 %10326
      %10328 = vrot.lane.b32.xlu0 %v10264, 62
      %v10329 = vpop.permute.xlu0 %10328
      %10330 = vrot.lane.b32.xlu0 %v10265, 62
      %v10331 = vpop.permute.xlu0 %10330
      %10332 = vrot.lane.b32.xlu0 %v10266, 62
      %v10333 = vpop.permute.xlu0 %10332
      %10334 = vrot.lane.b32.xlu0 %v10267, 62
      %v10335 = vpop.permute.xlu0 %10334
      %10336 = vrot.lane.b32.xlu0 %v10268, 62
      %v10337 = vpop.permute.xlu0 %10336
      %vm10338 = vcmask 506880
      %v10339 = vsel %vm10338, %v10303, %v10305
      %v10340 = vsel %vm10338, %v10305, %v10307
      %v10341 = vsel %vm10338, %v10307, %v10309
      %v10342 = vsel %vm10338, %v10309, %v10311
      %v10343 = vsel %vm10338, %v10311, %v10313
      %v10344 = vsel %vm10338, %v10313, %v10315
      %v10345 = vsel %vm10338, %v10315, %v10317
      %v10346 = vsel %vm10338, %v10317, %v10319
      %v10347 = vsel %vm10338, %v10321, %v10323
      %v10348 = vsel %vm10338, %v10323, %v10325
      %v10349 = vsel %vm10338, %v10325, %v10327
      %v10350 = vsel %vm10338, %v10327, %v10329
      %v10351 = vsel %vm10338, %v10329, %v10331
      %v10352 = vsel %vm10338, %v10331, %v10333
      %v10353 = vsel %vm10338, %v10333, %v10335
      %v10354 = vsel %vm10338, %v10335, %v10337
      %v10372 = vsel %vm831, %v10282, 0
      %v10375 = vsel %vm831, %v10283, 0
      %10377 = vmatprep.subr.bf16.mxu0 0
      %10378 = vmatpush1.bf16.msra.mxu0 0
      %10379 = vmatprep.subr.bf16.mxu0 0
      %10380 = vmatpush1.bf16.msra.mxu0 0
      %10381 = vmatprep.subr.bf16.mxu0 0
      %10382 = vmatpush1.bf16.msra.mxu0 0
      %10383 = vmatprep.subr.bf16.mxu0 0
      %10384 = vmatpush1.bf16.msra.mxu0 0
      %10385 = vmatprep.subr.bf16.mxu0 0
      %10386 = vmatpush1.bf16.msra.mxu0 0
      %10387 = vmatprep.subr.bf16.mxu0 0
      %10388 = vmatpush1.bf16.msra.mxu0 0
      %10389 = vmatprep.subr.bf16.mxu0 %v10348
      %10390 = vmatpush1.bf16.msra.mxu0 %v10347
      %10391 = vmatprep.subr.bf16.mxu0 %v10340
      %10392 = vmatpush1.bf16.msra.mxu0 %v10339
      %10393 = vmatprep.subr.bf16.mxu0 0
      %10394 = vmatpush2.bf16.msra.mxu0 0
      %10395 = vmatprep.subr.bf16.mxu0 0
      %10396 = vmatpush2.bf16.msra.mxu0 0
      %10397 = vmatprep.subr.bf16.mxu0 0
      %10398 = vmatpush2.bf16.msra.mxu0 0
      %10399 = vmatprep.subr.bf16.mxu0 0
      %10400 = vmatpush2.bf16.msra.mxu0 0
      %10401 = vmatprep.subr.bf16.mxu0 0
      %10402 = vmatpush2.bf16.msra.mxu0 0
      %10403 = vmatprep.subr.bf16.mxu0 0
      %10404 = vmatpush2.bf16.msra.mxu0 0
      %10405 = vmatprep.subr.bf16.mxu0 0
      %10406 = vmatpush2.bf16.msra.mxu0 0
      %10407 = vmatprep.subr.bf16.mxu0 0
      %10408 = vmatpush2.bf16.msra.mxu0 0
      %10409 = vmatprep.mubr.bf16.mxu0 0
      %10410 = vmatmul.mubr.bf16.gmra.mxu0 %v10372
      %v10411 = vpop.f32.mrf.mxu0
      %v10412 = vadd.f32 0.0, %v10411
      %v10413 = vpop.f32.mrf.mxu0
      %v10414 = vadd.f32 0.0, %v10413
      %v10415 = vpop.f32.mrf.mxu0
      %v10416 = vadd.f32 0.0, %v10415
      %v10417 = vpop.f32.mrf.mxu0
      %v10418 = vadd.f32 0.0, %v10417
      %10419 = vmatprep.mubr.bf16.mxu0 0
      %10420 = vmatmul.mubr.bf16.gmra.mxu0 %v10375
      %v10421 = vpop.f32.mrf.mxu0
      %v10422 = vadd.f32 0.0, %v10421
      %v10423 = vpop.f32.mrf.mxu0
      %v10424 = vadd.f32 0.0, %v10423
      %v10425 = vpop.f32.mrf.mxu0
      %v10426 = vadd.f32 0.0, %v10425
      %v10427 = vpop.f32.mrf.mxu0
      %v10428 = vadd.f32 0.0, %v10427
      %10429 = vdwg.mxu0
      %10430 = vmatprep.subr.bf16.mxu0 0
      %10431 = vmatpush1.bf16.msra.mxu0 0
      %10432 = vmatprep.subr.bf16.mxu0 0
      %10433 = vmatpush1.bf16.msra.mxu0 0
      %10434 = vmatprep.subr.bf16.mxu0 0
      %10435 = vmatpush1.bf16.msra.mxu0 0
      %10436 = vmatprep.subr.bf16.mxu0 0
      %10437 = vmatpush1.bf16.msra.mxu0 0
      %10438 = vmatprep.subr.bf16.mxu0 0
      %10439 = vmatpush1.bf16.msra.mxu0 0
      %10440 = vmatprep.subr.bf16.mxu0 0
      %10441 = vmatpush1.bf16.msra.mxu0 0
      %10442 = vmatprep.subr.bf16.mxu0 %v10350
      %10443 = vmatpush1.bf16.msra.mxu0 %v10349
      %10444 = vmatprep.subr.bf16.mxu0 %v10342
      %10445 = vmatpush1.bf16.msra.mxu0 %v10341
      %10446 = vmatprep.subr.bf16.mxu0 0
      %10447 = vmatpush2.bf16.msra.mxu0 0
      %10448 = vmatprep.subr.bf16.mxu0 0
      %10449 = vmatpush2.bf16.msra.mxu0 0
      %10450 = vmatprep.subr.bf16.mxu0 0
      %10451 = vmatpush2.bf16.msra.mxu0 0
      %10452 = vmatprep.subr.bf16.mxu0 0
      %10453 = vmatpush2.bf16.msra.mxu0 0
      %10454 = vmatprep.subr.bf16.mxu0 0
      %10455 = vmatpush2.bf16.msra.mxu0 0
      %10456 = vmatprep.subr.bf16.mxu0 0
      %10457 = vmatpush2.bf16.msra.mxu0 0
      %10458 = vmatprep.subr.bf16.mxu0 0
      %10459 = vmatpush2.bf16.msra.mxu0 0
      %10460 = vmatprep.subr.bf16.mxu0 0
      %10461 = vmatpush2.bf16.msra.mxu0 0
      %10462 = vmatprep.mubr.bf16.mxu0 0
      %10463 = vmatmul.mubr.bf16.gmra.mxu0 %v10372
      %v10464 = vpop.f32.mrf.mxu0
      %v10465 = vadd.f32 0.0, %v10464
      %v10466 = vpop.f32.mrf.mxu0
      %v10467 = vadd.f32 0.0, %v10466
      %v10468 = vpop.f32.mrf.mxu0
      %v10469 = vadd.f32 0.0, %v10468
      %v10470 = vpop.f32.mrf.mxu0
      %v10471 = vadd.f32 0.0, %v10470
      %10472 = vmatprep.mubr.bf16.mxu0 0
      %10473 = vmatmul.mubr.bf16.gmra.mxu0 %v10375
      %v10474 = vpop.f32.mrf.mxu0
      %v10475 = vadd.f32 0.0, %v10474
      %v10476 = vpop.f32.mrf.mxu0
      %v10477 = vadd.f32 0.0, %v10476
      %v10478 = vpop.f32.mrf.mxu0
      %v10479 = vadd.f32 0.0, %v10478
      %v10480 = vpop.f32.mrf.mxu0
      %v10481 = vadd.f32 0.0, %v10480
      %10482 = vdwg.mxu0
      %10483 = vmatprep.subr.bf16.mxu0 0
      %10484 = vmatpush1.bf16.msra.mxu0 0
      %10485 = vmatprep.subr.bf16.mxu0 0
      %10486 = vmatpush1.bf16.msra.mxu0 0
      %10487 = vmatprep.subr.bf16.mxu0 0
      %10488 = vmatpush1.bf16.msra.mxu0 0
      %10489 = vmatprep.subr.bf16.mxu0 0
      %10490 = vmatpush1.bf16.msra.mxu0 0
      %10491 = vmatprep.subr.bf16.mxu0 0
      %10492 = vmatpush1.bf16.msra.mxu0 0
      %10493 = vmatprep.subr.bf16.mxu0 0
      %10494 = vmatpush1.bf16.msra.mxu0 0
      %10495 = vmatprep.subr.bf16.mxu0 %v10352
      %10496 = vmatpush1.bf16.msra.mxu0 %v10351
      %10497 = vmatprep.subr.bf16.mxu0 %v10344
      %10498 = vmatpush1.bf16.msra.mxu0 %v10343
      %10499 = vmatprep.subr.bf16.mxu0 0
      %10500 = vmatpush2.bf16.msra.mxu0 0
      %10501 = vmatprep.subr.bf16.mxu0 0
      %10502 = vmatpush2.bf16.msra.mxu0 0
      %10503 = vmatprep.subr.bf16.mxu0 0
      %10504 = vmatpush2.bf16.msra.mxu0 0
      %10505 = vmatprep.subr.bf16.mxu0 0
      %10506 = vmatpush2.bf16.msra.mxu0 0
      %10507 = vmatprep.subr.bf16.mxu0 0
      %10508 = vmatpush2.bf16.msra.mxu0 0
      %10509 = vmatprep.subr.bf16.mxu0 0
      %10510 = vmatpush2.bf16.msra.mxu0 0
      %10511 = vmatprep.subr.bf16.mxu0 0
      %10512 = vmatpush2.bf16.msra.mxu0 0
      %10513 = vmatprep.subr.bf16.mxu0 0
      %10514 = vmatpush2.bf16.msra.mxu0 0
      %10515 = vmatprep.mubr.bf16.mxu0 0
      %10516 = vmatmul.mubr.bf16.gmra.mxu0 %v10372
      %v10517 = vpop.f32.mrf.mxu0
      %v10518 = vadd.f32 0.0, %v10517
      %v10519 = vpop.f32.mrf.mxu0
      %v10520 = vadd.f32 0.0, %v10519
      %v10521 = vpop.f32.mrf.mxu0
      %v10522 = vadd.f32 0.0, %v10521
      %v10523 = vpop.f32.mrf.mxu0
      %v10524 = vadd.f32 0.0, %v10523
      %10525 = vmatprep.mubr.bf16.mxu0 0
      %10526 = vmatmul.mubr.bf16.gmra.mxu0 %v10375
      %v10527 = vpop.f32.mrf.mxu0
      %v10528 = vadd.f32 0.0, %v10527
      %v10529 = vpop.f32.mrf.mxu0
      %v10530 = vadd.f32 0.0, %v10529
      %v10531 = vpop.f32.mrf.mxu0
      %v10532 = vadd.f32 0.0, %v10531
      %v10533 = vpop.f32.mrf.mxu0
      %v10534 = vadd.f32 0.0, %v10533
      %10535 = vdwg.mxu0
      %10536 = vmatprep.subr.bf16.mxu0 0
      %10537 = vmatpush1.bf16.msra.mxu0 0
      %10538 = vmatprep.subr.bf16.mxu0 0
      %10539 = vmatpush1.bf16.msra.mxu0 0
      %10540 = vmatprep.subr.bf16.mxu0 0
      %10541 = vmatpush1.bf16.msra.mxu0 0
      %10542 = vmatprep.subr.bf16.mxu0 0
      %10543 = vmatpush1.bf16.msra.mxu0 0
      %10544 = vmatprep.subr.bf16.mxu0 0
      %10545 = vmatpush1.bf16.msra.mxu0 0
      %10546 = vmatprep.subr.bf16.mxu0 0
      %10547 = vmatpush1.bf16.msra.mxu0 0
      %10548 = vmatprep.subr.bf16.mxu0 %v10354
      %10549 = vmatpush1.bf16.msra.mxu0 %v10353
      %10550 = vmatprep.subr.bf16.mxu0 %v10346
      %10551 = vmatpush1.bf16.msra.mxu0 %v10345
      %10552 = vmatprep.subr.bf16.mxu0 0
      %10553 = vmatpush2.bf16.msra.mxu0 0
      %10554 = vmatprep.subr.bf16.mxu0 0
      %10555 = vmatpush2.bf16.msra.mxu0 0
      %10556 = vmatprep.subr.bf16.mxu0 0
      %10557 = vmatpush2.bf16.msra.mxu0 0
      %10558 = vmatprep.subr.bf16.mxu0 0
      %10559 = vmatpush2.bf16.msra.mxu0 0
      %10560 = vmatprep.subr.bf16.mxu0 0
      %10561 = vmatpush2.bf16.msra.mxu0 0
      %10562 = vmatprep.subr.bf16.mxu0 0
      %10563 = vmatpush2.bf16.msra.mxu0 0
      %10564 = vmatprep.subr.bf16.mxu0 0
      %10565 = vmatpush2.bf16.msra.mxu0 0
      %10566 = vmatprep.subr.bf16.mxu0 0
      %10567 = vmatpush2.bf16.msra.mxu0 0
      %10568 = vmatprep.mubr.bf16.mxu0 0
      %10569 = vmatmul.mubr.bf16.gmra.mxu0 %v10372
      %v10570 = vpop.f32.mrf.mxu0
      %v10571 = vadd.f32 0.0, %v10570
      %v10572 = vpop.f32.mrf.mxu0
      %v10573 = vadd.f32 0.0, %v10572
      %v10574 = vpop.f32.mrf.mxu0
      %v10575 = vadd.f32 0.0, %v10574
      %v10576 = vpop.f32.mrf.mxu0
      %v10577 = vadd.f32 0.0, %v10576
      %10578 = vmatprep.mubr.bf16.mxu0 0
      %10579 = vmatmul.mubr.bf16.gmra.mxu0 %v10375
      %v10580 = vpop.f32.mrf.mxu0
      %v10581 = vadd.f32 0.0, %v10580
      %v10582 = vpop.f32.mrf.mxu0
      %v10583 = vadd.f32 0.0, %v10582
      %v10584 = vpop.f32.mrf.mxu0
      %v10585 = vadd.f32 0.0, %v10584
      %v10586 = vpop.f32.mrf.mxu0
      %v10587 = vadd.f32 0.0, %v10586
      %10588 = vdwg.mxu0
      %v10589 = vadd.f32 %v10186, %v10412
      %v10590 = vadd.f32 %v10187, %v10414
      %v10591 = vadd.f32 %v10188, %v10465
      %v10592 = vadd.f32 %v10189, %v10467
      %v10593 = vadd.f32 %v10190, %v10518
      %v10594 = vadd.f32 %v10191, %v10520
      %v10595 = vadd.f32 %v10192, %v10571
      %v10596 = vadd.f32 %v10193, %v10573
      %v10597 = vadd.f32 %v10194, %v10416
      %v10598 = vadd.f32 %v10195, %v10418
      %v10599 = vadd.f32 %v10196, %v10469
      %v10600 = vadd.f32 %v10197, %v10471
      %v10601 = vadd.f32 %v10198, %v10522
      %v10602 = vadd.f32 %v10199, %v10524
      %v10603 = vadd.f32 %v10200, %v10575
      %v10604 = vadd.f32 %v10201, %v10577
      %v10605 = vadd.f32 %v10202, %v10422
      %v10606 = vadd.f32 %v10203, %v10424
      %v10607 = vadd.f32 %v10204, %v10475
      %v10608 = vadd.f32 %v10205, %v10477
      %v10609 = vadd.f32 %v10206, %v10528
      %v10610 = vadd.f32 %v10207, %v10530
      %v10611 = vadd.f32 %v10208, %v10581
      %v10612 = vadd.f32 %v10209, %v10583
      %v10613 = vadd.f32 %v10210, %v10426
      %v10614 = vadd.f32 %v10211, %v10428
      %v10615 = vadd.f32 %v10212, %v10479
      %v10616 = vadd.f32 %v10213, %v10481
      %v10617 = vadd.f32 %v10214, %v10532
      %v10618 = vadd.f32 %v10215, %v10534
      %v10619 = vadd.f32 %v10216, %v10585
      %v10620 = vadd.f32 %v10217, %v10587
      %10621 = vst [vmem:[%s657] sm:$0xff] %v10589
      %10622 = vst [vmem:[%s657 + $0x8] sm:$0xff] %v10590
      %10623 = vst [vmem:[%s657 + $0x10] sm:$0xff] %v10591
      %10624 = vst [vmem:[%s657 + $0x18] sm:$0xff] %v10592
      %10625 = vst [vmem:[%s657 + $0x20] sm:$0xff] %v10593
      %10626 = vst [vmem:[%s657 + $0x28] sm:$0xff] %v10594
      %10627 = vst [vmem:[%s657 + $0x30] sm:$0xff] %v10595
      %10628 = vst [vmem:[%s657 + $0x38] sm:$0xff] %v10596
      %10629 = vst [vmem:[%s657 + $0x40] sm:$0xff] %v10597
      %10630 = vst [vmem:[%s657 + $0x48] sm:$0xff] %v10598
      %10631 = vst [vmem:[%s657 + $0x50] sm:$0xff] %v10599
      %10632 = vst [vmem:[%s657 + $0x58] sm:$0xff] %v10600
      %10633 = vst [vmem:[%s657 + $0x60] sm:$0xff] %v10601
      %10634 = vst [vmem:[%s657 + $0x68] sm:$0xff] %v10602
      %10635 = vst [vmem:[%s657 + $0x70] sm:$0xff] %v10603
      %10636 = vst [vmem:[%s657 + $0x78] sm:$0xff] %v10604
      %10637 = vst [vmem:[%s657 + $0x80] sm:$0xff] %v10605
      %10638 = vst [vmem:[%s657 + $0x88] sm:$0xff] %v10606
      %10639 = vst [vmem:[%s657 + $0x90] sm:$0xff] %v10607
      %10640 = vst [vmem:[%s657 + $0x98] sm:$0xff] %v10608
      %10641 = vst [vmem:[%s657 + $0xa0] sm:$0xff] %v10609
      %10642 = vst [vmem:[%s657 + $0xa8] sm:$0xff] %v10610
      %10643 = vst [vmem:[%s657 + $0xb0] sm:$0xff] %v10611
      %10644 = vst [vmem:[%s657 + $0xb8] sm:$0xff] %v10612
      %10645 = vst [vmem:[%s657 + $0xc0] sm:$0xff] %v10613
      %10646 = vst [vmem:[%s657 + $0xc8] sm:$0xff] %v10614
      %10647 = vst [vmem:[%s657 + $0xd0] sm:$0xff] %v10615
      %10648 = vst [vmem:[%s657 + $0xd8] sm:$0xff] %v10616
      %10649 = vst [vmem:[%s657 + $0xe0] sm:$0xff] %v10617
      %10650 = vst [vmem:[%s657 + $0xe8] sm:$0xff] %v10618
      %10651 = vst [vmem:[%s657 + $0xf0] sm:$0xff] %v10619
      %10652 = vst [vmem:[%s657 + $0xf8] sm:$0xff] %v10620
      %p10653 = scmp.lt.s32.totalorder %s30, 1
      %s10654 = scalar_select %p10653, %s30, 1
      %s10655 = smul.addr %s10654, 32
      %s10656 = smul.addr %s10655, 8
      %s10657 = scalar_lea.vmem %s15, %s10656
      %p10658 = scmp.lt.s32.totalorder %s30, 1
      %s10659 = scalar_select %p10658, %s30, 1
      %s10660 = smul.addr %s10659, 8
      %s10661 = smul.addr %s10660, 8
      %s10662 = scalar_lea.vmem %s16, %s10661
      %p10663 = scmp.lt.s32.totalorder %s30, 1
      %s10664 = scalar_select %p10663, %s30, 1
      %s10665 = smul.addr %s10664, 4
      %s10666 = smul.addr %s10665, 8
      %s10667 = scalar_lea.vmem %s17, %s10666
      %p10668 = scmp.lt.s32.totalorder %s30, 1
      %s10669 = scalar_select %p10668, %s30, 1
      %s10670 = smul.addr %s10669, 4
      %s10671 = smul.addr %s10670, 8
      %s10672 = scalar_lea.vmem %s18, %s10671
      // Predicated region
      $region81: #{fpn_forward.1} parent=79 // pred_check
        %p10673 = pneg %p383
      $region82: #{fpn_forward.1} parent=79 // pred_check_branch
        %10675 = sbr.rel (%p10673) target = $region84
      $region83: #{fpn_forward.1} parent=79 // pred_region
        _
      $region84: #{fpn_forward.1} parent=79 // pred_fallthru
        _
      // Predicated region
      $region85: #{fpn_forward.1} parent=79 // pred_check
        %p10676 = pneg %p409
      $region86: #{fpn_forward.1} parent=79 // pred_check_branch
        %10678 = sbr.rel (%p10676) target = $region88
      $region87: #{fpn_forward.1} parent=79 // pred_region
        _
      $region88: #{fpn_forward.1} parent=79 // pred_fallthru
        _
      // Predicated region
      $region89: #{fpn_forward.1} parent=79 // pred_check
        %p10679 = pneg %p435
      $region90: #{fpn_forward.1} parent=79 // pred_check_branch
        %10681 = sbr.rel (%p10679) target = $region92
      $region91: #{fpn_forward.1} parent=79 // pred_region
        _
      $region92: #{fpn_forward.1} parent=79 // pred_fallthru
        _
      // Predicated region
      $region93: #{fpn_forward.1} parent=79 // pred_check
        %p10682 = pneg %p461
      $region94: #{fpn_forward.1} parent=79 // pred_check_branch
        %10684 = sbr.rel (%p10682) target = $region96
      $region95: #{fpn_forward.1} parent=79 // pred_region
        _
      $region96: #{fpn_forward.1} parent=79 // pred_fallthru
        _
    $region80: #{fpn_forward.1} parent=5 // pred_fallthru
      _
    %p10685 = scmp.le.s32.totalorder 2, %s25
    // Predicated region
    $region97: #{fpn_forward.1} parent=5 // pred_check
      %p10686 = pneg %p10685
    $region98: #{fpn_forward.1} parent=5 // pred_check_branch
      %10688 = sbr.rel (%p10686) target = $region100
    $region99: #{fpn_forward.1} parent=5 // pred_region
      %s10689 = ssub.s32 %s25, 2
      // Predicated region
      $region101: #{fpn_forward.1} parent=99 // pred_check
        %p10690 = pneg %p389
      $region102: #{fpn_forward.1} parent=99 // pred_check_branch
        %10692 = sbr.rel (%p10690) target = $region104
      $region103: #{fpn_forward.1} parent=99 // pred_region
        %p10693 = scmp.lt.s32.totalorder %s31, 1
        %s10694 = scalar_select %p10693, %s31, 1
        %s10695 = smul.addr %s10694, 32
        %s10696 = smul.addr %s10695, 8
        %s10697 = scalar_lea.vmem %s15, %s10696
      $region104: #{fpn_forward.1} parent=99 // pred_fallthru
        _
      // Predicated region
      $region105: #{fpn_forward.1} parent=99 // pred_check
        %p10698 = pneg %p415
      $region106: #{fpn_forward.1} parent=99 // pred_check_branch
        %10700 = sbr.rel (%p10698) target = $region108
      $region107: #{fpn_forward.1} parent=99 // pred_region
        %p10701 = scmp.lt.s32.totalorder %s31, 1
        %s10702 = scalar_select %p10701, %s31, 1
        %s10703 = smul.addr %s10702, 8
        %s10704 = smul.addr %s10703, 8
        %s10705 = scalar_lea.vmem %s16, %s10704
      $region108: #{fpn_forward.1} parent=99 // pred_fallthru
        _
      // Predicated region
      $region109: #{fpn_forward.1} parent=99 // pred_check
        %p10706 = pneg %p441
      $region110: #{fpn_forward.1} parent=99 // pred_check_branch
        %10708 = sbr.rel (%p10706) target = $region112
      $region111: #{fpn_forward.1} parent=99 // pred_region
        %p10709 = scmp.lt.s32.totalorder %s31, 1
        %s10710 = scalar_select %p10709, %s31, 1
        %s10711 = smul.addr %s10710, 4
        %s10712 = smul.addr %s10711, 8
        %s10713 = scalar_lea.vmem %s17, %s10712
      $region112: #{fpn_forward.1} parent=99 // pred_fallthru
        _
      // Predicated region
      $region113: #{fpn_forward.1} parent=99 // pred_check
        %p10714 = pneg %p467
      $region114: #{fpn_forward.1} parent=99 // pred_check_branch
        %10716 = sbr.rel (%p10714) target = $region116
      $region115: #{fpn_forward.1} parent=99 // pred_region
        %p10717 = scmp.lt.s32.totalorder %s31, 1
        %s10718 = scalar_select %p10717, %s31, 1
        %s10719 = smul.addr %s10718, 4
        %s10720 = smul.addr %s10719, 8
        %s10721 = scalar_lea.vmem %s18, %s10720
      $region116: #{fpn_forward.1} parent=99 // pred_fallthru
        _
    $region100: #{fpn_forward.1} parent=5 // pred_fallthru
      _
  $region6: #{fpn_forward.1} parent=0 // loop_footer
    %s29 = sadd.s32 1, %s25
  $region7: #{fpn_forward.1} parent=0 // loop_footer_branch
    %24 = sbr.rel target = $region3
  $region8: #{fpn_forward.1} parent=0 // loop_exit
    _

</llo_original>
